<compile_context>
chip_gen: v5e
topology: v5e:2x2
jax: 0.10.0
libtpu: 0.0.40
codegen_flags: <defaults>
</compile_context>

<pallas_src>
import functools

import jax
import jax.numpy as jnp
from jax.experimental import pallas as pl
from jax.experimental.pallas import tpu as pltpu


# ----------------------------------------------------------------------------- #
# Fused backbone kernel: one grid step == B_TILE images
# ----------------------------------------------------------------------------- #
def _yolo_lite_backbone_kernel(p1_ref, w1_ref, b1_ref, w2_ref, b2_ref,
                               w3_ref, b3_ref, w4_ref, b4_ref,
                               pred_ref,
                               slab2_ref, slab3_ref, pat2_ref, pat3_ref, pool_ref,
                               *, bt):
    f32 = jnp.float32
    bf16 = jnp.bfloat16

    # ---- zero only the pad-border strips of the persistent slabs (interiors are fully
    #      overwritten every step; unconditional => correct under megacore partitioning) ----
    slab2_ref[:, 0:1, :, :] = jnp.zeros((bt, 1, 32, 128), f32)
    slab2_ref[:, 17:18, :, :] = jnp.zeros((bt, 1, 32, 128), f32)
    slab2_ref[:, :, 0:8, :] = jnp.zeros((bt, 18, 8, 128), f32)
    slab2_ref[:, :, 24:32, :] = jnp.zeros((bt, 18, 8, 128), f32)
    slab3_ref[:, 0:1, :, :] = jnp.zeros((bt, 1, 24, 128), f32)
    slab3_ref[:, 9:10, :, :] = jnp.zeros((bt, 1, 24, 128), f32)
    slab3_ref[:, :, 0:8, :] = jnp.zeros((bt, 10, 8, 128), f32)
    slab3_ref[:, :, 16:24, :] = jnp.zeros((bt, 10, 8, 128), f32)

    # -------- conv1: single MXU dot over wrapper-built im2col patches (K=27 padded to 128) --------
    a1 = jnp.dot(p1_ref[...].reshape(bt * 1024, 128), w1_ref[...],
                 preferred_element_type=f32) + b1_ref[...]
    a1 = jnp.maximum(a1, 0.1 * a1)                                  # LeakyReLU(0.1), f32
    # 2x2 maxpool: vertical pairs via a free outer-dim reshape, horizontal pairs via
    # strided sublane reads of an f32 VMEM scratch (proven lowering path).
    y4 = a1.reshape(bt * 16, 2, 32, 128)
    pool_ref[0:bt * 512, :] = jnp.maximum(y4[:, 0], y4[:, 1]).reshape(bt * 512, 128)
    p1 = jnp.maximum(pool_ref[pl.ds(0, bt * 256, 2), :],
                     pool_ref[pl.ds(1, bt * 256, 2), :])            # (bt*256, 128) f32
    slab2_ref[:, 1:17, 8:24, :] = p1.reshape(bt, 16, 16, 128)       # aligned interior store

    # -------- conv2: pack the 9 taps into K (one dot, K = 9*128), no accumulator RMW --------
    for t in range(9):
        ky, kx = divmod(t, 3)
        pat2_ref[:, t * 128:(t + 1) * 128] = (
            slab2_ref[:, ky:ky + 16, 7 + kx:23 + kx, :].reshape(bt * 256, 128).astype(bf16))
    a2 = jnp.dot(pat2_ref[...], w2_ref[...], preferred_element_type=f32) + b2_ref[...]
    a2 = jnp.maximum(a2, 0.1 * a2)
    y4 = a2.reshape(bt * 8, 2, 16, 128)
    pool_ref[0:bt * 128, :] = jnp.maximum(y4[:, 0], y4[:, 1]).reshape(bt * 128, 128)
    p2 = jnp.maximum(pool_ref[pl.ds(0, bt * 64, 2), :],
                     pool_ref[pl.ds(1, bt * 64, 2), :])             # (bt*64, 128)
    slab3_ref[:, 1:9, 8:16, :] = p2.reshape(bt, 8, 8, 128)

    # -------- conv3: same packed-K single dot --------
    for t in range(9):
        ky, kx = divmod(t, 3)
        pat3_ref[:, t * 128:(t + 1) * 128] = (
            slab3_ref[:, ky:ky + 8, 7 + kx:15 + kx, :].reshape(bt * 64, 128).astype(bf16))
    a3 = jnp.dot(pat3_ref[...], w3_ref[...], preferred_element_type=f32) + b3_ref[...]
    a3 = jnp.maximum(a3, 0.1 * a3)
    y4 = a3.reshape(bt * 4, 2, 8, 128)
    pool_ref[0:bt * 32, :] = jnp.maximum(y4[:, 0], y4[:, 1]).reshape(bt * 32, 128)
    p3 = jnp.maximum(pool_ref[pl.ds(0, bt * 16, 2), :],
                     pool_ref[pl.ds(1, bt * 16, 2), :])             # (bt*16, 128): 4x4 cells

    # -------- 1x1 detection head + sigmoid (lane-dense output; loss is done in the wrapper) -----
    logits = jnp.dot(p3.astype(bf16), w4_ref[...], preferred_element_type=f32) + b4_ref[...]
    pred_ref[...] = jax.nn.sigmoid(logits).reshape(bt, 16, 128)


# ----------------------------------------------------------------------------- #
# Host-side packing: taps on the K dim, channels padded, bf16 dot operands
# ----------------------------------------------------------------------------- #
def _pack_conv1(w1, b1):
    # (3,3,3,16) -> (128,128); K-row = tap*3 + cin (matches wrapper im2col ordering).
    wp = jnp.zeros((128, 128), jnp.float32).at[:27, :16].set(w1.reshape(27, 16).astype(jnp.float32))
    bp = jnp.zeros((1, 128), jnp.float32).at[0, :16].set(b1.astype(jnp.float32))
    return wp.astype(jnp.bfloat16), bp


def _pack_conv3x3(w, b, cin, cout):
    # (3,3,cin,cout) -> (1152,128); K-row = tap*128 + cin (matches in-kernel packed patches).
    wp = jnp.zeros((9, 128, 128), jnp.float32).at[:, :cin, :cout].set(
        w.reshape(9, cin, cout).astype(jnp.float32))
    bp = jnp.zeros((1, 128), jnp.float32).at[0, :cout].set(b.astype(jnp.float32))
    return wp.reshape(1152, 128).astype(jnp.bfloat16), bp


def _pack_head(w4, b4):
    wp = jnp.zeros((128, 128), jnp.float32).at[:64, :14].set(w4.astype(jnp.float32))
    bp = jnp.zeros((1, 128), jnp.float32).at[0, :14].set(b4.astype(jnp.float32))
    return wp.astype(jnp.bfloat16), bp


def _im2col_conv1(x_nchw):
    # NCHW -> lane-dense (N, 1024, 128) bf16 im2col patches for the 3x3/pad-1 first conv.
    n = x_nchw.shape[0]
    x = jnp.transpose(x_nchw, (0, 2, 3, 1)).astype(jnp.float32)          # NHWC
    xp = jnp.pad(x, ((0, 0), (1, 1), (1, 1), (0, 0)))
    taps = [xp[:, ky:ky + 32, kx:kx + 32, :] for ky in range(3) for kx in range(3)]
    pat = jnp.concatenate(taps, axis=-1).reshape(n, 1024, 27)            # tap-major, cin-minor
    pat = jnp.pad(pat, ((0, 0), (0, 0), (0, 128 - 27)))
    return pat.astype(jnp.bfloat16)


def _pick_b_tile(n):
    # Keep >=2 grid steps when possible (both v7x TCs busy) with modest VMEM growth.
    for bt in (8, 4, 2):
        if n % bt == 0 and n // bt >= 2:
            return bt
    return 1


# ----------------------------------------------------------------------------- #
# YOLOv1-style loss (hoisted to the wrapper per review; negligible in XLA)
# ----------------------------------------------------------------------------- #
def _yolo_loss(pred, targ, *, s_grid, l_coord=5.0, l_noobj=0.5):
    P = pred.astype(jnp.float32)                     # (N, S*S, 14)
    T = targ.astype(jnp.float32)
    coo = (T[..., 4:5] > 0).astype(jnp.float32)
    noo = 1.0 - coo

    noo_loss = jnp.sum(noo * ((P[..., 4:5] - T[..., 4:5]) ** 2
                              + (P[..., 9:10] - T[..., 9:10]) ** 2))

    txy, twh = T[..., 0:2], T[..., 2:4]

    def iou_with_target(xy, wh):
        lt = jnp.maximum(xy / s_grid - 0.5 * wh, txy / s_grid - 0.5 * twh)
        rb = jnp.minimum(xy / s_grid + 0.5 * wh, txy / s_grid + 0.5 * twh)
        whi = jnp.maximum(rb - lt, 0.0)
        inter = whi[..., 0:1] * whi[..., 1:2]
        a1 = wh[..., 0:1] * wh[..., 1:2]
        a2 = twh[..., 0:1] * twh[..., 1:2]
        return inter / jnp.maximum(a1 + a2 - inter, 1e-10)

    iou1 = iou_with_target(P[..., 0:2], P[..., 2:4])
    iou2 = iou_with_target(P[..., 5:7], P[..., 7:9])
    resp1 = jax.lax.stop_gradient(iou1 >= iou2)                  # responsible-box select (detached)
    max_iou = jax.lax.stop_gradient(jnp.maximum(iou1, iou2))

    xy_r = jnp.where(resp1, P[..., 0:2], P[..., 5:7])
    wh_r = jnp.where(resp1, P[..., 2:4], P[..., 7:9])
    c_r = jnp.where(resp1, P[..., 4:5], P[..., 9:10])
    c_nr = jnp.where(resp1, P[..., 9:10], P[..., 4:5])

    eps = 1e-10                                                  # keeps sqrt grad finite
    loc_loss = (jnp.sum(coo * (xy_r - txy) ** 2)
                + jnp.sum(coo * (jnp.sqrt(jnp.maximum(wh_r, eps))
                                 - jnp.sqrt(jnp.maximum(twh, eps))) ** 2))
    contain_loss = jnp.sum(coo * (c_r - max_iou) ** 2)
    not_contain_loss = jnp.sum(coo * c_nr ** 2)
    class_loss = jnp.sum(coo * (P[..., 10:14] - T[..., 10:14]) ** 2)

    n = P.shape[0]
    return (l_coord * loc_loss + 2.0 * contain_loss + not_contain_loss
            + l_noobj * noo_loss + class_loss) / n


# ----------------------------------------------------------------------------- #
# Model params + forward: YOLOLiteTrainer.forward(x, y) = yoloLoss(YOLOLite(x), y)
# ----------------------------------------------------------------------------- #
def init_params(key):
    ks = jax.random.split(key, 4)
    scale = 0.1
    return {
        "w1": scale * jax.random.normal(ks[0], (3, 3, 3, 16), jnp.float32),
        "b1": jnp.zeros((16,), jnp.float32),
        "w2": scale * jax.random.normal(ks[1], (3, 3, 16, 32), jnp.float32),
        "b2": jnp.zeros((32,), jnp.float32),
        "w3": scale * jax.random.normal(ks[2], (3, 3, 32, 64), jnp.float32),
        "b3": jnp.zeros((64,), jnp.float32),
        "w4": scale * jax.random.normal(ks[3], (64, 14), jnp.float32),   # 1x1 head: 64 -> 2*5+4
        "b4": jnp.zeros((14,), jnp.float32),
    }


def yolo_lite_trainer_forward(params, x_nchw, y):
    n, cin, hh, ww = x_nchw.shape
    assert (cin, hh, ww) == (3, 32, 32), "kernel instantiated for 3x32x32 inputs"
    b_tile = _pick_b_tile(n)
    assert n % b_tile == 0

    patches1 = _im2col_conv1(x_nchw)                              # (N, 1024, 128) bf16
    w1p, b1p = _pack_conv1(params["w1"], params["b1"])
    w2p, b2p = _pack_conv3x3(params["w2"], params["b2"], 16, 32)
    w3p, b3p = _pack_conv3x3(params["w3"], params["b3"], 32, 64)
    w4p, b4p = _pack_head(params["w4"], params["b4"])

    kernel = functools.partial(_yolo_lite_backbone_kernel, bt=b_tile)

    pred = pl.pallas_call(
        kernel,
        out_shape=jax.ShapeDtypeStruct((n, 16, 128), jnp.float32),
        grid=(n // b_tile,),
        in_specs=[
            pl.BlockSpec((b_tile, 1024, 128), lambda i: (i, 0, 0)),   # conv1 im2col patches
            pl.BlockSpec((128, 128), lambda i: (0, 0)),               # conv1 packed weight
            pl.BlockSpec((1, 128), lambda i: (0, 0)),
            pl.BlockSpec((1152, 128), lambda i: (0, 0)),              # conv2 taps packed on K
            pl.BlockSpec((1, 128), lambda i: (0, 0)),
            pl.BlockSpec((1152, 128), lambda i: (0, 0)),              # conv3 taps packed on K
            pl.BlockSpec((1, 128), lambda i: (0, 0)),
            pl.BlockSpec((128, 128), lambda i: (0, 0)),               # 1x1 head
            pl.BlockSpec((1, 128), lambda i: (0, 0)),
        ],
        out_specs=pl.BlockSpec((b_tile, 16, 128), lambda i: (i, 0, 0)),
        scratch_shapes=[
            pltpu.VMEM((b_tile, 18, 32, 128), jnp.float32),           # padded conv2 input slab
            pltpu.VMEM((b_tile, 10, 24, 128), jnp.float32),           # padded conv3 input slab
            pltpu.VMEM((b_tile * 256, 1152), jnp.bfloat16),           # conv2 packed patches
            pltpu.VMEM((b_tile * 64, 1152), jnp.bfloat16),            # conv3 packed patches
            pltpu.VMEM((b_tile * 512, 128), jnp.float32),             # maxpool temp
        ],
        compiler_params=pltpu.CompilerParams(
            dimension_semantics=("parallel",),                        # shard batch over v7x's 2 TCs
            vmem_limit_bytes=48 * 1024 * 1024),
    )(patches1, w1p, b1p, w2p, b2p, w3p, b3p, w4p, b4p)

    s_grid = hh // 8                                                  # 4x4 output grid
    targ = y.reshape(n, s_grid * s_grid, y.shape[-1])
    return _yolo_loss(pred[:, :, :14], targ, s_grid=float(s_grid))


if __name__ == "__main__":
    key = jax.random.PRNGKey(0)
    x = jax.random.normal(key, (2, 3, 32, 32), jnp.float32)           # NCHW image batch

    # Target tensor y: (N, S, S, B*5 + C_cls) = (2, 4, 4, 14), two cells carry objects.
    y = jnp.zeros((2, 4, 4, 14), jnp.float32)
    y = y.at[0, 1, 2, :].set(jnp.array(
        [0.5, 0.5, 0.3, 0.4, 1.0, 0.5, 0.5, 0.3, 0.4, 1.0, 0., 1., 0., 0.], jnp.float32))
    y = y.at[1, 3, 0, :].set(jnp.array(
        [0.2, 0.7, 0.6, 0.5, 1.0, 0.2, 0.7, 0.6, 0.5, 1.0, 0., 0., 0., 1.], jnp.float32))

    params = init_params(jax.random.PRNGKey(42))

    loss = jax.jit(yolo_lite_trainer_forward)(params, x, y)
    loss = jax.block_until_ready(loss)
    assert loss.shape == () and bool(jnp.isfinite(loss)), f"bad loss: {loss}"
    print("KERNEL_OK")
</pallas_src>

<mosaic_0001>
module attributes {stable_mosaic.version = 11 : i64} {
  func.func @_yolo_lite_backbone_kernel(%arg0: i32, %arg1: memref<1x1024x128xbf16, #tpu.memory_space<vmem>>, %arg2: memref<128x128xbf16, #tpu.memory_space<vmem>>, %arg3: memref<1x128xf32, #tpu.memory_space<vmem>>, %arg4: memref<1152x128xbf16, #tpu.memory_space<vmem>>, %arg5: memref<1x128xf32, #tpu.memory_space<vmem>>, %arg6: memref<1152x128xbf16, #tpu.memory_space<vmem>>, %arg7: memref<1x128xf32, #tpu.memory_space<vmem>>, %arg8: memref<128x128xbf16, #tpu.memory_space<vmem>>, %arg9: memref<1x128xf32, #tpu.memory_space<vmem>>, %arg10: memref<1x16x128xf32, #tpu.memory_space<vmem>>, %arg11: memref<1x18x32x128xf32, #tpu.memory_space<vmem>>, %arg12: memref<1x10x24x128xf32, #tpu.memory_space<vmem>>, %arg13: memref<256x1152xbf16, #tpu.memory_space<vmem>>, %arg14: memref<64x1152xbf16, #tpu.memory_space<vmem>>, %arg15: memref<512x128xf32, #tpu.memory_space<vmem>>) attributes {dimension_semantics = [#tpu.dimension_semantics<parallel>], iteration_bounds = array<i64: 2>, scalar_prefetch = 0 : i64, scratch_operands = 5 : i64, tpu.core_type = #tpu.core_type<tc>, window_params = [{transform_indices = @transform_0, window_bounds = array<i64: 1, 1024, 128>}, {pipeline_mode = #tpu.pipeline_mode<synchronous>, transform_indices = @transform_1, window_bounds = array<i64: 128, 128>}, {pipeline_mode = #tpu.pipeline_mode<synchronous>, transform_indices = @transform_2, window_bounds = array<i64: 1, 128>}, {pipeline_mode = #tpu.pipeline_mode<synchronous>, transform_indices = @transform_3, window_bounds = array<i64: 1152, 128>}, {pipeline_mode = #tpu.pipeline_mode<synchronous>, transform_indices = @transform_4, window_bounds = array<i64: 1, 128>}, {pipeline_mode = #tpu.pipeline_mode<synchronous>, transform_indices = @transform_5, window_bounds = array<i64: 1152, 128>}, {pipeline_mode = #tpu.pipeline_mode<synchronous>, transform_indices = @transform_6, window_bounds = array<i64: 1, 128>}, {pipeline_mode = #tpu.pipeline_mode<synchronous>, transform_indices = @transform_7, window_bounds = array<i64: 128, 128>}, {pipeline_mode = #tpu.pipeline_mode<synchronous>, transform_indices = @transform_8, window_bounds = array<i64: 1, 128>}, {transform_indices = @transform_9, window_bounds = array<i64: 1, 16, 128>}]} {
    %cst = arith.constant 0.000000e+00 : f32
    %0 = vector.broadcast %cst : f32 to vector<1x1x32x128xf32>
    %c0 = arith.constant 0 : index
    %c0_0 = arith.constant 0 : index
    %c0_1 = arith.constant 0 : index
    %c0_2 = arith.constant 0 : index
    %1 = vector.load %arg11[%c0, %c0_0, %c0_1, %c0_2] : memref<1x18x32x128xf32, #tpu.memory_space<vmem>>, vector<1x1x32x128xf32>
    tpu.vector_store %arg11[%c0, %c0_0, %c0_1, %c0_2], %0 {strides = array<i32>} : memref<1x18x32x128xf32, #tpu.memory_space<vmem>>, vector<1x1x32x128xf32>,
    %cst_3 = arith.constant 0.000000e+00 : f32
    %2 = vector.broadcast %cst_3 : f32 to vector<1x1x32x128xf32>
    %c0_4 = arith.constant 0 : index
    %c17 = arith.constant 17 : index
    %c0_5 = arith.constant 0 : index
    %c0_6 = arith.constant 0 : index
    %3 = vector.load %arg11[%c0_4, %c17, %c0_5, %c0_6] : memref<1x18x32x128xf32, #tpu.memory_space<vmem>>, vector<1x1x32x128xf32>
    tpu.vector_store %arg11[%c0_4, %c17, %c0_5, %c0_6], %2 {strides = array<i32>} : memref<1x18x32x128xf32, #tpu.memory_space<vmem>>, vector<1x1x32x128xf32>,
    %cst_7 = arith.constant 0.000000e+00 : f32
    %4 = vector.broadcast %cst_7 : f32 to vector<1x18x8x128xf32>
    %c0_8 = arith.constant 0 : index
    %c0_9 = arith.constant 0 : index
    %c0_10 = arith.constant 0 : index
    %c0_11 = arith.constant 0 : index
    %5 = vector.load %arg11[%c0_8, %c0_9, %c0_10, %c0_11] : memref<1x18x32x128xf32, #tpu.memory_space<vmem>>, vector<1x18x8x128xf32>
    tpu.vector_store %arg11[%c0_8, %c0_9, %c0_10, %c0_11], %4 {strides = array<i32>} : memref<1x18x32x128xf32, #tpu.memory_space<vmem>>, vector<1x18x8x128xf32>,
    %cst_12 = arith.constant 0.000000e+00 : f32
    %6 = vector.broadcast %cst_12 : f32 to vector<1x18x8x128xf32>
    %c0_13 = arith.constant 0 : index
    %c0_14 = arith.constant 0 : index
    %c24 = arith.constant 24 : index
    %c0_15 = arith.constant 0 : index
    %7 = vector.load %arg11[%c0_13, %c0_14, %c24, %c0_15] : memref<1x18x32x128xf32, #tpu.memory_space<vmem>>, vector<1x18x8x128xf32>
    tpu.vector_store %arg11[%c0_13, %c0_14, %c24, %c0_15], %6 {strides = array<i32>} : memref<1x18x32x128xf32, #tpu.memory_space<vmem>>, vector<1x18x8x128xf32>,
    %cst_16 = arith.constant 0.000000e+00 : f32
    %8 = vector.broadcast %cst_16 : f32 to vector<1x1x24x128xf32>
    %c0_17 = arith.constant 0 : index
    %c0_18 = arith.constant 0 : index
    %c0_19 = arith.constant 0 : index
    %c0_20 = arith.constant 0 : index
    %9 = vector.load %arg12[%c0_17, %c0_18, %c0_19, %c0_20] : memref<1x10x24x128xf32, #tpu.memory_space<vmem>>, vector<1x1x24x128xf32>
    tpu.vector_store %arg12[%c0_17, %c0_18, %c0_19, %c0_20], %8 {strides = array<i32>} : memref<1x10x24x128xf32, #tpu.memory_space<vmem>>, vector<1x1x24x128xf32>,
    %cst_21 = arith.constant 0.000000e+00 : f32
    %10 = vector.broadcast %cst_21 : f32 to vector<1x1x24x128xf32>
    %c0_22 = arith.constant 0 : index
    %c9 = arith.constant 9 : index
    %c0_23 = arith.constant 0 : index
    %c0_24 = arith.constant 0 : index
    %11 = vector.load %arg12[%c0_22, %c9, %c0_23, %c0_24] : memref<1x10x24x128xf32, #tpu.memory_space<vmem>>, vector<1x1x24x128xf32>
    tpu.vector_store %arg12[%c0_22, %c9, %c0_23, %c0_24], %10 {strides = array<i32>} : memref<1x10x24x128xf32, #tpu.memory_space<vmem>>, vector<1x1x24x128xf32>,
    %cst_25 = arith.constant 0.000000e+00 : f32
    %12 = vector.broadcast %cst_25 : f32 to vector<1x10x8x128xf32>
    %c0_26 = arith.constant 0 : index
    %c0_27 = arith.constant 0 : index
    %c0_28 = arith.constant 0 : index
    %c0_29 = arith.constant 0 : index
    %13 = vector.load %arg12[%c0_26, %c0_27, %c0_28, %c0_29] : memref<1x10x24x128xf32, #tpu.memory_space<vmem>>, vector<1x10x8x128xf32>
    tpu.vector_store %arg12[%c0_26, %c0_27, %c0_28, %c0_29], %12 {strides = array<i32>} : memref<1x10x24x128xf32, #tpu.memory_space<vmem>>, vector<1x10x8x128xf32>,
    %cst_30 = arith.constant 0.000000e+00 : f32
    %14 = vector.broadcast %cst_30 : f32 to vector<1x10x8x128xf32>
    %c0_31 = arith.constant 0 : index
    %c0_32 = arith.constant 0 : index
    %c16 = arith.constant 16 : index
    %c0_33 = arith.constant 0 : index
    %15 = vector.load %arg12[%c0_31, %c0_32, %c16, %c0_33] : memref<1x10x24x128xf32, #tpu.memory_space<vmem>>, vector<1x10x8x128xf32>
    tpu.vector_store %arg12[%c0_31, %c0_32, %c16, %c0_33], %14 {strides = array<i32>} : memref<1x10x24x128xf32, #tpu.memory_space<vmem>>, vector<1x10x8x128xf32>,
    %c0_34 = arith.constant 0 : index
    %c0_35 = arith.constant 0 : index
    %c0_36 = arith.constant 0 : index
    %16 = vector.load %arg1[%c0_34, %c0_35, %c0_36] : memref<1x1024x128xbf16, #tpu.memory_space<vmem>>, vector<1x1024x128xbf16>
    %17 = vector.shape_cast %16 : vector<1x1024x128xbf16> to vector<1024x128xbf16>
    %c0_37 = arith.constant 0 : index
    %c0_38 = arith.constant 0 : index
    %18 = vector.load %arg2[%c0_37, %c0_38] : memref<128x128xbf16, #tpu.memory_space<vmem>>, vector<128x128xbf16>
    %cst_39 = arith.constant dense<0.000000e+00> : vector<1024x128xf32>
    %19 = tpu.matmul %17, %18, %cst_39 {dimension_numbers = #tpu.dot_dimension_numbers<[1], [0], [0], [1], [0, 0, 1, 1], [], []>} : vector<1024x128xbf16>, vector<128x128xbf16>, vector<1024x128xf32> -> vector<1024x128xf32>
    %c0_40 = arith.constant 0 : index
    %c0_41 = arith.constant 0 : index
    %20 = vector.load %arg3[%c0_40, %c0_41] : memref<1x128xf32, #tpu.memory_space<vmem>>, vector<1x128xf32>
    %21 = vector.broadcast %20 : vector<1x128xf32> to vector<1024x128xf32>
    %22 = arith.addf %19, %21 : vector<1024x128xf32>
    %cst_42 = arith.constant 1.000000e-01 : f32
    %23 = vector.broadcast %cst_42 : f32 to vector<1024x128xf32>
    %24 = arith.mulf %23, %22 : vector<1024x128xf32>
    %25 = arith.maximumf %22, %24 : vector<1024x128xf32>
    %26 = vector.shape_cast %25 : vector<1024x128xf32> to vector<16x2x32x128xf32>
    %27 = vector.extract_strided_slice %26 {offsets = [0, 0, 0, 0], sizes = [16, 1, 32, 128], strides = [1, 1, 1, 1]} : vector<16x2x32x128xf32> to vector<16x1x32x128xf32>
    %28 = vector.shape_cast %27 : vector<16x1x32x128xf32> to vector<16x32x128xf32>
    %29 = vector.extract_strided_slice %26 {offsets = [0, 1, 0, 0], sizes = [16, 1, 32, 128], strides = [1, 1, 1, 1]} : vector<16x2x32x128xf32> to vector<16x1x32x128xf32>
    %30 = vector.shape_cast %29 : vector<16x1x32x128xf32> to vector<16x32x128xf32>
    %31 = arith.maximumf %28, %30 : vector<16x32x128xf32>
    %32 = vector.shape_cast %31 : vector<16x32x128xf32> to vector<512x128xf32>
    %c0_43 = arith.constant 0 : index
    %c0_44 = arith.constant 0 : index
    %33 = vector.load %arg15[%c0_43, %c0_44] : memref<512x128xf32, #tpu.memory_space<vmem>>, vector<512x128xf32>
    tpu.vector_store %arg15[%c0_43, %c0_44], %32 {strides = array<i32>} : memref<512x128xf32, #tpu.memory_space<vmem>>, vector<512x128xf32>,
    %c0_45 = arith.constant 0 : index
    %c0_46 = arith.constant 0 : index
    %34 = tpu.strided_load %arg15[%c0_45, %c0_46] {strides = array<i32: 2, 1>} : memref<512x128xf32, #tpu.memory_space<vmem>>, vector<256x128xf32>
    %c1 = arith.constant 1 : index
    %c0_47 = arith.constant 0 : index
    %35 = tpu.strided_load %arg15[%c1, %c0_47] {strides = array<i32: 2, 1>} : memref<512x128xf32, #tpu.memory_space<vmem>>, vector<256x128xf32>
    %36 = arith.maximumf %34, %35 : vector<256x128xf32>
    %37 = vector.shape_cast %36 : vector<256x128xf32> to vector<1x16x16x128xf32>
    %c0_48 = arith.constant 0 : index
    %c1_49 = arith.constant 1 : index
    %c8 = arith.constant 8 : index
    %c0_50 = arith.constant 0 : index
    %38 = vector.load %arg11[%c0_48, %c1_49, %c8, %c0_50] : memref<1x18x32x128xf32, #tpu.memory_space<vmem>>, vector<1x16x16x128xf32>
    tpu.vector_store %arg11[%c0_48, %c1_49, %c8, %c0_50], %37 {strides = array<i32>} : memref<1x18x32x128xf32, #tpu.memory_space<vmem>>, vector<1x16x16x128xf32>,
    %c0_51 = arith.constant 0 : index
    %c0_52 = arith.constant 0 : index
    %c7 = arith.constant 7 : index
    %c0_53 = arith.constant 0 : index
    %39 = vector.load %arg11[%c0_51, %c0_52, %c7, %c0_53] : memref<1x18x32x128xf32, #tpu.memory_space<vmem>>, vector<1x16x16x128xf32>
    %40 = vector.shape_cast %39 : vector<1x16x16x128xf32> to vector<256x128xf32>
    %41 = arith.truncf %40 : vector<256x128xf32> to vector<256x128xbf16>
    %c0_54 = arith.constant 0 : index
    %c0_55 = arith.constant 0 : index
    %42 = vector.load %arg13[%c0_54, %c0_55] : memref<256x1152xbf16, #tpu.memory_space<vmem>>, vector<256x128xbf16>
    tpu.vector_store %arg13[%c0_54, %c0_55], %41 {strides = array<i32>} : memref<256x1152xbf16, #tpu.memory_space<vmem>>, vector<256x128xbf16>,
    %c0_56 = arith.constant 0 : index
    %c0_57 = arith.constant 0 : index
    %c8_58 = arith.constant 8 : index
    %c0_59 = arith.constant 0 : index
    %43 = vector.load %arg11[%c0_56, %c0_57, %c8_58, %c0_59] : memref<1x18x32x128xf32, #tpu.memory_space<vmem>>, vector<1x16x16x128xf32>
    %44 = vector.shape_cast %43 : vector<1x16x16x128xf32> to vector<256x128xf32>
    %45 = arith.truncf %44 : vector<256x128xf32> to vector<256x128xbf16>
    %c0_60 = arith.constant 0 : index
    %c128 = arith.constant 128 : index
    %46 = vector.load %arg13[%c0_60, %c128] : memref<256x1152xbf16, #tpu.memory_space<vmem>>, vector<256x128xbf16>
    tpu.vector_store %arg13[%c0_60, %c128], %45 {strides = array<i32>} : memref<256x1152xbf16, #tpu.memory_space<vmem>>, vector<256x128xbf16>,
    %c0_61 = arith.constant 0 : index
    %c0_62 = arith.constant 0 : index
    %c9_63 = arith.constant 9 : index
    %c0_64 = arith.constant 0 : index
    %47 = vector.load %arg11[%c0_61, %c0_62, %c9_63, %c0_64] : memref<1x18x32x128xf32, #tpu.memory_space<vmem>>, vector<1x16x16x128xf32>
    %48 = vector.shape_cast %47 : vector<1x16x16x128xf32> to vector<256x128xf32>
    %49 = arith.truncf %48 : vector<256x128xf32> to vector<256x128xbf16>
    %c0_65 = arith.constant 0 : index
    %c256 = arith.constant 256 : index
    %50 = vector.load %arg13[%c0_65, %c256] : memref<256x1152xbf16, #tpu.memory_space<vmem>>, vector<256x128xbf16>
    tpu.vector_store %arg13[%c0_65, %c256], %49 {strides = array<i32>} : memref<256x1152xbf16, #tpu.memory_space<vmem>>, vector<256x128xbf16>,
    %c0_66 = arith.constant 0 : index
    %c1_67 = arith.constant 1 : index
    %c7_68 = arith.constant 7 : index
    %c0_69 = arith.constant 0 : index
    %51 = vector.load %arg11[%c0_66, %c1_67, %c7_68, %c0_69] : memref<1x18x32x128xf32, #tpu.memory_space<vmem>>, vector<1x16x16x128xf32>
    %52 = vector.shape_cast %51 : vector<1x16x16x128xf32> to vector<256x128xf32>
    %53 = arith.truncf %52 : vector<256x128xf32> to vector<256x128xbf16>
    %c0_70 = arith.constant 0 : index
    %c384 = arith.constant 384 : index
    %54 = vector.load %arg13[%c0_70, %c384] : memref<256x1152xbf16, #tpu.memory_space<vmem>>, vector<256x128xbf16>
    tpu.vector_store %arg13[%c0_70, %c384], %53 {strides = array<i32>} : memref<256x1152xbf16, #tpu.memory_space<vmem>>, vector<256x128xbf16>,
    %c0_71 = arith.constant 0 : index
    %c1_72 = arith.constant 1 : index
    %c8_73 = arith.constant 8 : index
    %c0_74 = arith.constant 0 : index
    %55 = vector.load %arg11[%c0_71, %c1_72, %c8_73, %c0_74] : memref<1x18x32x128xf32, #tpu.memory_space<vmem>>, vector<1x16x16x128xf32>
    %56 = vector.shape_cast %55 : vector<1x16x16x128xf32> to vector<256x128xf32>
    %57 = arith.truncf %56 : vector<256x128xf32> to vector<256x128xbf16>
    %c0_75 = arith.constant 0 : index
    %c512 = arith.constant 512 : index
    %58 = vector.load %arg13[%c0_75, %c512] : memref<256x1152xbf16, #tpu.memory_space<vmem>>, vector<256x128xbf16>
    tpu.vector_store %arg13[%c0_75, %c512], %57 {strides = array<i32>} : memref<256x1152xbf16, #tpu.memory_space<vmem>>, vector<256x128xbf16>,
    %c0_76 = arith.constant 0 : index
    %c1_77 = arith.constant 1 : index
    %c9_78 = arith.constant 9 : index
    %c0_79 = arith.constant 0 : index
    %59 = vector.load %arg11[%c0_76, %c1_77, %c9_78, %c0_79] : memref<1x18x32x128xf32, #tpu.memory_space<vmem>>, vector<1x16x16x128xf32>
    %60 = vector.shape_cast %59 : vector<1x16x16x128xf32> to vector<256x128xf32>
    %61 = arith.truncf %60 : vector<256x128xf32> to vector<256x128xbf16>
    %c0_80 = arith.constant 0 : index
    %c640 = arith.constant 640 : index
    %62 = vector.load %arg13[%c0_80, %c640] : memref<256x1152xbf16, #tpu.memory_space<vmem>>, vector<256x128xbf16>
    tpu.vector_store %arg13[%c0_80, %c640], %61 {strides = array<i32>} : memref<256x1152xbf16, #tpu.memory_space<vmem>>, vector<256x128xbf16>,
    %c0_81 = arith.constant 0 : index
    %c2 = arith.constant 2 : index
    %c7_82 = arith.constant 7 : index
    %c0_83 = arith.constant 0 : index
    %63 = vector.load %arg11[%c0_81, %c2, %c7_82, %c0_83] : memref<1x18x32x128xf32, #tpu.memory_space<vmem>>, vector<1x16x16x128xf32>
    %64 = vector.shape_cast %63 : vector<1x16x16x128xf32> to vector<256x128xf32>
    %65 = arith.truncf %64 : vector<256x128xf32> to vector<256x128xbf16>
    %c0_84 = arith.constant 0 : index
    %c768 = arith.constant 768 : index
    %66 = vector.load %arg13[%c0_84, %c768] : memref<256x1152xbf16, #tpu.memory_space<vmem>>, vector<256x128xbf16>
    tpu.vector_store %arg13[%c0_84, %c768], %65 {strides = array<i32>} : memref<256x1152xbf16, #tpu.memory_space<vmem>>, vector<256x128xbf16>,
    %c0_85 = arith.constant 0 : index
    %c2_86 = arith.constant 2 : index
    %c8_87 = arith.constant 8 : index
    %c0_88 = arith.constant 0 : index
    %67 = vector.load %arg11[%c0_85, %c2_86, %c8_87, %c0_88] : memref<1x18x32x128xf32, #tpu.memory_space<vmem>>, vector<1x16x16x128xf32>
    %68 = vector.shape_cast %67 : vector<1x16x16x128xf32> to vector<256x128xf32>
    %69 = arith.truncf %68 : vector<256x128xf32> to vector<256x128xbf16>
    %c0_89 = arith.constant 0 : index
    %c896 = arith.constant 896 : index
    %70 = vector.load %arg13[%c0_89, %c896] : memref<256x1152xbf16, #tpu.memory_space<vmem>>, vector<256x128xbf16>
    tpu.vector_store %arg13[%c0_89, %c896], %69 {strides = array<i32>} : memref<256x1152xbf16, #tpu.memory_space<vmem>>, vector<256x128xbf16>,
    %c0_90 = arith.constant 0 : index
    %c2_91 = arith.constant 2 : index
    %c9_92 = arith.constant 9 : index
    %c0_93 = arith.constant 0 : index
    %71 = vector.load %arg11[%c0_90, %c2_91, %c9_92, %c0_93] : memref<1x18x32x128xf32, #tpu.memory_space<vmem>>, vector<1x16x16x128xf32>
    %72 = vector.shape_cast %71 : vector<1x16x16x128xf32> to vector<256x128xf32>
    %73 = arith.truncf %72 : vector<256x128xf32> to vector<256x128xbf16>
    %c0_94 = arith.constant 0 : index
    %c1024 = arith.constant 1024 : index
    %74 = vector.load %arg13[%c0_94, %c1024] : memref<256x1152xbf16, #tpu.memory_space<vmem>>, vector<256x128xbf16>
    tpu.vector_store %arg13[%c0_94, %c1024], %73 {strides = array<i32>} : memref<256x1152xbf16, #tpu.memory_space<vmem>>, vector<256x128xbf16>,
    %c0_95 = arith.constant 0 : index
    %c0_96 = arith.constant 0 : index
    %75 = vector.load %arg13[%c0_95, %c0_96] : memref<256x1152xbf16, #tpu.memory_space<vmem>>, vector<256x1152xbf16>
    %c0_97 = arith.constant 0 : index
    %c0_98 = arith.constant 0 : index
    %76 = vector.load %arg4[%c0_97, %c0_98] : memref<1152x128xbf16, #tpu.memory_space<vmem>>, vector<1152x128xbf16>
    %cst_99 = arith.constant dense<0.000000e+00> : vector<256x128xf32>
    %77 = tpu.matmul %75, %76, %cst_99 {dimension_numbers = #tpu.dot_dimension_numbers<[1], [0], [0], [1], [0, 0, 1, 1], [], []>} : vector<256x1152xbf16>, vector<1152x128xbf16>, vector<256x128xf32> -> vector<256x128xf32>
    %c0_100 = arith.constant 0 : index
    %c0_101 = arith.constant 0 : index
    %78 = vector.load %arg5[%c0_100, %c0_101] : memref<1x128xf32, #tpu.memory_space<vmem>>, vector<1x128xf32>
    %79 = vector.broadcast %78 : vector<1x128xf32> to vector<256x128xf32>
    %80 = arith.addf %77, %79 : vector<256x128xf32>
    %cst_102 = arith.constant 1.000000e-01 : f32
    %81 = vector.broadcast %cst_102 : f32 to vector<256x128xf32>
    %82 = arith.mulf %81, %80 : vector<256x128xf32>
    %83 = arith.maximumf %80, %82 : vector<256x128xf32>
    %84 = vector.shape_cast %83 : vector<256x128xf32> to vector<8x2x16x128xf32>
    %85 = vector.extract_strided_slice %84 {offsets = [0, 0, 0, 0], sizes = [8, 1, 16, 128], strides = [1, 1, 1, 1]} : vector<8x2x16x128xf32> to vector<8x1x16x128xf32>
    %86 = vector.shape_cast %85 : vector<8x1x16x128xf32> to vector<8x16x128xf32>
    %87 = vector.extract_strided_slice %84 {offsets = [0, 1, 0, 0], sizes = [8, 1, 16, 128], strides = [1, 1, 1, 1]} : vector<8x2x16x128xf32> to vector<8x1x16x128xf32>
    %88 = vector.shape_cast %87 : vector<8x1x16x128xf32> to vector<8x16x128xf32>
    %89 = arith.maximumf %86, %88 : vector<8x16x128xf32>
    %90 = vector.shape_cast %89 : vector<8x16x128xf32> to vector<128x128xf32>
    %c0_103 = arith.constant 0 : index
    %c0_104 = arith.constant 0 : index
    %91 = vector.load %arg15[%c0_103, %c0_104] : memref<512x128xf32, #tpu.memory_space<vmem>>, vector<128x128xf32>
    tpu.vector_store %arg15[%c0_103, %c0_104], %90 {strides = array<i32>} : memref<512x128xf32, #tpu.memory_space<vmem>>, vector<128x128xf32>,
    %c0_105 = arith.constant 0 : index
    %c0_106 = arith.constant 0 : index
    %92 = tpu.strided_load %arg15[%c0_105, %c0_106] {strides = array<i32: 2, 1>} : memref<512x128xf32, #tpu.memory_space<vmem>>, vector<64x128xf32>
    %c1_107 = arith.constant 1 : index
    %c0_108 = arith.constant 0 : index
    %93 = tpu.strided_load %arg15[%c1_107, %c0_108] {strides = array<i32: 2, 1>} : memref<512x128xf32, #tpu.memory_space<vmem>>, vector<64x128xf32>
    %94 = arith.maximumf %92, %93 : vector<64x128xf32>
    %95 = vector.shape_cast %94 : vector<64x128xf32> to vector<1x8x8x128xf32>
    %c0_109 = arith.constant 0 : index
    %c1_110 = arith.constant 1 : index
    %c8_111 = arith.constant 8 : index
    %c0_112 = arith.constant 0 : index
    %96 = vector.load %arg12[%c0_109, %c1_110, %c8_111, %c0_112] : memref<1x10x24x128xf32, #tpu.memory_space<vmem>>, vector<1x8x8x128xf32>
    tpu.vector_store %arg12[%c0_109, %c1_110, %c8_111, %c0_112], %95 {strides = array<i32>} : memref<1x10x24x128xf32, #tpu.memory_space<vmem>>, vector<1x8x8x128xf32>,
    %c0_113 = arith.constant 0 : index
    %c0_114 = arith.constant 0 : index
    %c7_115 = arith.constant 7 : index
    %c0_116 = arith.constant 0 : index
    %97 = vector.load %arg12[%c0_113, %c0_114, %c7_115, %c0_116] : memref<1x10x24x128xf32, #tpu.memory_space<vmem>>, vector<1x8x8x128xf32>
    %98 = vector.shape_cast %97 : vector<1x8x8x128xf32> to vector<64x128xf32>
    %99 = arith.truncf %98 : vector<64x128xf32> to vector<64x128xbf16>
    %c0_117 = arith.constant 0 : index
    %c0_118 = arith.constant 0 : index
    %100 = vector.load %arg14[%c0_117, %c0_118] : memref<64x1152xbf16, #tpu.memory_space<vmem>>, vector<64x128xbf16>
    tpu.vector_store %arg14[%c0_117, %c0_118], %99 {strides = array<i32>} : memref<64x1152xbf16, #tpu.memory_space<vmem>>, vector<64x128xbf16>,
    %c0_119 = arith.constant 0 : index
    %c0_120 = arith.constant 0 : index
    %c8_121 = arith.constant 8 : index
    %c0_122 = arith.constant 0 : index
    %101 = vector.load %arg12[%c0_119, %c0_120, %c8_121, %c0_122] : memref<1x10x24x128xf32, #tpu.memory_space<vmem>>, vector<1x8x8x128xf32>
    %102 = vector.shape_cast %101 : vector<1x8x8x128xf32> to vector<64x128xf32>
    %103 = arith.truncf %102 : vector<64x128xf32> to vector<64x128xbf16>
    %c0_123 = arith.constant 0 : index
    %c128_124 = arith.constant 128 : index
    %104 = vector.load %arg14[%c0_123, %c128_124] : memref<64x1152xbf16, #tpu.memory_space<vmem>>, vector<64x128xbf16>
    tpu.vector_store %arg14[%c0_123, %c128_124], %103 {strides = array<i32>} : memref<64x1152xbf16, #tpu.memory_space<vmem>>, vector<64x128xbf16>,
    %c0_125 = arith.constant 0 : index
    %c0_126 = arith.constant 0 : index
    %c9_127 = arith.constant 9 : index
    %c0_128 = arith.constant 0 : index
    %105 = vector.load %arg12[%c0_125, %c0_126, %c9_127, %c0_128] : memref<1x10x24x128xf32, #tpu.memory_space<vmem>>, vector<1x8x8x128xf32>
    %106 = vector.shape_cast %105 : vector<1x8x8x128xf32> to vector<64x128xf32>
    %107 = arith.truncf %106 : vector<64x128xf32> to vector<64x128xbf16>
    %c0_129 = arith.constant 0 : index
    %c256_130 = arith.constant 256 : index
    %108 = vector.load %arg14[%c0_129, %c256_130] : memref<64x1152xbf16, #tpu.memory_space<vmem>>, vector<64x128xbf16>
    tpu.vector_store %arg14[%c0_129, %c256_130], %107 {strides = array<i32>} : memref<64x1152xbf16, #tpu.memory_space<vmem>>, vector<64x128xbf16>,
    %c0_131 = arith.constant 0 : index
    %c1_132 = arith.constant 1 : index
    %c7_133 = arith.constant 7 : index
    %c0_134 = arith.constant 0 : index
    %109 = vector.load %arg12[%c0_131, %c1_132, %c7_133, %c0_134] : memref<1x10x24x128xf32, #tpu.memory_space<vmem>>, vector<1x8x8x128xf32>
    %110 = vector.shape_cast %109 : vector<1x8x8x128xf32> to vector<64x128xf32>
    %111 = arith.truncf %110 : vector<64x128xf32> to vector<64x128xbf16>
    %c0_135 = arith.constant 0 : index
    %c384_136 = arith.constant 384 : index
    %112 = vector.load %arg14[%c0_135, %c384_136] : memref<64x1152xbf16, #tpu.memory_space<vmem>>, vector<64x128xbf16>
    tpu.vector_store %arg14[%c0_135, %c384_136], %111 {strides = array<i32>} : memref<64x1152xbf16, #tpu.memory_space<vmem>>, vector<64x128xbf16>,
    %c0_137 = arith.constant 0 : index
    %c1_138 = arith.constant 1 : index
    %c8_139 = arith.constant 8 : index
    %c0_140 = arith.constant 0 : index
    %113 = vector.load %arg12[%c0_137, %c1_138, %c8_139, %c0_140] : memref<1x10x24x128xf32, #tpu.memory_space<vmem>>, vector<1x8x8x128xf32>
    %114 = vector.shape_cast %113 : vector<1x8x8x128xf32> to vector<64x128xf32>
    %115 = arith.truncf %114 : vector<64x128xf32> to vector<64x128xbf16>
    %c0_141 = arith.constant 0 : index
    %c512_142 = arith.constant 512 : index
    %116 = vector.load %arg14[%c0_141, %c512_142] : memref<64x1152xbf16, #tpu.memory_space<vmem>>, vector<64x128xbf16>
    tpu.vector_store %arg14[%c0_141, %c512_142], %115 {strides = array<i32>} : memref<64x1152xbf16, #tpu.memory_space<vmem>>, vector<64x128xbf16>,
    %c0_143 = arith.constant 0 : index
    %c1_144 = arith.constant 1 : index
    %c9_145 = arith.constant 9 : index
    %c0_146 = arith.constant 0 : index
    %117 = vector.load %arg12[%c0_143, %c1_144, %c9_145, %c0_146] : memref<1x10x24x128xf32, #tpu.memory_space<vmem>>, vector<1x8x8x128xf32>
    %118 = vector.shape_cast %117 : vector<1x8x8x128xf32> to vector<64x128xf32>
    %119 = arith.truncf %118 : vector<64x128xf32> to vector<64x128xbf16>
    %c0_147 = arith.constant 0 : index
    %c640_148 = arith.constant 640 : index
    %120 = vector.load %arg14[%c0_147, %c640_148] : memref<64x1152xbf16, #tpu.memory_space<vmem>>, vector<64x128xbf16>
    tpu.vector_store %arg14[%c0_147, %c640_148], %119 {strides = array<i32>} : memref<64x1152xbf16, #tpu.memory_space<vmem>>, vector<64x128xbf16>,
    %c0_149 = arith.constant 0 : index
    %c2_150 = arith.constant 2 : index
    %c7_151 = arith.constant 7 : index
    %c0_152 = arith.constant 0 : index
    %121 = vector.load %arg12[%c0_149, %c2_150, %c7_151, %c0_152] : memref<1x10x24x128xf32, #tpu.memory_space<vmem>>, vector<1x8x8x128xf32>
    %122 = vector.shape_cast %121 : vector<1x8x8x128xf32> to vector<64x128xf32>
    %123 = arith.truncf %122 : vector<64x128xf32> to vector<64x128xbf16>
    %c0_153 = arith.constant 0 : index
    %c768_154 = arith.constant 768 : index
    %124 = vector.load %arg14[%c0_153, %c768_154] : memref<64x1152xbf16, #tpu.memory_space<vmem>>, vector<64x128xbf16>
    tpu.vector_store %arg14[%c0_153, %c768_154], %123 {strides = array<i32>} : memref<64x1152xbf16, #tpu.memory_space<vmem>>, vector<64x128xbf16>,
    %c0_155 = arith.constant 0 : index
    %c2_156 = arith.constant 2 : index
    %c8_157 = arith.constant 8 : index
    %c0_158 = arith.constant 0 : index
    %125 = vector.load %arg12[%c0_155, %c2_156, %c8_157, %c0_158] : memref<1x10x24x128xf32, #tpu.memory_space<vmem>>, vector<1x8x8x128xf32>
    %126 = vector.shape_cast %125 : vector<1x8x8x128xf32> to vector<64x128xf32>
    %127 = arith.truncf %126 : vector<64x128xf32> to vector<64x128xbf16>
    %c0_159 = arith.constant 0 : index
    %c896_160 = arith.constant 896 : index
    %128 = vector.load %arg14[%c0_159, %c896_160] : memref<64x1152xbf16, #tpu.memory_space<vmem>>, vector<64x128xbf16>
    tpu.vector_store %arg14[%c0_159, %c896_160], %127 {strides = array<i32>} : memref<64x1152xbf16, #tpu.memory_space<vmem>>, vector<64x128xbf16>,
    %c0_161 = arith.constant 0 : index
    %c2_162 = arith.constant 2 : index
    %c9_163 = arith.constant 9 : index
    %c0_164 = arith.constant 0 : index
    %129 = vector.load %arg12[%c0_161, %c2_162, %c9_163, %c0_164] : memref<1x10x24x128xf32, #tpu.memory_space<vmem>>, vector<1x8x8x128xf32>
    %130 = vector.shape_cast %129 : vector<1x8x8x128xf32> to vector<64x128xf32>
    %131 = arith.truncf %130 : vector<64x128xf32> to vector<64x128xbf16>
    %c0_165 = arith.constant 0 : index
    %c1024_166 = arith.constant 1024 : index
    %132 = vector.load %arg14[%c0_165, %c1024_166] : memref<64x1152xbf16, #tpu.memory_space<vmem>>, vector<64x128xbf16>
    tpu.vector_store %arg14[%c0_165, %c1024_166], %131 {strides = array<i32>} : memref<64x1152xbf16, #tpu.memory_space<vmem>>, vector<64x128xbf16>,
    %c0_167 = arith.constant 0 : index
    %c0_168 = arith.constant 0 : index
    %133 = vector.load %arg14[%c0_167, %c0_168] : memref<64x1152xbf16, #tpu.memory_space<vmem>>, vector<64x1152xbf16>
    %c0_169 = arith.constant 0 : index
    %c0_170 = arith.constant 0 : index
    %134 = vector.load %arg6[%c0_169, %c0_170] : memref<1152x128xbf16, #tpu.memory_space<vmem>>, vector<1152x128xbf16>
    %cst_171 = arith.constant dense<0.000000e+00> : vector<64x128xf32>
    %135 = tpu.matmul %133, %134, %cst_171 {dimension_numbers = #tpu.dot_dimension_numbers<[1], [0], [0], [1], [0, 0, 1, 1], [], []>} : vector<64x1152xbf16>, vector<1152x128xbf16>, vector<64x128xf32> -> vector<64x128xf32>
    %c0_172 = arith.constant 0 : index
    %c0_173 = arith.constant 0 : index
    %136 = vector.load %arg7[%c0_172, %c0_173] : memref<1x128xf32, #tpu.memory_space<vmem>>, vector<1x128xf32>
    %137 = vector.broadcast %136 : vector<1x128xf32> to vector<64x128xf32>
    %138 = arith.addf %135, %137 : vector<64x128xf32>
    %cst_174 = arith.constant 1.000000e-01 : f32
    %139 = vector.broadcast %cst_174 : f32 to vector<64x128xf32>
    %140 = arith.mulf %139, %138 : vector<64x128xf32>
    %141 = arith.maximumf %138, %140 : vector<64x128xf32>
    %142 = vector.shape_cast %141 : vector<64x128xf32> to vector<4x2x8x128xf32>
    %143 = vector.extract_strided_slice %142 {offsets = [0, 0, 0, 0], sizes = [4, 1, 8, 128], strides = [1, 1, 1, 1]} : vector<4x2x8x128xf32> to vector<4x1x8x128xf32>
    %144 = vector.shape_cast %143 : vector<4x1x8x128xf32> to vector<4x8x128xf32>
    %145 = vector.extract_strided_slice %142 {offsets = [0, 1, 0, 0], sizes = [4, 1, 8, 128], strides = [1, 1, 1, 1]} : vector<4x2x8x128xf32> to vector<4x1x8x128xf32>
    %146 = vector.shape_cast %145 : vector<4x1x8x128xf32> to vector<4x8x128xf32>
    %147 = arith.maximumf %144, %146 : vector<4x8x128xf32>
    %148 = vector.shape_cast %147 : vector<4x8x128xf32> to vector<32x128xf32>
    %c0_175 = arith.constant 0 : index
    %c0_176 = arith.constant 0 : index
    %149 = vector.load %arg15[%c0_175, %c0_176] : memref<512x128xf32, #tpu.memory_space<vmem>>, vector<32x128xf32>
    tpu.vector_store %arg15[%c0_175, %c0_176], %148 {strides = array<i32>} : memref<512x128xf32, #tpu.memory_space<vmem>>, vector<32x128xf32>,
    %c0_177 = arith.constant 0 : index
    %c0_178 = arith.constant 0 : index
    %150 = tpu.strided_load %arg15[%c0_177, %c0_178] {strides = array<i32: 2, 1>} : memref<512x128xf32, #tpu.memory_space<vmem>>, vector<16x128xf32>
    %c1_179 = arith.constant 1 : index
    %c0_180 = arith.constant 0 : index
    %151 = tpu.strided_load %arg15[%c1_179, %c0_180] {strides = array<i32: 2, 1>} : memref<512x128xf32, #tpu.memory_space<vmem>>, vector<16x128xf32>
    %152 = arith.maximumf %150, %151 : vector<16x128xf32>
    %153 = arith.truncf %152 : vector<16x128xf32> to vector<16x128xbf16>
    %c0_181 = arith.constant 0 : index
    %c0_182 = arith.constant 0 : index
    %154 = vector.load %arg8[%c0_181, %c0_182] : memref<128x128xbf16, #tpu.memory_space<vmem>>, vector<128x128xbf16>
    %cst_183 = arith.constant dense<0.000000e+00> : vector<16x128xf32>
    %155 = tpu.matmul %153, %154, %cst_183 {dimension_numbers = #tpu.dot_dimension_numbers<[1], [0], [0], [1], [0, 0, 1, 1], [], []>} : vector<16x128xbf16>, vector<128x128xbf16>, vector<16x128xf32> -> vector<16x128xf32>
    %c0_184 = arith.constant 0 : index
    %c0_185 = arith.constant 0 : index
    %156 = vector.load %arg9[%c0_184, %c0_185] : memref<1x128xf32, #tpu.memory_space<vmem>>, vector<1x128xf32>
    %157 = vector.broadcast %156 : vector<1x128xf32> to vector<16x128xf32>
    %158 = arith.addf %155, %157 : vector<16x128xf32>
    %159 = arith.negf %158 : vector<16x128xf32>
    %160 = math.exp %159 : vector<16x128xf32>
    %cst_186 = arith.constant 1.000000e+00 : f32
    %161 = vector.broadcast %cst_186 : f32 to vector<16x128xf32>
    %162 = arith.addf %161, %160 : vector<16x128xf32>
    %163 = arith.divf %161, %162 : vector<16x128xf32>
    %164 = vector.shape_cast %163 : vector<16x128xf32> to vector<1x16x128xf32>
    %c0_187 = arith.constant 0 : index
    %c0_188 = arith.constant 0 : index
    %c0_189 = arith.constant 0 : index
    %165 = vector.load %arg10[%c0_187, %c0_188, %c0_189] : memref<1x16x128xf32, #tpu.memory_space<vmem>>, vector<1x16x128xf32>
    tpu.vector_store %arg10[%c0_187, %c0_188, %c0_189], %164 {strides = array<i32>} : memref<1x16x128xf32, #tpu.memory_space<vmem>>, vector<1x16x128xf32>,
    return
  }
  func.func @transform_0(%arg0: i32) -> (i32, i32, i32) {
    %c0_i32 = arith.constant 0 : i32
    %c0_i32_0 = arith.constant 0 : i32
    %c0_i32_1 = arith.constant 0 : i32
    return %arg0, %c0_i32, %c0_i32_0 : i32, i32, i32
  }
  func.func @transform_1(%arg0: i32) -> (i32, i32) {
    %c0_i32 = arith.constant 0 : i32
    %c0_i32_0 = arith.constant 0 : i32
    %c0_i32_1 = arith.constant 0 : i32
    return %c0_i32, %c0_i32_0 : i32, i32
  }
  func.func @transform_2(%arg0: i32) -> (i32, i32) {
    %c0_i32 = arith.constant 0 : i32
    %c0_i32_0 = arith.constant 0 : i32
    %c0_i32_1 = arith.constant 0 : i32
    return %c0_i32, %c0_i32_0 : i32, i32
  }
  func.func @transform_3(%arg0: i32) -> (i32, i32) {
    %c0_i32 = arith.constant 0 : i32
    %c0_i32_0 = arith.constant 0 : i32
    %c0_i32_1 = arith.constant 0 : i32
    return %c0_i32, %c0_i32_0 : i32, i32
  }
  func.func @transform_4(%arg0: i32) -> (i32, i32) {
    %c0_i32 = arith.constant 0 : i32
    %c0_i32_0 = arith.constant 0 : i32
    %c0_i32_1 = arith.constant 0 : i32
    return %c0_i32, %c0_i32_0 : i32, i32
  }
  func.func @transform_5(%arg0: i32) -> (i32, i32) {
    %c0_i32 = arith.constant 0 : i32
    %c0_i32_0 = arith.constant 0 : i32
    %c0_i32_1 = arith.constant 0 : i32
    return %c0_i32, %c0_i32_0 : i32, i32
  }
  func.func @transform_6(%arg0: i32) -> (i32, i32) {
    %c0_i32 = arith.constant 0 : i32
    %c0_i32_0 = arith.constant 0 : i32
    %c0_i32_1 = arith.constant 0 : i32
    return %c0_i32, %c0_i32_0 : i32, i32
  }
  func.func @transform_7(%arg0: i32) -> (i32, i32) {
    %c0_i32 = arith.constant 0 : i32
    %c0_i32_0 = arith.constant 0 : i32
    %c0_i32_1 = arith.constant 0 : i32
    return %c0_i32, %c0_i32_0 : i32, i32
  }
  func.func @transform_8(%arg0: i32) -> (i32, i32) {
    %c0_i32 = arith.constant 0 : i32
    %c0_i32_0 = arith.constant 0 : i32
    %c0_i32_1 = arith.constant 0 : i32
    return %c0_i32, %c0_i32_0 : i32, i32
  }
  func.func @transform_9(%arg0: i32) -> (i32, i32, i32) {
    %c0_i32 = arith.constant 0 : i32
    %c0_i32_0 = arith.constant 0 : i32
    %c0_i32_1 = arith.constant 0 : i32
    return %arg0, %c0_i32, %c0_i32_0 : i32, i32, i32
  }
}

</mosaic_0001>

<llo_original>
// kernel: yolo_lite_trainer_forward.1
$region0: #{yolo_lite_trainer_forward.1}
  #allocation0 [shape = 'u32[]', space=smem, size = 0x4, offset = 0x4, fixed_abs, tag = 'smem constant byte address 0x4 - core index']
  #allocation1 [shape = 'u32[72,128]{1,0:T(1,128)}', space=vmem, size = 0x9000, scoped, tag = 'internal scratch']
  #allocation2 [shape = 'f32[1,18,32,128]{3,2,1,0:T(8,128)}', space=vmem, size = 0x48000, scoped, tag = 'scratch operand']
  #allocation3 [shape = 'f32[1,10,24,128]{3,2,1,0:T(8,128)}', space=vmem, size = 0x1e000, scoped, tag = 'scratch operand']
  #allocation4 [shape = 'bf16[256,1152]{1,0:T(8,128)(2,1)}', space=vmem, size = 0x90000, scoped, tag = 'scratch operand']
  #allocation5 [shape = 'bf16[64,1152]{1,0:T(8,128)(2,1)}', space=vmem, size = 0x24000, scoped, tag = 'scratch operand']
  #allocation6 [shape = 'f32[512,128]{1,0:T(8,128)}', space=vmem, size = 0x40000, scoped, tag = 'scratch operand']
  %s0 = inlined_call_operand.vmem [shape: bf16[2,1024,128], index: 0, kind: input, shape index: {}]
  %s1 = inlined_call_operand.vmem [shape: bf16[128,128], index: 1, kind: input, shape index: {}]
  %s2 = inlined_call_operand.vmem [shape: f32[1,128], index: 2, kind: input, shape index: {}]
  %s3 = inlined_call_operand.vmem [shape: bf16[1152,128], index: 3, kind: input, shape index: {}]
  %s4 = inlined_call_operand.vmem [shape: f32[1,128], index: 4, kind: input, shape index: {}]
  %s5 = inlined_call_operand.vmem [shape: bf16[1152,128], index: 5, kind: input, shape index: {}]
  %s6 = inlined_call_operand.vmem [shape: f32[1,128], index: 6, kind: input, shape index: {}]
  %s7 = inlined_call_operand.vmem [shape: bf16[128,128], index: 7, kind: input, shape index: {}]
  %s8 = inlined_call_operand.vmem [shape: f32[1,128], index: 8, kind: input, shape index: {}]
  %s9 = inlined_call_operand.vmem [shape: f32[2,16,128], index: 9, kind: output, shape index: {}]
  %s10 = sld [smem:[#allocation0]]
  $region69: #{yolo_lite_trainer_forward.1} parent=0
    _
  %s12 = ssub.s32 1, %s10
  %s13 = scalar_select 0, %s12, %s10
  loop: start=0, step=1, limit=4
  $region2: #{yolo_lite_trainer_forward.1} parent=0 // loop_pre_header
    _
  $region3: #{yolo_lite_trainer_forward.1} parent=0 // loop_header
    %s15 = sphi 0, %s19
    %p16 = scmp.ge.s32.totalorder %s15, 4
    %s25 = sphi 0, %s27
    %s28 = sphi 0, %s25
    %s29 = sphi 0, %s28
    %s45 = sphi 0, %s29
    %s49 = sphi 0, %s49
    %s51 = sphi 0, %s49
    %s52 = sphi 0, %s51
    %s66 = sphi 0, %s52
    %s70 = sphi 0, %s70
    %s72 = sphi 0, %s70
    %s73 = sphi 0, %s72
    %s87 = sphi 0, %s73
    %s91 = sphi 0, %s91
    %s93 = sphi 0, %s91
    %s94 = sphi 0, %s93
    %s108 = sphi 0, %s94
    %s112 = sphi 0, %s112
    %s114 = sphi 0, %s112
    %s115 = sphi 0, %s114
    %s129 = sphi 0, %s115
    %s133 = sphi 0, %s133
    %s135 = sphi 0, %s133
    %s136 = sphi 0, %s135
    %s150 = sphi 0, %s136
    %s154 = sphi 0, %s154
    %s156 = sphi 0, %s154
    %s157 = sphi 0, %s156
    %s171 = sphi 0, %s157
    %s175 = sphi 0, %s175
    %s177 = sphi 0, %s175
    %s178 = sphi 0, %s177
    %s192 = sphi 0, %s178
    %s196 = sphi 0, %s196
    %s198 = sphi 0, %s196
    %s199 = sphi 0, %s198
    %s213 = sphi 0, %s199
    %s219 = sphi 0, %s221
    %s222 = sphi 0, %s219
    %s223 = sphi 0, %s222
    %s239 = sphi 0, %s223
  $region4: #{yolo_lite_trainer_forward.1} parent=0 // loop_header_branch
    %18 = sbr.rel (%p16) target = $region8
  $region5: #{yolo_lite_trainer_forward.1} parent=0 // loop_body
    %s20 = ssub.s32 %s15, 1
    %s21 = ssub.s32 %s15, 2
    %s22 = sadd.s32 %s15, 1
    %s23 = ssub.s32 %s15, %s22
    %p24 = scmp.eq.s32.totalorder %s23, 0
    %s26 = sadd.s32 %s25, 1
    %s27 = scalar_select %p24, %s25, %s26
    %p30 = pneg %p24
    %p31 = scmp.eq.s32.totalorder %s15, 1
    %p32 = por %p30, %p31
    %p33 = scmp.ne.s32.totalorder %s25, %s28
    %p34 = scmp.eq.s32.totalorder %s15, 0
    %p35 = por %p33, %p34
    %p36 = scmp.ne.s32.totalorder %s25, %s28
    %p37 = scmp.eq.s32.totalorder %s20, 1
    %p38 = por %p36, %p37
    %p39 = scmp.ne.s32.totalorder %s28, %s29
    %p40 = scmp.eq.s32.totalorder %s20, 0
    %p41 = por %p39, %p40
    %p42 = scmp.ne.s32.totalorder %s28, %s29
    %p43 = scmp.eq.s32.totalorder %s21, 1
    %p44 = por %p42, %p43
    %p46 = scmp.ne.s32.totalorder %s29, %s45
    %p47 = scmp.eq.s32.totalorder %s21, 0
    %p48 = por %p46, %p47
    %s50 = sadd.s32 %s49, 1
    %p53 = scmp.eq.s32.totalorder %s15, 1
    %p54 = scmp.ne.s32.totalorder %s49, %s51
    %p55 = scmp.eq.s32.totalorder %s15, 0
    %p56 = por %p54, %p55
    %p57 = scmp.ne.s32.totalorder %s49, %s51
    %p58 = scmp.eq.s32.totalorder %s20, 1
    %p59 = por %p57, %p58
    %p60 = scmp.ne.s32.totalorder %s51, %s52
    %p61 = scmp.eq.s32.totalorder %s20, 0
    %p62 = por %p60, %p61
    %p63 = scmp.ne.s32.totalorder %s51, %s52
    %p64 = scmp.eq.s32.totalorder %s21, 1
    %p65 = por %p63, %p64
    %p67 = scmp.ne.s32.totalorder %s52, %s66
    %p68 = scmp.eq.s32.totalorder %s21, 0
    %p69 = por %p67, %p68
    %s71 = sadd.s32 %s70, 1
    %p74 = scmp.eq.s32.totalorder %s15, 1
    %p75 = scmp.ne.s32.totalorder %s70, %s72
    %p76 = scmp.eq.s32.totalorder %s15, 0
    %p77 = por %p75, %p76
    %p78 = scmp.ne.s32.totalorder %s70, %s72
    %p79 = scmp.eq.s32.totalorder %s20, 1
    %p80 = por %p78, %p79
    %p81 = scmp.ne.s32.totalorder %s72, %s73
    %p82 = scmp.eq.s32.totalorder %s20, 0
    %p83 = por %p81, %p82
    %p84 = scmp.ne.s32.totalorder %s72, %s73
    %p85 = scmp.eq.s32.totalorder %s21, 1
    %p86 = por %p84, %p85
    %p88 = scmp.ne.s32.totalorder %s73, %s87
    %p89 = scmp.eq.s32.totalorder %s21, 0
    %p90 = por %p88, %p89
    %s92 = sadd.s32 %s91, 1
    %p95 = scmp.eq.s32.totalorder %s15, 1
    %p96 = scmp.ne.s32.totalorder %s91, %s93
    %p97 = scmp.eq.s32.totalorder %s15, 0
    %p98 = por %p96, %p97
    %p99 = scmp.ne.s32.totalorder %s91, %s93
    %p100 = scmp.eq.s32.totalorder %s20, 1
    %p101 = por %p99, %p100
    %p102 = scmp.ne.s32.totalorder %s93, %s94
    %p103 = scmp.eq.s32.totalorder %s20, 0
    %p104 = por %p102, %p103
    %p105 = scmp.ne.s32.totalorder %s93, %s94
    %p106 = scmp.eq.s32.totalorder %s21, 1
    %p107 = por %p105, %p106
    %p109 = scmp.ne.s32.totalorder %s94, %s108
    %p110 = scmp.eq.s32.totalorder %s21, 0
    %p111 = por %p109, %p110
    %s113 = sadd.s32 %s112, 1
    %p116 = scmp.eq.s32.totalorder %s15, 1
    %p117 = scmp.ne.s32.totalorder %s112, %s114
    %p118 = scmp.eq.s32.totalorder %s15, 0
    %p119 = por %p117, %p118
    %p120 = scmp.ne.s32.totalorder %s112, %s114
    %p121 = scmp.eq.s32.totalorder %s20, 1
    %p122 = por %p120, %p121
    %p123 = scmp.ne.s32.totalorder %s114, %s115
    %p124 = scmp.eq.s32.totalorder %s20, 0
    %p125 = por %p123, %p124
    %p126 = scmp.ne.s32.totalorder %s114, %s115
    %p127 = scmp.eq.s32.totalorder %s21, 1
    %p128 = por %p126, %p127
    %p130 = scmp.ne.s32.totalorder %s115, %s129
    %p131 = scmp.eq.s32.totalorder %s21, 0
    %p132 = por %p130, %p131
    %s134 = sadd.s32 %s133, 1
    %p137 = scmp.eq.s32.totalorder %s15, 1
    %p138 = scmp.ne.s32.totalorder %s133, %s135
    %p139 = scmp.eq.s32.totalorder %s15, 0
    %p140 = por %p138, %p139
    %p141 = scmp.ne.s32.totalorder %s133, %s135
    %p142 = scmp.eq.s32.totalorder %s20, 1
    %p143 = por %p141, %p142
    %p144 = scmp.ne.s32.totalorder %s135, %s136
    %p145 = scmp.eq.s32.totalorder %s20, 0
    %p146 = por %p144, %p145
    %p147 = scmp.ne.s32.totalorder %s135, %s136
    %p148 = scmp.eq.s32.totalorder %s21, 1
    %p149 = por %p147, %p148
    %p151 = scmp.ne.s32.totalorder %s136, %s150
    %p152 = scmp.eq.s32.totalorder %s21, 0
    %p153 = por %p151, %p152
    %s155 = sadd.s32 %s154, 1
    %p158 = scmp.eq.s32.totalorder %s15, 1
    %p159 = scmp.ne.s32.totalorder %s154, %s156
    %p160 = scmp.eq.s32.totalorder %s15, 0
    %p161 = por %p159, %p160
    %p162 = scmp.ne.s32.totalorder %s154, %s156
    %p163 = scmp.eq.s32.totalorder %s20, 1
    %p164 = por %p162, %p163
    %p165 = scmp.ne.s32.totalorder %s156, %s157
    %p166 = scmp.eq.s32.totalorder %s20, 0
    %p167 = por %p165, %p166
    %p168 = scmp.ne.s32.totalorder %s156, %s157
    %p169 = scmp.eq.s32.totalorder %s21, 1
    %p170 = por %p168, %p169
    %p172 = scmp.ne.s32.totalorder %s157, %s171
    %p173 = scmp.eq.s32.totalorder %s21, 0
    %p174 = por %p172, %p173
    %s176 = sadd.s32 %s175, 1
    %p179 = scmp.eq.s32.totalorder %s15, 1
    %p180 = scmp.ne.s32.totalorder %s175, %s177
    %p181 = scmp.eq.s32.totalorder %s15, 0
    %p182 = por %p180, %p181
    %p183 = scmp.ne.s32.totalorder %s175, %s177
    %p184 = scmp.eq.s32.totalorder %s20, 1
    %p185 = por %p183, %p184
    %p186 = scmp.ne.s32.totalorder %s177, %s178
    %p187 = scmp.eq.s32.totalorder %s20, 0
    %p188 = por %p186, %p187
    %p189 = scmp.ne.s32.totalorder %s177, %s178
    %p190 = scmp.eq.s32.totalorder %s21, 1
    %p191 = por %p189, %p190
    %p193 = scmp.ne.s32.totalorder %s178, %s192
    %p194 = scmp.eq.s32.totalorder %s21, 0
    %p195 = por %p193, %p194
    %s197 = sadd.s32 %s196, 1
    %p200 = scmp.eq.s32.totalorder %s15, 1
    %p201 = scmp.ne.s32.totalorder %s196, %s198
    %p202 = scmp.eq.s32.totalorder %s15, 0
    %p203 = por %p201, %p202
    %p204 = scmp.ne.s32.totalorder %s196, %s198
    %p205 = scmp.eq.s32.totalorder %s20, 1
    %p206 = por %p204, %p205
    %p207 = scmp.ne.s32.totalorder %s198, %s199
    %p208 = scmp.eq.s32.totalorder %s20, 0
    %p209 = por %p207, %p208
    %p210 = scmp.ne.s32.totalorder %s198, %s199
    %p211 = scmp.eq.s32.totalorder %s21, 1
    %p212 = por %p210, %p211
    %p214 = scmp.ne.s32.totalorder %s199, %s213
    %p215 = scmp.eq.s32.totalorder %s21, 0
    %p216 = por %p214, %p215
    %s217 = ssub.s32 %s15, %s22
    %p218 = scmp.eq.s32.totalorder %s217, 0
    %s220 = sadd.s32 %s219, 1
    %s221 = scalar_select %p218, %s219, %s220
    %p224 = pneg %p218
    %p225 = scmp.eq.s32.totalorder %s15, 1
    %p226 = por %p224, %p225
    %p227 = scmp.ne.s32.totalorder %s219, %s222
    %p228 = scmp.eq.s32.totalorder %s15, 0
    %p229 = por %p227, %p228
    %p230 = scmp.ne.s32.totalorder %s219, %s222
    %p231 = scmp.eq.s32.totalorder %s20, 1
    %p232 = por %p230, %p231
    %p233 = scmp.ne.s32.totalorder %s222, %s223
    %p234 = scmp.eq.s32.totalorder %s20, 0
    %p235 = por %p233, %p234
    %p236 = scmp.ne.s32.totalorder %s222, %s223
    %p237 = scmp.eq.s32.totalorder %s21, 1
    %p238 = por %p236, %p237
    %p240 = scmp.ne.s32.totalorder %s223, %s239
    %p241 = scmp.eq.s32.totalorder %s21, 0
    %p242 = por %p240, %p241
    %p243 = scmp.le.s32.totalorder 1, %s15
    %p244 = scmp.lt.s32.totalorder %s15, 3
    %p245 = pnand %p243, %p244
    %p246 = pneg %p245
    // Predicated region
    $region9: #{yolo_lite_trainer_forward.1} parent=5 // pred_check
      _
    $region10: #{yolo_lite_trainer_forward.1} parent=5 // pred_check_branch
      %248 = sbr.rel (%p245) target = $region12
    $region11: #{yolo_lite_trainer_forward.1} parent=5 // pred_region
      %s249 = ssub.s32 %s15, 1
      // Predicated region
      $region13: #{yolo_lite_trainer_forward.1} parent=11 // pred_check
        %p250 = pneg %p62
      $region14: #{yolo_lite_trainer_forward.1} parent=11 // pred_check_branch
        %252 = sbr.rel (%p250) target = $region16
      $region15: #{yolo_lite_trainer_forward.1} parent=11 // pred_region
        _
      $region16: #{yolo_lite_trainer_forward.1} parent=11 // pred_fallthru
        _
      // Predicated region
      $region17: #{yolo_lite_trainer_forward.1} parent=11 // pred_check
        %p253 = pneg %p83
      $region18: #{yolo_lite_trainer_forward.1} parent=11 // pred_check_branch
        %255 = sbr.rel (%p253) target = $region20
      $region19: #{yolo_lite_trainer_forward.1} parent=11 // pred_region
        _
      $region20: #{yolo_lite_trainer_forward.1} parent=11 // pred_fallthru
        _
      // Predicated region
      $region21: #{yolo_lite_trainer_forward.1} parent=11 // pred_check
        %p256 = pneg %p104
      $region22: #{yolo_lite_trainer_forward.1} parent=11 // pred_check_branch
        %258 = sbr.rel (%p256) target = $region24
      $region23: #{yolo_lite_trainer_forward.1} parent=11 // pred_region
        _
      $region24: #{yolo_lite_trainer_forward.1} parent=11 // pred_fallthru
        _
      // Predicated region
      $region25: #{yolo_lite_trainer_forward.1} parent=11 // pred_check
        %p259 = pneg %p125
      $region26: #{yolo_lite_trainer_forward.1} parent=11 // pred_check_branch
        %261 = sbr.rel (%p259) target = $region28
      $region27: #{yolo_lite_trainer_forward.1} parent=11 // pred_region
        _
      $region28: #{yolo_lite_trainer_forward.1} parent=11 // pred_fallthru
        _
      // Predicated region
      $region29: #{yolo_lite_trainer_forward.1} parent=11 // pred_check
        %p262 = pneg %p146
      $region30: #{yolo_lite_trainer_forward.1} parent=11 // pred_check_branch
        %264 = sbr.rel (%p262) target = $region32
      $region31: #{yolo_lite_trainer_forward.1} parent=11 // pred_region
        _
      $region32: #{yolo_lite_trainer_forward.1} parent=11 // pred_fallthru
        _
      // Predicated region
      $region33: #{yolo_lite_trainer_forward.1} parent=11 // pred_check
        %p265 = pneg %p167
      $region34: #{yolo_lite_trainer_forward.1} parent=11 // pred_check_branch
        %267 = sbr.rel (%p265) target = $region36
      $region35: #{yolo_lite_trainer_forward.1} parent=11 // pred_region
        _
      $region36: #{yolo_lite_trainer_forward.1} parent=11 // pred_fallthru
        _
      // Predicated region
      $region37: #{yolo_lite_trainer_forward.1} parent=11 // pred_check
        %p268 = pneg %p188
      $region38: #{yolo_lite_trainer_forward.1} parent=11 // pred_check_branch
        %270 = sbr.rel (%p268) target = $region40
      $region39: #{yolo_lite_trainer_forward.1} parent=11 // pred_region
        _
      $region40: #{yolo_lite_trainer_forward.1} parent=11 // pred_fallthru
        _
      // Predicated region
      $region41: #{yolo_lite_trainer_forward.1} parent=11 // pred_check
        %p271 = pneg %p209
      $region42: #{yolo_lite_trainer_forward.1} parent=11 // pred_check_branch
        %273 = sbr.rel (%p271) target = $region44
      $region43: #{yolo_lite_trainer_forward.1} parent=11 // pred_region
        _
      $region44: #{yolo_lite_trainer_forward.1} parent=11 // pred_fallthru
        _
    $region12: #{yolo_lite_trainer_forward.1} parent=5 // pred_fallthru
      _
    %p274 = scmp.lt.s32.totalorder %s15, 2
    // Predicated region
    $region45: #{yolo_lite_trainer_forward.1} parent=5 // pred_check
      %p275 = pneg %p274
    $region46: #{yolo_lite_trainer_forward.1} parent=5 // pred_check_branch
      %277 = sbr.rel (%p275) target = $region48
    $region47: #{yolo_lite_trainer_forward.1} parent=5 // pred_region
      // Predicated region
      $region49: #{yolo_lite_trainer_forward.1} parent=47 // pred_check
        %p278 = pneg %p35
      $region50: #{yolo_lite_trainer_forward.1} parent=47 // pred_check_branch
        %280 = sbr.rel (%p278) target = $region52
      $region51: #{yolo_lite_trainer_forward.1} parent=47 // pred_region
        %p281 = scmp.lt.s32.totalorder %s15, 1
        %s282 = scalar_select %p281, %s15, 1
        %s283 = smul.addr %s282, 128
        %s284 = smul.addr %s283, 4
        %s285 = scalar_lea.vmem %s0, %s284
      $region52: #{yolo_lite_trainer_forward.1} parent=47 // pred_fallthru
        _
    $region48: #{yolo_lite_trainer_forward.1} parent=5 // pred_fallthru
      _
    %p286 = scmp.le.s32.totalorder 1, %s15
    %p287 = scmp.lt.s32.totalorder %s15, 3
    %p288 = pnand %p286, %p287
    %p289 = pneg %p288
    // Predicated region
    $region53: #{yolo_lite_trainer_forward.1} parent=5 // pred_check
      _
    $region54: #{yolo_lite_trainer_forward.1} parent=5 // pred_check_branch
      %291 = sbr.rel (%p288) target = $region56
    $region55: #{yolo_lite_trainer_forward.1} parent=5 // pred_region
      %s292 = ssub.s32 %s15, 1
      %p293 = scmp.lt.s32.totalorder %s20, 1
      %s294 = scalar_select %p293, %s20, 1
      %s295 = smul.addr %s294, 128
      %s296 = smul.addr %s295, 4
      %s297 = scalar_lea.vmem %s0, %s296
      %p298 = pneg %p41
      %p299 = pneg %p38
      %p300 = pneg %p62
      %p301 = pneg %p59
      %p302 = pneg %p83
      %p303 = pneg %p80
      %p304 = pneg %p104
      %p305 = pneg %p101
      %p306 = pneg %p125
      %p307 = pneg %p122
      %p308 = pneg %p146
      %p309 = pneg %p143
      %p310 = pneg %p167
      %p311 = pneg %p164
      %p312 = pneg %p188
      %p313 = pneg %p185
      %p314 = pneg %p209
      %p315 = pneg %p206
      %p316 = pneg %p235
      %p317 = pneg %p232
      %p318 = scmp.lt.s32.totalorder %s20, 1
      %s319 = scalar_select %p318, %s20, 1
      %s320 = smul.addr %s319, 2
      %s321 = smul.addr %s320, 8
      %s322 = scalar_lea.vmem %s9, %s321
      %p323 = scmp.lt.s32.totalorder %s20, 1
      %s324 = scalar_select %p323, %s20, 1
      %s325 = smul.addr %s324, 128
      %s326 = smul.addr %s325, 4
      %s327 = scalar_lea.vmem %s0, %s326
      %p328 = scmp.lt.s32.totalorder %s20, 1
      %s329 = scalar_select %p328, %s20, 1
      %s330 = smul.addr %s329, 2
      %s331 = smul.addr %s330, 8
      %s332 = scalar_lea.vmem %s9, %s331
      %333 = vst [vmem:[#allocation2] sm:$0xff] 0.0
      %334 = vst [vmem:[#allocation2 + $0x8] sm:$0xff] 0.0
      %335 = vst [vmem:[#allocation2 + $0x10] sm:$0xff] 0.0
      %336 = vst [vmem:[#allocation2 + $0x18] sm:$0xff] 0.0
      %s337 = scalar_lea.vmem [#allocation2], 544
      %338 = vst [vmem:[%s337] sm:$0xff] 0.0
      %339 = vst [vmem:[%s337 + $0x8] sm:$0xff] 0.0
      %340 = vst [vmem:[%s337 + $0x10] sm:$0xff] 0.0
      %341 = vst [vmem:[%s337 + $0x18] sm:$0xff] 0.0
      %342 = vst [vmem:[#allocation2] sm:$0xff] 0.0
      %343 = vst [vmem:[#allocation2 + $0x20] sm:$0xff] 0.0
      %344 = vst [vmem:[#allocation2 + $0x40] sm:$0xff] 0.0
      %345 = vst [vmem:[#allocation2 + $0x60] sm:$0xff] 0.0
      %346 = vst [vmem:[#allocation2 + $0x80] sm:$0xff] 0.0
      %347 = vst [vmem:[#allocation2 + $0xa0] sm:$0xff] 0.0
      %348 = vst [vmem:[#allocation2 + $0xc0] sm:$0xff] 0.0
      %349 = vst [vmem:[#allocation2 + $0xe0] sm:$0xff] 0.0
      %350 = vst [vmem:[#allocation2 + $0x100] sm:$0xff] 0.0
      %351 = vst [vmem:[#allocation2 + $0x120] sm:$0xff] 0.0
      %352 = vst [vmem:[#allocation2 + $0x140] sm:$0xff] 0.0
      %353 = vst [vmem:[#allocation2 + $0x160] sm:$0xff] 0.0
      %354 = vst [vmem:[#allocation2 + $0x180] sm:$0xff] 0.0
      %355 = vst [vmem:[#allocation2 + $0x1a0] sm:$0xff] 0.0
      %356 = vst [vmem:[#allocation2 + $0x1c0] sm:$0xff] 0.0
      %357 = vst [vmem:[#allocation2 + $0x1e0] sm:$0xff] 0.0
      %358 = vst [vmem:[#allocation2 + $0x200] sm:$0xff] 0.0
      %359 = vst [vmem:[#allocation2 + $0x220] sm:$0xff] 0.0
      %360 = vst [vmem:[#allocation2 + $0x18] sm:$0xff] 0.0
      %361 = vst [vmem:[#allocation2 + $0x38] sm:$0xff] 0.0
      %362 = vst [vmem:[#allocation2 + $0x58] sm:$0xff] 0.0
      %363 = vst [vmem:[#allocation2 + $0x78] sm:$0xff] 0.0
      %364 = vst [vmem:[#allocation2 + $0x98] sm:$0xff] 0.0
      %365 = vst [vmem:[#allocation2 + $0xb8] sm:$0xff] 0.0
      %366 = vst [vmem:[#allocation2 + $0xd8] sm:$0xff] 0.0
      %367 = vst [vmem:[#allocation2 + $0xf8] sm:$0xff] 0.0
      %368 = vst [vmem:[#allocation2 + $0x118] sm:$0xff] 0.0
      %369 = vst [vmem:[#allocation2 + $0x138] sm:$0xff] 0.0
      %370 = vst [vmem:[#allocation2 + $0x158] sm:$0xff] 0.0
      %371 = vst [vmem:[#allocation2 + $0x178] sm:$0xff] 0.0
      %372 = vst [vmem:[#allocation2 + $0x198] sm:$0xff] 0.0
      %373 = vst [vmem:[#allocation2 + $0x1b8] sm:$0xff] 0.0
      %374 = vst [vmem:[#allocation2 + $0x1d8] sm:$0xff] 0.0
      %375 = vst [vmem:[#allocation2 + $0x1f8] sm:$0xff] 0.0
      %376 = vst [vmem:[#allocation2 + $0x218] sm:$0xff] 0.0
      %377 = vst [vmem:[#allocation2 + $0x238] sm:$0xff] 0.0
      %378 = vst [vmem:[#allocation3] sm:$0xff] 0.0
      %379 = vst [vmem:[#allocation3 + $0x8] sm:$0xff] 0.0
      %380 = vst [vmem:[#allocation3 + $0x10] sm:$0xff] 0.0
      %s381 = scalar_lea.vmem [#allocation3], 216
      %382 = vst [vmem:[%s381] sm:$0xff] 0.0
      %383 = vst [vmem:[%s381 + $0x8] sm:$0xff] 0.0
      %384 = vst [vmem:[%s381 + $0x10] sm:$0xff] 0.0
      %385 = vst [vmem:[#allocation3] sm:$0xff] 0.0
      %386 = vst [vmem:[#allocation3 + $0x18] sm:$0xff] 0.0
      %387 = vst [vmem:[#allocation3 + $0x30] sm:$0xff] 0.0
      %388 = vst [vmem:[#allocation3 + $0x48] sm:$0xff] 0.0
      %389 = vst [vmem:[#allocation3 + $0x60] sm:$0xff] 0.0
      %390 = vst [vmem:[#allocation3 + $0x78] sm:$0xff] 0.0
      %391 = vst [vmem:[#allocation3 + $0x90] sm:$0xff] 0.0
      %392 = vst [vmem:[#allocation3 + $0xa8] sm:$0xff] 0.0
      %393 = vst [vmem:[#allocation3 + $0xc0] sm:$0xff] 0.0
      %394 = vst [vmem:[#allocation3 + $0xd8] sm:$0xff] 0.0
      %395 = vst [vmem:[#allocation3 + $0x10] sm:$0xff] 0.0
      %396 = vst [vmem:[#allocation3 + $0x28] sm:$0xff] 0.0
      %397 = vst [vmem:[#allocation3 + $0x40] sm:$0xff] 0.0
      %398 = vst [vmem:[#allocation3 + $0x58] sm:$0xff] 0.0
      %399 = vst [vmem:[#allocation3 + $0x70] sm:$0xff] 0.0
      %400 = vst [vmem:[#allocation3 + $0x88] sm:$0xff] 0.0
      %401 = vst [vmem:[#allocation3 + $0xa0] sm:$0xff] 0.0
      %402 = vst [vmem:[#allocation3 + $0xb8] sm:$0xff] 0.0
      %403 = vst [vmem:[#allocation3 + $0xd0] sm:$0xff] 0.0
      %404 = vst [vmem:[#allocation3 + $0xe8] sm:$0xff] 0.0
      %v405 = vld [vmem:[%s327] sm:$0xf]
      %v406 = vld [vmem:[%s327 + $0x4] sm:$0xf]
      %v407 = vld [vmem:[%s327 + $0x8] sm:$0xf]
      %v408 = vld [vmem:[%s327 + $0xc] sm:$0xf]
      %v409 = vld [vmem:[%s327 + $0x10] sm:$0xf]
      %v410 = vld [vmem:[%s327 + $0x14] sm:$0xf]
      %v411 = vld [vmem:[%s327 + $0x18] sm:$0xf]
      %v412 = vld [vmem:[%s327 + $0x1c] sm:$0xf]
      %v413 = vld [vmem:[%s327 + $0x20] sm:$0xf]
      %v414 = vld [vmem:[%s327 + $0x24] sm:$0xf]
      %v415 = vld [vmem:[%s327 + $0x28] sm:$0xf]
      %v416 = vld [vmem:[%s327 + $0x2c] sm:$0xf]
      %v417 = vld [vmem:[%s327 + $0x30] sm:$0xf]
      %v418 = vld [vmem:[%s327 + $0x34] sm:$0xf]
      %v419 = vld [vmem:[%s327 + $0x38] sm:$0xf]
      %v420 = vld [vmem:[%s327 + $0x3c] sm:$0xf]
      %v421 = vld [vmem:[%s327 + $0x40] sm:$0xf]
      %v422 = vld [vmem:[%s327 + $0x44] sm:$0xf]
      %v423 = vld [vmem:[%s327 + $0x48] sm:$0xf]
      %v424 = vld [vmem:[%s327 + $0x4c] sm:$0xf]
      %v425 = vld [vmem:[%s327 + $0x50] sm:$0xf]
      %v426 = vld [vmem:[%s327 + $0x54] sm:$0xf]
      %v427 = vld [vmem:[%s327 + $0x58] sm:$0xf]
      %v428 = vld [vmem:[%s327 + $0x5c] sm:$0xf]
      %v429 = vld [vmem:[%s327 + $0x60] sm:$0xf]
      %v430 = vld [vmem:[%s327 + $0x64] sm:$0xf]
      %v431 = vld [vmem:[%s327 + $0x68] sm:$0xf]
      %v432 = vld [vmem:[%s327 + $0x6c] sm:$0xf]
      %v433 = vld [vmem:[%s327 + $0x70] sm:$0xf]
      %v434 = vld [vmem:[%s327 + $0x74] sm:$0xf]
      %v435 = vld [vmem:[%s327 + $0x78] sm:$0xf]
      %v436 = vld [vmem:[%s327 + $0x7c] sm:$0xf]
      %v437 = vld [vmem:[%s327 + $0x80] sm:$0xf]
      %v438 = vld [vmem:[%s327 + $0x84] sm:$0xf]
      %v439 = vld [vmem:[%s327 + $0x88] sm:$0xf]
      %v440 = vld [vmem:[%s327 + $0x8c] sm:$0xf]
      %v441 = vld [vmem:[%s327 + $0x90] sm:$0xf]
      %v442 = vld [vmem:[%s327 + $0x94] sm:$0xf]
      %v443 = vld [vmem:[%s327 + $0x98] sm:$0xf]
      %v444 = vld [vmem:[%s327 + $0x9c] sm:$0xf]
      %v445 = vld [vmem:[%s327 + $0xa0] sm:$0xf]
      %v446 = vld [vmem:[%s327 + $0xa4] sm:$0xf]
      %v447 = vld [vmem:[%s327 + $0xa8] sm:$0xf]
      %v448 = vld [vmem:[%s327 + $0xac] sm:$0xf]
      %v449 = vld [vmem:[%s327 + $0xb0] sm:$0xf]
      %v450 = vld [vmem:[%s327 + $0xb4] sm:$0xf]
      %v451 = vld [vmem:[%s327 + $0xb8] sm:$0xf]
      %v452 = vld [vmem:[%s327 + $0xbc] sm:$0xf]
      %v453 = vld [vmem:[%s327 + $0xc0] sm:$0xf]
      %v454 = vld [vmem:[%s327 + $0xc4] sm:$0xf]
      %v455 = vld [vmem:[%s327 + $0xc8] sm:$0xf]
      %v456 = vld [vmem:[%s327 + $0xcc] sm:$0xf]
      %v457 = vld [vmem:[%s327 + $0xd0] sm:$0xf]
      %v458 = vld [vmem:[%s327 + $0xd4] sm:$0xf]
      %v459 = vld [vmem:[%s327 + $0xd8] sm:$0xf]
      %v460 = vld [vmem:[%s327 + $0xdc] sm:$0xf]
      %v461 = vld [vmem:[%s327 + $0xe0] sm:$0xf]
      %v462 = vld [vmem:[%s327 + $0xe4] sm:$0xf]
      %v463 = vld [vmem:[%s327 + $0xe8] sm:$0xf]
      %v464 = vld [vmem:[%s327 + $0xec] sm:$0xf]
      %v465 = vld [vmem:[%s327 + $0xf0] sm:$0xf]
      %v466 = vld [vmem:[%s327 + $0xf4] sm:$0xf]
      %v467 = vld [vmem:[%s327 + $0xf8] sm:$0xf]
      %v468 = vld [vmem:[%s327 + $0xfc] sm:$0xf]
      %v469 = vld [vmem:[%s327 + $0x100] sm:$0xf]
      %v470 = vld [vmem:[%s327 + $0x104] sm:$0xf]
      %v471 = vld [vmem:[%s327 + $0x108] sm:$0xf]
      %v472 = vld [vmem:[%s327 + $0x10c] sm:$0xf]
      %v473 = vld [vmem:[%s327 + $0x110] sm:$0xf]
      %v474 = vld [vmem:[%s327 + $0x114] sm:$0xf]
      %v475 = vld [vmem:[%s327 + $0x118] sm:$0xf]
      %v476 = vld [vmem:[%s327 + $0x11c] sm:$0xf]
      %v477 = vld [vmem:[%s327 + $0x120] sm:$0xf]
      %v478 = vld [vmem:[%s327 + $0x124] sm:$0xf]
      %v479 = vld [vmem:[%s327 + $0x128] sm:$0xf]
      %v480 = vld [vmem:[%s327 + $0x12c] sm:$0xf]
      %v481 = vld [vmem:[%s327 + $0x130] sm:$0xf]
      %v482 = vld [vmem:[%s327 + $0x134] sm:$0xf]
      %v483 = vld [vmem:[%s327 + $0x138] sm:$0xf]
      %v484 = vld [vmem:[%s327 + $0x13c] sm:$0xf]
      %v485 = vld [vmem:[%s327 + $0x140] sm:$0xf]
      %v486 = vld [vmem:[%s327 + $0x144] sm:$0xf]
      %v487 = vld [vmem:[%s327 + $0x148] sm:$0xf]
      %v488 = vld [vmem:[%s327 + $0x14c] sm:$0xf]
      %v489 = vld [vmem:[%s327 + $0x150] sm:$0xf]
      %v490 = vld [vmem:[%s327 + $0x154] sm:$0xf]
      %v491 = vld [vmem:[%s327 + $0x158] sm:$0xf]
      %v492 = vld [vmem:[%s327 + $0x15c] sm:$0xf]
      %v493 = vld [vmem:[%s327 + $0x160] sm:$0xf]
      %v494 = vld [vmem:[%s327 + $0x164] sm:$0xf]
      %v495 = vld [vmem:[%s327 + $0x168] sm:$0xf]
      %v496 = vld [vmem:[%s327 + $0x16c] sm:$0xf]
      %v497 = vld [vmem:[%s327 + $0x170] sm:$0xf]
      %v498 = vld [vmem:[%s327 + $0x174] sm:$0xf]
      %v499 = vld [vmem:[%s327 + $0x178] sm:$0xf]
      %v500 = vld [vmem:[%s327 + $0x17c] sm:$0xf]
      %v501 = vld [vmem:[%s327 + $0x180] sm:$0xf]
      %v502 = vld [vmem:[%s327 + $0x184] sm:$0xf]
      %v503 = vld [vmem:[%s327 + $0x188] sm:$0xf]
      %v504 = vld [vmem:[%s327 + $0x18c] sm:$0xf]
      %v505 = vld [vmem:[%s327 + $0x190] sm:$0xf]
      %v506 = vld [vmem:[%s327 + $0x194] sm:$0xf]
      %v507 = vld [vmem:[%s327 + $0x198] sm:$0xf]
      %v508 = vld [vmem:[%s327 + $0x19c] sm:$0xf]
      %v509 = vld [vmem:[%s327 + $0x1a0] sm:$0xf]
      %v510 = vld [vmem:[%s327 + $0x1a4] sm:$0xf]
      %v511 = vld [vmem:[%s327 + $0x1a8] sm:$0xf]
      %v512 = vld [vmem:[%s327 + $0x1ac] sm:$0xf]
      %v513 = vld [vmem:[%s327 + $0x1b0] sm:$0xf]
      %v514 = vld [vmem:[%s327 + $0x1b4] sm:$0xf]
      %v515 = vld [vmem:[%s327 + $0x1b8] sm:$0xf]
      %v516 = vld [vmem:[%s327 + $0x1bc] sm:$0xf]
      %v517 = vld [vmem:[%s327 + $0x1c0] sm:$0xf]
      %v518 = vld [vmem:[%s327 + $0x1c4] sm:$0xf]
      %v519 = vld [vmem:[%s327 + $0x1c8] sm:$0xf]
      %v520 = vld [vmem:[%s327 + $0x1cc] sm:$0xf]
      %v521 = vld [vmem:[%s327 + $0x1d0] sm:$0xf]
      %v522 = vld [vmem:[%s327 + $0x1d4] sm:$0xf]
      %v523 = vld [vmem:[%s327 + $0x1d8] sm:$0xf]
      %v524 = vld [vmem:[%s327 + $0x1dc] sm:$0xf]
      %v525 = vld [vmem:[%s327 + $0x1e0] sm:$0xf]
      %v526 = vld [vmem:[%s327 + $0x1e4] sm:$0xf]
      %v527 = vld [vmem:[%s327 + $0x1e8] sm:$0xf]
      %v528 = vld [vmem:[%s327 + $0x1ec] sm:$0xf]
      %v529 = vld [vmem:[%s327 + $0x1f0] sm:$0xf]
      %v530 = vld [vmem:[%s327 + $0x1f4] sm:$0xf]
      %v531 = vld [vmem:[%s327 + $0x1f8] sm:$0xf]
      %v532 = vld [vmem:[%s327 + $0x1fc] sm:$0xf]
      %v533 = vld [vmem:[%s1] sm:$0xf]
      %v534 = vld [vmem:[%s1 + $0x4] sm:$0xf]
      %v535 = vld [vmem:[%s1 + $0x8] sm:$0xf]
      %v536 = vld [vmem:[%s1 + $0xc] sm:$0xf]
      %v537 = vld [vmem:[%s1 + $0x10] sm:$0xf]
      %v538 = vld [vmem:[%s1 + $0x14] sm:$0xf]
      %v539 = vld [vmem:[%s1 + $0x18] sm:$0xf]
      %v540 = vld [vmem:[%s1 + $0x1c] sm:$0xf]
      %v541 = vld [vmem:[%s1 + $0x20] sm:$0xf]
      %v542 = vld [vmem:[%s1 + $0x24] sm:$0xf]
      %v543 = vld [vmem:[%s1 + $0x28] sm:$0xf]
      %v544 = vld [vmem:[%s1 + $0x2c] sm:$0xf]
      %v545 = vld [vmem:[%s1 + $0x30] sm:$0xf]
      %v546 = vld [vmem:[%s1 + $0x34] sm:$0xf]
      %v547 = vld [vmem:[%s1 + $0x38] sm:$0xf]
      %v548 = vld [vmem:[%s1 + $0x3c] sm:$0xf]
      %v549 = vld [vmem:[%s2] sm:$0x1]
      %v551 = vperm.slane %v549, 0
      %v681 = vunpack.c.l.b16 %v405
      %v682 = vunpack.c.l.b16 %v406
      %v683 = vunpack.c.l.b16 %v407
      %v684 = vunpack.c.l.b16 %v408
      %v685 = vunpack.c.l.b16 %v409
      %v686 = vunpack.c.l.b16 %v410
      %v687 = vunpack.c.l.b16 %v411
      %v688 = vunpack.c.l.b16 %v412
      %v689 = vunpack.c.l.b16 %v413
      %v690 = vunpack.c.l.b16 %v414
      %v691 = vunpack.c.l.b16 %v415
      %v692 = vunpack.c.l.b16 %v416
      %v693 = vunpack.c.l.b16 %v417
      %v694 = vunpack.c.l.b16 %v418
      %v695 = vunpack.c.l.b16 %v419
      %v696 = vunpack.c.l.b16 %v420
      %v697 = vunpack.c.l.b16 %v421
      %v698 = vunpack.c.l.b16 %v422
      %v699 = vunpack.c.l.b16 %v423
      %v700 = vunpack.c.l.b16 %v424
      %v701 = vunpack.c.l.b16 %v425
      %v702 = vunpack.c.l.b16 %v426
      %v703 = vunpack.c.l.b16 %v427
      %v704 = vunpack.c.l.b16 %v428
      %v705 = vunpack.c.l.b16 %v429
      %v706 = vunpack.c.l.b16 %v430
      %v707 = vunpack.c.l.b16 %v431
      %v708 = vunpack.c.l.b16 %v432
      %v709 = vunpack.c.l.b16 %v433
      %v710 = vunpack.c.l.b16 %v434
      %v711 = vunpack.c.l.b16 %v435
      %v712 = vunpack.c.l.b16 %v436
      %v713 = vunpack.c.l.b16 %v437
      %v714 = vunpack.c.l.b16 %v438
      %v715 = vunpack.c.l.b16 %v439
      %v716 = vunpack.c.l.b16 %v440
      %v717 = vunpack.c.l.b16 %v441
      %v718 = vunpack.c.l.b16 %v442
      %v719 = vunpack.c.l.b16 %v443
      %v720 = vunpack.c.l.b16 %v444
      %v721 = vunpack.c.l.b16 %v445
      %v722 = vunpack.c.l.b16 %v446
      %v723 = vunpack.c.l.b16 %v447
      %v724 = vunpack.c.l.b16 %v448
      %v725 = vunpack.c.l.b16 %v449
      %v726 = vunpack.c.l.b16 %v450
      %v727 = vunpack.c.l.b16 %v451
      %v728 = vunpack.c.l.b16 %v452
      %v729 = vunpack.c.l.b16 %v453
      %v730 = vunpack.c.l.b16 %v454
      %v731 = vunpack.c.l.b16 %v455
      %v732 = vunpack.c.l.b16 %v456
      %v733 = vunpack.c.l.b16 %v457
      %v734 = vunpack.c.l.b16 %v458
      %v735 = vunpack.c.l.b16 %v459
      %v736 = vunpack.c.l.b16 %v460
      %v737 = vunpack.c.l.b16 %v461
      %v738 = vunpack.c.l.b16 %v462
      %v739 = vunpack.c.l.b16 %v463
      %v740 = vunpack.c.l.b16 %v464
      %v741 = vunpack.c.l.b16 %v465
      %v742 = vunpack.c.l.b16 %v466
      %v743 = vunpack.c.l.b16 %v467
      %v744 = vunpack.c.l.b16 %v468
      %v745 = vunpack.c.l.b16 %v469
      %v746 = vunpack.c.l.b16 %v470
      %v747 = vunpack.c.l.b16 %v471
      %v748 = vunpack.c.l.b16 %v472
      %v749 = vunpack.c.l.b16 %v473
      %v750 = vunpack.c.l.b16 %v474
      %v751 = vunpack.c.l.b16 %v475
      %v752 = vunpack.c.l.b16 %v476
      %v753 = vunpack.c.l.b16 %v477
      %v754 = vunpack.c.l.b16 %v478
      %v755 = vunpack.c.l.b16 %v479
      %v756 = vunpack.c.l.b16 %v480
      %v757 = vunpack.c.l.b16 %v481
      %v758 = vunpack.c.l.b16 %v482
      %v759 = vunpack.c.l.b16 %v483
      %v760 = vunpack.c.l.b16 %v484
      %v761 = vunpack.c.l.b16 %v485
      %v762 = vunpack.c.l.b16 %v486
      %v763 = vunpack.c.l.b16 %v487
      %v764 = vunpack.c.l.b16 %v488
      %v765 = vunpack.c.l.b16 %v489
      %v766 = vunpack.c.l.b16 %v490
      %v767 = vunpack.c.l.b16 %v491
      %v768 = vunpack.c.l.b16 %v492
      %v769 = vunpack.c.l.b16 %v493
      %v770 = vunpack.c.l.b16 %v494
      %v771 = vunpack.c.l.b16 %v495
      %v772 = vunpack.c.l.b16 %v496
      %v773 = vunpack.c.l.b16 %v497
      %v774 = vunpack.c.l.b16 %v498
      %v775 = vunpack.c.l.b16 %v499
      %v776 = vunpack.c.l.b16 %v500
      %v777 = vunpack.c.l.b16 %v501
      %v778 = vunpack.c.l.b16 %v502
      %v779 = vunpack.c.l.b16 %v503
      %v780 = vunpack.c.l.b16 %v504
      %v781 = vunpack.c.l.b16 %v505
      %v782 = vunpack.c.l.b16 %v506
      %v783 = vunpack.c.l.b16 %v507
      %v784 = vunpack.c.l.b16 %v508
      %v785 = vunpack.c.l.b16 %v509
      %v786 = vunpack.c.l.b16 %v510
      %v787 = vunpack.c.l.b16 %v511
      %v788 = vunpack.c.l.b16 %v512
      %v789 = vunpack.c.l.b16 %v513
      %v790 = vunpack.c.l.b16 %v514
      %v791 = vunpack.c.l.b16 %v515
      %v792 = vunpack.c.l.b16 %v516
      %v793 = vunpack.c.l.b16 %v517
      %v794 = vunpack.c.l.b16 %v518
      %v795 = vunpack.c.l.b16 %v519
      %v796 = vunpack.c.l.b16 %v520
      %v797 = vunpack.c.l.b16 %v521
      %v798 = vunpack.c.l.b16 %v522
      %v799 = vunpack.c.l.b16 %v523
      %v800 = vunpack.c.l.b16 %v524
      %v801 = vunpack.c.l.b16 %v525
      %v802 = vunpack.c.l.b16 %v526
      %v803 = vunpack.c.l.b16 %v527
      %v804 = vunpack.c.l.b16 %v528
      %v805 = vunpack.c.l.b16 %v529
      %v806 = vunpack.c.l.b16 %v530
      %v807 = vunpack.c.l.b16 %v531
      %v808 = vunpack.c.l.b16 %v532
      %v809 = vpack.c.b16 %v682, %v681
      %v810 = vpack.c.b16 %v684, %v683
      %v811 = vpack.c.b16 %v686, %v685
      %v812 = vpack.c.b16 %v688, %v687
      %v813 = vpack.c.b16 %v690, %v689
      %v814 = vpack.c.b16 %v692, %v691
      %v815 = vpack.c.b16 %v694, %v693
      %v816 = vpack.c.b16 %v696, %v695
      %v817 = vpack.c.b16 %v698, %v697
      %v818 = vpack.c.b16 %v700, %v699
      %v819 = vpack.c.b16 %v702, %v701
      %v820 = vpack.c.b16 %v704, %v703
      %v821 = vpack.c.b16 %v706, %v705
      %v822 = vpack.c.b16 %v708, %v707
      %v823 = vpack.c.b16 %v710, %v709
      %v824 = vpack.c.b16 %v712, %v711
      %v825 = vpack.c.b16 %v714, %v713
      %v826 = vpack.c.b16 %v716, %v715
      %v827 = vpack.c.b16 %v718, %v717
      %v828 = vpack.c.b16 %v720, %v719
      %v829 = vpack.c.b16 %v722, %v721
      %v830 = vpack.c.b16 %v724, %v723
      %v831 = vpack.c.b16 %v726, %v725
      %v832 = vpack.c.b16 %v728, %v727
      %v833 = vpack.c.b16 %v730, %v729
      %v834 = vpack.c.b16 %v732, %v731
      %v835 = vpack.c.b16 %v734, %v733
      %v836 = vpack.c.b16 %v736, %v735
      %v837 = vpack.c.b16 %v738, %v737
      %v838 = vpack.c.b16 %v740, %v739
      %v839 = vpack.c.b16 %v742, %v741
      %v840 = vpack.c.b16 %v744, %v743
      %v841 = vpack.c.b16 %v746, %v745
      %v842 = vpack.c.b16 %v748, %v747
      %v843 = vpack.c.b16 %v750, %v749
      %v844 = vpack.c.b16 %v752, %v751
      %v845 = vpack.c.b16 %v754, %v753
      %v846 = vpack.c.b16 %v756, %v755
      %v847 = vpack.c.b16 %v758, %v757
      %v848 = vpack.c.b16 %v760, %v759
      %v849 = vpack.c.b16 %v762, %v761
      %v850 = vpack.c.b16 %v764, %v763
      %v851 = vpack.c.b16 %v766, %v765
      %v852 = vpack.c.b16 %v768, %v767
      %v853 = vpack.c.b16 %v770, %v769
      %v854 = vpack.c.b16 %v772, %v771
      %v855 = vpack.c.b16 %v774, %v773
      %v856 = vpack.c.b16 %v776, %v775
      %v857 = vpack.c.b16 %v778, %v777
      %v858 = vpack.c.b16 %v780, %v779
      %v859 = vpack.c.b16 %v782, %v781
      %v860 = vpack.c.b16 %v784, %v783
      %v861 = vpack.c.b16 %v786, %v785
      %v862 = vpack.c.b16 %v788, %v787
      %v863 = vpack.c.b16 %v790, %v789
      %v864 = vpack.c.b16 %v792, %v791
      %v865 = vpack.c.b16 %v794, %v793
      %v866 = vpack.c.b16 %v796, %v795
      %v867 = vpack.c.b16 %v798, %v797
      %v868 = vpack.c.b16 %v800, %v799
      %v869 = vpack.c.b16 %v802, %v801
      %v870 = vpack.c.b16 %v804, %v803
      %v871 = vpack.c.b16 %v806, %v805
      %v872 = vpack.c.b16 %v808, %v807
      %v953 = vunpack.c.l.b16 %v533
      %v954 = vunpack.c.l.b16 %v534
      %v955 = vunpack.c.l.b16 %v535
      %v956 = vunpack.c.l.b16 %v536
      %v957 = vunpack.c.l.b16 %v537
      %v958 = vunpack.c.l.b16 %v538
      %v959 = vunpack.c.l.b16 %v539
      %v960 = vunpack.c.l.b16 %v540
      %v961 = vunpack.c.l.b16 %v541
      %v962 = vunpack.c.l.b16 %v542
      %v963 = vunpack.c.l.b16 %v543
      %v964 = vunpack.c.l.b16 %v544
      %v965 = vunpack.c.l.b16 %v545
      %v966 = vunpack.c.l.b16 %v546
      %v967 = vunpack.c.l.b16 %v547
      %v968 = vunpack.c.l.b16 %v548
      %v969 = vpack.c.b16 %v954, %v953
      %v970 = vpack.c.b16 %v956, %v955
      %v971 = vpack.c.b16 %v958, %v957
      %v972 = vpack.c.b16 %v960, %v959
      %v973 = vpack.c.b16 %v962, %v961
      %v974 = vpack.c.b16 %v964, %v963
      %v975 = vpack.c.b16 %v966, %v965
      %v976 = vpack.c.b16 %v968, %v967
      %985 = vmatpush.bf16.msra.mxu0 %v976
      %986 = vmatpush.bf16.msra.mxu0 %v975
      %987 = vmatpush.bf16.msra.mxu0 %v974
      %988 = vmatpush.bf16.msra.mxu0 %v973
      %989 = vmatpush.bf16.msra.mxu0 %v972
      %990 = vmatpush.bf16.msra.mxu0 %v971
      %991 = vmatpush.bf16.msra.mxu0 %v970
      %992 = vmatpush.bf16.msra.mxu0 %v969
      %993 = vmatmul.bf16.gmra.mxu0 %v809
      %v994 = vpop.f32.mrf.mxu0
      %v995 = vadd.f32 %v551, %v994
      %v996 = vpop.f32.mrf.mxu0
      %v997 = vadd.f32 %v551, %v996
      %998 = vmatmul.bf16.gmra.mxu0 %v810
      %v999 = vpop.f32.mrf.mxu0
      %v1000 = vadd.f32 %v551, %v999
      %v1001 = vpop.f32.mrf.mxu0
      %v1002 = vadd.f32 %v551, %v1001
      %1003 = vmatmul.bf16.gmra.mxu0 %v811
      %v1004 = vpop.f32.mrf.mxu0
      %v1005 = vadd.f32 %v551, %v1004
      %v1006 = vpop.f32.mrf.mxu0
      %v1007 = vadd.f32 %v551, %v1006
      %1008 = vmatmul.bf16.gmra.mxu0 %v812
      %v1009 = vpop.f32.mrf.mxu0
      %v1010 = vadd.f32 %v551, %v1009
      %v1011 = vpop.f32.mrf.mxu0
      %v1012 = vadd.f32 %v551, %v1011
      %1013 = vmatmul.bf16.gmra.mxu0 %v813
      %v1014 = vpop.f32.mrf.mxu0
      %v1015 = vadd.f32 %v551, %v1014
      %v1016 = vpop.f32.mrf.mxu0
      %v1017 = vadd.f32 %v551, %v1016
      %1018 = vmatmul.bf16.gmra.mxu0 %v814
      %v1019 = vpop.f32.mrf.mxu0
      %v1020 = vadd.f32 %v551, %v1019
      %v1021 = vpop.f32.mrf.mxu0
      %v1022 = vadd.f32 %v551, %v1021
      %1023 = vmatmul.bf16.gmra.mxu0 %v815
      %v1024 = vpop.f32.mrf.mxu0
      %v1025 = vadd.f32 %v551, %v1024
      %v1026 = vpop.f32.mrf.mxu0
      %v1027 = vadd.f32 %v551, %v1026
      %1028 = vmatmul.bf16.gmra.mxu0 %v816
      %v1029 = vpop.f32.mrf.mxu0
      %v1030 = vadd.f32 %v551, %v1029
      %v1031 = vpop.f32.mrf.mxu0
      %v1032 = vadd.f32 %v551, %v1031
      %1033 = vmatmul.bf16.gmra.mxu0 %v817
      %v1034 = vpop.f32.mrf.mxu0
      %v1035 = vadd.f32 %v551, %v1034
      %v1036 = vpop.f32.mrf.mxu0
      %v1037 = vadd.f32 %v551, %v1036
      %1038 = vmatmul.bf16.gmra.mxu0 %v818
      %v1039 = vpop.f32.mrf.mxu0
      %v1040 = vadd.f32 %v551, %v1039
      %v1041 = vpop.f32.mrf.mxu0
      %v1042 = vadd.f32 %v551, %v1041
      %1043 = vmatmul.bf16.gmra.mxu0 %v819
      %v1044 = vpop.f32.mrf.mxu0
      %v1045 = vadd.f32 %v551, %v1044
      %v1046 = vpop.f32.mrf.mxu0
      %v1047 = vadd.f32 %v551, %v1046
      %1048 = vmatmul.bf16.gmra.mxu0 %v820
      %v1049 = vpop.f32.mrf.mxu0
      %v1050 = vadd.f32 %v551, %v1049
      %v1051 = vpop.f32.mrf.mxu0
      %v1052 = vadd.f32 %v551, %v1051
      %1053 = vmatmul.bf16.gmra.mxu0 %v821
      %v1054 = vpop.f32.mrf.mxu0
      %v1055 = vadd.f32 %v551, %v1054
      %v1056 = vpop.f32.mrf.mxu0
      %v1057 = vadd.f32 %v551, %v1056
      %1058 = vmatmul.bf16.gmra.mxu0 %v822
      %v1059 = vpop.f32.mrf.mxu0
      %v1060 = vadd.f32 %v551, %v1059
      %v1061 = vpop.f32.mrf.mxu0
      %v1062 = vadd.f32 %v551, %v1061
      %1063 = vmatmul.bf16.gmra.mxu0 %v823
      %v1064 = vpop.f32.mrf.mxu0
      %v1065 = vadd.f32 %v551, %v1064
      %v1066 = vpop.f32.mrf.mxu0
      %v1067 = vadd.f32 %v551, %v1066
      %1068 = vmatmul.bf16.gmra.mxu0 %v824
      %v1069 = vpop.f32.mrf.mxu0
      %v1070 = vadd.f32 %v551, %v1069
      %v1071 = vpop.f32.mrf.mxu0
      %v1072 = vadd.f32 %v551, %v1071
      %1073 = vmatmul.bf16.gmra.mxu0 %v825
      %v1074 = vpop.f32.mrf.mxu0
      %v1075 = vadd.f32 %v551, %v1074
      %v1076 = vpop.f32.mrf.mxu0
      %v1077 = vadd.f32 %v551, %v1076
      %1078 = vmatmul.bf16.gmra.mxu0 %v826
      %v1079 = vpop.f32.mrf.mxu0
      %v1080 = vadd.f32 %v551, %v1079
      %v1081 = vpop.f32.mrf.mxu0
      %v1082 = vadd.f32 %v551, %v1081
      %1083 = vmatmul.bf16.gmra.mxu0 %v827
      %v1084 = vpop.f32.mrf.mxu0
      %v1085 = vadd.f32 %v551, %v1084
      %v1086 = vpop.f32.mrf.mxu0
      %v1087 = vadd.f32 %v551, %v1086
      %1088 = vmatmul.bf16.gmra.mxu0 %v828
      %v1089 = vpop.f32.mrf.mxu0
      %v1090 = vadd.f32 %v551, %v1089
      %v1091 = vpop.f32.mrf.mxu0
      %v1092 = vadd.f32 %v551, %v1091
      %1093 = vmatmul.bf16.gmra.mxu0 %v829
      %v1094 = vpop.f32.mrf.mxu0
      %v1095 = vadd.f32 %v551, %v1094
      %v1096 = vpop.f32.mrf.mxu0
      %v1097 = vadd.f32 %v551, %v1096
      %1098 = vmatmul.bf16.gmra.mxu0 %v830
      %v1099 = vpop.f32.mrf.mxu0
      %v1100 = vadd.f32 %v551, %v1099
      %v1101 = vpop.f32.mrf.mxu0
      %v1102 = vadd.f32 %v551, %v1101
      %1103 = vmatmul.bf16.gmra.mxu0 %v831
      %v1104 = vpop.f32.mrf.mxu0
      %v1105 = vadd.f32 %v551, %v1104
      %v1106 = vpop.f32.mrf.mxu0
      %v1107 = vadd.f32 %v551, %v1106
      %1108 = vmatmul.bf16.gmra.mxu0 %v832
      %v1109 = vpop.f32.mrf.mxu0
      %v1110 = vadd.f32 %v551, %v1109
      %v1111 = vpop.f32.mrf.mxu0
      %v1112 = vadd.f32 %v551, %v1111
      %1113 = vmatmul.bf16.gmra.mxu0 %v833
      %v1114 = vpop.f32.mrf.mxu0
      %v1115 = vadd.f32 %v551, %v1114
      %v1116 = vpop.f32.mrf.mxu0
      %v1117 = vadd.f32 %v551, %v1116
      %1118 = vmatmul.bf16.gmra.mxu0 %v834
      %v1119 = vpop.f32.mrf.mxu0
      %v1120 = vadd.f32 %v551, %v1119
      %v1121 = vpop.f32.mrf.mxu0
      %v1122 = vadd.f32 %v551, %v1121
      %1123 = vmatmul.bf16.gmra.mxu0 %v835
      %v1124 = vpop.f32.mrf.mxu0
      %v1125 = vadd.f32 %v551, %v1124
      %v1126 = vpop.f32.mrf.mxu0
      %v1127 = vadd.f32 %v551, %v1126
      %1128 = vmatmul.bf16.gmra.mxu0 %v836
      %v1129 = vpop.f32.mrf.mxu0
      %v1130 = vadd.f32 %v551, %v1129
      %v1131 = vpop.f32.mrf.mxu0
      %v1132 = vadd.f32 %v551, %v1131
      %1133 = vmatmul.bf16.gmra.mxu0 %v837
      %v1134 = vpop.f32.mrf.mxu0
      %v1135 = vadd.f32 %v551, %v1134
      %v1136 = vpop.f32.mrf.mxu0
      %v1137 = vadd.f32 %v551, %v1136
      %1138 = vmatmul.bf16.gmra.mxu0 %v838
      %v1139 = vpop.f32.mrf.mxu0
      %v1140 = vadd.f32 %v551, %v1139
      %v1141 = vpop.f32.mrf.mxu0
      %v1142 = vadd.f32 %v551, %v1141
      %1143 = vmatmul.bf16.gmra.mxu0 %v839
      %v1144 = vpop.f32.mrf.mxu0
      %v1145 = vadd.f32 %v551, %v1144
      %v1146 = vpop.f32.mrf.mxu0
      %v1147 = vadd.f32 %v551, %v1146
      %1148 = vmatmul.bf16.gmra.mxu0 %v840
      %v1149 = vpop.f32.mrf.mxu0
      %v1150 = vadd.f32 %v551, %v1149
      %v1151 = vpop.f32.mrf.mxu0
      %v1152 = vadd.f32 %v551, %v1151
      %1153 = vmatmul.bf16.gmra.mxu0 %v841
      %v1154 = vpop.f32.mrf.mxu0
      %v1155 = vadd.f32 %v551, %v1154
      %v1156 = vpop.f32.mrf.mxu0
      %v1157 = vadd.f32 %v551, %v1156
      %1158 = vmatmul.bf16.gmra.mxu0 %v842
      %v1159 = vpop.f32.mrf.mxu0
      %v1160 = vadd.f32 %v551, %v1159
      %v1161 = vpop.f32.mrf.mxu0
      %v1162 = vadd.f32 %v551, %v1161
      %1163 = vmatmul.bf16.gmra.mxu0 %v843
      %v1164 = vpop.f32.mrf.mxu0
      %v1165 = vadd.f32 %v551, %v1164
      %v1166 = vpop.f32.mrf.mxu0
      %v1167 = vadd.f32 %v551, %v1166
      %1168 = vmatmul.bf16.gmra.mxu0 %v844
      %v1169 = vpop.f32.mrf.mxu0
      %v1170 = vadd.f32 %v551, %v1169
      %v1171 = vpop.f32.mrf.mxu0
      %v1172 = vadd.f32 %v551, %v1171
      %1173 = vmatmul.bf16.gmra.mxu0 %v845
      %v1174 = vpop.f32.mrf.mxu0
      %v1175 = vadd.f32 %v551, %v1174
      %v1176 = vpop.f32.mrf.mxu0
      %v1177 = vadd.f32 %v551, %v1176
      %1178 = vmatmul.bf16.gmra.mxu0 %v846
      %v1179 = vpop.f32.mrf.mxu0
      %v1180 = vadd.f32 %v551, %v1179
      %v1181 = vpop.f32.mrf.mxu0
      %v1182 = vadd.f32 %v551, %v1181
      %1183 = vmatmul.bf16.gmra.mxu0 %v847
      %v1184 = vpop.f32.mrf.mxu0
      %v1185 = vadd.f32 %v551, %v1184
      %v1186 = vpop.f32.mrf.mxu0
      %v1187 = vadd.f32 %v551, %v1186
      %1188 = vmatmul.bf16.gmra.mxu0 %v848
      %v1189 = vpop.f32.mrf.mxu0
      %v1190 = vadd.f32 %v551, %v1189
      %v1191 = vpop.f32.mrf.mxu0
      %v1192 = vadd.f32 %v551, %v1191
      %1193 = vmatmul.bf16.gmra.mxu0 %v849
      %v1194 = vpop.f32.mrf.mxu0
      %v1195 = vadd.f32 %v551, %v1194
      %v1196 = vpop.f32.mrf.mxu0
      %v1197 = vadd.f32 %v551, %v1196
      %1198 = vmatmul.bf16.gmra.mxu0 %v850
      %v1199 = vpop.f32.mrf.mxu0
      %v1200 = vadd.f32 %v551, %v1199
      %v1201 = vpop.f32.mrf.mxu0
      %v1202 = vadd.f32 %v551, %v1201
      %1203 = vmatmul.bf16.gmra.mxu0 %v851
      %v1204 = vpop.f32.mrf.mxu0
      %v1205 = vadd.f32 %v551, %v1204
      %v1206 = vpop.f32.mrf.mxu0
      %v1207 = vadd.f32 %v551, %v1206
      %1208 = vmatmul.bf16.gmra.mxu0 %v852
      %v1209 = vpop.f32.mrf.mxu0
      %v1210 = vadd.f32 %v551, %v1209
      %v1211 = vpop.f32.mrf.mxu0
      %v1212 = vadd.f32 %v551, %v1211
      %1213 = vmatmul.bf16.gmra.mxu0 %v853
      %v1214 = vpop.f32.mrf.mxu0
      %v1215 = vadd.f32 %v551, %v1214
      %v1216 = vpop.f32.mrf.mxu0
      %v1217 = vadd.f32 %v551, %v1216
      %1218 = vmatmul.bf16.gmra.mxu0 %v854
      %v1219 = vpop.f32.mrf.mxu0
      %v1220 = vadd.f32 %v551, %v1219
      %v1221 = vpop.f32.mrf.mxu0
      %v1222 = vadd.f32 %v551, %v1221
      %1223 = vmatmul.bf16.gmra.mxu0 %v855
      %v1224 = vpop.f32.mrf.mxu0
      %v1225 = vadd.f32 %v551, %v1224
      %v1226 = vpop.f32.mrf.mxu0
      %v1227 = vadd.f32 %v551, %v1226
      %1228 = vmatmul.bf16.gmra.mxu0 %v856
      %v1229 = vpop.f32.mrf.mxu0
      %v1230 = vadd.f32 %v551, %v1229
      %v1231 = vpop.f32.mrf.mxu0
      %v1232 = vadd.f32 %v551, %v1231
      %1233 = vmatmul.bf16.gmra.mxu0 %v857
      %v1234 = vpop.f32.mrf.mxu0
      %v1235 = vadd.f32 %v551, %v1234
      %v1236 = vpop.f32.mrf.mxu0
      %v1237 = vadd.f32 %v551, %v1236
      %1238 = vmatmul.bf16.gmra.mxu0 %v858
      %v1239 = vpop.f32.mrf.mxu0
      %v1240 = vadd.f32 %v551, %v1239
      %v1241 = vpop.f32.mrf.mxu0
      %v1242 = vadd.f32 %v551, %v1241
      %1243 = vmatmul.bf16.gmra.mxu0 %v859
      %v1244 = vpop.f32.mrf.mxu0
      %v1245 = vadd.f32 %v551, %v1244
      %v1246 = vpop.f32.mrf.mxu0
      %v1247 = vadd.f32 %v551, %v1246
      %1248 = vmatmul.bf16.gmra.mxu0 %v860
      %v1249 = vpop.f32.mrf.mxu0
      %v1250 = vadd.f32 %v551, %v1249
      %v1251 = vpop.f32.mrf.mxu0
      %v1252 = vadd.f32 %v551, %v1251
      %1253 = vmatmul.bf16.gmra.mxu0 %v861
      %v1254 = vpop.f32.mrf.mxu0
      %v1255 = vadd.f32 %v551, %v1254
      %v1256 = vpop.f32.mrf.mxu0
      %v1257 = vadd.f32 %v551, %v1256
      %1258 = vmatmul.bf16.gmra.mxu0 %v862
      %v1259 = vpop.f32.mrf.mxu0
      %v1260 = vadd.f32 %v551, %v1259
      %v1261 = vpop.f32.mrf.mxu0
      %v1262 = vadd.f32 %v551, %v1261
      %1263 = vmatmul.bf16.gmra.mxu0 %v863
      %v1264 = vpop.f32.mrf.mxu0
      %v1265 = vadd.f32 %v551, %v1264
      %v1266 = vpop.f32.mrf.mxu0
      %v1267 = vadd.f32 %v551, %v1266
      %1268 = vmatmul.bf16.gmra.mxu0 %v864
      %v1269 = vpop.f32.mrf.mxu0
      %v1270 = vadd.f32 %v551, %v1269
      %v1271 = vpop.f32.mrf.mxu0
      %v1272 = vadd.f32 %v551, %v1271
      %1273 = vmatmul.bf16.gmra.mxu0 %v865
      %v1274 = vpop.f32.mrf.mxu0
      %v1275 = vadd.f32 %v551, %v1274
      %v1276 = vpop.f32.mrf.mxu0
      %v1277 = vadd.f32 %v551, %v1276
      %1278 = vmatmul.bf16.gmra.mxu0 %v866
      %v1279 = vpop.f32.mrf.mxu0
      %v1280 = vadd.f32 %v551, %v1279
      %v1281 = vpop.f32.mrf.mxu0
      %v1282 = vadd.f32 %v551, %v1281
      %1283 = vmatmul.bf16.gmra.mxu0 %v867
      %v1284 = vpop.f32.mrf.mxu0
      %v1285 = vadd.f32 %v551, %v1284
      %v1286 = vpop.f32.mrf.mxu0
      %v1287 = vadd.f32 %v551, %v1286
      %1288 = vmatmul.bf16.gmra.mxu0 %v868
      %v1289 = vpop.f32.mrf.mxu0
      %v1290 = vadd.f32 %v551, %v1289
      %v1291 = vpop.f32.mrf.mxu0
      %v1292 = vadd.f32 %v551, %v1291
      %1293 = vmatmul.bf16.gmra.mxu0 %v869
      %v1294 = vpop.f32.mrf.mxu0
      %v1295 = vadd.f32 %v551, %v1294
      %v1296 = vpop.f32.mrf.mxu0
      %v1297 = vadd.f32 %v551, %v1296
      %1298 = vmatmul.bf16.gmra.mxu0 %v870
      %v1299 = vpop.f32.mrf.mxu0
      %v1300 = vadd.f32 %v551, %v1299
      %v1301 = vpop.f32.mrf.mxu0
      %v1302 = vadd.f32 %v551, %v1301
      %1303 = vmatmul.bf16.gmra.mxu0 %v871
      %v1304 = vpop.f32.mrf.mxu0
      %v1305 = vadd.f32 %v551, %v1304
      %v1306 = vpop.f32.mrf.mxu0
      %v1307 = vadd.f32 %v551, %v1306
      %1308 = vmatmul.bf16.gmra.mxu0 %v872
      %v1309 = vpop.f32.mrf.mxu0
      %v1310 = vadd.f32 %v551, %v1309
      %v1311 = vpop.f32.mrf.mxu0
      %v1312 = vadd.f32 %v551, %v1311
      %1313 = vdwg.mxu0
      %v1314 = vmul.f32 %v995, 0.1
      %v1315 = vmul.f32 %v997, 0.1
      %v1316 = vmul.f32 %v1000, 0.1
      %v1317 = vmul.f32 %v1002, 0.1
      %v1318 = vmul.f32 %v1005, 0.1
      %v1319 = vmul.f32 %v1007, 0.1
      %v1320 = vmul.f32 %v1010, 0.1
      %v1321 = vmul.f32 %v1012, 0.1
      %v1322 = vmul.f32 %v1015, 0.1
      %v1323 = vmul.f32 %v1017, 0.1
      %v1324 = vmul.f32 %v1020, 0.1
      %v1325 = vmul.f32 %v1022, 0.1
      %v1326 = vmul.f32 %v1025, 0.1
      %v1327 = vmul.f32 %v1027, 0.1
      %v1328 = vmul.f32 %v1030, 0.1
      %v1329 = vmul.f32 %v1032, 0.1
      %v1330 = vmul.f32 %v1035, 0.1
      %v1331 = vmul.f32 %v1037, 0.1
      %v1332 = vmul.f32 %v1040, 0.1
      %v1333 = vmul.f32 %v1042, 0.1
      %v1334 = vmul.f32 %v1045, 0.1
      %v1335 = vmul.f32 %v1047, 0.1
      %v1336 = vmul.f32 %v1050, 0.1
      %v1337 = vmul.f32 %v1052, 0.1
      %v1338 = vmul.f32 %v1055, 0.1
      %v1339 = vmul.f32 %v1057, 0.1
      %v1340 = vmul.f32 %v1060, 0.1
      %v1341 = vmul.f32 %v1062, 0.1
      %v1342 = vmul.f32 %v1065, 0.1
      %v1343 = vmul.f32 %v1067, 0.1
      %v1344 = vmul.f32 %v1070, 0.1
      %v1345 = vmul.f32 %v1072, 0.1
      %v1346 = vmul.f32 %v1075, 0.1
      %v1347 = vmul.f32 %v1077, 0.1
      %v1348 = vmul.f32 %v1080, 0.1
      %v1349 = vmul.f32 %v1082, 0.1
      %v1350 = vmul.f32 %v1085, 0.1
      %v1351 = vmul.f32 %v1087, 0.1
      %v1352 = vmul.f32 %v1090, 0.1
      %v1353 = vmul.f32 %v1092, 0.1
      %v1354 = vmul.f32 %v1095, 0.1
      %v1355 = vmul.f32 %v1097, 0.1
      %v1356 = vmul.f32 %v1100, 0.1
      %v1357 = vmul.f32 %v1102, 0.1
      %v1358 = vmul.f32 %v1105, 0.1
      %v1359 = vmul.f32 %v1107, 0.1
      %v1360 = vmul.f32 %v1110, 0.1
      %v1361 = vmul.f32 %v1112, 0.1
      %v1362 = vmul.f32 %v1115, 0.1
      %v1363 = vmul.f32 %v1117, 0.1
      %v1364 = vmul.f32 %v1120, 0.1
      %v1365 = vmul.f32 %v1122, 0.1
      %v1366 = vmul.f32 %v1125, 0.1
      %v1367 = vmul.f32 %v1127, 0.1
      %v1368 = vmul.f32 %v1130, 0.1
      %v1369 = vmul.f32 %v1132, 0.1
      %v1370 = vmul.f32 %v1135, 0.1
      %v1371 = vmul.f32 %v1137, 0.1
      %v1372 = vmul.f32 %v1140, 0.1
      %v1373 = vmul.f32 %v1142, 0.1
      %v1374 = vmul.f32 %v1145, 0.1
      %v1375 = vmul.f32 %v1147, 0.1
      %v1376 = vmul.f32 %v1150, 0.1
      %v1377 = vmul.f32 %v1152, 0.1
      %v1378 = vmul.f32 %v1155, 0.1
      %v1379 = vmul.f32 %v1157, 0.1
      %v1380 = vmul.f32 %v1160, 0.1
      %v1381 = vmul.f32 %v1162, 0.1
      %v1382 = vmul.f32 %v1165, 0.1
      %v1383 = vmul.f32 %v1167, 0.1
      %v1384 = vmul.f32 %v1170, 0.1
      %v1385 = vmul.f32 %v1172, 0.1
      %v1386 = vmul.f32 %v1175, 0.1
      %v1387 = vmul.f32 %v1177, 0.1
      %v1388 = vmul.f32 %v1180, 0.1
      %v1389 = vmul.f32 %v1182, 0.1
      %v1390 = vmul.f32 %v1185, 0.1
      %v1391 = vmul.f32 %v1187, 0.1
      %v1392 = vmul.f32 %v1190, 0.1
      %v1393 = vmul.f32 %v1192, 0.1
      %v1394 = vmul.f32 %v1195, 0.1
      %v1395 = vmul.f32 %v1197, 0.1
      %v1396 = vmul.f32 %v1200, 0.1
      %v1397 = vmul.f32 %v1202, 0.1
      %v1398 = vmul.f32 %v1205, 0.1
      %v1399 = vmul.f32 %v1207, 0.1
      %v1400 = vmul.f32 %v1210, 0.1
      %v1401 = vmul.f32 %v1212, 0.1
      %v1402 = vmul.f32 %v1215, 0.1
      %v1403 = vmul.f32 %v1217, 0.1
      %v1404 = vmul.f32 %v1220, 0.1
      %v1405 = vmul.f32 %v1222, 0.1
      %v1406 = vmul.f32 %v1225, 0.1
      %v1407 = vmul.f32 %v1227, 0.1
      %v1408 = vmul.f32 %v1230, 0.1
      %v1409 = vmul.f32 %v1232, 0.1
      %v1410 = vmul.f32 %v1235, 0.1
      %v1411 = vmul.f32 %v1237, 0.1
      %v1412 = vmul.f32 %v1240, 0.1
      %v1413 = vmul.f32 %v1242, 0.1
      %v1414 = vmul.f32 %v1245, 0.1
      %v1415 = vmul.f32 %v1247, 0.1
      %v1416 = vmul.f32 %v1250, 0.1
      %v1417 = vmul.f32 %v1252, 0.1
      %v1418 = vmul.f32 %v1255, 0.1
      %v1419 = vmul.f32 %v1257, 0.1
      %v1420 = vmul.f32 %v1260, 0.1
      %v1421 = vmul.f32 %v1262, 0.1
      %v1422 = vmul.f32 %v1265, 0.1
      %v1423 = vmul.f32 %v1267, 0.1
      %v1424 = vmul.f32 %v1270, 0.1
      %v1425 = vmul.f32 %v1272, 0.1
      %v1426 = vmul.f32 %v1275, 0.1
      %v1427 = vmul.f32 %v1277, 0.1
      %v1428 = vmul.f32 %v1280, 0.1
      %v1429 = vmul.f32 %v1282, 0.1
      %v1430 = vmul.f32 %v1285, 0.1
      %v1431 = vmul.f32 %v1287, 0.1
      %v1432 = vmul.f32 %v1290, 0.1
      %v1433 = vmul.f32 %v1292, 0.1
      %v1434 = vmul.f32 %v1295, 0.1
      %v1435 = vmul.f32 %v1297, 0.1
      %v1436 = vmul.f32 %v1300, 0.1
      %v1437 = vmul.f32 %v1302, 0.1
      %v1438 = vmul.f32 %v1305, 0.1
      %v1439 = vmul.f32 %v1307, 0.1
      %v1440 = vmul.f32 %v1310, 0.1
      %v1441 = vmul.f32 %v1312, 0.1
      %v1442 = vmax.f32 %v995, %v1314
      %v1443 = vmax.f32 %v997, %v1315
      %v1444 = vmax.f32 %v1000, %v1316
      %v1445 = vmax.f32 %v1002, %v1317
      %v1446 = vmax.f32 %v1005, %v1318
      %v1447 = vmax.f32 %v1007, %v1319
      %v1448 = vmax.f32 %v1010, %v1320
      %v1449 = vmax.f32 %v1012, %v1321
      %v1450 = vmax.f32 %v1015, %v1322
      %v1451 = vmax.f32 %v1017, %v1323
      %v1452 = vmax.f32 %v1020, %v1324
      %v1453 = vmax.f32 %v1022, %v1325
      %v1454 = vmax.f32 %v1025, %v1326
      %v1455 = vmax.f32 %v1027, %v1327
      %v1456 = vmax.f32 %v1030, %v1328
      %v1457 = vmax.f32 %v1032, %v1329
      %v1458 = vmax.f32 %v1035, %v1330
      %v1459 = vmax.f32 %v1037, %v1331
      %v1460 = vmax.f32 %v1040, %v1332
      %v1461 = vmax.f32 %v1042, %v1333
      %v1462 = vmax.f32 %v1045, %v1334
      %v1463 = vmax.f32 %v1047, %v1335
      %v1464 = vmax.f32 %v1050, %v1336
      %v1465 = vmax.f32 %v1052, %v1337
      %v1466 = vmax.f32 %v1055, %v1338
      %v1467 = vmax.f32 %v1057, %v1339
      %v1468 = vmax.f32 %v1060, %v1340
      %v1469 = vmax.f32 %v1062, %v1341
      %v1470 = vmax.f32 %v1065, %v1342
      %v1471 = vmax.f32 %v1067, %v1343
      %v1472 = vmax.f32 %v1070, %v1344
      %v1473 = vmax.f32 %v1072, %v1345
      %v1474 = vmax.f32 %v1075, %v1346
      %v1475 = vmax.f32 %v1077, %v1347
      %v1476 = vmax.f32 %v1080, %v1348
      %v1477 = vmax.f32 %v1082, %v1349
      %v1478 = vmax.f32 %v1085, %v1350
      %v1479 = vmax.f32 %v1087, %v1351
      %v1480 = vmax.f32 %v1090, %v1352
      %v1481 = vmax.f32 %v1092, %v1353
      %v1482 = vmax.f32 %v1095, %v1354
      %v1483 = vmax.f32 %v1097, %v1355
      %v1484 = vmax.f32 %v1100, %v1356
      %v1485 = vmax.f32 %v1102, %v1357
      %v1486 = vmax.f32 %v1105, %v1358
      %v1487 = vmax.f32 %v1107, %v1359
      %v1488 = vmax.f32 %v1110, %v1360
      %v1489 = vmax.f32 %v1112, %v1361
      %v1490 = vmax.f32 %v1115, %v1362
      %v1491 = vmax.f32 %v1117, %v1363
      %v1492 = vmax.f32 %v1120, %v1364
      %v1493 = vmax.f32 %v1122, %v1365
      %v1494 = vmax.f32 %v1125, %v1366
      %v1495 = vmax.f32 %v1127, %v1367
      %v1496 = vmax.f32 %v1130, %v1368
      %v1497 = vmax.f32 %v1132, %v1369
      %v1498 = vmax.f32 %v1135, %v1370
      %v1499 = vmax.f32 %v1137, %v1371
      %v1500 = vmax.f32 %v1140, %v1372
      %v1501 = vmax.f32 %v1142, %v1373
      %v1502 = vmax.f32 %v1145, %v1374
      %v1503 = vmax.f32 %v1147, %v1375
      %v1504 = vmax.f32 %v1150, %v1376
      %v1505 = vmax.f32 %v1152, %v1377
      %v1506 = vmax.f32 %v1155, %v1378
      %v1507 = vmax.f32 %v1157, %v1379
      %v1508 = vmax.f32 %v1160, %v1380
      %v1509 = vmax.f32 %v1162, %v1381
      %v1510 = vmax.f32 %v1165, %v1382
      %v1511 = vmax.f32 %v1167, %v1383
      %v1512 = vmax.f32 %v1170, %v1384
      %v1513 = vmax.f32 %v1172, %v1385
      %v1514 = vmax.f32 %v1175, %v1386
      %v1515 = vmax.f32 %v1177, %v1387
      %v1516 = vmax.f32 %v1180, %v1388
      %v1517 = vmax.f32 %v1182, %v1389
      %v1518 = vmax.f32 %v1185, %v1390
      %v1519 = vmax.f32 %v1187, %v1391
      %v1520 = vmax.f32 %v1190, %v1392
      %v1521 = vmax.f32 %v1192, %v1393
      %v1522 = vmax.f32 %v1195, %v1394
      %v1523 = vmax.f32 %v1197, %v1395
      %v1524 = vmax.f32 %v1200, %v1396
      %v1525 = vmax.f32 %v1202, %v1397
      %v1526 = vmax.f32 %v1205, %v1398
      %v1527 = vmax.f32 %v1207, %v1399
      %v1528 = vmax.f32 %v1210, %v1400
      %v1529 = vmax.f32 %v1212, %v1401
      %v1530 = vmax.f32 %v1215, %v1402
      %v1531 = vmax.f32 %v1217, %v1403
      %v1532 = vmax.f32 %v1220, %v1404
      %v1533 = vmax.f32 %v1222, %v1405
      %v1534 = vmax.f32 %v1225, %v1406
      %v1535 = vmax.f32 %v1227, %v1407
      %v1536 = vmax.f32 %v1230, %v1408
      %v1537 = vmax.f32 %v1232, %v1409
      %v1538 = vmax.f32 %v1235, %v1410
      %v1539 = vmax.f32 %v1237, %v1411
      %v1540 = vmax.f32 %v1240, %v1412
      %v1541 = vmax.f32 %v1242, %v1413
      %v1542 = vmax.f32 %v1245, %v1414
      %v1543 = vmax.f32 %v1247, %v1415
      %v1544 = vmax.f32 %v1250, %v1416
      %v1545 = vmax.f32 %v1252, %v1417
      %v1546 = vmax.f32 %v1255, %v1418
      %v1547 = vmax.f32 %v1257, %v1419
      %v1548 = vmax.f32 %v1260, %v1420
      %v1549 = vmax.f32 %v1262, %v1421
      %v1550 = vmax.f32 %v1265, %v1422
      %v1551 = vmax.f32 %v1267, %v1423
      %v1552 = vmax.f32 %v1270, %v1424
      %v1553 = vmax.f32 %v1272, %v1425
      %v1554 = vmax.f32 %v1275, %v1426
      %v1555 = vmax.f32 %v1277, %v1427
      %v1556 = vmax.f32 %v1280, %v1428
      %v1557 = vmax.f32 %v1282, %v1429
      %v1558 = vmax.f32 %v1285, %v1430
      %v1559 = vmax.f32 %v1287, %v1431
      %v1560 = vmax.f32 %v1290, %v1432
      %v1561 = vmax.f32 %v1292, %v1433
      %v1562 = vmax.f32 %v1295, %v1434
      %v1563 = vmax.f32 %v1297, %v1435
      %v1564 = vmax.f32 %v1300, %v1436
      %v1565 = vmax.f32 %v1302, %v1437
      %v1566 = vmax.f32 %v1305, %v1438
      %v1567 = vmax.f32 %v1307, %v1439
      %v1568 = vmax.f32 %v1310, %v1440
      %v1569 = vmax.f32 %v1312, %v1441
      %v1570 = vmax.f32 %v1442, %v1446
      %v1571 = vmax.f32 %v1443, %v1447
      %v1572 = vmax.f32 %v1444, %v1448
      %v1573 = vmax.f32 %v1445, %v1449
      %v1574 = vmax.f32 %v1450, %v1454
      %v1575 = vmax.f32 %v1451, %v1455
      %v1576 = vmax.f32 %v1452, %v1456
      %v1577 = vmax.f32 %v1453, %v1457
      %v1578 = vmax.f32 %v1458, %v1462
      %v1579 = vmax.f32 %v1459, %v1463
      %v1580 = vmax.f32 %v1460, %v1464
      %v1581 = vmax.f32 %v1461, %v1465
      %v1582 = vmax.f32 %v1466, %v1470
      %v1583 = vmax.f32 %v1467, %v1471
      %v1584 = vmax.f32 %v1468, %v1472
      %v1585 = vmax.f32 %v1469, %v1473
      %v1586 = vmax.f32 %v1474, %v1478
      %v1587 = vmax.f32 %v1475, %v1479
      %v1588 = vmax.f32 %v1476, %v1480
      %v1589 = vmax.f32 %v1477, %v1481
      %v1590 = vmax.f32 %v1482, %v1486
      %v1591 = vmax.f32 %v1483, %v1487
      %v1592 = vmax.f32 %v1484, %v1488
      %v1593 = vmax.f32 %v1485, %v1489
      %v1594 = vmax.f32 %v1490, %v1494
      %v1595 = vmax.f32 %v1491, %v1495
      %v1596 = vmax.f32 %v1492, %v1496
      %v1597 = vmax.f32 %v1493, %v1497
      %v1598 = vmax.f32 %v1498, %v1502
      %v1599 = vmax.f32 %v1499, %v1503
      %v1600 = vmax.f32 %v1500, %v1504
      %v1601 = vmax.f32 %v1501, %v1505
      %v1602 = vmax.f32 %v1506, %v1510
      %v1603 = vmax.f32 %v1507, %v1511
      %v1604 = vmax.f32 %v1508, %v1512
      %v1605 = vmax.f32 %v1509, %v1513
      %v1606 = vmax.f32 %v1514, %v1518
      %v1607 = vmax.f32 %v1515, %v1519
      %v1608 = vmax.f32 %v1516, %v1520
      %v1609 = vmax.f32 %v1517, %v1521
      %v1610 = vmax.f32 %v1522, %v1526
      %v1611 = vmax.f32 %v1523, %v1527
      %v1612 = vmax.f32 %v1524, %v1528
      %v1613 = vmax.f32 %v1525, %v1529
      %v1614 = vmax.f32 %v1530, %v1534
      %v1615 = vmax.f32 %v1531, %v1535
      %v1616 = vmax.f32 %v1532, %v1536
      %v1617 = vmax.f32 %v1533, %v1537
      %v1618 = vmax.f32 %v1538, %v1542
      %v1619 = vmax.f32 %v1539, %v1543
      %v1620 = vmax.f32 %v1540, %v1544
      %v1621 = vmax.f32 %v1541, %v1545
      %v1622 = vmax.f32 %v1546, %v1550
      %v1623 = vmax.f32 %v1547, %v1551
      %v1624 = vmax.f32 %v1548, %v1552
      %v1625 = vmax.f32 %v1549, %v1553
      %v1626 = vmax.f32 %v1554, %v1558
      %v1627 = vmax.f32 %v1555, %v1559
      %v1628 = vmax.f32 %v1556, %v1560
      %v1629 = vmax.f32 %v1557, %v1561
      %v1630 = vmax.f32 %v1562, %v1566
      %v1631 = vmax.f32 %v1563, %v1567
      %v1632 = vmax.f32 %v1564, %v1568
      %v1633 = vmax.f32 %v1565, %v1569
      %1634 = vst [vmem:[#allocation6] sm:$0xff] %v1570
      %1635 = vst [vmem:[#allocation6 + $0x8] sm:$0xff] %v1571
      %1636 = vst [vmem:[#allocation6 + $0x10] sm:$0xff] %v1572
      %1637 = vst [vmem:[#allocation6 + $0x18] sm:$0xff] %v1573
      %1638 = vst [vmem:[#allocation6 + $0x20] sm:$0xff] %v1574
      %1639 = vst [vmem:[#allocation6 + $0x28] sm:$0xff] %v1575
      %1640 = vst [vmem:[#allocation6 + $0x30] sm:$0xff] %v1576
      %1641 = vst [vmem:[#allocation6 + $0x38] sm:$0xff] %v1577
      %1642 = vst [vmem:[#allocation6 + $0x40] sm:$0xff] %v1578
      %1643 = vst [vmem:[#allocation6 + $0x48] sm:$0xff] %v1579
      %1644 = vst [vmem:[#allocation6 + $0x50] sm:$0xff] %v1580
      %1645 = vst [vmem:[#allocation6 + $0x58] sm:$0xff] %v1581
      %1646 = vst [vmem:[#allocation6 + $0x60] sm:$0xff] %v1582
      %1647 = vst [vmem:[#allocation6 + $0x68] sm:$0xff] %v1583
      %1648 = vst [vmem:[#allocation6 + $0x70] sm:$0xff] %v1584
      %1649 = vst [vmem:[#allocation6 + $0x78] sm:$0xff] %v1585
      %1650 = vst [vmem:[#allocation6 + $0x80] sm:$0xff] %v1586
      %1651 = vst [vmem:[#allocation6 + $0x88] sm:$0xff] %v1587
      %1652 = vst [vmem:[#allocation6 + $0x90] sm:$0xff] %v1588
      %1653 = vst [vmem:[#allocation6 + $0x98] sm:$0xff] %v1589
      %1654 = vst [vmem:[#allocation6 + $0xa0] sm:$0xff] %v1590
      %1655 = vst [vmem:[#allocation6 + $0xa8] sm:$0xff] %v1591
      %1656 = vst [vmem:[#allocation6 + $0xb0] sm:$0xff] %v1592
      %1657 = vst [vmem:[#allocation6 + $0xb8] sm:$0xff] %v1593
      %1658 = vst [vmem:[#allocation6 + $0xc0] sm:$0xff] %v1594
      %1659 = vst [vmem:[#allocation6 + $0xc8] sm:$0xff] %v1595
      %1660 = vst [vmem:[#allocation6 + $0xd0] sm:$0xff] %v1596
      %1661 = vst [vmem:[#allocation6 + $0xd8] sm:$0xff] %v1597
      %1662 = vst [vmem:[#allocation6 + $0xe0] sm:$0xff] %v1598
      %1663 = vst [vmem:[#allocation6 + $0xe8] sm:$0xff] %v1599
      %1664 = vst [vmem:[#allocation6 + $0xf0] sm:$0xff] %v1600
      %1665 = vst [vmem:[#allocation6 + $0xf8] sm:$0xff] %v1601
      %1666 = vst [vmem:[#allocation6 + $0x100] sm:$0xff] %v1602
      %1667 = vst [vmem:[#allocation6 + $0x108] sm:$0xff] %v1603
      %1668 = vst [vmem:[#allocation6 + $0x110] sm:$0xff] %v1604
      %1669 = vst [vmem:[#allocation6 + $0x118] sm:$0xff] %v1605
      %1670 = vst [vmem:[#allocation6 + $0x120] sm:$0xff] %v1606
      %1671 = vst [vmem:[#allocation6 + $0x128] sm:$0xff] %v1607
      %1672 = vst [vmem:[#allocation6 + $0x130] sm:$0xff] %v1608
      %1673 = vst [vmem:[#allocation6 + $0x138] sm:$0xff] %v1609
      %1674 = vst [vmem:[#allocation6 + $0x140] sm:$0xff] %v1610
      %1675 = vst [vmem:[#allocation6 + $0x148] sm:$0xff] %v1611
      %1676 = vst [vmem:[#allocation6 + $0x150] sm:$0xff] %v1612
      %1677 = vst [vmem:[#allocation6 + $0x158] sm:$0xff] %v1613
      %1678 = vst [vmem:[#allocation6 + $0x160] sm:$0xff] %v1614
      %1679 = vst [vmem:[#allocation6 + $0x168] sm:$0xff] %v1615
      %1680 = vst [vmem:[#allocation6 + $0x170] sm:$0xff] %v1616
      %1681 = vst [vmem:[#allocation6 + $0x178] sm:$0xff] %v1617
      %1682 = vst [vmem:[#allocation6 + $0x180] sm:$0xff] %v1618
      %1683 = vst [vmem:[#allocation6 + $0x188] sm:$0xff] %v1619
      %1684 = vst [vmem:[#allocation6 + $0x190] sm:$0xff] %v1620
      %1685 = vst [vmem:[#allocation6 + $0x198] sm:$0xff] %v1621
      %1686 = vst [vmem:[#allocation6 + $0x1a0] sm:$0xff] %v1622
      %1687 = vst [vmem:[#allocation6 + $0x1a8] sm:$0xff] %v1623
      %1688 = vst [vmem:[#allocation6 + $0x1b0] sm:$0xff] %v1624
      %1689 = vst [vmem:[#allocation6 + $0x1b8] sm:$0xff] %v1625
      %1690 = vst [vmem:[#allocation6 + $0x1c0] sm:$0xff] %v1626
      %1691 = vst [vmem:[#allocation6 + $0x1c8] sm:$0xff] %v1627
      %1692 = vst [vmem:[#allocation6 + $0x1d0] sm:$0xff] %v1628
      %1693 = vst [vmem:[#allocation6 + $0x1d8] sm:$0xff] %v1629
      %1694 = vst [vmem:[#allocation6 + $0x1e0] sm:$0xff] %v1630
      %1695 = vst [vmem:[#allocation6 + $0x1e8] sm:$0xff] %v1631
      %1696 = vst [vmem:[#allocation6 + $0x1f0] sm:$0xff] %v1632
      %1697 = vst [vmem:[#allocation6 + $0x1f8] sm:$0xff] %v1633
      %v1698 = vld [vmem:[#allocation6] ss:$2 sm:$0xff]
      %s1699 = scalar_lea.vmem [#allocation6], 16
      %v1700 = vld [vmem:[%s1699] ss:$2 sm:$0xff]
      %s1701 = scalar_lea.vmem [#allocation6], 32
      %v1702 = vld [vmem:[%s1701] ss:$2 sm:$0xff]
      %s1703 = scalar_lea.vmem [#allocation6], 48
      %v1704 = vld [vmem:[%s1703] ss:$2 sm:$0xff]
      %s1705 = scalar_lea.vmem [#allocation6], 64
      %v1706 = vld [vmem:[%s1705] ss:$2 sm:$0xff]
      %s1707 = scalar_lea.vmem [#allocation6], 80
      %v1708 = vld [vmem:[%s1707] ss:$2 sm:$0xff]
      %s1709 = scalar_lea.vmem [#allocation6], 96
      %v1710 = vld [vmem:[%s1709] ss:$2 sm:$0xff]
      %s1711 = scalar_lea.vmem [#allocation6], 112
      %v1712 = vld [vmem:[%s1711] ss:$2 sm:$0xff]
      %s1713 = scalar_lea.vmem [#allocation6], 128
      %v1714 = vld [vmem:[%s1713] ss:$2 sm:$0xff]
      %s1715 = scalar_lea.vmem [#allocation6], 144
      %v1716 = vld [vmem:[%s1715] ss:$2 sm:$0xff]
      %s1717 = scalar_lea.vmem [#allocation6], 160
      %v1718 = vld [vmem:[%s1717] ss:$2 sm:$0xff]
      %s1719 = scalar_lea.vmem [#allocation6], 176
      %v1720 = vld [vmem:[%s1719] ss:$2 sm:$0xff]
      %s1721 = scalar_lea.vmem [#allocation6], 192
      %v1722 = vld [vmem:[%s1721] ss:$2 sm:$0xff]
      %s1723 = scalar_lea.vmem [#allocation6], 208
      %v1724 = vld [vmem:[%s1723] ss:$2 sm:$0xff]
      %s1725 = scalar_lea.vmem [#allocation6], 224
      %v1726 = vld [vmem:[%s1725] ss:$2 sm:$0xff]
      %s1727 = scalar_lea.vmem [#allocation6], 240
      %v1728 = vld [vmem:[%s1727] ss:$2 sm:$0xff]
      %s1729 = scalar_lea.vmem [#allocation6], 256
      %v1730 = vld [vmem:[%s1729] ss:$2 sm:$0xff]
      %s1731 = scalar_lea.vmem [#allocation6], 272
      %v1732 = vld [vmem:[%s1731] ss:$2 sm:$0xff]
      %s1733 = scalar_lea.vmem [#allocation6], 288
      %v1734 = vld [vmem:[%s1733] ss:$2 sm:$0xff]
      %s1735 = scalar_lea.vmem [#allocation6], 304
      %v1736 = vld [vmem:[%s1735] ss:$2 sm:$0xff]
      %s1737 = scalar_lea.vmem [#allocation6], 320
      %v1738 = vld [vmem:[%s1737] ss:$2 sm:$0xff]
      %s1739 = scalar_lea.vmem [#allocation6], 336
      %v1740 = vld [vmem:[%s1739] ss:$2 sm:$0xff]
      %s1741 = scalar_lea.vmem [#allocation6], 352
      %v1742 = vld [vmem:[%s1741] ss:$2 sm:$0xff]
      %s1743 = scalar_lea.vmem [#allocation6], 368
      %v1744 = vld [vmem:[%s1743] ss:$2 sm:$0xff]
      %s1745 = scalar_lea.vmem [#allocation6], 384
      %v1746 = vld [vmem:[%s1745] ss:$2 sm:$0xff]
      %s1747 = scalar_lea.vmem [#allocation6], 400
      %v1748 = vld [vmem:[%s1747] ss:$2 sm:$0xff]
      %s1749 = scalar_lea.vmem [#allocation6], 416
      %v1750 = vld [vmem:[%s1749] ss:$2 sm:$0xff]
      %s1751 = scalar_lea.vmem [#allocation6], 432
      %v1752 = vld [vmem:[%s1751] ss:$2 sm:$0xff]
      %s1753 = scalar_lea.vmem [#allocation6], 448
      %v1754 = vld [vmem:[%s1753] ss:$2 sm:$0xff]
      %s1755 = scalar_lea.vmem [#allocation6], 464
      %v1756 = vld [vmem:[%s1755] ss:$2 sm:$0xff]
      %s1757 = scalar_lea.vmem [#allocation6], 480
      %v1758 = vld [vmem:[%s1757] ss:$2 sm:$0xff]
      %s1759 = scalar_lea.vmem [#allocation6], 496
      %v1760 = vld [vmem:[%s1759] ss:$2 sm:$0xff]
      %s1761 = scalar_lea.vmem [#allocation6], 1
      %v1762 = vld [vmem:[%s1761] ss:$2 sm:$0xff]
      %s1763 = scalar_lea.vmem [#allocation6], 17
      %v1764 = vld [vmem:[%s1763] ss:$2 sm:$0xff]
      %s1765 = scalar_lea.vmem [#allocation6], 33
      %v1766 = vld [vmem:[%s1765] ss:$2 sm:$0xff]
      %s1767 = scalar_lea.vmem [#allocation6], 49
      %v1768 = vld [vmem:[%s1767] ss:$2 sm:$0xff]
      %s1769 = scalar_lea.vmem [#allocation6], 65
      %v1770 = vld [vmem:[%s1769] ss:$2 sm:$0xff]
      %s1771 = scalar_lea.vmem [#allocation6], 81
      %v1772 = vld [vmem:[%s1771] ss:$2 sm:$0xff]
      %s1773 = scalar_lea.vmem [#allocation6], 97
      %v1774 = vld [vmem:[%s1773] ss:$2 sm:$0xff]
      %s1775 = scalar_lea.vmem [#allocation6], 113
      %v1776 = vld [vmem:[%s1775] ss:$2 sm:$0xff]
      %s1777 = scalar_lea.vmem [#allocation6], 129
      %v1778 = vld [vmem:[%s1777] ss:$2 sm:$0xff]
      %s1779 = scalar_lea.vmem [#allocation6], 145
      %v1780 = vld [vmem:[%s1779] ss:$2 sm:$0xff]
      %s1781 = scalar_lea.vmem [#allocation6], 161
      %v1782 = vld [vmem:[%s1781] ss:$2 sm:$0xff]
      %s1783 = scalar_lea.vmem [#allocation6], 177
      %v1784 = vld [vmem:[%s1783] ss:$2 sm:$0xff]
      %s1785 = scalar_lea.vmem [#allocation6], 193
      %v1786 = vld [vmem:[%s1785] ss:$2 sm:$0xff]
      %s1787 = scalar_lea.vmem [#allocation6], 209
      %v1788 = vld [vmem:[%s1787] ss:$2 sm:$0xff]
      %s1789 = scalar_lea.vmem [#allocation6], 225
      %v1790 = vld [vmem:[%s1789] ss:$2 sm:$0xff]
      %s1791 = scalar_lea.vmem [#allocation6], 241
      %v1792 = vld [vmem:[%s1791] ss:$2 sm:$0xff]
      %s1793 = scalar_lea.vmem [#allocation6], 257
      %v1794 = vld [vmem:[%s1793] ss:$2 sm:$0xff]
      %s1795 = scalar_lea.vmem [#allocation6], 273
      %v1796 = vld [vmem:[%s1795] ss:$2 sm:$0xff]
      %s1797 = scalar_lea.vmem [#allocation6], 289
      %v1798 = vld [vmem:[%s1797] ss:$2 sm:$0xff]
      %s1799 = scalar_lea.vmem [#allocation6], 305
      %v1800 = vld [vmem:[%s1799] ss:$2 sm:$0xff]
      %s1801 = scalar_lea.vmem [#allocation6], 321
      %v1802 = vld [vmem:[%s1801] ss:$2 sm:$0xff]
      %s1803 = scalar_lea.vmem [#allocation6], 337
      %v1804 = vld [vmem:[%s1803] ss:$2 sm:$0xff]
      %s1805 = scalar_lea.vmem [#allocation6], 353
      %v1806 = vld [vmem:[%s1805] ss:$2 sm:$0xff]
      %s1807 = scalar_lea.vmem [#allocation6], 369
      %v1808 = vld [vmem:[%s1807] ss:$2 sm:$0xff]
      %s1809 = scalar_lea.vmem [#allocation6], 385
      %v1810 = vld [vmem:[%s1809] ss:$2 sm:$0xff]
      %s1811 = scalar_lea.vmem [#allocation6], 401
      %v1812 = vld [vmem:[%s1811] ss:$2 sm:$0xff]
      %s1813 = scalar_lea.vmem [#allocation6], 417
      %v1814 = vld [vmem:[%s1813] ss:$2 sm:$0xff]
      %s1815 = scalar_lea.vmem [#allocation6], 433
      %v1816 = vld [vmem:[%s1815] ss:$2 sm:$0xff]
      %s1817 = scalar_lea.vmem [#allocation6], 449
      %v1818 = vld [vmem:[%s1817] ss:$2 sm:$0xff]
      %s1819 = scalar_lea.vmem [#allocation6], 465
      %v1820 = vld [vmem:[%s1819] ss:$2 sm:$0xff]
      %s1821 = scalar_lea.vmem [#allocation6], 481
      %v1822 = vld [vmem:[%s1821] ss:$2 sm:$0xff]
      %s1823 = scalar_lea.vmem [#allocation6], 497
      %v1824 = vld [vmem:[%s1823] ss:$2 sm:$0xff]
      %v1825 = vmax.f32 %v1698, %v1762
      %v1826 = vmax.f32 %v1700, %v1764
      %v1827 = vmax.f32 %v1702, %v1766
      %v1828 = vmax.f32 %v1704, %v1768
      %v1829 = vmax.f32 %v1706, %v1770
      %v1830 = vmax.f32 %v1708, %v1772
      %v1831 = vmax.f32 %v1710, %v1774
      %v1832 = vmax.f32 %v1712, %v1776
      %v1833 = vmax.f32 %v1714, %v1778
      %v1834 = vmax.f32 %v1716, %v1780
      %v1835 = vmax.f32 %v1718, %v1782
      %v1836 = vmax.f32 %v1720, %v1784
      %v1837 = vmax.f32 %v1722, %v1786
      %v1838 = vmax.f32 %v1724, %v1788
      %v1839 = vmax.f32 %v1726, %v1790
      %v1840 = vmax.f32 %v1728, %v1792
      %v1841 = vmax.f32 %v1730, %v1794
      %v1842 = vmax.f32 %v1732, %v1796
      %v1843 = vmax.f32 %v1734, %v1798
      %v1844 = vmax.f32 %v1736, %v1800
      %v1845 = vmax.f32 %v1738, %v1802
      %v1846 = vmax.f32 %v1740, %v1804
      %v1847 = vmax.f32 %v1742, %v1806
      %v1848 = vmax.f32 %v1744, %v1808
      %v1849 = vmax.f32 %v1746, %v1810
      %v1850 = vmax.f32 %v1748, %v1812
      %v1851 = vmax.f32 %v1750, %v1814
      %v1852 = vmax.f32 %v1752, %v1816
      %v1853 = vmax.f32 %v1754, %v1818
      %v1854 = vmax.f32 %v1756, %v1820
      %v1855 = vmax.f32 %v1758, %v1822
      %v1856 = vmax.f32 %v1760, %v1824
      %s1857 = scalar_lea.vmem [#allocation2], 32
      %1858 = vst [vmem:[%s1857 + $0x8] sm:$0xff] %v1825
      %1859 = vst [vmem:[%s1857 + $0x10] sm:$0xff] %v1826
      %1860 = vst [vmem:[%s1857 + $0x28] sm:$0xff] %v1827
      %1861 = vst [vmem:[%s1857 + $0x30] sm:$0xff] %v1828
      %1862 = vst [vmem:[%s1857 + $0x48] sm:$0xff] %v1829
      %1863 = vst [vmem:[%s1857 + $0x50] sm:$0xff] %v1830
      %1864 = vst [vmem:[%s1857 + $0x68] sm:$0xff] %v1831
      %1865 = vst [vmem:[%s1857 + $0x70] sm:$0xff] %v1832
      %1866 = vst [vmem:[%s1857 + $0x88] sm:$0xff] %v1833
      %1867 = vst [vmem:[%s1857 + $0x90] sm:$0xff] %v1834
      %1868 = vst [vmem:[%s1857 + $0xa8] sm:$0xff] %v1835
      %1869 = vst [vmem:[%s1857 + $0xb0] sm:$0xff] %v1836
      %1870 = vst [vmem:[%s1857 + $0xc8] sm:$0xff] %v1837
      %1871 = vst [vmem:[%s1857 + $0xd0] sm:$0xff] %v1838
      %1872 = vst [vmem:[%s1857 + $0xe8] sm:$0xff] %v1839
      %1873 = vst [vmem:[%s1857 + $0xf0] sm:$0xff] %v1840
      %1874 = vst [vmem:[%s1857 + $0x108] sm:$0xff] %v1841
      %1875 = vst [vmem:[%s1857 + $0x110] sm:$0xff] %v1842
      %1876 = vst [vmem:[%s1857 + $0x128] sm:$0xff] %v1843
      %1877 = vst [vmem:[%s1857 + $0x130] sm:$0xff] %v1844
      %1878 = vst [vmem:[%s1857 + $0x148] sm:$0xff] %v1845
      %1879 = vst [vmem:[%s1857 + $0x150] sm:$0xff] %v1846
      %1880 = vst [vmem:[%s1857 + $0x168] sm:$0xff] %v1847
      %1881 = vst [vmem:[%s1857 + $0x170] sm:$0xff] %v1848
      %1882 = vst [vmem:[%s1857 + $0x188] sm:$0xff] %v1849
      %1883 = vst [vmem:[%s1857 + $0x190] sm:$0xff] %v1850
      %1884 = vst [vmem:[%s1857 + $0x1a8] sm:$0xff] %v1851
      %1885 = vst [vmem:[%s1857 + $0x1b0] sm:$0xff] %v1852
      %1886 = vst [vmem:[%s1857 + $0x1c8] sm:$0xff] %v1853
      %1887 = vst [vmem:[%s1857 + $0x1d0] sm:$0xff] %v1854
      %1888 = vst [vmem:[%s1857 + $0x1e8] sm:$0xff] %v1855
      %1889 = vst [vmem:[%s1857 + $0x1f0] sm:$0xff] %v1856
      %v1890 = vld [vmem:[#allocation2 + $0x7] sm:$0xff]
      %v1891 = vld [vmem:[#allocation2 + $0xf] sm:$0xff]
      %v1892 = vld [vmem:[#allocation2 + $0x27] sm:$0xff]
      %v1893 = vld [vmem:[#allocation2 + $0x2f] sm:$0xff]
      %v1894 = vld [vmem:[#allocation2 + $0x47] sm:$0xff]
      %v1895 = vld [vmem:[#allocation2 + $0x4f] sm:$0xff]
      %v1896 = vld [vmem:[#allocation2 + $0x67] sm:$0xff]
      %v1897 = vld [vmem:[#allocation2 + $0x6f] sm:$0xff]
      %v1898 = vld [vmem:[#allocation2 + $0x87] sm:$0xff]
      %v1899 = vld [vmem:[#allocation2 + $0x8f] sm:$0xff]
      %v1900 = vld [vmem:[#allocation2 + $0xa7] sm:$0xff]
      %v1901 = vld [vmem:[#allocation2 + $0xaf] sm:$0xff]
      %v1902 = vld [vmem:[#allocation2 + $0xc7] sm:$0xff]
      %v1903 = vld [vmem:[#allocation2 + $0xcf] sm:$0xff]
      %v1904 = vld [vmem:[#allocation2 + $0xe7] sm:$0xff]
      %v1905 = vld [vmem:[#allocation2 + $0xef] sm:$0xff]
      %v1906 = vld [vmem:[#allocation2 + $0x107] sm:$0xff]
      %v1907 = vld [vmem:[#allocation2 + $0x10f] sm:$0xff]
      %v1908 = vld [vmem:[#allocation2 + $0x127] sm:$0xff]
      %v1909 = vld [vmem:[#allocation2 + $0x12f] sm:$0xff]
      %v1910 = vld [vmem:[#allocation2 + $0x147] sm:$0xff]
      %v1911 = vld [vmem:[#allocation2 + $0x14f] sm:$0xff]
      %v1912 = vld [vmem:[#allocation2 + $0x167] sm:$0xff]
      %v1913 = vld [vmem:[#allocation2 + $0x16f] sm:$0xff]
      %v1914 = vld [vmem:[#allocation2 + $0x187] sm:$0xff]
      %v1915 = vld [vmem:[#allocation2 + $0x18f] sm:$0xff]
      %v1916 = vld [vmem:[#allocation2 + $0x1a7] sm:$0xff]
      %v1917 = vld [vmem:[#allocation2 + $0x1af] sm:$0xff]
      %v1918 = vld [vmem:[#allocation2 + $0x1c7] sm:$0xff]
      %v1919 = vld [vmem:[#allocation2 + $0x1cf] sm:$0xff]
      %v1920 = vld [vmem:[#allocation2 + $0x1e7] sm:$0xff]
      %v1921 = vld [vmem:[#allocation2 + $0x1ef] sm:$0xff]
      %v1922 = vpack.c.bf16 %v1890, %v1890
      %v1923 = vpack.c.bf16 %v1891, %v1891
      %v1924 = vpack.c.bf16 %v1892, %v1892
      %v1925 = vpack.c.bf16 %v1893, %v1893
      %v1926 = vpack.c.bf16 %v1894, %v1894
      %v1927 = vpack.c.bf16 %v1895, %v1895
      %v1928 = vpack.c.bf16 %v1896, %v1896
      %v1929 = vpack.c.bf16 %v1897, %v1897
      %v1930 = vpack.c.bf16 %v1898, %v1898
      %v1931 = vpack.c.bf16 %v1899, %v1899
      %v1932 = vpack.c.bf16 %v1900, %v1900
      %v1933 = vpack.c.bf16 %v1901, %v1901
      %v1934 = vpack.c.bf16 %v1902, %v1902
      %v1935 = vpack.c.bf16 %v1903, %v1903
      %v1936 = vpack.c.bf16 %v1904, %v1904
      %v1937 = vpack.c.bf16 %v1905, %v1905
      %v1938 = vpack.c.bf16 %v1906, %v1906
      %v1939 = vpack.c.bf16 %v1907, %v1907
      %v1940 = vpack.c.bf16 %v1908, %v1908
      %v1941 = vpack.c.bf16 %v1909, %v1909
      %v1942 = vpack.c.bf16 %v1910, %v1910
      %v1943 = vpack.c.bf16 %v1911, %v1911
      %v1944 = vpack.c.bf16 %v1912, %v1912
      %v1945 = vpack.c.bf16 %v1913, %v1913
      %v1946 = vpack.c.bf16 %v1914, %v1914
      %v1947 = vpack.c.bf16 %v1915, %v1915
      %v1948 = vpack.c.bf16 %v1916, %v1916
      %v1949 = vpack.c.bf16 %v1917, %v1917
      %v1950 = vpack.c.bf16 %v1918, %v1918
      %v1951 = vpack.c.bf16 %v1919, %v1919
      %v1952 = vpack.c.bf16 %v1920, %v1920
      %v1953 = vpack.c.bf16 %v1921, %v1921
      %1954 = vst [vmem:[#allocation4] sm:$0xf] %v1922
      %1955 = vst [vmem:[#allocation4 + $0x24] sm:$0xf] %v1923
      %1956 = vst [vmem:[#allocation4 + $0x48] sm:$0xf] %v1924
      %1957 = vst [vmem:[#allocation4 + $0x6c] sm:$0xf] %v1925
      %1958 = vst [vmem:[#allocation4 + $0x90] sm:$0xf] %v1926
      %1959 = vst [vmem:[#allocation4 + $0xb4] sm:$0xf] %v1927
      %1960 = vst [vmem:[#allocation4 + $0xd8] sm:$0xf] %v1928
      %1961 = vst [vmem:[#allocation4 + $0xfc] sm:$0xf] %v1929
      %1962 = vst [vmem:[#allocation4 + $0x120] sm:$0xf] %v1930
      %1963 = vst [vmem:[#allocation4 + $0x144] sm:$0xf] %v1931
      %1964 = vst [vmem:[#allocation4 + $0x168] sm:$0xf] %v1932
      %1965 = vst [vmem:[#allocation4 + $0x18c] sm:$0xf] %v1933
      %1966 = vst [vmem:[#allocation4 + $0x1b0] sm:$0xf] %v1934
      %1967 = vst [vmem:[#allocation4 + $0x1d4] sm:$0xf] %v1935
      %1968 = vst [vmem:[#allocation4 + $0x1f8] sm:$0xf] %v1936
      %1969 = vst [vmem:[#allocation4 + $0x21c] sm:$0xf] %v1937
      %1970 = vst [vmem:[#allocation4 + $0x240] sm:$0xf] %v1938
      %1971 = vst [vmem:[#allocation4 + $0x264] sm:$0xf] %v1939
      %1972 = vst [vmem:[#allocation4 + $0x288] sm:$0xf] %v1940
      %1973 = vst [vmem:[#allocation4 + $0x2ac] sm:$0xf] %v1941
      %1974 = vst [vmem:[#allocation4 + $0x2d0] sm:$0xf] %v1942
      %1975 = vst [vmem:[#allocation4 + $0x2f4] sm:$0xf] %v1943
      %1976 = vst [vmem:[#allocation4 + $0x318] sm:$0xf] %v1944
      %1977 = vst [vmem:[#allocation4 + $0x33c] sm:$0xf] %v1945
      %1978 = vst [vmem:[#allocation4 + $0x360] sm:$0xf] %v1946
      %1979 = vst [vmem:[#allocation4 + $0x384] sm:$0xf] %v1947
      %1980 = vst [vmem:[#allocation4 + $0x3a8] sm:$0xf] %v1948
      %1981 = vst [vmem:[#allocation4 + $0x3cc] sm:$0xf] %v1949
      %1982 = vst [vmem:[#allocation4 + $0x3f0] sm:$0xf] %v1950
      %1983 = vst [vmem:[#allocation4 + $0x414] sm:$0xf] %v1951
      %1984 = vst [vmem:[#allocation4 + $0x438] sm:$0xf] %v1952
      %1985 = vst [vmem:[#allocation4 + $0x45c] sm:$0xf] %v1953
      %v1986 = vld [vmem:[#allocation2 + $0x8] sm:$0xff]
      %v1987 = vld [vmem:[#allocation2 + $0x10] sm:$0xff]
      %v1988 = vld [vmem:[#allocation2 + $0x28] sm:$0xff]
      %v1989 = vld [vmem:[#allocation2 + $0x30] sm:$0xff]
      %v1990 = vld [vmem:[#allocation2 + $0x48] sm:$0xff]
      %v1991 = vld [vmem:[#allocation2 + $0x50] sm:$0xff]
      %v1992 = vld [vmem:[#allocation2 + $0x68] sm:$0xff]
      %v1993 = vld [vmem:[#allocation2 + $0x70] sm:$0xff]
      %v1994 = vld [vmem:[#allocation2 + $0x88] sm:$0xff]
      %v1995 = vld [vmem:[#allocation2 + $0x90] sm:$0xff]
      %v1996 = vld [vmem:[#allocation2 + $0xa8] sm:$0xff]
      %v1997 = vld [vmem:[#allocation2 + $0xb0] sm:$0xff]
      %v1998 = vld [vmem:[#allocation2 + $0xc8] sm:$0xff]
      %v1999 = vld [vmem:[#allocation2 + $0xd0] sm:$0xff]
      %v2000 = vld [vmem:[#allocation2 + $0xe8] sm:$0xff]
      %v2001 = vld [vmem:[#allocation2 + $0xf0] sm:$0xff]
      %v2002 = vld [vmem:[#allocation2 + $0x108] sm:$0xff]
      %v2003 = vld [vmem:[#allocation2 + $0x110] sm:$0xff]
      %v2004 = vld [vmem:[#allocation2 + $0x128] sm:$0xff]
      %v2005 = vld [vmem:[#allocation2 + $0x130] sm:$0xff]
      %v2006 = vld [vmem:[#allocation2 + $0x148] sm:$0xff]
      %v2007 = vld [vmem:[#allocation2 + $0x150] sm:$0xff]
      %v2008 = vld [vmem:[#allocation2 + $0x168] sm:$0xff]
      %v2009 = vld [vmem:[#allocation2 + $0x170] sm:$0xff]
      %v2010 = vld [vmem:[#allocation2 + $0x188] sm:$0xff]
      %v2011 = vld [vmem:[#allocation2 + $0x190] sm:$0xff]
      %v2012 = vld [vmem:[#allocation2 + $0x1a8] sm:$0xff]
      %v2013 = vld [vmem:[#allocation2 + $0x1b0] sm:$0xff]
      %v2014 = vld [vmem:[#allocation2 + $0x1c8] sm:$0xff]
      %v2015 = vld [vmem:[#allocation2 + $0x1d0] sm:$0xff]
      %v2016 = vld [vmem:[#allocation2 + $0x1e8] sm:$0xff]
      %v2017 = vld [vmem:[#allocation2 + $0x1f0] sm:$0xff]
      %v2018 = vpack.c.bf16 %v1986, %v1986
      %v2019 = vpack.c.bf16 %v1987, %v1987
      %v2020 = vpack.c.bf16 %v1988, %v1988
      %v2021 = vpack.c.bf16 %v1989, %v1989
      %v2022 = vpack.c.bf16 %v1990, %v1990
      %v2023 = vpack.c.bf16 %v1991, %v1991
      %v2024 = vpack.c.bf16 %v1992, %v1992
      %v2025 = vpack.c.bf16 %v1993, %v1993
      %v2026 = vpack.c.bf16 %v1994, %v1994
      %v2027 = vpack.c.bf16 %v1995, %v1995
      %v2028 = vpack.c.bf16 %v1996, %v1996
      %v2029 = vpack.c.bf16 %v1997, %v1997
      %v2030 = vpack.c.bf16 %v1998, %v1998
      %v2031 = vpack.c.bf16 %v1999, %v1999
      %v2032 = vpack.c.bf16 %v2000, %v2000
      %v2033 = vpack.c.bf16 %v2001, %v2001
      %v2034 = vpack.c.bf16 %v2002, %v2002
      %v2035 = vpack.c.bf16 %v2003, %v2003
      %v2036 = vpack.c.bf16 %v2004, %v2004
      %v2037 = vpack.c.bf16 %v2005, %v2005
      %v2038 = vpack.c.bf16 %v2006, %v2006
      %v2039 = vpack.c.bf16 %v2007, %v2007
      %v2040 = vpack.c.bf16 %v2008, %v2008
      %v2041 = vpack.c.bf16 %v2009, %v2009
      %v2042 = vpack.c.bf16 %v2010, %v2010
      %v2043 = vpack.c.bf16 %v2011, %v2011
      %v2044 = vpack.c.bf16 %v2012, %v2012
      %v2045 = vpack.c.bf16 %v2013, %v2013
      %v2046 = vpack.c.bf16 %v2014, %v2014
      %v2047 = vpack.c.bf16 %v2015, %v2015
      %v2048 = vpack.c.bf16 %v2016, %v2016
      %v2049 = vpack.c.bf16 %v2017, %v2017
      %2050 = vst [vmem:[#allocation4 + $0x4] sm:$0xf] %v2018
      %2051 = vst [vmem:[#allocation4 + $0x28] sm:$0xf] %v2019
      %2052 = vst [vmem:[#allocation4 + $0x4c] sm:$0xf] %v2020
      %2053 = vst [vmem:[#allocation4 + $0x70] sm:$0xf] %v2021
      %2054 = vst [vmem:[#allocation4 + $0x94] sm:$0xf] %v2022
      %2055 = vst [vmem:[#allocation4 + $0xb8] sm:$0xf] %v2023
      %2056 = vst [vmem:[#allocation4 + $0xdc] sm:$0xf] %v2024
      %2057 = vst [vmem:[#allocation4 + $0x100] sm:$0xf] %v2025
      %2058 = vst [vmem:[#allocation4 + $0x124] sm:$0xf] %v2026
      %2059 = vst [vmem:[#allocation4 + $0x148] sm:$0xf] %v2027
      %2060 = vst [vmem:[#allocation4 + $0x16c] sm:$0xf] %v2028
      %2061 = vst [vmem:[#allocation4 + $0x190] sm:$0xf] %v2029
      %2062 = vst [vmem:[#allocation4 + $0x1b4] sm:$0xf] %v2030
      %2063 = vst [vmem:[#allocation4 + $0x1d8] sm:$0xf] %v2031
      %2064 = vst [vmem:[#allocation4 + $0x1fc] sm:$0xf] %v2032
      %2065 = vst [vmem:[#allocation4 + $0x220] sm:$0xf] %v2033
      %2066 = vst [vmem:[#allocation4 + $0x244] sm:$0xf] %v2034
      %2067 = vst [vmem:[#allocation4 + $0x268] sm:$0xf] %v2035
      %2068 = vst [vmem:[#allocation4 + $0x28c] sm:$0xf] %v2036
      %2069 = vst [vmem:[#allocation4 + $0x2b0] sm:$0xf] %v2037
      %2070 = vst [vmem:[#allocation4 + $0x2d4] sm:$0xf] %v2038
      %2071 = vst [vmem:[#allocation4 + $0x2f8] sm:$0xf] %v2039
      %2072 = vst [vmem:[#allocation4 + $0x31c] sm:$0xf] %v2040
      %2073 = vst [vmem:[#allocation4 + $0x340] sm:$0xf] %v2041
      %2074 = vst [vmem:[#allocation4 + $0x364] sm:$0xf] %v2042
      %2075 = vst [vmem:[#allocation4 + $0x388] sm:$0xf] %v2043
      %2076 = vst [vmem:[#allocation4 + $0x3ac] sm:$0xf] %v2044
      %2077 = vst [vmem:[#allocation4 + $0x3d0] sm:$0xf] %v2045
      %2078 = vst [vmem:[#allocation4 + $0x3f4] sm:$0xf] %v2046
      %2079 = vst [vmem:[#allocation4 + $0x418] sm:$0xf] %v2047
      %2080 = vst [vmem:[#allocation4 + $0x43c] sm:$0xf] %v2048
      %2081 = vst [vmem:[#allocation4 + $0x460] sm:$0xf] %v2049
      %v2082 = vld [vmem:[#allocation2 + $0x9] sm:$0xff]
      %v2083 = vld [vmem:[#allocation2 + $0x11] sm:$0xff]
      %v2084 = vld [vmem:[#allocation2 + $0x29] sm:$0xff]
      %v2085 = vld [vmem:[#allocation2 + $0x31] sm:$0xff]
      %v2086 = vld [vmem:[#allocation2 + $0x49] sm:$0xff]
      %v2087 = vld [vmem:[#allocation2 + $0x51] sm:$0xff]
      %v2088 = vld [vmem:[#allocation2 + $0x69] sm:$0xff]
      %v2089 = vld [vmem:[#allocation2 + $0x71] sm:$0xff]
      %v2090 = vld [vmem:[#allocation2 + $0x89] sm:$0xff]
      %v2091 = vld [vmem:[#allocation2 + $0x91] sm:$0xff]
      %v2092 = vld [vmem:[#allocation2 + $0xa9] sm:$0xff]
      %v2093 = vld [vmem:[#allocation2 + $0xb1] sm:$0xff]
      %v2094 = vld [vmem:[#allocation2 + $0xc9] sm:$0xff]
      %v2095 = vld [vmem:[#allocation2 + $0xd1] sm:$0xff]
      %v2096 = vld [vmem:[#allocation2 + $0xe9] sm:$0xff]
      %v2097 = vld [vmem:[#allocation2 + $0xf1] sm:$0xff]
      %v2098 = vld [vmem:[#allocation2 + $0x109] sm:$0xff]
      %v2099 = vld [vmem:[#allocation2 + $0x111] sm:$0xff]
      %v2100 = vld [vmem:[#allocation2 + $0x129] sm:$0xff]
      %v2101 = vld [vmem:[#allocation2 + $0x131] sm:$0xff]
      %v2102 = vld [vmem:[#allocation2 + $0x149] sm:$0xff]
      %v2103 = vld [vmem:[#allocation2 + $0x151] sm:$0xff]
      %v2104 = vld [vmem:[#allocation2 + $0x169] sm:$0xff]
      %v2105 = vld [vmem:[#allocation2 + $0x171] sm:$0xff]
      %v2106 = vld [vmem:[#allocation2 + $0x189] sm:$0xff]
      %v2107 = vld [vmem:[#allocation2 + $0x191] sm:$0xff]
      %v2108 = vld [vmem:[#allocation2 + $0x1a9] sm:$0xff]
      %v2109 = vld [vmem:[#allocation2 + $0x1b1] sm:$0xff]
      %v2110 = vld [vmem:[#allocation2 + $0x1c9] sm:$0xff]
      %v2111 = vld [vmem:[#allocation2 + $0x1d1] sm:$0xff]
      %v2112 = vld [vmem:[#allocation2 + $0x1e9] sm:$0xff]
      %v2113 = vld [vmem:[#allocation2 + $0x1f1] sm:$0xff]
      %v2114 = vpack.c.bf16 %v2082, %v2082
      %v2115 = vpack.c.bf16 %v2083, %v2083
      %v2116 = vpack.c.bf16 %v2084, %v2084
      %v2117 = vpack.c.bf16 %v2085, %v2085
      %v2118 = vpack.c.bf16 %v2086, %v2086
      %v2119 = vpack.c.bf16 %v2087, %v2087
      %v2120 = vpack.c.bf16 %v2088, %v2088
      %v2121 = vpack.c.bf16 %v2089, %v2089
      %v2122 = vpack.c.bf16 %v2090, %v2090
      %v2123 = vpack.c.bf16 %v2091, %v2091
      %v2124 = vpack.c.bf16 %v2092, %v2092
      %v2125 = vpack.c.bf16 %v2093, %v2093
      %v2126 = vpack.c.bf16 %v2094, %v2094
      %v2127 = vpack.c.bf16 %v2095, %v2095
      %v2128 = vpack.c.bf16 %v2096, %v2096
      %v2129 = vpack.c.bf16 %v2097, %v2097
      %v2130 = vpack.c.bf16 %v2098, %v2098
      %v2131 = vpack.c.bf16 %v2099, %v2099
      %v2132 = vpack.c.bf16 %v2100, %v2100
      %v2133 = vpack.c.bf16 %v2101, %v2101
      %v2134 = vpack.c.bf16 %v2102, %v2102
      %v2135 = vpack.c.bf16 %v2103, %v2103
      %v2136 = vpack.c.bf16 %v2104, %v2104
      %v2137 = vpack.c.bf16 %v2105, %v2105
      %v2138 = vpack.c.bf16 %v2106, %v2106
      %v2139 = vpack.c.bf16 %v2107, %v2107
      %v2140 = vpack.c.bf16 %v2108, %v2108
      %v2141 = vpack.c.bf16 %v2109, %v2109
      %v2142 = vpack.c.bf16 %v2110, %v2110
      %v2143 = vpack.c.bf16 %v2111, %v2111
      %v2144 = vpack.c.bf16 %v2112, %v2112
      %v2145 = vpack.c.bf16 %v2113, %v2113
      %2146 = vst [vmem:[#allocation4 + $0x8] sm:$0xf] %v2114
      %2147 = vst [vmem:[#allocation4 + $0x2c] sm:$0xf] %v2115
      %2148 = vst [vmem:[#allocation4 + $0x50] sm:$0xf] %v2116
      %2149 = vst [vmem:[#allocation4 + $0x74] sm:$0xf] %v2117
      %2150 = vst [vmem:[#allocation4 + $0x98] sm:$0xf] %v2118
      %2151 = vst [vmem:[#allocation4 + $0xbc] sm:$0xf] %v2119
      %2152 = vst [vmem:[#allocation4 + $0xe0] sm:$0xf] %v2120
      %2153 = vst [vmem:[#allocation4 + $0x104] sm:$0xf] %v2121
      %2154 = vst [vmem:[#allocation4 + $0x128] sm:$0xf] %v2122
      %2155 = vst [vmem:[#allocation4 + $0x14c] sm:$0xf] %v2123
      %2156 = vst [vmem:[#allocation4 + $0x170] sm:$0xf] %v2124
      %2157 = vst [vmem:[#allocation4 + $0x194] sm:$0xf] %v2125
      %2158 = vst [vmem:[#allocation4 + $0x1b8] sm:$0xf] %v2126
      %2159 = vst [vmem:[#allocation4 + $0x1dc] sm:$0xf] %v2127
      %2160 = vst [vmem:[#allocation4 + $0x200] sm:$0xf] %v2128
      %2161 = vst [vmem:[#allocation4 + $0x224] sm:$0xf] %v2129
      %2162 = vst [vmem:[#allocation4 + $0x248] sm:$0xf] %v2130
      %2163 = vst [vmem:[#allocation4 + $0x26c] sm:$0xf] %v2131
      %2164 = vst [vmem:[#allocation4 + $0x290] sm:$0xf] %v2132
      %2165 = vst [vmem:[#allocation4 + $0x2b4] sm:$0xf] %v2133
      %2166 = vst [vmem:[#allocation4 + $0x2d8] sm:$0xf] %v2134
      %2167 = vst [vmem:[#allocation4 + $0x2fc] sm:$0xf] %v2135
      %2168 = vst [vmem:[#allocation4 + $0x320] sm:$0xf] %v2136
      %2169 = vst [vmem:[#allocation4 + $0x344] sm:$0xf] %v2137
      %2170 = vst [vmem:[#allocation4 + $0x368] sm:$0xf] %v2138
      %2171 = vst [vmem:[#allocation4 + $0x38c] sm:$0xf] %v2139
      %2172 = vst [vmem:[#allocation4 + $0x3b0] sm:$0xf] %v2140
      %2173 = vst [vmem:[#allocation4 + $0x3d4] sm:$0xf] %v2141
      %2174 = vst [vmem:[#allocation4 + $0x3f8] sm:$0xf] %v2142
      %2175 = vst [vmem:[#allocation4 + $0x41c] sm:$0xf] %v2143
      %2176 = vst [vmem:[#allocation4 + $0x440] sm:$0xf] %v2144
      %2177 = vst [vmem:[#allocation4 + $0x464] sm:$0xf] %v2145
      %v2178 = vld [vmem:[%s1857 + $0x7] sm:$0xff]
      %v2179 = vld [vmem:[%s1857 + $0xf] sm:$0xff]
      %v2180 = vld [vmem:[%s1857 + $0x27] sm:$0xff]
      %v2181 = vld [vmem:[%s1857 + $0x2f] sm:$0xff]
      %v2182 = vld [vmem:[%s1857 + $0x47] sm:$0xff]
      %v2183 = vld [vmem:[%s1857 + $0x4f] sm:$0xff]
      %v2184 = vld [vmem:[%s1857 + $0x67] sm:$0xff]
      %v2185 = vld [vmem:[%s1857 + $0x6f] sm:$0xff]
      %v2186 = vld [vmem:[%s1857 + $0x87] sm:$0xff]
      %v2187 = vld [vmem:[%s1857 + $0x8f] sm:$0xff]
      %v2188 = vld [vmem:[%s1857 + $0xa7] sm:$0xff]
      %v2189 = vld [vmem:[%s1857 + $0xaf] sm:$0xff]
      %v2190 = vld [vmem:[%s1857 + $0xc7] sm:$0xff]
      %v2191 = vld [vmem:[%s1857 + $0xcf] sm:$0xff]
      %v2192 = vld [vmem:[%s1857 + $0xe7] sm:$0xff]
      %v2193 = vld [vmem:[%s1857 + $0xef] sm:$0xff]
      %v2194 = vld [vmem:[%s1857 + $0x107] sm:$0xff]
      %v2195 = vld [vmem:[%s1857 + $0x10f] sm:$0xff]
      %v2196 = vld [vmem:[%s1857 + $0x127] sm:$0xff]
      %v2197 = vld [vmem:[%s1857 + $0x12f] sm:$0xff]
      %v2198 = vld [vmem:[%s1857 + $0x147] sm:$0xff]
      %v2199 = vld [vmem:[%s1857 + $0x14f] sm:$0xff]
      %v2200 = vld [vmem:[%s1857 + $0x167] sm:$0xff]
      %v2201 = vld [vmem:[%s1857 + $0x16f] sm:$0xff]
      %v2202 = vld [vmem:[%s1857 + $0x187] sm:$0xff]
      %v2203 = vld [vmem:[%s1857 + $0x18f] sm:$0xff]
      %v2204 = vld [vmem:[%s1857 + $0x1a7] sm:$0xff]
      %v2205 = vld [vmem:[%s1857 + $0x1af] sm:$0xff]
      %v2206 = vld [vmem:[%s1857 + $0x1c7] sm:$0xff]
      %v2207 = vld [vmem:[%s1857 + $0x1cf] sm:$0xff]
      %v2208 = vld [vmem:[%s1857 + $0x1e7] sm:$0xff]
      %v2209 = vld [vmem:[%s1857 + $0x1ef] sm:$0xff]
      %v2210 = vpack.c.bf16 %v2178, %v2178
      %v2211 = vpack.c.bf16 %v2179, %v2179
      %v2212 = vpack.c.bf16 %v2180, %v2180
      %v2213 = vpack.c.bf16 %v2181, %v2181
      %v2214 = vpack.c.bf16 %v2182, %v2182
      %v2215 = vpack.c.bf16 %v2183, %v2183
      %v2216 = vpack.c.bf16 %v2184, %v2184
      %v2217 = vpack.c.bf16 %v2185, %v2185
      %v2218 = vpack.c.bf16 %v2186, %v2186
      %v2219 = vpack.c.bf16 %v2187, %v2187
      %v2220 = vpack.c.bf16 %v2188, %v2188
      %v2221 = vpack.c.bf16 %v2189, %v2189
      %v2222 = vpack.c.bf16 %v2190, %v2190
      %v2223 = vpack.c.bf16 %v2191, %v2191
      %v2224 = vpack.c.bf16 %v2192, %v2192
      %v2225 = vpack.c.bf16 %v2193, %v2193
      %v2226 = vpack.c.bf16 %v2194, %v2194
      %v2227 = vpack.c.bf16 %v2195, %v2195
      %v2228 = vpack.c.bf16 %v2196, %v2196
      %v2229 = vpack.c.bf16 %v2197, %v2197
      %v2230 = vpack.c.bf16 %v2198, %v2198
      %v2231 = vpack.c.bf16 %v2199, %v2199
      %v2232 = vpack.c.bf16 %v2200, %v2200
      %v2233 = vpack.c.bf16 %v2201, %v2201
      %v2234 = vpack.c.bf16 %v2202, %v2202
      %v2235 = vpack.c.bf16 %v2203, %v2203
      %v2236 = vpack.c.bf16 %v2204, %v2204
      %v2237 = vpack.c.bf16 %v2205, %v2205
      %v2238 = vpack.c.bf16 %v2206, %v2206
      %v2239 = vpack.c.bf16 %v2207, %v2207
      %v2240 = vpack.c.bf16 %v2208, %v2208
      %v2241 = vpack.c.bf16 %v2209, %v2209
      %2242 = vst [vmem:[#allocation4 + $0xc] sm:$0xf] %v2210
      %2243 = vst [vmem:[#allocation4 + $0x30] sm:$0xf] %v2211
      %2244 = vst [vmem:[#allocation4 + $0x54] sm:$0xf] %v2212
      %2245 = vst [vmem:[#allocation4 + $0x78] sm:$0xf] %v2213
      %2246 = vst [vmem:[#allocation4 + $0x9c] sm:$0xf] %v2214
      %2247 = vst [vmem:[#allocation4 + $0xc0] sm:$0xf] %v2215
      %2248 = vst [vmem:[#allocation4 + $0xe4] sm:$0xf] %v2216
      %2249 = vst [vmem:[#allocation4 + $0x108] sm:$0xf] %v2217
      %2250 = vst [vmem:[#allocation4 + $0x12c] sm:$0xf] %v2218
      %2251 = vst [vmem:[#allocation4 + $0x150] sm:$0xf] %v2219
      %2252 = vst [vmem:[#allocation4 + $0x174] sm:$0xf] %v2220
      %2253 = vst [vmem:[#allocation4 + $0x198] sm:$0xf] %v2221
      %2254 = vst [vmem:[#allocation4 + $0x1bc] sm:$0xf] %v2222
      %2255 = vst [vmem:[#allocation4 + $0x1e0] sm:$0xf] %v2223
      %2256 = vst [vmem:[#allocation4 + $0x204] sm:$0xf] %v2224
      %2257 = vst [vmem:[#allocation4 + $0x228] sm:$0xf] %v2225
      %2258 = vst [vmem:[#allocation4 + $0x24c] sm:$0xf] %v2226
      %2259 = vst [vmem:[#allocation4 + $0x270] sm:$0xf] %v2227
      %2260 = vst [vmem:[#allocation4 + $0x294] sm:$0xf] %v2228
      %2261 = vst [vmem:[#allocation4 + $0x2b8] sm:$0xf] %v2229
      %2262 = vst [vmem:[#allocation4 + $0x2dc] sm:$0xf] %v2230
      %2263 = vst [vmem:[#allocation4 + $0x300] sm:$0xf] %v2231
      %2264 = vst [vmem:[#allocation4 + $0x324] sm:$0xf] %v2232
      %2265 = vst [vmem:[#allocation4 + $0x348] sm:$0xf] %v2233
      %2266 = vst [vmem:[#allocation4 + $0x36c] sm:$0xf] %v2234
      %2267 = vst [vmem:[#allocation4 + $0x390] sm:$0xf] %v2235
      %2268 = vst [vmem:[#allocation4 + $0x3b4] sm:$0xf] %v2236
      %2269 = vst [vmem:[#allocation4 + $0x3d8] sm:$0xf] %v2237
      %2270 = vst [vmem:[#allocation4 + $0x3fc] sm:$0xf] %v2238
      %2271 = vst [vmem:[#allocation4 + $0x420] sm:$0xf] %v2239
      %2272 = vst [vmem:[#allocation4 + $0x444] sm:$0xf] %v2240
      %2273 = vst [vmem:[#allocation4 + $0x468] sm:$0xf] %v2241
      %v2274 = vld [vmem:[%s1857 + $0x8] sm:$0xff]
      %v2275 = vld [vmem:[%s1857 + $0x10] sm:$0xff]
      %v2276 = vld [vmem:[%s1857 + $0x28] sm:$0xff]
      %v2277 = vld [vmem:[%s1857 + $0x30] sm:$0xff]
      %v2278 = vld [vmem:[%s1857 + $0x48] sm:$0xff]
      %v2279 = vld [vmem:[%s1857 + $0x50] sm:$0xff]
      %v2280 = vld [vmem:[%s1857 + $0x68] sm:$0xff]
      %v2281 = vld [vmem:[%s1857 + $0x70] sm:$0xff]
      %v2282 = vld [vmem:[%s1857 + $0x88] sm:$0xff]
      %v2283 = vld [vmem:[%s1857 + $0x90] sm:$0xff]
      %v2284 = vld [vmem:[%s1857 + $0xa8] sm:$0xff]
      %v2285 = vld [vmem:[%s1857 + $0xb0] sm:$0xff]
      %v2286 = vld [vmem:[%s1857 + $0xc8] sm:$0xff]
      %v2287 = vld [vmem:[%s1857 + $0xd0] sm:$0xff]
      %v2288 = vld [vmem:[%s1857 + $0xe8] sm:$0xff]
      %v2289 = vld [vmem:[%s1857 + $0xf0] sm:$0xff]
      %v2290 = vld [vmem:[%s1857 + $0x108] sm:$0xff]
      %v2291 = vld [vmem:[%s1857 + $0x110] sm:$0xff]
      %v2292 = vld [vmem:[%s1857 + $0x128] sm:$0xff]
      %v2293 = vld [vmem:[%s1857 + $0x130] sm:$0xff]
      %v2294 = vld [vmem:[%s1857 + $0x148] sm:$0xff]
      %v2295 = vld [vmem:[%s1857 + $0x150] sm:$0xff]
      %v2296 = vld [vmem:[%s1857 + $0x168] sm:$0xff]
      %v2297 = vld [vmem:[%s1857 + $0x170] sm:$0xff]
      %v2298 = vld [vmem:[%s1857 + $0x188] sm:$0xff]
      %v2299 = vld [vmem:[%s1857 + $0x190] sm:$0xff]
      %v2300 = vld [vmem:[%s1857 + $0x1a8] sm:$0xff]
      %v2301 = vld [vmem:[%s1857 + $0x1b0] sm:$0xff]
      %v2302 = vld [vmem:[%s1857 + $0x1c8] sm:$0xff]
      %v2303 = vld [vmem:[%s1857 + $0x1d0] sm:$0xff]
      %v2304 = vld [vmem:[%s1857 + $0x1e8] sm:$0xff]
      %v2305 = vld [vmem:[%s1857 + $0x1f0] sm:$0xff]
      %v2306 = vpack.c.bf16 %v2274, %v2274
      %v2307 = vpack.c.bf16 %v2275, %v2275
      %v2308 = vpack.c.bf16 %v2276, %v2276
      %v2309 = vpack.c.bf16 %v2277, %v2277
      %v2310 = vpack.c.bf16 %v2278, %v2278
      %v2311 = vpack.c.bf16 %v2279, %v2279
      %v2312 = vpack.c.bf16 %v2280, %v2280
      %v2313 = vpack.c.bf16 %v2281, %v2281
      %v2314 = vpack.c.bf16 %v2282, %v2282
      %v2315 = vpack.c.bf16 %v2283, %v2283
      %v2316 = vpack.c.bf16 %v2284, %v2284
      %v2317 = vpack.c.bf16 %v2285, %v2285
      %v2318 = vpack.c.bf16 %v2286, %v2286
      %v2319 = vpack.c.bf16 %v2287, %v2287
      %v2320 = vpack.c.bf16 %v2288, %v2288
      %v2321 = vpack.c.bf16 %v2289, %v2289
      %v2322 = vpack.c.bf16 %v2290, %v2290
      %v2323 = vpack.c.bf16 %v2291, %v2291
      %v2324 = vpack.c.bf16 %v2292, %v2292
      %v2325 = vpack.c.bf16 %v2293, %v2293
      %v2326 = vpack.c.bf16 %v2294, %v2294
      %v2327 = vpack.c.bf16 %v2295, %v2295
      %v2328 = vpack.c.bf16 %v2296, %v2296
      %v2329 = vpack.c.bf16 %v2297, %v2297
      %v2330 = vpack.c.bf16 %v2298, %v2298
      %v2331 = vpack.c.bf16 %v2299, %v2299
      %v2332 = vpack.c.bf16 %v2300, %v2300
      %v2333 = vpack.c.bf16 %v2301, %v2301
      %v2334 = vpack.c.bf16 %v2302, %v2302
      %v2335 = vpack.c.bf16 %v2303, %v2303
      %v2336 = vpack.c.bf16 %v2304, %v2304
      %v2337 = vpack.c.bf16 %v2305, %v2305
      %2338 = vst [vmem:[#allocation4 + $0x10] sm:$0xf] %v2306
      %2339 = vst [vmem:[#allocation4 + $0x34] sm:$0xf] %v2307
      %2340 = vst [vmem:[#allocation4 + $0x58] sm:$0xf] %v2308
      %2341 = vst [vmem:[#allocation4 + $0x7c] sm:$0xf] %v2309
      %2342 = vst [vmem:[#allocation4 + $0xa0] sm:$0xf] %v2310
      %2343 = vst [vmem:[#allocation4 + $0xc4] sm:$0xf] %v2311
      %2344 = vst [vmem:[#allocation4 + $0xe8] sm:$0xf] %v2312
      %2345 = vst [vmem:[#allocation4 + $0x10c] sm:$0xf] %v2313
      %2346 = vst [vmem:[#allocation4 + $0x130] sm:$0xf] %v2314
      %2347 = vst [vmem:[#allocation4 + $0x154] sm:$0xf] %v2315
      %2348 = vst [vmem:[#allocation4 + $0x178] sm:$0xf] %v2316
      %2349 = vst [vmem:[#allocation4 + $0x19c] sm:$0xf] %v2317
      %2350 = vst [vmem:[#allocation4 + $0x1c0] sm:$0xf] %v2318
      %2351 = vst [vmem:[#allocation4 + $0x1e4] sm:$0xf] %v2319
      %2352 = vst [vmem:[#allocation4 + $0x208] sm:$0xf] %v2320
      %2353 = vst [vmem:[#allocation4 + $0x22c] sm:$0xf] %v2321
      %2354 = vst [vmem:[#allocation4 + $0x250] sm:$0xf] %v2322
      %2355 = vst [vmem:[#allocation4 + $0x274] sm:$0xf] %v2323
      %2356 = vst [vmem:[#allocation4 + $0x298] sm:$0xf] %v2324
      %2357 = vst [vmem:[#allocation4 + $0x2bc] sm:$0xf] %v2325
      %2358 = vst [vmem:[#allocation4 + $0x2e0] sm:$0xf] %v2326
      %2359 = vst [vmem:[#allocation4 + $0x304] sm:$0xf] %v2327
      %2360 = vst [vmem:[#allocation4 + $0x328] sm:$0xf] %v2328
      %2361 = vst [vmem:[#allocation4 + $0x34c] sm:$0xf] %v2329
      %2362 = vst [vmem:[#allocation4 + $0x370] sm:$0xf] %v2330
      %2363 = vst [vmem:[#allocation4 + $0x394] sm:$0xf] %v2331
      %2364 = vst [vmem:[#allocation4 + $0x3b8] sm:$0xf] %v2332
      %2365 = vst [vmem:[#allocation4 + $0x3dc] sm:$0xf] %v2333
      %2366 = vst [vmem:[#allocation4 + $0x400] sm:$0xf] %v2334
      %2367 = vst [vmem:[#allocation4 + $0x424] sm:$0xf] %v2335
      %2368 = vst [vmem:[#allocation4 + $0x448] sm:$0xf] %v2336
      %2369 = vst [vmem:[#allocation4 + $0x46c] sm:$0xf] %v2337
      %v2370 = vld [vmem:[%s1857 + $0x9] sm:$0xff]
      %v2371 = vld [vmem:[%s1857 + $0x11] sm:$0xff]
      %v2372 = vld [vmem:[%s1857 + $0x29] sm:$0xff]
      %v2373 = vld [vmem:[%s1857 + $0x31] sm:$0xff]
      %v2374 = vld [vmem:[%s1857 + $0x49] sm:$0xff]
      %v2375 = vld [vmem:[%s1857 + $0x51] sm:$0xff]
      %v2376 = vld [vmem:[%s1857 + $0x69] sm:$0xff]
      %v2377 = vld [vmem:[%s1857 + $0x71] sm:$0xff]
      %v2378 = vld [vmem:[%s1857 + $0x89] sm:$0xff]
      %v2379 = vld [vmem:[%s1857 + $0x91] sm:$0xff]
      %v2380 = vld [vmem:[%s1857 + $0xa9] sm:$0xff]
      %v2381 = vld [vmem:[%s1857 + $0xb1] sm:$0xff]
      %v2382 = vld [vmem:[%s1857 + $0xc9] sm:$0xff]
      %v2383 = vld [vmem:[%s1857 + $0xd1] sm:$0xff]
      %v2384 = vld [vmem:[%s1857 + $0xe9] sm:$0xff]
      %v2385 = vld [vmem:[%s1857 + $0xf1] sm:$0xff]
      %v2386 = vld [vmem:[%s1857 + $0x109] sm:$0xff]
      %v2387 = vld [vmem:[%s1857 + $0x111] sm:$0xff]
      %v2388 = vld [vmem:[%s1857 + $0x129] sm:$0xff]
      %v2389 = vld [vmem:[%s1857 + $0x131] sm:$0xff]
      %v2390 = vld [vmem:[%s1857 + $0x149] sm:$0xff]
      %v2391 = vld [vmem:[%s1857 + $0x151] sm:$0xff]
      %v2392 = vld [vmem:[%s1857 + $0x169] sm:$0xff]
      %v2393 = vld [vmem:[%s1857 + $0x171] sm:$0xff]
      %v2394 = vld [vmem:[%s1857 + $0x189] sm:$0xff]
      %v2395 = vld [vmem:[%s1857 + $0x191] sm:$0xff]
      %v2396 = vld [vmem:[%s1857 + $0x1a9] sm:$0xff]
      %v2397 = vld [vmem:[%s1857 + $0x1b1] sm:$0xff]
      %v2398 = vld [vmem:[%s1857 + $0x1c9] sm:$0xff]
      %v2399 = vld [vmem:[%s1857 + $0x1d1] sm:$0xff]
      %v2400 = vld [vmem:[%s1857 + $0x1e9] sm:$0xff]
      %v2401 = vld [vmem:[%s1857 + $0x1f1] sm:$0xff]
      %v2402 = vpack.c.bf16 %v2370, %v2370
      %v2403 = vpack.c.bf16 %v2371, %v2371
      %v2404 = vpack.c.bf16 %v2372, %v2372
      %v2405 = vpack.c.bf16 %v2373, %v2373
      %v2406 = vpack.c.bf16 %v2374, %v2374
      %v2407 = vpack.c.bf16 %v2375, %v2375
      %v2408 = vpack.c.bf16 %v2376, %v2376
      %v2409 = vpack.c.bf16 %v2377, %v2377
      %v2410 = vpack.c.bf16 %v2378, %v2378
      %v2411 = vpack.c.bf16 %v2379, %v2379
      %v2412 = vpack.c.bf16 %v2380, %v2380
      %v2413 = vpack.c.bf16 %v2381, %v2381
      %v2414 = vpack.c.bf16 %v2382, %v2382
      %v2415 = vpack.c.bf16 %v2383, %v2383
      %v2416 = vpack.c.bf16 %v2384, %v2384
      %v2417 = vpack.c.bf16 %v2385, %v2385
      %v2418 = vpack.c.bf16 %v2386, %v2386
      %v2419 = vpack.c.bf16 %v2387, %v2387
      %v2420 = vpack.c.bf16 %v2388, %v2388
      %v2421 = vpack.c.bf16 %v2389, %v2389
      %v2422 = vpack.c.bf16 %v2390, %v2390
      %v2423 = vpack.c.bf16 %v2391, %v2391
      %v2424 = vpack.c.bf16 %v2392, %v2392
      %v2425 = vpack.c.bf16 %v2393, %v2393
      %v2426 = vpack.c.bf16 %v2394, %v2394
      %v2427 = vpack.c.bf16 %v2395, %v2395
      %v2428 = vpack.c.bf16 %v2396, %v2396
      %v2429 = vpack.c.bf16 %v2397, %v2397
      %v2430 = vpack.c.bf16 %v2398, %v2398
      %v2431 = vpack.c.bf16 %v2399, %v2399
      %v2432 = vpack.c.bf16 %v2400, %v2400
      %v2433 = vpack.c.bf16 %v2401, %v2401
      %2434 = vst [vmem:[#allocation4 + $0x14] sm:$0xf] %v2402
      %2435 = vst [vmem:[#allocation4 + $0x38] sm:$0xf] %v2403
      %2436 = vst [vmem:[#allocation4 + $0x5c] sm:$0xf] %v2404
      %2437 = vst [vmem:[#allocation4 + $0x80] sm:$0xf] %v2405
      %2438 = vst [vmem:[#allocation4 + $0xa4] sm:$0xf] %v2406
      %2439 = vst [vmem:[#allocation4 + $0xc8] sm:$0xf] %v2407
      %2440 = vst [vmem:[#allocation4 + $0xec] sm:$0xf] %v2408
      %2441 = vst [vmem:[#allocation4 + $0x110] sm:$0xf] %v2409
      %2442 = vst [vmem:[#allocation4 + $0x134] sm:$0xf] %v2410
      %2443 = vst [vmem:[#allocation4 + $0x158] sm:$0xf] %v2411
      %2444 = vst [vmem:[#allocation4 + $0x17c] sm:$0xf] %v2412
      %2445 = vst [vmem:[#allocation4 + $0x1a0] sm:$0xf] %v2413
      %2446 = vst [vmem:[#allocation4 + $0x1c4] sm:$0xf] %v2414
      %2447 = vst [vmem:[#allocation4 + $0x1e8] sm:$0xf] %v2415
      %2448 = vst [vmem:[#allocation4 + $0x20c] sm:$0xf] %v2416
      %2449 = vst [vmem:[#allocation4 + $0x230] sm:$0xf] %v2417
      %2450 = vst [vmem:[#allocation4 + $0x254] sm:$0xf] %v2418
      %2451 = vst [vmem:[#allocation4 + $0x278] sm:$0xf] %v2419
      %2452 = vst [vmem:[#allocation4 + $0x29c] sm:$0xf] %v2420
      %2453 = vst [vmem:[#allocation4 + $0x2c0] sm:$0xf] %v2421
      %2454 = vst [vmem:[#allocation4 + $0x2e4] sm:$0xf] %v2422
      %2455 = vst [vmem:[#allocation4 + $0x308] sm:$0xf] %v2423
      %2456 = vst [vmem:[#allocation4 + $0x32c] sm:$0xf] %v2424
      %2457 = vst [vmem:[#allocation4 + $0x350] sm:$0xf] %v2425
      %2458 = vst [vmem:[#allocation4 + $0x374] sm:$0xf] %v2426
      %2459 = vst [vmem:[#allocation4 + $0x398] sm:$0xf] %v2427
      %2460 = vst [vmem:[#allocation4 + $0x3bc] sm:$0xf] %v2428
      %2461 = vst [vmem:[#allocation4 + $0x3e0] sm:$0xf] %v2429
      %2462 = vst [vmem:[#allocation4 + $0x404] sm:$0xf] %v2430
      %2463 = vst [vmem:[#allocation4 + $0x428] sm:$0xf] %v2431
      %2464 = vst [vmem:[#allocation4 + $0x44c] sm:$0xf] %v2432
      %2465 = vst [vmem:[#allocation4 + $0x470] sm:$0xf] %v2433
      %s2466 = scalar_lea.vmem [#allocation2], 64
      %v2467 = vld [vmem:[%s2466 + $0x7] sm:$0xff]
      %v2468 = vld [vmem:[%s2466 + $0xf] sm:$0xff]
      %v2469 = vld [vmem:[%s2466 + $0x27] sm:$0xff]
      %v2470 = vld [vmem:[%s2466 + $0x2f] sm:$0xff]
      %v2471 = vld [vmem:[%s2466 + $0x47] sm:$0xff]
      %v2472 = vld [vmem:[%s2466 + $0x4f] sm:$0xff]
      %v2473 = vld [vmem:[%s2466 + $0x67] sm:$0xff]
      %v2474 = vld [vmem:[%s2466 + $0x6f] sm:$0xff]
      %v2475 = vld [vmem:[%s2466 + $0x87] sm:$0xff]
      %v2476 = vld [vmem:[%s2466 + $0x8f] sm:$0xff]
      %v2477 = vld [vmem:[%s2466 + $0xa7] sm:$0xff]
      %v2478 = vld [vmem:[%s2466 + $0xaf] sm:$0xff]
      %v2479 = vld [vmem:[%s2466 + $0xc7] sm:$0xff]
      %v2480 = vld [vmem:[%s2466 + $0xcf] sm:$0xff]
      %v2481 = vld [vmem:[%s2466 + $0xe7] sm:$0xff]
      %v2482 = vld [vmem:[%s2466 + $0xef] sm:$0xff]
      %v2483 = vld [vmem:[%s2466 + $0x107] sm:$0xff]
      %v2484 = vld [vmem:[%s2466 + $0x10f] sm:$0xff]
      %v2485 = vld [vmem:[%s2466 + $0x127] sm:$0xff]
      %v2486 = vld [vmem:[%s2466 + $0x12f] sm:$0xff]
      %v2487 = vld [vmem:[%s2466 + $0x147] sm:$0xff]
      %v2488 = vld [vmem:[%s2466 + $0x14f] sm:$0xff]
      %v2489 = vld [vmem:[%s2466 + $0x167] sm:$0xff]
      %v2490 = vld [vmem:[%s2466 + $0x16f] sm:$0xff]
      %v2491 = vld [vmem:[%s2466 + $0x187] sm:$0xff]
      %v2492 = vld [vmem:[%s2466 + $0x18f] sm:$0xff]
      %v2493 = vld [vmem:[%s2466 + $0x1a7] sm:$0xff]
      %v2494 = vld [vmem:[%s2466 + $0x1af] sm:$0xff]
      %v2495 = vld [vmem:[%s2466 + $0x1c7] sm:$0xff]
      %v2496 = vld [vmem:[%s2466 + $0x1cf] sm:$0xff]
      %v2497 = vld [vmem:[%s2466 + $0x1e7] sm:$0xff]
      %v2498 = vld [vmem:[%s2466 + $0x1ef] sm:$0xff]
      %v2499 = vpack.c.bf16 %v2467, %v2467
      %v2500 = vpack.c.bf16 %v2468, %v2468
      %v2501 = vpack.c.bf16 %v2469, %v2469
      %v2502 = vpack.c.bf16 %v2470, %v2470
      %v2503 = vpack.c.bf16 %v2471, %v2471
      %v2504 = vpack.c.bf16 %v2472, %v2472
      %v2505 = vpack.c.bf16 %v2473, %v2473
      %v2506 = vpack.c.bf16 %v2474, %v2474
      %v2507 = vpack.c.bf16 %v2475, %v2475
      %v2508 = vpack.c.bf16 %v2476, %v2476
      %v2509 = vpack.c.bf16 %v2477, %v2477
      %v2510 = vpack.c.bf16 %v2478, %v2478
      %v2511 = vpack.c.bf16 %v2479, %v2479
      %v2512 = vpack.c.bf16 %v2480, %v2480
      %v2513 = vpack.c.bf16 %v2481, %v2481
      %v2514 = vpack.c.bf16 %v2482, %v2482
      %v2515 = vpack.c.bf16 %v2483, %v2483
      %v2516 = vpack.c.bf16 %v2484, %v2484
      %v2517 = vpack.c.bf16 %v2485, %v2485
      %v2518 = vpack.c.bf16 %v2486, %v2486
      %v2519 = vpack.c.bf16 %v2487, %v2487
      %v2520 = vpack.c.bf16 %v2488, %v2488
      %v2521 = vpack.c.bf16 %v2489, %v2489
      %v2522 = vpack.c.bf16 %v2490, %v2490
      %v2523 = vpack.c.bf16 %v2491, %v2491
      %v2524 = vpack.c.bf16 %v2492, %v2492
      %v2525 = vpack.c.bf16 %v2493, %v2493
      %v2526 = vpack.c.bf16 %v2494, %v2494
      %v2527 = vpack.c.bf16 %v2495, %v2495
      %v2528 = vpack.c.bf16 %v2496, %v2496
      %v2529 = vpack.c.bf16 %v2497, %v2497
      %v2530 = vpack.c.bf16 %v2498, %v2498
      %2531 = vst [vmem:[#allocation4 + $0x18] sm:$0xf] %v2499
      %2532 = vst [vmem:[#allocation4 + $0x3c] sm:$0xf] %v2500
      %2533 = vst [vmem:[#allocation4 + $0x60] sm:$0xf] %v2501
      %2534 = vst [vmem:[#allocation4 + $0x84] sm:$0xf] %v2502
      %2535 = vst [vmem:[#allocation4 + $0xa8] sm:$0xf] %v2503
      %2536 = vst [vmem:[#allocation4 + $0xcc] sm:$0xf] %v2504
      %2537 = vst [vmem:[#allocation4 + $0xf0] sm:$0xf] %v2505
      %2538 = vst [vmem:[#allocation4 + $0x114] sm:$0xf] %v2506
      %2539 = vst [vmem:[#allocation4 + $0x138] sm:$0xf] %v2507
      %2540 = vst [vmem:[#allocation4 + $0x15c] sm:$0xf] %v2508
      %2541 = vst [vmem:[#allocation4 + $0x180] sm:$0xf] %v2509
      %2542 = vst [vmem:[#allocation4 + $0x1a4] sm:$0xf] %v2510
      %2543 = vst [vmem:[#allocation4 + $0x1c8] sm:$0xf] %v2511
      %2544 = vst [vmem:[#allocation4 + $0x1ec] sm:$0xf] %v2512
      %2545 = vst [vmem:[#allocation4 + $0x210] sm:$0xf] %v2513
      %2546 = vst [vmem:[#allocation4 + $0x234] sm:$0xf] %v2514
      %2547 = vst [vmem:[#allocation4 + $0x258] sm:$0xf] %v2515
      %2548 = vst [vmem:[#allocation4 + $0x27c] sm:$0xf] %v2516
      %2549 = vst [vmem:[#allocation4 + $0x2a0] sm:$0xf] %v2517
      %2550 = vst [vmem:[#allocation4 + $0x2c4] sm:$0xf] %v2518
      %2551 = vst [vmem:[#allocation4 + $0x2e8] sm:$0xf] %v2519
      %2552 = vst [vmem:[#allocation4 + $0x30c] sm:$0xf] %v2520
      %2553 = vst [vmem:[#allocation4 + $0x330] sm:$0xf] %v2521
      %2554 = vst [vmem:[#allocation4 + $0x354] sm:$0xf] %v2522
      %2555 = vst [vmem:[#allocation4 + $0x378] sm:$0xf] %v2523
      %2556 = vst [vmem:[#allocation4 + $0x39c] sm:$0xf] %v2524
      %2557 = vst [vmem:[#allocation4 + $0x3c0] sm:$0xf] %v2525
      %2558 = vst [vmem:[#allocation4 + $0x3e4] sm:$0xf] %v2526
      %2559 = vst [vmem:[#allocation4 + $0x408] sm:$0xf] %v2527
      %2560 = vst [vmem:[#allocation4 + $0x42c] sm:$0xf] %v2528
      %2561 = vst [vmem:[#allocation4 + $0x450] sm:$0xf] %v2529
      %2562 = vst [vmem:[#allocation4 + $0x474] sm:$0xf] %v2530
      %v2563 = vld [vmem:[%s2466 + $0x8] sm:$0xff]
      %v2564 = vld [vmem:[%s2466 + $0x10] sm:$0xff]
      %v2565 = vld [vmem:[%s2466 + $0x28] sm:$0xff]
      %v2566 = vld [vmem:[%s2466 + $0x30] sm:$0xff]
      %v2567 = vld [vmem:[%s2466 + $0x48] sm:$0xff]
      %v2568 = vld [vmem:[%s2466 + $0x50] sm:$0xff]
      %v2569 = vld [vmem:[%s2466 + $0x68] sm:$0xff]
      %v2570 = vld [vmem:[%s2466 + $0x70] sm:$0xff]
      %v2571 = vld [vmem:[%s2466 + $0x88] sm:$0xff]
      %v2572 = vld [vmem:[%s2466 + $0x90] sm:$0xff]
      %v2573 = vld [vmem:[%s2466 + $0xa8] sm:$0xff]
      %v2574 = vld [vmem:[%s2466 + $0xb0] sm:$0xff]
      %v2575 = vld [vmem:[%s2466 + $0xc8] sm:$0xff]
      %v2576 = vld [vmem:[%s2466 + $0xd0] sm:$0xff]
      %v2577 = vld [vmem:[%s2466 + $0xe8] sm:$0xff]
      %v2578 = vld [vmem:[%s2466 + $0xf0] sm:$0xff]
      %v2579 = vld [vmem:[%s2466 + $0x108] sm:$0xff]
      %v2580 = vld [vmem:[%s2466 + $0x110] sm:$0xff]
      %v2581 = vld [vmem:[%s2466 + $0x128] sm:$0xff]
      %v2582 = vld [vmem:[%s2466 + $0x130] sm:$0xff]
      %v2583 = vld [vmem:[%s2466 + $0x148] sm:$0xff]
      %v2584 = vld [vmem:[%s2466 + $0x150] sm:$0xff]
      %v2585 = vld [vmem:[%s2466 + $0x168] sm:$0xff]
      %v2586 = vld [vmem:[%s2466 + $0x170] sm:$0xff]
      %v2587 = vld [vmem:[%s2466 + $0x188] sm:$0xff]
      %v2588 = vld [vmem:[%s2466 + $0x190] sm:$0xff]
      %v2589 = vld [vmem:[%s2466 + $0x1a8] sm:$0xff]
      %v2590 = vld [vmem:[%s2466 + $0x1b0] sm:$0xff]
      %v2591 = vld [vmem:[%s2466 + $0x1c8] sm:$0xff]
      %v2592 = vld [vmem:[%s2466 + $0x1d0] sm:$0xff]
      %v2593 = vld [vmem:[%s2466 + $0x1e8] sm:$0xff]
      %v2594 = vld [vmem:[%s2466 + $0x1f0] sm:$0xff]
      %v2595 = vpack.c.bf16 %v2563, %v2563
      %v2596 = vpack.c.bf16 %v2564, %v2564
      %v2597 = vpack.c.bf16 %v2565, %v2565
      %v2598 = vpack.c.bf16 %v2566, %v2566
      %v2599 = vpack.c.bf16 %v2567, %v2567
      %v2600 = vpack.c.bf16 %v2568, %v2568
      %v2601 = vpack.c.bf16 %v2569, %v2569
      %v2602 = vpack.c.bf16 %v2570, %v2570
      %v2603 = vpack.c.bf16 %v2571, %v2571
      %v2604 = vpack.c.bf16 %v2572, %v2572
      %v2605 = vpack.c.bf16 %v2573, %v2573
      %v2606 = vpack.c.bf16 %v2574, %v2574
      %v2607 = vpack.c.bf16 %v2575, %v2575
      %v2608 = vpack.c.bf16 %v2576, %v2576
      %v2609 = vpack.c.bf16 %v2577, %v2577
      %v2610 = vpack.c.bf16 %v2578, %v2578
      %v2611 = vpack.c.bf16 %v2579, %v2579
      %v2612 = vpack.c.bf16 %v2580, %v2580
      %v2613 = vpack.c.bf16 %v2581, %v2581
      %v2614 = vpack.c.bf16 %v2582, %v2582
      %v2615 = vpack.c.bf16 %v2583, %v2583
      %v2616 = vpack.c.bf16 %v2584, %v2584
      %v2617 = vpack.c.bf16 %v2585, %v2585
      %v2618 = vpack.c.bf16 %v2586, %v2586
      %v2619 = vpack.c.bf16 %v2587, %v2587
      %v2620 = vpack.c.bf16 %v2588, %v2588
      %v2621 = vpack.c.bf16 %v2589, %v2589
      %v2622 = vpack.c.bf16 %v2590, %v2590
      %v2623 = vpack.c.bf16 %v2591, %v2591
      %v2624 = vpack.c.bf16 %v2592, %v2592
      %v2625 = vpack.c.bf16 %v2593, %v2593
      %v2626 = vpack.c.bf16 %v2594, %v2594
      %2627 = vst [vmem:[#allocation4 + $0x1c] sm:$0xf] %v2595
      %2628 = vst [vmem:[#allocation4 + $0x40] sm:$0xf] %v2596
      %2629 = vst [vmem:[#allocation4 + $0x64] sm:$0xf] %v2597
      %2630 = vst [vmem:[#allocation4 + $0x88] sm:$0xf] %v2598
      %2631 = vst [vmem:[#allocation4 + $0xac] sm:$0xf] %v2599
      %2632 = vst [vmem:[#allocation4 + $0xd0] sm:$0xf] %v2600
      %2633 = vst [vmem:[#allocation4 + $0xf4] sm:$0xf] %v2601
      %2634 = vst [vmem:[#allocation4 + $0x118] sm:$0xf] %v2602
      %2635 = vst [vmem:[#allocation4 + $0x13c] sm:$0xf] %v2603
      %2636 = vst [vmem:[#allocation4 + $0x160] sm:$0xf] %v2604
      %2637 = vst [vmem:[#allocation4 + $0x184] sm:$0xf] %v2605
      %2638 = vst [vmem:[#allocation4 + $0x1a8] sm:$0xf] %v2606
      %2639 = vst [vmem:[#allocation4 + $0x1cc] sm:$0xf] %v2607
      %2640 = vst [vmem:[#allocation4 + $0x1f0] sm:$0xf] %v2608
      %2641 = vst [vmem:[#allocation4 + $0x214] sm:$0xf] %v2609
      %2642 = vst [vmem:[#allocation4 + $0x238] sm:$0xf] %v2610
      %2643 = vst [vmem:[#allocation4 + $0x25c] sm:$0xf] %v2611
      %2644 = vst [vmem:[#allocation4 + $0x280] sm:$0xf] %v2612
      %2645 = vst [vmem:[#allocation4 + $0x2a4] sm:$0xf] %v2613
      %2646 = vst [vmem:[#allocation4 + $0x2c8] sm:$0xf] %v2614
      %2647 = vst [vmem:[#allocation4 + $0x2ec] sm:$0xf] %v2615
      %2648 = vst [vmem:[#allocation4 + $0x310] sm:$0xf] %v2616
      %2649 = vst [vmem:[#allocation4 + $0x334] sm:$0xf] %v2617
      %2650 = vst [vmem:[#allocation4 + $0x358] sm:$0xf] %v2618
      %2651 = vst [vmem:[#allocation4 + $0x37c] sm:$0xf] %v2619
      %2652 = vst [vmem:[#allocation4 + $0x3a0] sm:$0xf] %v2620
      %2653 = vst [vmem:[#allocation4 + $0x3c4] sm:$0xf] %v2621
      %2654 = vst [vmem:[#allocation4 + $0x3e8] sm:$0xf] %v2622
      %2655 = vst [vmem:[#allocation4 + $0x40c] sm:$0xf] %v2623
      %2656 = vst [vmem:[#allocation4 + $0x430] sm:$0xf] %v2624
      %2657 = vst [vmem:[#allocation4 + $0x454] sm:$0xf] %v2625
      %2658 = vst [vmem:[#allocation4 + $0x478] sm:$0xf] %v2626
      %v2659 = vld [vmem:[%s2466 + $0x9] sm:$0xff]
      %v2660 = vld [vmem:[%s2466 + $0x11] sm:$0xff]
      %v2661 = vld [vmem:[%s2466 + $0x29] sm:$0xff]
      %v2662 = vld [vmem:[%s2466 + $0x31] sm:$0xff]
      %v2663 = vld [vmem:[%s2466 + $0x49] sm:$0xff]
      %v2664 = vld [vmem:[%s2466 + $0x51] sm:$0xff]
      %v2665 = vld [vmem:[%s2466 + $0x69] sm:$0xff]
      %v2666 = vld [vmem:[%s2466 + $0x71] sm:$0xff]
      %v2667 = vld [vmem:[%s2466 + $0x89] sm:$0xff]
      %v2668 = vld [vmem:[%s2466 + $0x91] sm:$0xff]
      %v2669 = vld [vmem:[%s2466 + $0xa9] sm:$0xff]
      %v2670 = vld [vmem:[%s2466 + $0xb1] sm:$0xff]
      %v2671 = vld [vmem:[%s2466 + $0xc9] sm:$0xff]
      %v2672 = vld [vmem:[%s2466 + $0xd1] sm:$0xff]
      %v2673 = vld [vmem:[%s2466 + $0xe9] sm:$0xff]
      %v2674 = vld [vmem:[%s2466 + $0xf1] sm:$0xff]
      %v2675 = vld [vmem:[%s2466 + $0x109] sm:$0xff]
      %v2676 = vld [vmem:[%s2466 + $0x111] sm:$0xff]
      %v2677 = vld [vmem:[%s2466 + $0x129] sm:$0xff]
      %v2678 = vld [vmem:[%s2466 + $0x131] sm:$0xff]
      %v2679 = vld [vmem:[%s2466 + $0x149] sm:$0xff]
      %v2680 = vld [vmem:[%s2466 + $0x151] sm:$0xff]
      %v2681 = vld [vmem:[%s2466 + $0x169] sm:$0xff]
      %v2682 = vld [vmem:[%s2466 + $0x171] sm:$0xff]
      %v2683 = vld [vmem:[%s2466 + $0x189] sm:$0xff]
      %v2684 = vld [vmem:[%s2466 + $0x191] sm:$0xff]
      %v2685 = vld [vmem:[%s2466 + $0x1a9] sm:$0xff]
      %v2686 = vld [vmem:[%s2466 + $0x1b1] sm:$0xff]
      %v2687 = vld [vmem:[%s2466 + $0x1c9] sm:$0xff]
      %v2688 = vld [vmem:[%s2466 + $0x1d1] sm:$0xff]
      %v2689 = vld [vmem:[%s2466 + $0x1e9] sm:$0xff]
      %v2690 = vld [vmem:[%s2466 + $0x1f1] sm:$0xff]
      %v2691 = vpack.c.bf16 %v2659, %v2659
      %v2692 = vpack.c.bf16 %v2660, %v2660
      %v2693 = vpack.c.bf16 %v2661, %v2661
      %v2694 = vpack.c.bf16 %v2662, %v2662
      %v2695 = vpack.c.bf16 %v2663, %v2663
      %v2696 = vpack.c.bf16 %v2664, %v2664
      %v2697 = vpack.c.bf16 %v2665, %v2665
      %v2698 = vpack.c.bf16 %v2666, %v2666
      %v2699 = vpack.c.bf16 %v2667, %v2667
      %v2700 = vpack.c.bf16 %v2668, %v2668
      %v2701 = vpack.c.bf16 %v2669, %v2669
      %v2702 = vpack.c.bf16 %v2670, %v2670
      %v2703 = vpack.c.bf16 %v2671, %v2671
      %v2704 = vpack.c.bf16 %v2672, %v2672
      %v2705 = vpack.c.bf16 %v2673, %v2673
      %v2706 = vpack.c.bf16 %v2674, %v2674
      %v2707 = vpack.c.bf16 %v2675, %v2675
      %v2708 = vpack.c.bf16 %v2676, %v2676
      %v2709 = vpack.c.bf16 %v2677, %v2677
      %v2710 = vpack.c.bf16 %v2678, %v2678
      %v2711 = vpack.c.bf16 %v2679, %v2679
      %v2712 = vpack.c.bf16 %v2680, %v2680
      %v2713 = vpack.c.bf16 %v2681, %v2681
      %v2714 = vpack.c.bf16 %v2682, %v2682
      %v2715 = vpack.c.bf16 %v2683, %v2683
      %v2716 = vpack.c.bf16 %v2684, %v2684
      %v2717 = vpack.c.bf16 %v2685, %v2685
      %v2718 = vpack.c.bf16 %v2686, %v2686
      %v2719 = vpack.c.bf16 %v2687, %v2687
      %v2720 = vpack.c.bf16 %v2688, %v2688
      %v2721 = vpack.c.bf16 %v2689, %v2689
      %v2722 = vpack.c.bf16 %v2690, %v2690
      %2723 = vst [vmem:[#allocation4 + $0x20] sm:$0xf] %v2691
      %2724 = vst [vmem:[#allocation4 + $0x44] sm:$0xf] %v2692
      %2725 = vst [vmem:[#allocation4 + $0x68] sm:$0xf] %v2693
      %2726 = vst [vmem:[#allocation4 + $0x8c] sm:$0xf] %v2694
      %2727 = vst [vmem:[#allocation4 + $0xb0] sm:$0xf] %v2695
      %2728 = vst [vmem:[#allocation4 + $0xd4] sm:$0xf] %v2696
      %2729 = vst [vmem:[#allocation4 + $0xf8] sm:$0xf] %v2697
      %2730 = vst [vmem:[#allocation4 + $0x11c] sm:$0xf] %v2698
      %2731 = vst [vmem:[#allocation4 + $0x140] sm:$0xf] %v2699
      %2732 = vst [vmem:[#allocation4 + $0x164] sm:$0xf] %v2700
      %2733 = vst [vmem:[#allocation4 + $0x188] sm:$0xf] %v2701
      %2734 = vst [vmem:[#allocation4 + $0x1ac] sm:$0xf] %v2702
      %2735 = vst [vmem:[#allocation4 + $0x1d0] sm:$0xf] %v2703
      %2736 = vst [vmem:[#allocation4 + $0x1f4] sm:$0xf] %v2704
      %2737 = vst [vmem:[#allocation4 + $0x218] sm:$0xf] %v2705
      %2738 = vst [vmem:[#allocation4 + $0x23c] sm:$0xf] %v2706
      %2739 = vst [vmem:[#allocation4 + $0x260] sm:$0xf] %v2707
      %2740 = vst [vmem:[#allocation4 + $0x284] sm:$0xf] %v2708
      %2741 = vst [vmem:[#allocation4 + $0x2a8] sm:$0xf] %v2709
      %2742 = vst [vmem:[#allocation4 + $0x2cc] sm:$0xf] %v2710
      %2743 = vst [vmem:[#allocation4 + $0x2f0] sm:$0xf] %v2711
      %2744 = vst [vmem:[#allocation4 + $0x314] sm:$0xf] %v2712
      %2745 = vst [vmem:[#allocation4 + $0x338] sm:$0xf] %v2713
      %2746 = vst [vmem:[#allocation4 + $0x35c] sm:$0xf] %v2714
      %2747 = vst [vmem:[#allocation4 + $0x380] sm:$0xf] %v2715
      %2748 = vst [vmem:[#allocation4 + $0x3a4] sm:$0xf] %v2716
      %2749 = vst [vmem:[#allocation4 + $0x3c8] sm:$0xf] %v2717
      %2750 = vst [vmem:[#allocation4 + $0x3ec] sm:$0xf] %v2718
      %2751 = vst [vmem:[#allocation4 + $0x410] sm:$0xf] %v2719
      %2752 = vst [vmem:[#allocation4 + $0x434] sm:$0xf] %v2720
      %2753 = vst [vmem:[#allocation4 + $0x458] sm:$0xf] %v2721
      %2754 = vst [vmem:[#allocation4 + $0x47c] sm:$0xf] %v2722
      %v2755 = vld [vmem:[#allocation4] sm:$0xff]
      %v2756 = vld [vmem:[#allocation4 + $0x8] sm:$0xff]
      %v2757 = vld [vmem:[#allocation4 + $0x10] sm:$0xff]
      %v2758 = vld [vmem:[#allocation4 + $0x18] sm:$0xff]
      %v2759 = vld [vmem:[#allocation4 + $0x20] sm:$0xf]
      %v2760 = vld [vmem:[#allocation4 + $0x24] sm:$0xff]
      %v2761 = vld [vmem:[#allocation4 + $0x2c] sm:$0xff]
      %v2762 = vld [vmem:[#allocation4 + $0x34] sm:$0xff]
      %v2763 = vld [vmem:[#allocation4 + $0x3c] sm:$0xff]
      %v2764 = vld [vmem:[#allocation4 + $0x44] sm:$0xf]
      %v2765 = vld [vmem:[#allocation4 + $0x48] sm:$0xff]
      %v2766 = vld [vmem:[#allocation4 + $0x50] sm:$0xff]
      %v2767 = vld [vmem:[#allocation4 + $0x58] sm:$0xff]
      %v2768 = vld [vmem:[#allocation4 + $0x60] sm:$0xff]
      %v2769 = vld [vmem:[#allocation4 + $0x68] sm:$0xf]
      %v2770 = vld [vmem:[#allocation4 + $0x6c] sm:$0xff]
      %v2771 = vld [vmem:[#allocation4 + $0x74] sm:$0xff]
      %v2772 = vld [vmem:[#allocation4 + $0x7c] sm:$0xff]
      %v2773 = vld [vmem:[#allocation4 + $0x84] sm:$0xff]
      %v2774 = vld [vmem:[#allocation4 + $0x8c] sm:$0xf]
      %v2775 = vld [vmem:[#allocation4 + $0x90] sm:$0xff]
      %v2776 = vld [vmem:[#allocation4 + $0x98] sm:$0xff]
      %v2777 = vld [vmem:[#allocation4 + $0xa0] sm:$0xff]
      %v2778 = vld [vmem:[#allocation4 + $0xa8] sm:$0xff]
      %v2779 = vld [vmem:[#allocation4 + $0xb0] sm:$0xf]
      %v2780 = vld [vmem:[#allocation4 + $0xb4] sm:$0xff]
      %v2781 = vld [vmem:[#allocation4 + $0xbc] sm:$0xff]
      %v2782 = vld [vmem:[#allocation4 + $0xc4] sm:$0xff]
      %v2783 = vld [vmem:[#allocation4 + $0xcc] sm:$0xff]
      %v2784 = vld [vmem:[#allocation4 + $0xd4] sm:$0xf]
      %v2785 = vld [vmem:[#allocation4 + $0xd8] sm:$0xff]
      %v2786 = vld [vmem:[#allocation4 + $0xe0] sm:$0xff]
      %v2787 = vld [vmem:[#allocation4 + $0xe8] sm:$0xff]
      %v2788 = vld [vmem:[#allocation4 + $0xf0] sm:$0xff]
      %v2789 = vld [vmem:[#allocation4 + $0xf8] sm:$0xf]
      %v2790 = vld [vmem:[#allocation4 + $0xfc] sm:$0xff]
      %v2791 = vld [vmem:[#allocation4 + $0x104] sm:$0xff]
      %v2792 = vld [vmem:[#allocation4 + $0x10c] sm:$0xff]
      %v2793 = vld [vmem:[#allocation4 + $0x114] sm:$0xff]
      %v2794 = vld [vmem:[#allocation4 + $0x11c] sm:$0xf]
      %v2795 = vld [vmem:[#allocation4 + $0x120] sm:$0xff]
      %v2796 = vld [vmem:[#allocation4 + $0x128] sm:$0xff]
      %v2797 = vld [vmem:[#allocation4 + $0x130] sm:$0xff]
      %v2798 = vld [vmem:[#allocation4 + $0x138] sm:$0xff]
      %v2799 = vld [vmem:[#allocation4 + $0x140] sm:$0xf]
      %v2800 = vld [vmem:[#allocation4 + $0x144] sm:$0xff]
      %v2801 = vld [vmem:[#allocation4 + $0x14c] sm:$0xff]
      %v2802 = vld [vmem:[#allocation4 + $0x154] sm:$0xff]
      %v2803 = vld [vmem:[#allocation4 + $0x15c] sm:$0xff]
      %v2804 = vld [vmem:[#allocation4 + $0x164] sm:$0xf]
      %v2805 = vld [vmem:[#allocation4 + $0x168] sm:$0xff]
      %v2806 = vld [vmem:[#allocation4 + $0x170] sm:$0xff]
      %v2807 = vld [vmem:[#allocation4 + $0x178] sm:$0xff]
      %v2808 = vld [vmem:[#allocation4 + $0x180] sm:$0xff]
      %v2809 = vld [vmem:[#allocation4 + $0x188] sm:$0xf]
      %v2810 = vld [vmem:[#allocation4 + $0x18c] sm:$0xff]
      %v2811 = vld [vmem:[#allocation4 + $0x194] sm:$0xff]
      %v2812 = vld [vmem:[#allocation4 + $0x19c] sm:$0xff]
      %v2813 = vld [vmem:[#allocation4 + $0x1a4] sm:$0xff]
      %v2814 = vld [vmem:[#allocation4 + $0x1ac] sm:$0xf]
      %v2815 = vld [vmem:[#allocation4 + $0x1b0] sm:$0xff]
      %v2816 = vld [vmem:[#allocation4 + $0x1b8] sm:$0xff]
      %v2817 = vld [vmem:[#allocation4 + $0x1c0] sm:$0xff]
      %v2818 = vld [vmem:[#allocation4 + $0x1c8] sm:$0xff]
      %v2819 = vld [vmem:[#allocation4 + $0x1d0] sm:$0xf]
      %v2820 = vld [vmem:[#allocation4 + $0x1d4] sm:$0xff]
      %v2821 = vld [vmem:[#allocation4 + $0x1dc] sm:$0xff]
      %v2822 = vld [vmem:[#allocation4 + $0x1e4] sm:$0xff]
      %v2823 = vld [vmem:[#allocation4 + $0x1ec] sm:$0xff]
      %v2824 = vld [vmem:[#allocation4 + $0x1f4] sm:$0xf]
      %v2825 = vld [vmem:[#allocation4 + $0x1f8] sm:$0xff]
      %v2826 = vld [vmem:[#allocation4 + $0x200] sm:$0xff]
      %v2827 = vld [vmem:[#allocation4 + $0x208] sm:$0xff]
      %v2828 = vld [vmem:[#allocation4 + $0x210] sm:$0xff]
      %v2829 = vld [vmem:[#allocation4 + $0x218] sm:$0xf]
      %v2830 = vld [vmem:[#allocation4 + $0x21c] sm:$0xff]
      %v2831 = vld [vmem:[#allocation4 + $0x224] sm:$0xff]
      %v2832 = vld [vmem:[#allocation4 + $0x22c] sm:$0xff]
      %v2833 = vld [vmem:[#allocation4 + $0x234] sm:$0xff]
      %v2834 = vld [vmem:[#allocation4 + $0x23c] sm:$0xf]
      %v2835 = vld [vmem:[#allocation4 + $0x240] sm:$0xff]
      %v2836 = vld [vmem:[#allocation4 + $0x248] sm:$0xff]
      %v2837 = vld [vmem:[#allocation4 + $0x250] sm:$0xff]
      %v2838 = vld [vmem:[#allocation4 + $0x258] sm:$0xff]
      %v2839 = vld [vmem:[#allocation4 + $0x260] sm:$0xf]
      %v2840 = vld [vmem:[#allocation4 + $0x264] sm:$0xff]
      %v2841 = vld [vmem:[#allocation4 + $0x26c] sm:$0xff]
      %v2842 = vld [vmem:[#allocation4 + $0x274] sm:$0xff]
      %v2843 = vld [vmem:[#allocation4 + $0x27c] sm:$0xff]
      %v2844 = vld [vmem:[#allocation4 + $0x284] sm:$0xf]
      %v2845 = vld [vmem:[#allocation4 + $0x288] sm:$0xff]
      %v2846 = vld [vmem:[#allocation4 + $0x290] sm:$0xff]
      %v2847 = vld [vmem:[#allocation4 + $0x298] sm:$0xff]
      %v2848 = vld [vmem:[#allocation4 + $0x2a0] sm:$0xff]
      %v2849 = vld [vmem:[#allocation4 + $0x2a8] sm:$0xf]
      %v2850 = vld [vmem:[#allocation4 + $0x2ac] sm:$0xff]
      %v2851 = vld [vmem:[#allocation4 + $0x2b4] sm:$0xff]
      %v2852 = vld [vmem:[#allocation4 + $0x2bc] sm:$0xff]
      %v2853 = vld [vmem:[#allocation4 + $0x2c4] sm:$0xff]
      %v2854 = vld [vmem:[#allocation4 + $0x2cc] sm:$0xf]
      %v2855 = vld [vmem:[#allocation4 + $0x2d0] sm:$0xff]
      %v2856 = vld [vmem:[#allocation4 + $0x2d8] sm:$0xff]
      %v2857 = vld [vmem:[#allocation4 + $0x2e0] sm:$0xff]
      %v2858 = vld [vmem:[#allocation4 + $0x2e8] sm:$0xff]
      %v2859 = vld [vmem:[#allocation4 + $0x2f0] sm:$0xf]
      %v2860 = vld [vmem:[#allocation4 + $0x2f4] sm:$0xff]
      %v2861 = vld [vmem:[#allocation4 + $0x2fc] sm:$0xff]
      %v2862 = vld [vmem:[#allocation4 + $0x304] sm:$0xff]
      %v2863 = vld [vmem:[#allocation4 + $0x30c] sm:$0xff]
      %v2864 = vld [vmem:[#allocation4 + $0x314] sm:$0xf]
      %v2865 = vld [vmem:[#allocation4 + $0x318] sm:$0xff]
      %v2866 = vld [vmem:[#allocation4 + $0x320] sm:$0xff]
      %v2867 = vld [vmem:[#allocation4 + $0x328] sm:$0xff]
      %v2868 = vld [vmem:[#allocation4 + $0x330] sm:$0xff]
      %v2869 = vld [vmem:[#allocation4 + $0x338] sm:$0xf]
      %v2870 = vld [vmem:[#allocation4 + $0x33c] sm:$0xff]
      %v2871 = vld [vmem:[#allocation4 + $0x344] sm:$0xff]
      %v2872 = vld [vmem:[#allocation4 + $0x34c] sm:$0xff]
      %v2873 = vld [vmem:[#allocation4 + $0x354] sm:$0xff]
      %v2874 = vld [vmem:[#allocation4 + $0x35c] sm:$0xf]
      %v2875 = vld [vmem:[#allocation4 + $0x360] sm:$0xff]
      %v2876 = vld [vmem:[#allocation4 + $0x368] sm:$0xff]
      %v2877 = vld [vmem:[#allocation4 + $0x370] sm:$0xff]
      %v2878 = vld [vmem:[#allocation4 + $0x378] sm:$0xff]
      %v2879 = vld [vmem:[#allocation4 + $0x380] sm:$0xf]
      %v2880 = vld [vmem:[#allocation4 + $0x384] sm:$0xff]
      %v2881 = vld [vmem:[#allocation4 + $0x38c] sm:$0xff]
      %v2882 = vld [vmem:[#allocation4 + $0x394] sm:$0xff]
      %v2883 = vld [vmem:[#allocation4 + $0x39c] sm:$0xff]
      %v2884 = vld [vmem:[#allocation4 + $0x3a4] sm:$0xf]
      %v2885 = vld [vmem:[#allocation4 + $0x3a8] sm:$0xff]
      %v2886 = vld [vmem:[#allocation4 + $0x3b0] sm:$0xff]
      %v2887 = vld [vmem:[#allocation4 + $0x3b8] sm:$0xff]
      %v2888 = vld [vmem:[#allocation4 + $0x3c0] sm:$0xff]
      %v2889 = vld [vmem:[#allocation4 + $0x3c8] sm:$0xf]
      %v2890 = vld [vmem:[#allocation4 + $0x3cc] sm:$0xff]
      %v2891 = vld [vmem:[#allocation4 + $0x3d4] sm:$0xff]
      %v2892 = vld [vmem:[#allocation4 + $0x3dc] sm:$0xff]
      %v2893 = vld [vmem:[#allocation4 + $0x3e4] sm:$0xff]
      %v2894 = vld [vmem:[#allocation4 + $0x3ec] sm:$0xf]
      %v2895 = vld [vmem:[#allocation4 + $0x3f0] sm:$0xff]
      %v2896 = vld [vmem:[#allocation4 + $0x3f8] sm:$0xff]
      %v2897 = vld [vmem:[#allocation4 + $0x400] sm:$0xff]
      %v2898 = vld [vmem:[#allocation4 + $0x408] sm:$0xff]
      %v2899 = vld [vmem:[#allocation4 + $0x410] sm:$0xf]
      %v2900 = vld [vmem:[#allocation4 + $0x414] sm:$0xff]
      %v2901 = vld [vmem:[#allocation4 + $0x41c] sm:$0xff]
      %v2902 = vld [vmem:[#allocation4 + $0x424] sm:$0xff]
      %v2903 = vld [vmem:[#allocation4 + $0x42c] sm:$0xff]
      %v2904 = vld [vmem:[#allocation4 + $0x434] sm:$0xf]
      %v2905 = vld [vmem:[#allocation4 + $0x438] sm:$0xff]
      %v2906 = vld [vmem:[#allocation4 + $0x440] sm:$0xff]
      %v2907 = vld [vmem:[#allocation4 + $0x448] sm:$0xff]
      %v2908 = vld [vmem:[#allocation4 + $0x450] sm:$0xff]
      %v2909 = vld [vmem:[#allocation4 + $0x458] sm:$0xf]
      %v2910 = vld [vmem:[#allocation4 + $0x45c] sm:$0xff]
      %v2911 = vld [vmem:[#allocation4 + $0x464] sm:$0xff]
      %v2912 = vld [vmem:[#allocation4 + $0x46c] sm:$0xff]
      %v2913 = vld [vmem:[#allocation4 + $0x474] sm:$0xff]
      %v2914 = vld [vmem:[#allocation4 + $0x47c] sm:$0xf]
      %v2915 = vld [vmem:[%s3] sm:$0xf]
      %v2916 = vld [vmem:[%s3 + $0x4] sm:$0xf]
      %v2917 = vld [vmem:[%s3 + $0x8] sm:$0xf]
      %v2918 = vld [vmem:[%s3 + $0xc] sm:$0xf]
      %v2919 = vld [vmem:[%s3 + $0x10] sm:$0xf]
      %v2920 = vld [vmem:[%s3 + $0x14] sm:$0xf]
      %v2921 = vld [vmem:[%s3 + $0x18] sm:$0xf]
      %v2922 = vld [vmem:[%s3 + $0x1c] sm:$0xf]
      %v2923 = vld [vmem:[%s3 + $0x20] sm:$0xf]
      %v2924 = vld [vmem:[%s3 + $0x24] sm:$0xf]
      %v2925 = vld [vmem:[%s3 + $0x28] sm:$0xf]
      %v2926 = vld [vmem:[%s3 + $0x2c] sm:$0xf]
      %v2927 = vld [vmem:[%s3 + $0x30] sm:$0xf]
      %v2928 = vld [vmem:[%s3 + $0x34] sm:$0xf]
      %v2929 = vld [vmem:[%s3 + $0x38] sm:$0xf]
      %v2930 = vld [vmem:[%s3 + $0x3c] sm:$0xf]
      %v2931 = vld [vmem:[%s3 + $0x40] sm:$0xf]
      %v2932 = vld [vmem:[%s3 + $0x44] sm:$0xf]
      %v2933 = vld [vmem:[%s3 + $0x48] sm:$0xf]
      %v2934 = vld [vmem:[%s3 + $0x4c] sm:$0xf]
      %v2935 = vld [vmem:[%s3 + $0x50] sm:$0xf]
      %v2936 = vld [vmem:[%s3 + $0x54] sm:$0xf]
      %v2937 = vld [vmem:[%s3 + $0x58] sm:$0xf]
      %v2938 = vld [vmem:[%s3 + $0x5c] sm:$0xf]
      %v2939 = vld [vmem:[%s3 + $0x60] sm:$0xf]
      %v2940 = vld [vmem:[%s3 + $0x64] sm:$0xf]
      %v2941 = vld [vmem:[%s3 + $0x68] sm:$0xf]
      %v2942 = vld [vmem:[%s3 + $0x6c] sm:$0xf]
      %v2943 = vld [vmem:[%s3 + $0x70] sm:$0xf]
      %v2944 = vld [vmem:[%s3 + $0x74] sm:$0xf]
      %v2945 = vld [vmem:[%s3 + $0x78] sm:$0xf]
      %v2946 = vld [vmem:[%s3 + $0x7c] sm:$0xf]
      %v2947 = vld [vmem:[%s3 + $0x80] sm:$0xf]
      %v2948 = vld [vmem:[%s3 + $0x84] sm:$0xf]
      %v2949 = vld [vmem:[%s3 + $0x88] sm:$0xf]
      %v2950 = vld [vmem:[%s3 + $0x8c] sm:$0xf]
      %v2951 = vld [vmem:[%s3 + $0x90] sm:$0xf]
      %v2952 = vld [vmem:[%s3 + $0x94] sm:$0xf]
      %v2953 = vld [vmem:[%s3 + $0x98] sm:$0xf]
      %v2954 = vld [vmem:[%s3 + $0x9c] sm:$0xf]
      %v2955 = vld [vmem:[%s3 + $0xa0] sm:$0xf]
      %v2956 = vld [vmem:[%s3 + $0xa4] sm:$0xf]
      %v2957 = vld [vmem:[%s3 + $0xa8] sm:$0xf]
      %v2958 = vld [vmem:[%s3 + $0xac] sm:$0xf]
      %v2959 = vld [vmem:[%s3 + $0xb0] sm:$0xf]
      %v2960 = vld [vmem:[%s3 + $0xb4] sm:$0xf]
      %v2961 = vld [vmem:[%s3 + $0xb8] sm:$0xf]
      %v2962 = vld [vmem:[%s3 + $0xbc] sm:$0xf]
      %v2963 = vld [vmem:[%s3 + $0xc0] sm:$0xf]
      %v2964 = vld [vmem:[%s3 + $0xc4] sm:$0xf]
      %v2965 = vld [vmem:[%s3 + $0xc8] sm:$0xf]
      %v2966 = vld [vmem:[%s3 + $0xcc] sm:$0xf]
      %v2967 = vld [vmem:[%s3 + $0xd0] sm:$0xf]
      %v2968 = vld [vmem:[%s3 + $0xd4] sm:$0xf]
      %v2969 = vld [vmem:[%s3 + $0xd8] sm:$0xf]
      %v2970 = vld [vmem:[%s3 + $0xdc] sm:$0xf]
      %v2971 = vld [vmem:[%s3 + $0xe0] sm:$0xf]
      %v2972 = vld [vmem:[%s3 + $0xe4] sm:$0xf]
      %v2973 = vld [vmem:[%s3 + $0xe8] sm:$0xf]
      %v2974 = vld [vmem:[%s3 + $0xec] sm:$0xf]
      %v2975 = vld [vmem:[%s3 + $0xf0] sm:$0xf]
      %v2976 = vld [vmem:[%s3 + $0xf4] sm:$0xf]
      %v2977 = vld [vmem:[%s3 + $0xf8] sm:$0xf]
      %v2978 = vld [vmem:[%s3 + $0xfc] sm:$0xf]
      %v2979 = vld [vmem:[%s3 + $0x100] sm:$0xf]
      %v2980 = vld [vmem:[%s3 + $0x104] sm:$0xf]
      %v2981 = vld [vmem:[%s3 + $0x108] sm:$0xf]
      %v2982 = vld [vmem:[%s3 + $0x10c] sm:$0xf]
      %v2983 = vld [vmem:[%s3 + $0x110] sm:$0xf]
      %v2984 = vld [vmem:[%s3 + $0x114] sm:$0xf]
      %v2985 = vld [vmem:[%s3 + $0x118] sm:$0xf]
      %v2986 = vld [vmem:[%s3 + $0x11c] sm:$0xf]
      %v2987 = vld [vmem:[%s3 + $0x120] sm:$0xf]
      %v2988 = vld [vmem:[%s3 + $0x124] sm:$0xf]
      %v2989 = vld [vmem:[%s3 + $0x128] sm:$0xf]
      %v2990 = vld [vmem:[%s3 + $0x12c] sm:$0xf]
      %v2991 = vld [vmem:[%s3 + $0x130] sm:$0xf]
      %v2992 = vld [vmem:[%s3 + $0x134] sm:$0xf]
      %v2993 = vld [vmem:[%s3 + $0x138] sm:$0xf]
      %v2994 = vld [vmem:[%s3 + $0x13c] sm:$0xf]
      %v2995 = vld [vmem:[%s3 + $0x140] sm:$0xf]
      %v2996 = vld [vmem:[%s3 + $0x144] sm:$0xf]
      %v2997 = vld [vmem:[%s3 + $0x148] sm:$0xf]
      %v2998 = vld [vmem:[%s3 + $0x14c] sm:$0xf]
      %v2999 = vld [vmem:[%s3 + $0x150] sm:$0xf]
      %v3000 = vld [vmem:[%s3 + $0x154] sm:$0xf]
      %v3001 = vld [vmem:[%s3 + $0x158] sm:$0xf]
      %v3002 = vld [vmem:[%s3 + $0x15c] sm:$0xf]
      %v3003 = vld [vmem:[%s3 + $0x160] sm:$0xf]
      %v3004 = vld [vmem:[%s3 + $0x164] sm:$0xf]
      %v3005 = vld [vmem:[%s3 + $0x168] sm:$0xf]
      %v3006 = vld [vmem:[%s3 + $0x16c] sm:$0xf]
      %v3007 = vld [vmem:[%s3 + $0x170] sm:$0xf]
      %v3008 = vld [vmem:[%s3 + $0x174] sm:$0xf]
      %v3009 = vld [vmem:[%s3 + $0x178] sm:$0xf]
      %v3010 = vld [vmem:[%s3 + $0x17c] sm:$0xf]
      %v3011 = vld [vmem:[%s3 + $0x180] sm:$0xf]
      %v3012 = vld [vmem:[%s3 + $0x184] sm:$0xf]
      %v3013 = vld [vmem:[%s3 + $0x188] sm:$0xf]
      %v3014 = vld [vmem:[%s3 + $0x18c] sm:$0xf]
      %v3015 = vld [vmem:[%s3 + $0x190] sm:$0xf]
      %v3016 = vld [vmem:[%s3 + $0x194] sm:$0xf]
      %v3017 = vld [vmem:[%s3 + $0x198] sm:$0xf]
      %v3018 = vld [vmem:[%s3 + $0x19c] sm:$0xf]
      %v3019 = vld [vmem:[%s3 + $0x1a0] sm:$0xf]
      %v3020 = vld [vmem:[%s3 + $0x1a4] sm:$0xf]
      %v3021 = vld [vmem:[%s3 + $0x1a8] sm:$0xf]
      %v3022 = vld [vmem:[%s3 + $0x1ac] sm:$0xf]
      %v3023 = vld [vmem:[%s3 + $0x1b0] sm:$0xf]
      %v3024 = vld [vmem:[%s3 + $0x1b4] sm:$0xf]
      %v3025 = vld [vmem:[%s3 + $0x1b8] sm:$0xf]
      %v3026 = vld [vmem:[%s3 + $0x1bc] sm:$0xf]
      %v3027 = vld [vmem:[%s3 + $0x1c0] sm:$0xf]
      %v3028 = vld [vmem:[%s3 + $0x1c4] sm:$0xf]
      %v3029 = vld [vmem:[%s3 + $0x1c8] sm:$0xf]
      %v3030 = vld [vmem:[%s3 + $0x1cc] sm:$0xf]
      %v3031 = vld [vmem:[%s3 + $0x1d0] sm:$0xf]
      %v3032 = vld [vmem:[%s3 + $0x1d4] sm:$0xf]
      %v3033 = vld [vmem:[%s3 + $0x1d8] sm:$0xf]
      %v3034 = vld [vmem:[%s3 + $0x1dc] sm:$0xf]
      %v3035 = vld [vmem:[%s3 + $0x1e0] sm:$0xf]
      %v3036 = vld [vmem:[%s3 + $0x1e4] sm:$0xf]
      %v3037 = vld [vmem:[%s3 + $0x1e8] sm:$0xf]
      %v3038 = vld [vmem:[%s3 + $0x1ec] sm:$0xf]
      %v3039 = vld [vmem:[%s3 + $0x1f0] sm:$0xf]
      %v3040 = vld [vmem:[%s3 + $0x1f4] sm:$0xf]
      %v3041 = vld [vmem:[%s3 + $0x1f8] sm:$0xf]
      %v3042 = vld [vmem:[%s3 + $0x1fc] sm:$0xf]
      %v3043 = vld [vmem:[%s3 + $0x200] sm:$0xf]
      %v3044 = vld [vmem:[%s3 + $0x204] sm:$0xf]
      %v3045 = vld [vmem:[%s3 + $0x208] sm:$0xf]
      %v3046 = vld [vmem:[%s3 + $0x20c] sm:$0xf]
      %v3047 = vld [vmem:[%s3 + $0x210] sm:$0xf]
      %v3048 = vld [vmem:[%s3 + $0x214] sm:$0xf]
      %v3049 = vld [vmem:[%s3 + $0x218] sm:$0xf]
      %v3050 = vld [vmem:[%s3 + $0x21c] sm:$0xf]
      %v3051 = vld [vmem:[%s3 + $0x220] sm:$0xf]
      %v3052 = vld [vmem:[%s3 + $0x224] sm:$0xf]
      %v3053 = vld [vmem:[%s3 + $0x228] sm:$0xf]
      %v3054 = vld [vmem:[%s3 + $0x22c] sm:$0xf]
      %v3055 = vld [vmem:[%s3 + $0x230] sm:$0xf]
      %v3056 = vld [vmem:[%s3 + $0x234] sm:$0xf]
      %v3057 = vld [vmem:[%s3 + $0x238] sm:$0xf]
      %v3058 = vld [vmem:[%s3 + $0x23c] sm:$0xf]
      %v3059 = vld [vmem:[%s4] sm:$0x1]
      %v3061 = vperm.slane %v3059, 0
      %v3223 = vunpack.c.l.b16 %v2755
      %v3224 = vunpack.c.h.b16 %v2755
      %v3225 = vunpack.c.l.b16 %v2756
      %v3226 = vunpack.c.h.b16 %v2756
      %v3227 = vunpack.c.l.b16 %v2757
      %v3228 = vunpack.c.h.b16 %v2757
      %v3229 = vunpack.c.l.b16 %v2758
      %v3230 = vunpack.c.h.b16 %v2758
      %v3231 = vunpack.c.l.b16 %v2759
      %v3232 = vunpack.c.l.b16 %v2760
      %v3233 = vunpack.c.h.b16 %v2760
      %v3234 = vunpack.c.l.b16 %v2761
      %v3235 = vunpack.c.h.b16 %v2761
      %v3236 = vunpack.c.l.b16 %v2762
      %v3237 = vunpack.c.h.b16 %v2762
      %v3238 = vunpack.c.l.b16 %v2763
      %v3239 = vunpack.c.h.b16 %v2763
      %v3240 = vunpack.c.l.b16 %v2764
      %v3241 = vunpack.c.l.b16 %v2765
      %v3242 = vunpack.c.h.b16 %v2765
      %v3243 = vunpack.c.l.b16 %v2766
      %v3244 = vunpack.c.h.b16 %v2766
      %v3245 = vunpack.c.l.b16 %v2767
      %v3246 = vunpack.c.h.b16 %v2767
      %v3247 = vunpack.c.l.b16 %v2768
      %v3248 = vunpack.c.h.b16 %v2768
      %v3249 = vunpack.c.l.b16 %v2769
      %v3250 = vunpack.c.l.b16 %v2770
      %v3251 = vunpack.c.h.b16 %v2770
      %v3252 = vunpack.c.l.b16 %v2771
      %v3253 = vunpack.c.h.b16 %v2771
      %v3254 = vunpack.c.l.b16 %v2772
      %v3255 = vunpack.c.h.b16 %v2772
      %v3256 = vunpack.c.l.b16 %v2773
      %v3257 = vunpack.c.h.b16 %v2773
      %v3258 = vunpack.c.l.b16 %v2774
      %v3259 = vunpack.c.l.b16 %v2775
      %v3260 = vunpack.c.h.b16 %v2775
      %v3261 = vunpack.c.l.b16 %v2776
      %v3262 = vunpack.c.h.b16 %v2776
      %v3263 = vunpack.c.l.b16 %v2777
      %v3264 = vunpack.c.h.b16 %v2777
      %v3265 = vunpack.c.l.b16 %v2778
      %v3266 = vunpack.c.h.b16 %v2778
      %v3267 = vunpack.c.l.b16 %v2779
      %v3268 = vunpack.c.l.b16 %v2780
      %v3269 = vunpack.c.h.b16 %v2780
      %v3270 = vunpack.c.l.b16 %v2781
      %v3271 = vunpack.c.h.b16 %v2781
      %v3272 = vunpack.c.l.b16 %v2782
      %v3273 = vunpack.c.h.b16 %v2782
      %v3274 = vunpack.c.l.b16 %v2783
      %v3275 = vunpack.c.h.b16 %v2783
      %v3276 = vunpack.c.l.b16 %v2784
      %v3277 = vunpack.c.l.b16 %v2785
      %v3278 = vunpack.c.h.b16 %v2785
      %v3279 = vunpack.c.l.b16 %v2786
      %v3280 = vunpack.c.h.b16 %v2786
      %v3281 = vunpack.c.l.b16 %v2787
      %v3282 = vunpack.c.h.b16 %v2787
      %v3283 = vunpack.c.l.b16 %v2788
      %v3284 = vunpack.c.h.b16 %v2788
      %v3285 = vunpack.c.l.b16 %v2789
      %v3286 = vunpack.c.l.b16 %v2790
      %v3287 = vunpack.c.h.b16 %v2790
      %v3288 = vunpack.c.l.b16 %v2791
      %v3289 = vunpack.c.h.b16 %v2791
      %v3290 = vunpack.c.l.b16 %v2792
      %v3291 = vunpack.c.h.b16 %v2792
      %v3292 = vunpack.c.l.b16 %v2793
      %v3293 = vunpack.c.h.b16 %v2793
      %v3294 = vunpack.c.l.b16 %v2794
      %v3295 = vunpack.c.l.b16 %v2795
      %v3296 = vunpack.c.h.b16 %v2795
      %v3297 = vunpack.c.l.b16 %v2796
      %v3298 = vunpack.c.h.b16 %v2796
      %v3299 = vunpack.c.l.b16 %v2797
      %v3300 = vunpack.c.h.b16 %v2797
      %v3301 = vunpack.c.l.b16 %v2798
      %v3302 = vunpack.c.h.b16 %v2798
      %v3303 = vunpack.c.l.b16 %v2799
      %v3304 = vunpack.c.l.b16 %v2800
      %v3305 = vunpack.c.h.b16 %v2800
      %v3306 = vunpack.c.l.b16 %v2801
      %v3307 = vunpack.c.h.b16 %v2801
      %v3308 = vunpack.c.l.b16 %v2802
      %v3309 = vunpack.c.h.b16 %v2802
      %v3310 = vunpack.c.l.b16 %v2803
      %v3311 = vunpack.c.h.b16 %v2803
      %v3312 = vunpack.c.l.b16 %v2804
      %v3313 = vunpack.c.l.b16 %v2805
      %v3314 = vunpack.c.h.b16 %v2805
      %v3315 = vunpack.c.l.b16 %v2806
      %v3316 = vunpack.c.h.b16 %v2806
      %v3317 = vunpack.c.l.b16 %v2807
      %v3318 = vunpack.c.h.b16 %v2807
      %v3319 = vunpack.c.l.b16 %v2808
      %v3320 = vunpack.c.h.b16 %v2808
      %v3321 = vunpack.c.l.b16 %v2809
      %v3322 = vunpack.c.l.b16 %v2810
      %v3323 = vunpack.c.h.b16 %v2810
      %v3324 = vunpack.c.l.b16 %v2811
      %v3325 = vunpack.c.h.b16 %v2811
      %v3326 = vunpack.c.l.b16 %v2812
      %v3327 = vunpack.c.h.b16 %v2812
      %v3328 = vunpack.c.l.b16 %v2813
      %v3329 = vunpack.c.h.b16 %v2813
      %v3330 = vunpack.c.l.b16 %v2814
      %v3331 = vunpack.c.l.b16 %v2815
      %v3332 = vunpack.c.h.b16 %v2815
      %v3333 = vunpack.c.l.b16 %v2816
      %v3334 = vunpack.c.h.b16 %v2816
      %v3335 = vunpack.c.l.b16 %v2817
      %v3336 = vunpack.c.h.b16 %v2817
      %v3337 = vunpack.c.l.b16 %v2818
      %v3338 = vunpack.c.h.b16 %v2818
      %v3339 = vunpack.c.l.b16 %v2819
      %v3340 = vunpack.c.l.b16 %v2820
      %v3341 = vunpack.c.h.b16 %v2820
      %v3342 = vunpack.c.l.b16 %v2821
      %v3343 = vunpack.c.h.b16 %v2821
      %v3344 = vunpack.c.l.b16 %v2822
      %v3345 = vunpack.c.h.b16 %v2822
      %v3346 = vunpack.c.l.b16 %v2823
      %v3347 = vunpack.c.h.b16 %v2823
      %v3348 = vunpack.c.l.b16 %v2824
      %v3349 = vunpack.c.l.b16 %v2825
      %v3350 = vunpack.c.h.b16 %v2825
      %v3351 = vunpack.c.l.b16 %v2826
      %v3352 = vunpack.c.h.b16 %v2826
      %v3353 = vunpack.c.l.b16 %v2827
      %v3354 = vunpack.c.h.b16 %v2827
      %v3355 = vunpack.c.l.b16 %v2828
      %v3356 = vunpack.c.h.b16 %v2828
      %v3357 = vunpack.c.l.b16 %v2829
      %v3358 = vunpack.c.l.b16 %v2830
      %v3359 = vunpack.c.h.b16 %v2830
      %v3360 = vunpack.c.l.b16 %v2831
      %v3361 = vunpack.c.h.b16 %v2831
      %v3362 = vunpack.c.l.b16 %v2832
      %v3363 = vunpack.c.h.b16 %v2832
      %v3364 = vunpack.c.l.b16 %v2833
      %v3365 = vunpack.c.h.b16 %v2833
      %v3366 = vunpack.c.l.b16 %v2834
      %v3367 = vunpack.c.l.b16 %v2835
      %v3368 = vunpack.c.h.b16 %v2835
      %v3369 = vunpack.c.l.b16 %v2836
      %v3370 = vunpack.c.h.b16 %v2836
      %v3371 = vunpack.c.l.b16 %v2837
      %v3372 = vunpack.c.h.b16 %v2837
      %v3373 = vunpack.c.l.b16 %v2838
      %v3374 = vunpack.c.h.b16 %v2838
      %v3375 = vunpack.c.l.b16 %v2839
      %v3376 = vunpack.c.l.b16 %v2840
      %v3377 = vunpack.c.h.b16 %v2840
      %v3378 = vunpack.c.l.b16 %v2841
      %v3379 = vunpack.c.h.b16 %v2841
      %v3380 = vunpack.c.l.b16 %v2842
      %v3381 = vunpack.c.h.b16 %v2842
      %v3382 = vunpack.c.l.b16 %v2843
      %v3383 = vunpack.c.h.b16 %v2843
      %v3384 = vunpack.c.l.b16 %v2844
      %v3385 = vunpack.c.l.b16 %v2845
      %v3386 = vunpack.c.h.b16 %v2845
      %v3387 = vunpack.c.l.b16 %v2846
      %v3388 = vunpack.c.h.b16 %v2846
      %v3389 = vunpack.c.l.b16 %v2847
      %v3390 = vunpack.c.h.b16 %v2847
      %v3391 = vunpack.c.l.b16 %v2848
      %v3392 = vunpack.c.h.b16 %v2848
      %v3393 = vunpack.c.l.b16 %v2849
      %v3394 = vunpack.c.l.b16 %v2850
      %v3395 = vunpack.c.h.b16 %v2850
      %v3396 = vunpack.c.l.b16 %v2851
      %v3397 = vunpack.c.h.b16 %v2851
      %v3398 = vunpack.c.l.b16 %v2852
      %v3399 = vunpack.c.h.b16 %v2852
      %v3400 = vunpack.c.l.b16 %v2853
      %v3401 = vunpack.c.h.b16 %v2853
      %v3402 = vunpack.c.l.b16 %v2854
      %v3403 = vunpack.c.l.b16 %v2855
      %v3404 = vunpack.c.h.b16 %v2855
      %v3405 = vunpack.c.l.b16 %v2856
      %v3406 = vunpack.c.h.b16 %v2856
      %v3407 = vunpack.c.l.b16 %v2857
      %v3408 = vunpack.c.h.b16 %v2857
      %v3409 = vunpack.c.l.b16 %v2858
      %v3410 = vunpack.c.h.b16 %v2858
      %v3411 = vunpack.c.l.b16 %v2859
      %v3412 = vunpack.c.l.b16 %v2860
      %v3413 = vunpack.c.h.b16 %v2860
      %v3414 = vunpack.c.l.b16 %v2861
      %v3415 = vunpack.c.h.b16 %v2861
      %v3416 = vunpack.c.l.b16 %v2862
      %v3417 = vunpack.c.h.b16 %v2862
      %v3418 = vunpack.c.l.b16 %v2863
      %v3419 = vunpack.c.h.b16 %v2863
      %v3420 = vunpack.c.l.b16 %v2864
      %v3421 = vunpack.c.l.b16 %v2865
      %v3422 = vunpack.c.h.b16 %v2865
      %v3423 = vunpack.c.l.b16 %v2866
      %v3424 = vunpack.c.h.b16 %v2866
      %v3425 = vunpack.c.l.b16 %v2867
      %v3426 = vunpack.c.h.b16 %v2867
      %v3427 = vunpack.c.l.b16 %v2868
      %v3428 = vunpack.c.h.b16 %v2868
      %v3429 = vunpack.c.l.b16 %v2869
      %v3430 = vunpack.c.l.b16 %v2870
      %v3431 = vunpack.c.h.b16 %v2870
      %v3432 = vunpack.c.l.b16 %v2871
      %v3433 = vunpack.c.h.b16 %v2871
      %v3434 = vunpack.c.l.b16 %v2872
      %v3435 = vunpack.c.h.b16 %v2872
      %v3436 = vunpack.c.l.b16 %v2873
      %v3437 = vunpack.c.h.b16 %v2873
      %v3438 = vunpack.c.l.b16 %v2874
      %v3439 = vunpack.c.l.b16 %v2875
      %v3440 = vunpack.c.h.b16 %v2875
      %v3441 = vunpack.c.l.b16 %v2876
      %v3442 = vunpack.c.h.b16 %v2876
      %v3443 = vunpack.c.l.b16 %v2877
      %v3444 = vunpack.c.h.b16 %v2877
      %v3445 = vunpack.c.l.b16 %v2878
      %v3446 = vunpack.c.h.b16 %v2878
      %v3447 = vunpack.c.l.b16 %v2879
      %v3448 = vunpack.c.l.b16 %v2880
      %v3449 = vunpack.c.h.b16 %v2880
      %v3450 = vunpack.c.l.b16 %v2881
      %v3451 = vunpack.c.h.b16 %v2881
      %v3452 = vunpack.c.l.b16 %v2882
      %v3453 = vunpack.c.h.b16 %v2882
      %v3454 = vunpack.c.l.b16 %v2883
      %v3455 = vunpack.c.h.b16 %v2883
      %v3456 = vunpack.c.l.b16 %v2884
      %v3457 = vunpack.c.l.b16 %v2885
      %v3458 = vunpack.c.h.b16 %v2885
      %v3459 = vunpack.c.l.b16 %v2886
      %v3460 = vunpack.c.h.b16 %v2886
      %v3461 = vunpack.c.l.b16 %v2887
      %v3462 = vunpack.c.h.b16 %v2887
      %v3463 = vunpack.c.l.b16 %v2888
      %v3464 = vunpack.c.h.b16 %v2888
      %v3465 = vunpack.c.l.b16 %v2889
      %v3466 = vunpack.c.l.b16 %v2890
      %v3467 = vunpack.c.h.b16 %v2890
      %v3468 = vunpack.c.l.b16 %v2891
      %v3469 = vunpack.c.h.b16 %v2891
      %v3470 = vunpack.c.l.b16 %v2892
      %v3471 = vunpack.c.h.b16 %v2892
      %v3472 = vunpack.c.l.b16 %v2893
      %v3473 = vunpack.c.h.b16 %v2893
      %v3474 = vunpack.c.l.b16 %v2894
      %v3475 = vunpack.c.l.b16 %v2895
      %v3476 = vunpack.c.h.b16 %v2895
      %v3477 = vunpack.c.l.b16 %v2896
      %v3478 = vunpack.c.h.b16 %v2896
      %v3479 = vunpack.c.l.b16 %v2897
      %v3480 = vunpack.c.h.b16 %v2897
      %v3481 = vunpack.c.l.b16 %v2898
      %v3482 = vunpack.c.h.b16 %v2898
      %v3483 = vunpack.c.l.b16 %v2899
      %v3484 = vunpack.c.l.b16 %v2900
      %v3485 = vunpack.c.h.b16 %v2900
      %v3486 = vunpack.c.l.b16 %v2901
      %v3487 = vunpack.c.h.b16 %v2901
      %v3488 = vunpack.c.l.b16 %v2902
      %v3489 = vunpack.c.h.b16 %v2902
      %v3490 = vunpack.c.l.b16 %v2903
      %v3491 = vunpack.c.h.b16 %v2903
      %v3492 = vunpack.c.l.b16 %v2904
      %v3493 = vunpack.c.l.b16 %v2905
      %v3494 = vunpack.c.h.b16 %v2905
      %v3495 = vunpack.c.l.b16 %v2906
      %v3496 = vunpack.c.h.b16 %v2906
      %v3497 = vunpack.c.l.b16 %v2907
      %v3498 = vunpack.c.h.b16 %v2907
      %v3499 = vunpack.c.l.b16 %v2908
      %v3500 = vunpack.c.h.b16 %v2908
      %v3501 = vunpack.c.l.b16 %v2909
      %v3502 = vunpack.c.l.b16 %v2910
      %v3503 = vunpack.c.h.b16 %v2910
      %v3504 = vunpack.c.l.b16 %v2911
      %v3505 = vunpack.c.h.b16 %v2911
      %v3506 = vunpack.c.l.b16 %v2912
      %v3507 = vunpack.c.h.b16 %v2912
      %v3508 = vunpack.c.l.b16 %v2913
      %v3509 = vunpack.c.h.b16 %v2913
      %v3510 = vunpack.c.l.b16 %v2914
      %v3511 = vpack.c.b16 %v3232, %v3223
      %v3512 = vpack.c.b16 %v3233, %v3224
      %v3513 = vpack.c.b16 %v3234, %v3225
      %v3514 = vpack.c.b16 %v3235, %v3226
      %v3515 = vpack.c.b16 %v3236, %v3227
      %v3516 = vpack.c.b16 %v3237, %v3228
      %v3517 = vpack.c.b16 %v3238, %v3229
      %v3518 = vpack.c.b16 %v3239, %v3230
      %v3519 = vpack.c.b16 %v3240, %v3231
      %v3520 = vpack.c.b16 %v3250, %v3241
      %v3521 = vpack.c.b16 %v3251, %v3242
      %v3522 = vpack.c.b16 %v3252, %v3243
      %v3523 = vpack.c.b16 %v3253, %v3244
      %v3524 = vpack.c.b16 %v3254, %v3245
      %v3525 = vpack.c.b16 %v3255, %v3246
      %v3526 = vpack.c.b16 %v3256, %v3247
      %v3527 = vpack.c.b16 %v3257, %v3248
      %v3528 = vpack.c.b16 %v3258, %v3249
      %v3529 = vpack.c.b16 %v3268, %v3259
      %v3530 = vpack.c.b16 %v3269, %v3260
      %v3531 = vpack.c.b16 %v3270, %v3261
      %v3532 = vpack.c.b16 %v3271, %v3262
      %v3533 = vpack.c.b16 %v3272, %v3263
      %v3534 = vpack.c.b16 %v3273, %v3264
      %v3535 = vpack.c.b16 %v3274, %v3265
      %v3536 = vpack.c.b16 %v3275, %v3266
      %v3537 = vpack.c.b16 %v3276, %v3267
      %v3538 = vpack.c.b16 %v3286, %v3277
      %v3539 = vpack.c.b16 %v3287, %v3278
      %v3540 = vpack.c.b16 %v3288, %v3279
      %v3541 = vpack.c.b16 %v3289, %v3280
      %v3542 = vpack.c.b16 %v3290, %v3281
      %v3543 = vpack.c.b16 %v3291, %v3282
      %v3544 = vpack.c.b16 %v3292, %v3283
      %v3545 = vpack.c.b16 %v3293, %v3284
      %v3546 = vpack.c.b16 %v3294, %v3285
      %v3547 = vpack.c.b16 %v3304, %v3295
      %v3548 = vpack.c.b16 %v3305, %v3296
      %v3549 = vpack.c.b16 %v3306, %v3297
      %v3550 = vpack.c.b16 %v3307, %v3298
      %v3551 = vpack.c.b16 %v3308, %v3299
      %v3552 = vpack.c.b16 %v3309, %v3300
      %v3553 = vpack.c.b16 %v3310, %v3301
      %v3554 = vpack.c.b16 %v3311, %v3302
      %v3555 = vpack.c.b16 %v3312, %v3303
      %v3556 = vpack.c.b16 %v3322, %v3313
      %v3557 = vpack.c.b16 %v3323, %v3314
      %v3558 = vpack.c.b16 %v3324, %v3315
      %v3559 = vpack.c.b16 %v3325, %v3316
      %v3560 = vpack.c.b16 %v3326, %v3317
      %v3561 = vpack.c.b16 %v3327, %v3318
      %v3562 = vpack.c.b16 %v3328, %v3319
      %v3563 = vpack.c.b16 %v3329, %v3320
      %v3564 = vpack.c.b16 %v3330, %v3321
      %v3565 = vpack.c.b16 %v3340, %v3331
      %v3566 = vpack.c.b16 %v3341, %v3332
      %v3567 = vpack.c.b16 %v3342, %v3333
      %v3568 = vpack.c.b16 %v3343, %v3334
      %v3569 = vpack.c.b16 %v3344, %v3335
      %v3570 = vpack.c.b16 %v3345, %v3336
      %v3571 = vpack.c.b16 %v3346, %v3337
      %v3572 = vpack.c.b16 %v3347, %v3338
      %v3573 = vpack.c.b16 %v3348, %v3339
      %v3574 = vpack.c.b16 %v3358, %v3349
      %v3575 = vpack.c.b16 %v3359, %v3350
      %v3576 = vpack.c.b16 %v3360, %v3351
      %v3577 = vpack.c.b16 %v3361, %v3352
      %v3578 = vpack.c.b16 %v3362, %v3353
      %v3579 = vpack.c.b16 %v3363, %v3354
      %v3580 = vpack.c.b16 %v3364, %v3355
      %v3581 = vpack.c.b16 %v3365, %v3356
      %v3582 = vpack.c.b16 %v3366, %v3357
      %v3583 = vpack.c.b16 %v3376, %v3367
      %v3584 = vpack.c.b16 %v3377, %v3368
      %v3585 = vpack.c.b16 %v3378, %v3369
      %v3586 = vpack.c.b16 %v3379, %v3370
      %v3587 = vpack.c.b16 %v3380, %v3371
      %v3588 = vpack.c.b16 %v3381, %v3372
      %v3589 = vpack.c.b16 %v3382, %v3373
      %v3590 = vpack.c.b16 %v3383, %v3374
      %v3591 = vpack.c.b16 %v3384, %v3375
      %v3592 = vpack.c.b16 %v3394, %v3385
      %v3593 = vpack.c.b16 %v3395, %v3386
      %v3594 = vpack.c.b16 %v3396, %v3387
      %v3595 = vpack.c.b16 %v3397, %v3388
      %v3596 = vpack.c.b16 %v3398, %v3389
      %v3597 = vpack.c.b16 %v3399, %v3390
      %v3598 = vpack.c.b16 %v3400, %v3391
      %v3599 = vpack.c.b16 %v3401, %v3392
      %v3600 = vpack.c.b16 %v3402, %v3393
      %v3601 = vpack.c.b16 %v3412, %v3403
      %v3602 = vpack.c.b16 %v3413, %v3404
      %v3603 = vpack.c.b16 %v3414, %v3405
      %v3604 = vpack.c.b16 %v3415, %v3406
      %v3605 = vpack.c.b16 %v3416, %v3407
      %v3606 = vpack.c.b16 %v3417, %v3408
      %v3607 = vpack.c.b16 %v3418, %v3409
      %v3608 = vpack.c.b16 %v3419, %v3410
      %v3609 = vpack.c.b16 %v3420, %v3411
      %v3610 = vpack.c.b16 %v3430, %v3421
      %v3611 = vpack.c.b16 %v3431, %v3422
      %v3612 = vpack.c.b16 %v3432, %v3423
      %v3613 = vpack.c.b16 %v3433, %v3424
      %v3614 = vpack.c.b16 %v3434, %v3425
      %v3615 = vpack.c.b16 %v3435, %v3426
      %v3616 = vpack.c.b16 %v3436, %v3427
      %v3617 = vpack.c.b16 %v3437, %v3428
      %v3618 = vpack.c.b16 %v3438, %v3429
      %v3619 = vpack.c.b16 %v3448, %v3439
      %v3620 = vpack.c.b16 %v3449, %v3440
      %v3621 = vpack.c.b16 %v3450, %v3441
      %v3622 = vpack.c.b16 %v3451, %v3442
      %v3623 = vpack.c.b16 %v3452, %v3443
      %v3624 = vpack.c.b16 %v3453, %v3444
      %v3625 = vpack.c.b16 %v3454, %v3445
      %v3626 = vpack.c.b16 %v3455, %v3446
      %v3627 = vpack.c.b16 %v3456, %v3447
      %v3628 = vpack.c.b16 %v3466, %v3457
      %v3629 = vpack.c.b16 %v3467, %v3458
      %v3630 = vpack.c.b16 %v3468, %v3459
      %v3631 = vpack.c.b16 %v3469, %v3460
      %v3632 = vpack.c.b16 %v3470, %v3461
      %v3633 = vpack.c.b16 %v3471, %v3462
      %v3634 = vpack.c.b16 %v3472, %v3463
      %v3635 = vpack.c.b16 %v3473, %v3464
      %v3636 = vpack.c.b16 %v3474, %v3465
      %v3637 = vpack.c.b16 %v3484, %v3475
      %v3638 = vpack.c.b16 %v3485, %v3476
      %v3639 = vpack.c.b16 %v3486, %v3477
      %v3640 = vpack.c.b16 %v3487, %v3478
      %v3641 = vpack.c.b16 %v3488, %v3479
      %v3642 = vpack.c.b16 %v3489, %v3480
      %v3643 = vpack.c.b16 %v3490, %v3481
      %v3644 = vpack.c.b16 %v3491, %v3482
      %v3645 = vpack.c.b16 %v3492, %v3483
      %v3646 = vpack.c.b16 %v3502, %v3493
      %v3647 = vpack.c.b16 %v3503, %v3494
      %v3648 = vpack.c.b16 %v3504, %v3495
      %v3649 = vpack.c.b16 %v3505, %v3496
      %v3650 = vpack.c.b16 %v3506, %v3497
      %v3651 = vpack.c.b16 %v3507, %v3498
      %v3652 = vpack.c.b16 %v3508, %v3499
      %v3653 = vpack.c.b16 %v3509, %v3500
      %v3654 = vpack.c.b16 %v3510, %v3501
      %v3943 = vunpack.c.l.b16 %v2915
      %v3944 = vunpack.c.l.b16 %v2916
      %v3945 = vunpack.c.l.b16 %v2917
      %v3946 = vunpack.c.l.b16 %v2918
      %v3947 = vunpack.c.l.b16 %v2919
      %v3948 = vunpack.c.l.b16 %v2920
      %v3949 = vunpack.c.l.b16 %v2921
      %v3950 = vunpack.c.l.b16 %v2922
      %v3951 = vunpack.c.l.b16 %v2923
      %v3952 = vunpack.c.l.b16 %v2924
      %v3953 = vunpack.c.l.b16 %v2925
      %v3954 = vunpack.c.l.b16 %v2926
      %v3955 = vunpack.c.l.b16 %v2927
      %v3956 = vunpack.c.l.b16 %v2928
      %v3957 = vunpack.c.l.b16 %v2929
      %v3958 = vunpack.c.l.b16 %v2930
      %v3959 = vunpack.c.l.b16 %v2931
      %v3960 = vunpack.c.l.b16 %v2932
      %v3961 = vunpack.c.l.b16 %v2933
      %v3962 = vunpack.c.l.b16 %v2934
      %v3963 = vunpack.c.l.b16 %v2935
      %v3964 = vunpack.c.l.b16 %v2936
      %v3965 = vunpack.c.l.b16 %v2937
      %v3966 = vunpack.c.l.b16 %v2938
      %v3967 = vunpack.c.l.b16 %v2939
      %v3968 = vunpack.c.l.b16 %v2940
      %v3969 = vunpack.c.l.b16 %v2941
      %v3970 = vunpack.c.l.b16 %v2942
      %v3971 = vunpack.c.l.b16 %v2943
      %v3972 = vunpack.c.l.b16 %v2944
      %v3973 = vunpack.c.l.b16 %v2945
      %v3974 = vunpack.c.l.b16 %v2946
      %v3975 = vunpack.c.l.b16 %v2947
      %v3976 = vunpack.c.l.b16 %v2948
      %v3977 = vunpack.c.l.b16 %v2949
      %v3978 = vunpack.c.l.b16 %v2950
      %v3979 = vunpack.c.l.b16 %v2951
      %v3980 = vunpack.c.l.b16 %v2952
      %v3981 = vunpack.c.l.b16 %v2953
      %v3982 = vunpack.c.l.b16 %v2954
      %v3983 = vunpack.c.l.b16 %v2955
      %v3984 = vunpack.c.l.b16 %v2956
      %v3985 = vunpack.c.l.b16 %v2957
      %v3986 = vunpack.c.l.b16 %v2958
      %v3987 = vunpack.c.l.b16 %v2959
      %v3988 = vunpack.c.l.b16 %v2960
      %v3989 = vunpack.c.l.b16 %v2961
      %v3990 = vunpack.c.l.b16 %v2962
      %v3991 = vunpack.c.l.b16 %v2963
      %v3992 = vunpack.c.l.b16 %v2964
      %v3993 = vunpack.c.l.b16 %v2965
      %v3994 = vunpack.c.l.b16 %v2966
      %v3995 = vunpack.c.l.b16 %v2967
      %v3996 = vunpack.c.l.b16 %v2968
      %v3997 = vunpack.c.l.b16 %v2969
      %v3998 = vunpack.c.l.b16 %v2970
      %v3999 = vunpack.c.l.b16 %v2971
      %v4000 = vunpack.c.l.b16 %v2972
      %v4001 = vunpack.c.l.b16 %v2973
      %v4002 = vunpack.c.l.b16 %v2974
      %v4003 = vunpack.c.l.b16 %v2975
      %v4004 = vunpack.c.l.b16 %v2976
      %v4005 = vunpack.c.l.b16 %v2977
      %v4006 = vunpack.c.l.b16 %v2978
      %v4007 = vunpack.c.l.b16 %v2979
      %v4008 = vunpack.c.l.b16 %v2980
      %v4009 = vunpack.c.l.b16 %v2981
      %v4010 = vunpack.c.l.b16 %v2982
      %v4011 = vunpack.c.l.b16 %v2983
      %v4012 = vunpack.c.l.b16 %v2984
      %v4013 = vunpack.c.l.b16 %v2985
      %v4014 = vunpack.c.l.b16 %v2986
      %v4015 = vunpack.c.l.b16 %v2987
      %v4016 = vunpack.c.l.b16 %v2988
      %v4017 = vunpack.c.l.b16 %v2989
      %v4018 = vunpack.c.l.b16 %v2990
      %v4019 = vunpack.c.l.b16 %v2991
      %v4020 = vunpack.c.l.b16 %v2992
      %v4021 = vunpack.c.l.b16 %v2993
      %v4022 = vunpack.c.l.b16 %v2994
      %v4023 = vunpack.c.l.b16 %v2995
      %v4024 = vunpack.c.l.b16 %v2996
      %v4025 = vunpack.c.l.b16 %v2997
      %v4026 = vunpack.c.l.b16 %v2998
      %v4027 = vunpack.c.l.b16 %v2999
      %v4028 = vunpack.c.l.b16 %v3000
      %v4029 = vunpack.c.l.b16 %v3001
      %v4030 = vunpack.c.l.b16 %v3002
      %v4031 = vunpack.c.l.b16 %v3003
      %v4032 = vunpack.c.l.b16 %v3004
      %v4033 = vunpack.c.l.b16 %v3005
      %v4034 = vunpack.c.l.b16 %v3006
      %v4035 = vunpack.c.l.b16 %v3007
      %v4036 = vunpack.c.l.b16 %v3008
      %v4037 = vunpack.c.l.b16 %v3009
      %v4038 = vunpack.c.l.b16 %v3010
      %v4039 = vunpack.c.l.b16 %v3011
      %v4040 = vunpack.c.l.b16 %v3012
      %v4041 = vunpack.c.l.b16 %v3013
      %v4042 = vunpack.c.l.b16 %v3014
      %v4043 = vunpack.c.l.b16 %v3015
      %v4044 = vunpack.c.l.b16 %v3016
      %v4045 = vunpack.c.l.b16 %v3017
      %v4046 = vunpack.c.l.b16 %v3018
      %v4047 = vunpack.c.l.b16 %v3019
      %v4048 = vunpack.c.l.b16 %v3020
      %v4049 = vunpack.c.l.b16 %v3021
      %v4050 = vunpack.c.l.b16 %v3022
      %v4051 = vunpack.c.l.b16 %v3023
      %v4052 = vunpack.c.l.b16 %v3024
      %v4053 = vunpack.c.l.b16 %v3025
      %v4054 = vunpack.c.l.b16 %v3026
      %v4055 = vunpack.c.l.b16 %v3027
      %v4056 = vunpack.c.l.b16 %v3028
      %v4057 = vunpack.c.l.b16 %v3029
      %v4058 = vunpack.c.l.b16 %v3030
      %v4059 = vunpack.c.l.b16 %v3031
      %v4060 = vunpack.c.l.b16 %v3032
      %v4061 = vunpack.c.l.b16 %v3033
      %v4062 = vunpack.c.l.b16 %v3034
      %v4063 = vunpack.c.l.b16 %v3035
      %v4064 = vunpack.c.l.b16 %v3036
      %v4065 = vunpack.c.l.b16 %v3037
      %v4066 = vunpack.c.l.b16 %v3038
      %v4067 = vunpack.c.l.b16 %v3039
      %v4068 = vunpack.c.l.b16 %v3040
      %v4069 = vunpack.c.l.b16 %v3041
      %v4070 = vunpack.c.l.b16 %v3042
      %v4071 = vunpack.c.l.b16 %v3043
      %v4072 = vunpack.c.l.b16 %v3044
      %v4073 = vunpack.c.l.b16 %v3045
      %v4074 = vunpack.c.l.b16 %v3046
      %v4075 = vunpack.c.l.b16 %v3047
      %v4076 = vunpack.c.l.b16 %v3048
      %v4077 = vunpack.c.l.b16 %v3049
      %v4078 = vunpack.c.l.b16 %v3050
      %v4079 = vunpack.c.l.b16 %v3051
      %v4080 = vunpack.c.l.b16 %v3052
      %v4081 = vunpack.c.l.b16 %v3053
      %v4082 = vunpack.c.l.b16 %v3054
      %v4083 = vunpack.c.l.b16 %v3055
      %v4084 = vunpack.c.l.b16 %v3056
      %v4085 = vunpack.c.l.b16 %v3057
      %v4086 = vunpack.c.l.b16 %v3058
      %v4087 = vpack.c.b16 %v3944, %v3943
      %v4088 = vpack.c.b16 %v3946, %v3945
      %v4089 = vpack.c.b16 %v3948, %v3947
      %v4090 = vpack.c.b16 %v3950, %v3949
      %v4091 = vpack.c.b16 %v3952, %v3951
      %v4092 = vpack.c.b16 %v3954, %v3953
      %v4093 = vpack.c.b16 %v3956, %v3955
      %v4094 = vpack.c.b16 %v3958, %v3957
      %v4095 = vpack.c.b16 %v3960, %v3959
      %v4096 = vpack.c.b16 %v3962, %v3961
      %v4097 = vpack.c.b16 %v3964, %v3963
      %v4098 = vpack.c.b16 %v3966, %v3965
      %v4099 = vpack.c.b16 %v3968, %v3967
      %v4100 = vpack.c.b16 %v3970, %v3969
      %v4101 = vpack.c.b16 %v3972, %v3971
      %v4102 = vpack.c.b16 %v3974, %v3973
      %v4103 = vpack.c.b16 %v3976, %v3975
      %v4104 = vpack.c.b16 %v3978, %v3977
      %v4105 = vpack.c.b16 %v3980, %v3979
      %v4106 = vpack.c.b16 %v3982, %v3981
      %v4107 = vpack.c.b16 %v3984, %v3983
      %v4108 = vpack.c.b16 %v3986, %v3985
      %v4109 = vpack.c.b16 %v3988, %v3987
      %v4110 = vpack.c.b16 %v3990, %v3989
      %v4111 = vpack.c.b16 %v3992, %v3991
      %v4112 = vpack.c.b16 %v3994, %v3993
      %v4113 = vpack.c.b16 %v3996, %v3995
      %v4114 = vpack.c.b16 %v3998, %v3997
      %v4115 = vpack.c.b16 %v4000, %v3999
      %v4116 = vpack.c.b16 %v4002, %v4001
      %v4117 = vpack.c.b16 %v4004, %v4003
      %v4118 = vpack.c.b16 %v4006, %v4005
      %v4119 = vpack.c.b16 %v4008, %v4007
      %v4120 = vpack.c.b16 %v4010, %v4009
      %v4121 = vpack.c.b16 %v4012, %v4011
      %v4122 = vpack.c.b16 %v4014, %v4013
      %v4123 = vpack.c.b16 %v4016, %v4015
      %v4124 = vpack.c.b16 %v4018, %v4017
      %v4125 = vpack.c.b16 %v4020, %v4019
      %v4126 = vpack.c.b16 %v4022, %v4021
      %v4127 = vpack.c.b16 %v4024, %v4023
      %v4128 = vpack.c.b16 %v4026, %v4025
      %v4129 = vpack.c.b16 %v4028, %v4027
      %v4130 = vpack.c.b16 %v4030, %v4029
      %v4131 = vpack.c.b16 %v4032, %v4031
      %v4132 = vpack.c.b16 %v4034, %v4033
      %v4133 = vpack.c.b16 %v4036, %v4035
      %v4134 = vpack.c.b16 %v4038, %v4037
      %v4135 = vpack.c.b16 %v4040, %v4039
      %v4136 = vpack.c.b16 %v4042, %v4041
      %v4137 = vpack.c.b16 %v4044, %v4043
      %v4138 = vpack.c.b16 %v4046, %v4045
      %v4139 = vpack.c.b16 %v4048, %v4047
      %v4140 = vpack.c.b16 %v4050, %v4049
      %v4141 = vpack.c.b16 %v4052, %v4051
      %v4142 = vpack.c.b16 %v4054, %v4053
      %v4143 = vpack.c.b16 %v4056, %v4055
      %v4144 = vpack.c.b16 %v4058, %v4057
      %v4145 = vpack.c.b16 %v4060, %v4059
      %v4146 = vpack.c.b16 %v4062, %v4061
      %v4147 = vpack.c.b16 %v4064, %v4063
      %v4148 = vpack.c.b16 %v4066, %v4065
      %v4149 = vpack.c.b16 %v4068, %v4067
      %v4150 = vpack.c.b16 %v4070, %v4069
      %v4151 = vpack.c.b16 %v4072, %v4071
      %v4152 = vpack.c.b16 %v4074, %v4073
      %v4153 = vpack.c.b16 %v4076, %v4075
      %v4154 = vpack.c.b16 %v4078, %v4077
      %v4155 = vpack.c.b16 %v4080, %v4079
      %v4156 = vpack.c.b16 %v4082, %v4081
      %v4157 = vpack.c.b16 %v4084, %v4083
      %v4158 = vpack.c.b16 %v4086, %v4085
      %4231 = vmatpush.bf16.msra.mxu0 %v4094
      %4232 = vmatpush.bf16.msra.mxu0 %v4093
      %4233 = vmatpush.bf16.msra.mxu0 %v4092
      %4234 = vmatpush.bf16.msra.mxu0 %v4091
      %4235 = vmatpush.bf16.msra.mxu0 %v4090
      %4236 = vmatpush.bf16.msra.mxu0 %v4089
      %4237 = vmatpush.bf16.msra.mxu0 %v4088
      %4238 = vmatpush.bf16.msra.mxu0 %v4087
      %4239 = vmatmul.bf16.gmra.mxu0 %v3511
      %v4240 = vpop.f32.mrf.mxu0
      %v4241 = vadd.f32 %v3061, %v4240
      %v4242 = vpop.f32.mrf.mxu0
      %v4243 = vadd.f32 %v3061, %v4242
      %4244 = vmatmul.bf16.gmra.mxu0 %v3520
      %v4245 = vpop.f32.mrf.mxu0
      %v4246 = vadd.f32 %v3061, %v4245
      %v4247 = vpop.f32.mrf.mxu0
      %v4248 = vadd.f32 %v3061, %v4247
      %4249 = vmatmul.bf16.gmra.mxu0 %v3529
      %v4250 = vpop.f32.mrf.mxu0
      %v4251 = vadd.f32 %v3061, %v4250
      %v4252 = vpop.f32.mrf.mxu0
      %v4253 = vadd.f32 %v3061, %v4252
      %4254 = vmatmul.bf16.gmra.mxu0 %v3538
      %v4255 = vpop.f32.mrf.mxu0
      %v4256 = vadd.f32 %v3061, %v4255
      %v4257 = vpop.f32.mrf.mxu0
      %v4258 = vadd.f32 %v3061, %v4257
      %4259 = vmatmul.bf16.gmra.mxu0 %v3547
      %v4260 = vpop.f32.mrf.mxu0
      %v4261 = vadd.f32 %v3061, %v4260
      %v4262 = vpop.f32.mrf.mxu0
      %v4263 = vadd.f32 %v3061, %v4262
      %4264 = vmatmul.bf16.gmra.mxu0 %v3556
      %v4265 = vpop.f32.mrf.mxu0
      %v4266 = vadd.f32 %v3061, %v4265
      %v4267 = vpop.f32.mrf.mxu0
      %v4268 = vadd.f32 %v3061, %v4267
      %4269 = vmatmul.bf16.gmra.mxu0 %v3565
      %v4270 = vpop.f32.mrf.mxu0
      %v4271 = vadd.f32 %v3061, %v4270
      %v4272 = vpop.f32.mrf.mxu0
      %v4273 = vadd.f32 %v3061, %v4272
      %4274 = vmatmul.bf16.gmra.mxu0 %v3574
      %v4275 = vpop.f32.mrf.mxu0
      %v4276 = vadd.f32 %v3061, %v4275
      %v4277 = vpop.f32.mrf.mxu0
      %v4278 = vadd.f32 %v3061, %v4277
      %4279 = vmatmul.bf16.gmra.mxu0 %v3583
      %v4280 = vpop.f32.mrf.mxu0
      %v4281 = vadd.f32 %v3061, %v4280
      %v4282 = vpop.f32.mrf.mxu0
      %v4283 = vadd.f32 %v3061, %v4282
      %4284 = vmatmul.bf16.gmra.mxu0 %v3592
      %v4285 = vpop.f32.mrf.mxu0
      %v4286 = vadd.f32 %v3061, %v4285
      %v4287 = vpop.f32.mrf.mxu0
      %v4288 = vadd.f32 %v3061, %v4287
      %4289 = vmatmul.bf16.gmra.mxu0 %v3601
      %v4290 = vpop.f32.mrf.mxu0
      %v4291 = vadd.f32 %v3061, %v4290
      %v4292 = vpop.f32.mrf.mxu0
      %v4293 = vadd.f32 %v3061, %v4292
      %4294 = vmatmul.bf16.gmra.mxu0 %v3610
      %v4295 = vpop.f32.mrf.mxu0
      %v4296 = vadd.f32 %v3061, %v4295
      %v4297 = vpop.f32.mrf.mxu0
      %v4298 = vadd.f32 %v3061, %v4297
      %4299 = vmatmul.bf16.gmra.mxu0 %v3619
      %v4300 = vpop.f32.mrf.mxu0
      %v4301 = vadd.f32 %v3061, %v4300
      %v4302 = vpop.f32.mrf.mxu0
      %v4303 = vadd.f32 %v3061, %v4302
      %4304 = vmatmul.bf16.gmra.mxu0 %v3628
      %v4305 = vpop.f32.mrf.mxu0
      %v4306 = vadd.f32 %v3061, %v4305
      %v4307 = vpop.f32.mrf.mxu0
      %v4308 = vadd.f32 %v3061, %v4307
      %4309 = vmatmul.bf16.gmra.mxu0 %v3637
      %v4310 = vpop.f32.mrf.mxu0
      %v4311 = vadd.f32 %v3061, %v4310
      %v4312 = vpop.f32.mrf.mxu0
      %v4313 = vadd.f32 %v3061, %v4312
      %4314 = vmatmul.bf16.gmra.mxu0 %v3646
      %v4315 = vpop.f32.mrf.mxu0
      %v4316 = vadd.f32 %v3061, %v4315
      %v4317 = vpop.f32.mrf.mxu0
      %v4318 = vadd.f32 %v3061, %v4317
      %4319 = vdwg.mxu0
      %4320 = vmatpush.bf16.msra.mxu0 %v4102
      %4321 = vmatpush.bf16.msra.mxu0 %v4101
      %4322 = vmatpush.bf16.msra.mxu0 %v4100
      %4323 = vmatpush.bf16.msra.mxu0 %v4099
      %4324 = vmatpush.bf16.msra.mxu0 %v4098
      %4325 = vmatpush.bf16.msra.mxu0 %v4097
      %4326 = vmatpush.bf16.msra.mxu0 %v4096
      %4327 = vmatpush.bf16.msra.mxu0 %v4095
      %4328 = vmatmul.bf16.gmra.mxu0 %v3512
      %v4329 = vpop.f32.mrf.mxu0
      %v4330 = vadd.f32 %v4241, %v4329
      %v4331 = vpop.f32.mrf.mxu0
      %v4332 = vadd.f32 %v4243, %v4331
      %4333 = vmatmul.bf16.gmra.mxu0 %v3521
      %v4334 = vpop.f32.mrf.mxu0
      %v4335 = vadd.f32 %v4246, %v4334
      %v4336 = vpop.f32.mrf.mxu0
      %v4337 = vadd.f32 %v4248, %v4336
      %4338 = vmatmul.bf16.gmra.mxu0 %v3530
      %v4339 = vpop.f32.mrf.mxu0
      %v4340 = vadd.f32 %v4251, %v4339
      %v4341 = vpop.f32.mrf.mxu0
      %v4342 = vadd.f32 %v4253, %v4341
      %4343 = vmatmul.bf16.gmra.mxu0 %v3539
      %v4344 = vpop.f32.mrf.mxu0
      %v4345 = vadd.f32 %v4256, %v4344
      %v4346 = vpop.f32.mrf.mxu0
      %v4347 = vadd.f32 %v4258, %v4346
      %4348 = vmatmul.bf16.gmra.mxu0 %v3548
      %v4349 = vpop.f32.mrf.mxu0
      %v4350 = vadd.f32 %v4261, %v4349
      %v4351 = vpop.f32.mrf.mxu0
      %v4352 = vadd.f32 %v4263, %v4351
      %4353 = vmatmul.bf16.gmra.mxu0 %v3557
      %v4354 = vpop.f32.mrf.mxu0
      %v4355 = vadd.f32 %v4266, %v4354
      %v4356 = vpop.f32.mrf.mxu0
      %v4357 = vadd.f32 %v4268, %v4356
      %4358 = vmatmul.bf16.gmra.mxu0 %v3566
      %v4359 = vpop.f32.mrf.mxu0
      %v4360 = vadd.f32 %v4271, %v4359
      %v4361 = vpop.f32.mrf.mxu0
      %v4362 = vadd.f32 %v4273, %v4361
      %4363 = vmatmul.bf16.gmra.mxu0 %v3575
      %v4364 = vpop.f32.mrf.mxu0
      %v4365 = vadd.f32 %v4276, %v4364
      %v4366 = vpop.f32.mrf.mxu0
      %v4367 = vadd.f32 %v4278, %v4366
      %4368 = vmatmul.bf16.gmra.mxu0 %v3584
      %v4369 = vpop.f32.mrf.mxu0
      %v4370 = vadd.f32 %v4281, %v4369
      %v4371 = vpop.f32.mrf.mxu0
      %v4372 = vadd.f32 %v4283, %v4371
      %4373 = vmatmul.bf16.gmra.mxu0 %v3593
      %v4374 = vpop.f32.mrf.mxu0
      %v4375 = vadd.f32 %v4286, %v4374
      %v4376 = vpop.f32.mrf.mxu0
      %v4377 = vadd.f32 %v4288, %v4376
      %4378 = vmatmul.bf16.gmra.mxu0 %v3602
      %v4379 = vpop.f32.mrf.mxu0
      %v4380 = vadd.f32 %v4291, %v4379
      %v4381 = vpop.f32.mrf.mxu0
      %v4382 = vadd.f32 %v4293, %v4381
      %4383 = vmatmul.bf16.gmra.mxu0 %v3611
      %v4384 = vpop.f32.mrf.mxu0
      %v4385 = vadd.f32 %v4296, %v4384
      %v4386 = vpop.f32.mrf.mxu0
      %v4387 = vadd.f32 %v4298, %v4386
      %4388 = vmatmul.bf16.gmra.mxu0 %v3620
      %v4389 = vpop.f32.mrf.mxu0
      %v4390 = vadd.f32 %v4301, %v4389
      %v4391 = vpop.f32.mrf.mxu0
      %v4392 = vadd.f32 %v4303, %v4391
      %4393 = vmatmul.bf16.gmra.mxu0 %v3629
      %v4394 = vpop.f32.mrf.mxu0
      %v4395 = vadd.f32 %v4306, %v4394
      %v4396 = vpop.f32.mrf.mxu0
      %v4397 = vadd.f32 %v4308, %v4396
      %4398 = vmatmul.bf16.gmra.mxu0 %v3638
      %v4399 = vpop.f32.mrf.mxu0
      %v4400 = vadd.f32 %v4311, %v4399
      %v4401 = vpop.f32.mrf.mxu0
      %v4402 = vadd.f32 %v4313, %v4401
      %4403 = vmatmul.bf16.gmra.mxu0 %v3647
      %v4404 = vpop.f32.mrf.mxu0
      %v4405 = vadd.f32 %v4316, %v4404
      %v4406 = vpop.f32.mrf.mxu0
      %v4407 = vadd.f32 %v4318, %v4406
      %4408 = vdwg.mxu0
      %4409 = vmatpush.bf16.msra.mxu0 %v4110
      %4410 = vmatpush.bf16.msra.mxu0 %v4109
      %4411 = vmatpush.bf16.msra.mxu0 %v4108
      %4412 = vmatpush.bf16.msra.mxu0 %v4107
      %4413 = vmatpush.bf16.msra.mxu0 %v4106
      %4414 = vmatpush.bf16.msra.mxu0 %v4105
      %4415 = vmatpush.bf16.msra.mxu0 %v4104
      %4416 = vmatpush.bf16.msra.mxu0 %v4103
      %4417 = vmatmul.bf16.gmra.mxu0 %v3513
      %v4418 = vpop.f32.mrf.mxu0
      %v4419 = vadd.f32 %v4330, %v4418
      %v4420 = vpop.f32.mrf.mxu0
      %v4421 = vadd.f32 %v4332, %v4420
      %4422 = vmatmul.bf16.gmra.mxu0 %v3522
      %v4423 = vpop.f32.mrf.mxu0
      %v4424 = vadd.f32 %v4335, %v4423
      %v4425 = vpop.f32.mrf.mxu0
      %v4426 = vadd.f32 %v4337, %v4425
      %4427 = vmatmul.bf16.gmra.mxu0 %v3531
      %v4428 = vpop.f32.mrf.mxu0
      %v4429 = vadd.f32 %v4340, %v4428
      %v4430 = vpop.f32.mrf.mxu0
      %v4431 = vadd.f32 %v4342, %v4430
      %4432 = vmatmul.bf16.gmra.mxu0 %v3540
      %v4433 = vpop.f32.mrf.mxu0
      %v4434 = vadd.f32 %v4345, %v4433
      %v4435 = vpop.f32.mrf.mxu0
      %v4436 = vadd.f32 %v4347, %v4435
      %4437 = vmatmul.bf16.gmra.mxu0 %v3549
      %v4438 = vpop.f32.mrf.mxu0
      %v4439 = vadd.f32 %v4350, %v4438
      %v4440 = vpop.f32.mrf.mxu0
      %v4441 = vadd.f32 %v4352, %v4440
      %4442 = vmatmul.bf16.gmra.mxu0 %v3558
      %v4443 = vpop.f32.mrf.mxu0
      %v4444 = vadd.f32 %v4355, %v4443
      %v4445 = vpop.f32.mrf.mxu0
      %v4446 = vadd.f32 %v4357, %v4445
      %4447 = vmatmul.bf16.gmra.mxu0 %v3567
      %v4448 = vpop.f32.mrf.mxu0
      %v4449 = vadd.f32 %v4360, %v4448
      %v4450 = vpop.f32.mrf.mxu0
      %v4451 = vadd.f32 %v4362, %v4450
      %4452 = vmatmul.bf16.gmra.mxu0 %v3576
      %v4453 = vpop.f32.mrf.mxu0
      %v4454 = vadd.f32 %v4365, %v4453
      %v4455 = vpop.f32.mrf.mxu0
      %v4456 = vadd.f32 %v4367, %v4455
      %4457 = vmatmul.bf16.gmra.mxu0 %v3585
      %v4458 = vpop.f32.mrf.mxu0
      %v4459 = vadd.f32 %v4370, %v4458
      %v4460 = vpop.f32.mrf.mxu0
      %v4461 = vadd.f32 %v4372, %v4460
      %4462 = vmatmul.bf16.gmra.mxu0 %v3594
      %v4463 = vpop.f32.mrf.mxu0
      %v4464 = vadd.f32 %v4375, %v4463
      %v4465 = vpop.f32.mrf.mxu0
      %v4466 = vadd.f32 %v4377, %v4465
      %4467 = vmatmul.bf16.gmra.mxu0 %v3603
      %v4468 = vpop.f32.mrf.mxu0
      %v4469 = vadd.f32 %v4380, %v4468
      %v4470 = vpop.f32.mrf.mxu0
      %v4471 = vadd.f32 %v4382, %v4470
      %4472 = vmatmul.bf16.gmra.mxu0 %v3612
      %v4473 = vpop.f32.mrf.mxu0
      %v4474 = vadd.f32 %v4385, %v4473
      %v4475 = vpop.f32.mrf.mxu0
      %v4476 = vadd.f32 %v4387, %v4475
      %4477 = vmatmul.bf16.gmra.mxu0 %v3621
      %v4478 = vpop.f32.mrf.mxu0
      %v4479 = vadd.f32 %v4390, %v4478
      %v4480 = vpop.f32.mrf.mxu0
      %v4481 = vadd.f32 %v4392, %v4480
      %4482 = vmatmul.bf16.gmra.mxu0 %v3630
      %v4483 = vpop.f32.mrf.mxu0
      %v4484 = vadd.f32 %v4395, %v4483
      %v4485 = vpop.f32.mrf.mxu0
      %v4486 = vadd.f32 %v4397, %v4485
      %4487 = vmatmul.bf16.gmra.mxu0 %v3639
      %v4488 = vpop.f32.mrf.mxu0
      %v4489 = vadd.f32 %v4400, %v4488
      %v4490 = vpop.f32.mrf.mxu0
      %v4491 = vadd.f32 %v4402, %v4490
      %4492 = vmatmul.bf16.gmra.mxu0 %v3648
      %v4493 = vpop.f32.mrf.mxu0
      %v4494 = vadd.f32 %v4405, %v4493
      %v4495 = vpop.f32.mrf.mxu0
      %v4496 = vadd.f32 %v4407, %v4495
      %4497 = vdwg.mxu0
      %4498 = vmatpush.bf16.msra.mxu0 %v4118
      %4499 = vmatpush.bf16.msra.mxu0 %v4117
      %4500 = vmatpush.bf16.msra.mxu0 %v4116
      %4501 = vmatpush.bf16.msra.mxu0 %v4115
      %4502 = vmatpush.bf16.msra.mxu0 %v4114
      %4503 = vmatpush.bf16.msra.mxu0 %v4113
      %4504 = vmatpush.bf16.msra.mxu0 %v4112
      %4505 = vmatpush.bf16.msra.mxu0 %v4111
      %4506 = vmatmul.bf16.gmra.mxu0 %v3514
      %v4507 = vpop.f32.mrf.mxu0
      %v4508 = vadd.f32 %v4419, %v4507
      %v4509 = vpop.f32.mrf.mxu0
      %v4510 = vadd.f32 %v4421, %v4509
      %4511 = vmatmul.bf16.gmra.mxu0 %v3523
      %v4512 = vpop.f32.mrf.mxu0
      %v4513 = vadd.f32 %v4424, %v4512
      %v4514 = vpop.f32.mrf.mxu0
      %v4515 = vadd.f32 %v4426, %v4514
      %4516 = vmatmul.bf16.gmra.mxu0 %v3532
      %v4517 = vpop.f32.mrf.mxu0
      %v4518 = vadd.f32 %v4429, %v4517
      %v4519 = vpop.f32.mrf.mxu0
      %v4520 = vadd.f32 %v4431, %v4519
      %4521 = vmatmul.bf16.gmra.mxu0 %v3541
      %v4522 = vpop.f32.mrf.mxu0
      %v4523 = vadd.f32 %v4434, %v4522
      %v4524 = vpop.f32.mrf.mxu0
      %v4525 = vadd.f32 %v4436, %v4524
      %4526 = vmatmul.bf16.gmra.mxu0 %v3550
      %v4527 = vpop.f32.mrf.mxu0
      %v4528 = vadd.f32 %v4439, %v4527
      %v4529 = vpop.f32.mrf.mxu0
      %v4530 = vadd.f32 %v4441, %v4529
      %4531 = vmatmul.bf16.gmra.mxu0 %v3559
      %v4532 = vpop.f32.mrf.mxu0
      %v4533 = vadd.f32 %v4444, %v4532
      %v4534 = vpop.f32.mrf.mxu0
      %v4535 = vadd.f32 %v4446, %v4534
      %4536 = vmatmul.bf16.gmra.mxu0 %v3568
      %v4537 = vpop.f32.mrf.mxu0
      %v4538 = vadd.f32 %v4449, %v4537
      %v4539 = vpop.f32.mrf.mxu0
      %v4540 = vadd.f32 %v4451, %v4539
      %4541 = vmatmul.bf16.gmra.mxu0 %v3577
      %v4542 = vpop.f32.mrf.mxu0
      %v4543 = vadd.f32 %v4454, %v4542
      %v4544 = vpop.f32.mrf.mxu0
      %v4545 = vadd.f32 %v4456, %v4544
      %4546 = vmatmul.bf16.gmra.mxu0 %v3586
      %v4547 = vpop.f32.mrf.mxu0
      %v4548 = vadd.f32 %v4459, %v4547
      %v4549 = vpop.f32.mrf.mxu0
      %v4550 = vadd.f32 %v4461, %v4549
      %4551 = vmatmul.bf16.gmra.mxu0 %v3595
      %v4552 = vpop.f32.mrf.mxu0
      %v4553 = vadd.f32 %v4464, %v4552
      %v4554 = vpop.f32.mrf.mxu0
      %v4555 = vadd.f32 %v4466, %v4554
      %4556 = vmatmul.bf16.gmra.mxu0 %v3604
      %v4557 = vpop.f32.mrf.mxu0
      %v4558 = vadd.f32 %v4469, %v4557
      %v4559 = vpop.f32.mrf.mxu0
      %v4560 = vadd.f32 %v4471, %v4559
      %4561 = vmatmul.bf16.gmra.mxu0 %v3613
      %v4562 = vpop.f32.mrf.mxu0
      %v4563 = vadd.f32 %v4474, %v4562
      %v4564 = vpop.f32.mrf.mxu0
      %v4565 = vadd.f32 %v4476, %v4564
      %4566 = vmatmul.bf16.gmra.mxu0 %v3622
      %v4567 = vpop.f32.mrf.mxu0
      %v4568 = vadd.f32 %v4479, %v4567
      %v4569 = vpop.f32.mrf.mxu0
      %v4570 = vadd.f32 %v4481, %v4569
      %4571 = vmatmul.bf16.gmra.mxu0 %v3631
      %v4572 = vpop.f32.mrf.mxu0
      %v4573 = vadd.f32 %v4484, %v4572
      %v4574 = vpop.f32.mrf.mxu0
      %v4575 = vadd.f32 %v4486, %v4574
      %4576 = vmatmul.bf16.gmra.mxu0 %v3640
      %v4577 = vpop.f32.mrf.mxu0
      %v4578 = vadd.f32 %v4489, %v4577
      %v4579 = vpop.f32.mrf.mxu0
      %v4580 = vadd.f32 %v4491, %v4579
      %4581 = vmatmul.bf16.gmra.mxu0 %v3649
      %v4582 = vpop.f32.mrf.mxu0
      %v4583 = vadd.f32 %v4494, %v4582
      %v4584 = vpop.f32.mrf.mxu0
      %v4585 = vadd.f32 %v4496, %v4584
      %4586 = vdwg.mxu0
      %4587 = vmatpush.bf16.msra.mxu0 %v4126
      %4588 = vmatpush.bf16.msra.mxu0 %v4125
      %4589 = vmatpush.bf16.msra.mxu0 %v4124
      %4590 = vmatpush.bf16.msra.mxu0 %v4123
      %4591 = vmatpush.bf16.msra.mxu0 %v4122
      %4592 = vmatpush.bf16.msra.mxu0 %v4121
      %4593 = vmatpush.bf16.msra.mxu0 %v4120
      %4594 = vmatpush.bf16.msra.mxu0 %v4119
      %4595 = vmatmul.bf16.gmra.mxu0 %v3515
      %v4596 = vpop.f32.mrf.mxu0
      %v4597 = vadd.f32 %v4508, %v4596
      %v4598 = vpop.f32.mrf.mxu0
      %v4599 = vadd.f32 %v4510, %v4598
      %4600 = vmatmul.bf16.gmra.mxu0 %v3524
      %v4601 = vpop.f32.mrf.mxu0
      %v4602 = vadd.f32 %v4513, %v4601
      %v4603 = vpop.f32.mrf.mxu0
      %v4604 = vadd.f32 %v4515, %v4603
      %4605 = vmatmul.bf16.gmra.mxu0 %v3533
      %v4606 = vpop.f32.mrf.mxu0
      %v4607 = vadd.f32 %v4518, %v4606
      %v4608 = vpop.f32.mrf.mxu0
      %v4609 = vadd.f32 %v4520, %v4608
      %4610 = vmatmul.bf16.gmra.mxu0 %v3542
      %v4611 = vpop.f32.mrf.mxu0
      %v4612 = vadd.f32 %v4523, %v4611
      %v4613 = vpop.f32.mrf.mxu0
      %v4614 = vadd.f32 %v4525, %v4613
      %4615 = vmatmul.bf16.gmra.mxu0 %v3551
      %v4616 = vpop.f32.mrf.mxu0
      %v4617 = vadd.f32 %v4528, %v4616
      %v4618 = vpop.f32.mrf.mxu0
      %v4619 = vadd.f32 %v4530, %v4618
      %4620 = vmatmul.bf16.gmra.mxu0 %v3560
      %v4621 = vpop.f32.mrf.mxu0
      %v4622 = vadd.f32 %v4533, %v4621
      %v4623 = vpop.f32.mrf.mxu0
      %v4624 = vadd.f32 %v4535, %v4623
      %4625 = vmatmul.bf16.gmra.mxu0 %v3569
      %v4626 = vpop.f32.mrf.mxu0
      %v4627 = vadd.f32 %v4538, %v4626
      %v4628 = vpop.f32.mrf.mxu0
      %v4629 = vadd.f32 %v4540, %v4628
      %4630 = vmatmul.bf16.gmra.mxu0 %v3578
      %v4631 = vpop.f32.mrf.mxu0
      %v4632 = vadd.f32 %v4543, %v4631
      %v4633 = vpop.f32.mrf.mxu0
      %v4634 = vadd.f32 %v4545, %v4633
      %4635 = vmatmul.bf16.gmra.mxu0 %v3587
      %v4636 = vpop.f32.mrf.mxu0
      %v4637 = vadd.f32 %v4548, %v4636
      %v4638 = vpop.f32.mrf.mxu0
      %v4639 = vadd.f32 %v4550, %v4638
      %4640 = vmatmul.bf16.gmra.mxu0 %v3596
      %v4641 = vpop.f32.mrf.mxu0
      %v4642 = vadd.f32 %v4553, %v4641
      %v4643 = vpop.f32.mrf.mxu0
      %v4644 = vadd.f32 %v4555, %v4643
      %4645 = vmatmul.bf16.gmra.mxu0 %v3605
      %v4646 = vpop.f32.mrf.mxu0
      %v4647 = vadd.f32 %v4558, %v4646
      %v4648 = vpop.f32.mrf.mxu0
      %v4649 = vadd.f32 %v4560, %v4648
      %4650 = vmatmul.bf16.gmra.mxu0 %v3614
      %v4651 = vpop.f32.mrf.mxu0
      %v4652 = vadd.f32 %v4563, %v4651
      %v4653 = vpop.f32.mrf.mxu0
      %v4654 = vadd.f32 %v4565, %v4653
      %4655 = vmatmul.bf16.gmra.mxu0 %v3623
      %v4656 = vpop.f32.mrf.mxu0
      %v4657 = vadd.f32 %v4568, %v4656
      %v4658 = vpop.f32.mrf.mxu0
      %v4659 = vadd.f32 %v4570, %v4658
      %4660 = vmatmul.bf16.gmra.mxu0 %v3632
      %v4661 = vpop.f32.mrf.mxu0
      %v4662 = vadd.f32 %v4573, %v4661
      %v4663 = vpop.f32.mrf.mxu0
      %v4664 = vadd.f32 %v4575, %v4663
      %4665 = vmatmul.bf16.gmra.mxu0 %v3641
      %v4666 = vpop.f32.mrf.mxu0
      %v4667 = vadd.f32 %v4578, %v4666
      %v4668 = vpop.f32.mrf.mxu0
      %v4669 = vadd.f32 %v4580, %v4668
      %4670 = vmatmul.bf16.gmra.mxu0 %v3650
      %v4671 = vpop.f32.mrf.mxu0
      %v4672 = vadd.f32 %v4583, %v4671
      %v4673 = vpop.f32.mrf.mxu0
      %v4674 = vadd.f32 %v4585, %v4673
      %4675 = vdwg.mxu0
      %4676 = vmatpush.bf16.msra.mxu0 %v4134
      %4677 = vmatpush.bf16.msra.mxu0 %v4133
      %4678 = vmatpush.bf16.msra.mxu0 %v4132
      %4679 = vmatpush.bf16.msra.mxu0 %v4131
      %4680 = vmatpush.bf16.msra.mxu0 %v4130
      %4681 = vmatpush.bf16.msra.mxu0 %v4129
      %4682 = vmatpush.bf16.msra.mxu0 %v4128
      %4683 = vmatpush.bf16.msra.mxu0 %v4127
      %4684 = vmatmul.bf16.gmra.mxu0 %v3516
      %v4685 = vpop.f32.mrf.mxu0
      %v4686 = vadd.f32 %v4597, %v4685
      %v4687 = vpop.f32.mrf.mxu0
      %v4688 = vadd.f32 %v4599, %v4687
      %4689 = vmatmul.bf16.gmra.mxu0 %v3525
      %v4690 = vpop.f32.mrf.mxu0
      %v4691 = vadd.f32 %v4602, %v4690
      %v4692 = vpop.f32.mrf.mxu0
      %v4693 = vadd.f32 %v4604, %v4692
      %4694 = vmatmul.bf16.gmra.mxu0 %v3534
      %v4695 = vpop.f32.mrf.mxu0
      %v4696 = vadd.f32 %v4607, %v4695
      %v4697 = vpop.f32.mrf.mxu0
      %v4698 = vadd.f32 %v4609, %v4697
      %4699 = vmatmul.bf16.gmra.mxu0 %v3543
      %v4700 = vpop.f32.mrf.mxu0
      %v4701 = vadd.f32 %v4612, %v4700
      %v4702 = vpop.f32.mrf.mxu0
      %v4703 = vadd.f32 %v4614, %v4702
      %4704 = vmatmul.bf16.gmra.mxu0 %v3552
      %v4705 = vpop.f32.mrf.mxu0
      %v4706 = vadd.f32 %v4617, %v4705
      %v4707 = vpop.f32.mrf.mxu0
      %v4708 = vadd.f32 %v4619, %v4707
      %4709 = vmatmul.bf16.gmra.mxu0 %v3561
      %v4710 = vpop.f32.mrf.mxu0
      %v4711 = vadd.f32 %v4622, %v4710
      %v4712 = vpop.f32.mrf.mxu0
      %v4713 = vadd.f32 %v4624, %v4712
      %4714 = vmatmul.bf16.gmra.mxu0 %v3570
      %v4715 = vpop.f32.mrf.mxu0
      %v4716 = vadd.f32 %v4627, %v4715
      %v4717 = vpop.f32.mrf.mxu0
      %v4718 = vadd.f32 %v4629, %v4717
      %4719 = vmatmul.bf16.gmra.mxu0 %v3579
      %v4720 = vpop.f32.mrf.mxu0
      %v4721 = vadd.f32 %v4632, %v4720
      %v4722 = vpop.f32.mrf.mxu0
      %v4723 = vadd.f32 %v4634, %v4722
      %4724 = vmatmul.bf16.gmra.mxu0 %v3588
      %v4725 = vpop.f32.mrf.mxu0
      %v4726 = vadd.f32 %v4637, %v4725
      %v4727 = vpop.f32.mrf.mxu0
      %v4728 = vadd.f32 %v4639, %v4727
      %4729 = vmatmul.bf16.gmra.mxu0 %v3597
      %v4730 = vpop.f32.mrf.mxu0
      %v4731 = vadd.f32 %v4642, %v4730
      %v4732 = vpop.f32.mrf.mxu0
      %v4733 = vadd.f32 %v4644, %v4732
      %4734 = vmatmul.bf16.gmra.mxu0 %v3606
      %v4735 = vpop.f32.mrf.mxu0
      %v4736 = vadd.f32 %v4647, %v4735
      %v4737 = vpop.f32.mrf.mxu0
      %v4738 = vadd.f32 %v4649, %v4737
      %4739 = vmatmul.bf16.gmra.mxu0 %v3615
      %v4740 = vpop.f32.mrf.mxu0
      %v4741 = vadd.f32 %v4652, %v4740
      %v4742 = vpop.f32.mrf.mxu0
      %v4743 = vadd.f32 %v4654, %v4742
      %4744 = vmatmul.bf16.gmra.mxu0 %v3624
      %v4745 = vpop.f32.mrf.mxu0
      %v4746 = vadd.f32 %v4657, %v4745
      %v4747 = vpop.f32.mrf.mxu0
      %v4748 = vadd.f32 %v4659, %v4747
      %4749 = vmatmul.bf16.gmra.mxu0 %v3633
      %v4750 = vpop.f32.mrf.mxu0
      %v4751 = vadd.f32 %v4662, %v4750
      %v4752 = vpop.f32.mrf.mxu0
      %v4753 = vadd.f32 %v4664, %v4752
      %4754 = vmatmul.bf16.gmra.mxu0 %v3642
      %v4755 = vpop.f32.mrf.mxu0
      %v4756 = vadd.f32 %v4667, %v4755
      %v4757 = vpop.f32.mrf.mxu0
      %v4758 = vadd.f32 %v4669, %v4757
      %4759 = vmatmul.bf16.gmra.mxu0 %v3651
      %v4760 = vpop.f32.mrf.mxu0
      %v4761 = vadd.f32 %v4672, %v4760
      %v4762 = vpop.f32.mrf.mxu0
      %v4763 = vadd.f32 %v4674, %v4762
      %4764 = vdwg.mxu0
      %4765 = vmatpush.bf16.msra.mxu0 %v4142
      %4766 = vmatpush.bf16.msra.mxu0 %v4141
      %4767 = vmatpush.bf16.msra.mxu0 %v4140
      %4768 = vmatpush.bf16.msra.mxu0 %v4139
      %4769 = vmatpush.bf16.msra.mxu0 %v4138
      %4770 = vmatpush.bf16.msra.mxu0 %v4137
      %4771 = vmatpush.bf16.msra.mxu0 %v4136
      %4772 = vmatpush.bf16.msra.mxu0 %v4135
      %4773 = vmatmul.bf16.gmra.mxu0 %v3517
      %v4774 = vpop.f32.mrf.mxu0
      %v4775 = vadd.f32 %v4686, %v4774
      %v4776 = vpop.f32.mrf.mxu0
      %v4777 = vadd.f32 %v4688, %v4776
      %4778 = vmatmul.bf16.gmra.mxu0 %v3526
      %v4779 = vpop.f32.mrf.mxu0
      %v4780 = vadd.f32 %v4691, %v4779
      %v4781 = vpop.f32.mrf.mxu0
      %v4782 = vadd.f32 %v4693, %v4781
      %4783 = vmatmul.bf16.gmra.mxu0 %v3535
      %v4784 = vpop.f32.mrf.mxu0
      %v4785 = vadd.f32 %v4696, %v4784
      %v4786 = vpop.f32.mrf.mxu0
      %v4787 = vadd.f32 %v4698, %v4786
      %4788 = vmatmul.bf16.gmra.mxu0 %v3544
      %v4789 = vpop.f32.mrf.mxu0
      %v4790 = vadd.f32 %v4701, %v4789
      %v4791 = vpop.f32.mrf.mxu0
      %v4792 = vadd.f32 %v4703, %v4791
      %4793 = vmatmul.bf16.gmra.mxu0 %v3553
      %v4794 = vpop.f32.mrf.mxu0
      %v4795 = vadd.f32 %v4706, %v4794
      %v4796 = vpop.f32.mrf.mxu0
      %v4797 = vadd.f32 %v4708, %v4796
      %4798 = vmatmul.bf16.gmra.mxu0 %v3562
      %v4799 = vpop.f32.mrf.mxu0
      %v4800 = vadd.f32 %v4711, %v4799
      %v4801 = vpop.f32.mrf.mxu0
      %v4802 = vadd.f32 %v4713, %v4801
      %4803 = vmatmul.bf16.gmra.mxu0 %v3571
      %v4804 = vpop.f32.mrf.mxu0
      %v4805 = vadd.f32 %v4716, %v4804
      %v4806 = vpop.f32.mrf.mxu0
      %v4807 = vadd.f32 %v4718, %v4806
      %4808 = vmatmul.bf16.gmra.mxu0 %v3580
      %v4809 = vpop.f32.mrf.mxu0
      %v4810 = vadd.f32 %v4721, %v4809
      %v4811 = vpop.f32.mrf.mxu0
      %v4812 = vadd.f32 %v4723, %v4811
      %4813 = vmatmul.bf16.gmra.mxu0 %v3589
      %v4814 = vpop.f32.mrf.mxu0
      %v4815 = vadd.f32 %v4726, %v4814
      %v4816 = vpop.f32.mrf.mxu0
      %v4817 = vadd.f32 %v4728, %v4816
      %4818 = vmatmul.bf16.gmra.mxu0 %v3598
      %v4819 = vpop.f32.mrf.mxu0
      %v4820 = vadd.f32 %v4731, %v4819
      %v4821 = vpop.f32.mrf.mxu0
      %v4822 = vadd.f32 %v4733, %v4821
      %4823 = vmatmul.bf16.gmra.mxu0 %v3607
      %v4824 = vpop.f32.mrf.mxu0
      %v4825 = vadd.f32 %v4736, %v4824
      %v4826 = vpop.f32.mrf.mxu0
      %v4827 = vadd.f32 %v4738, %v4826
      %4828 = vmatmul.bf16.gmra.mxu0 %v3616
      %v4829 = vpop.f32.mrf.mxu0
      %v4830 = vadd.f32 %v4741, %v4829
      %v4831 = vpop.f32.mrf.mxu0
      %v4832 = vadd.f32 %v4743, %v4831
      %4833 = vmatmul.bf16.gmra.mxu0 %v3625
      %v4834 = vpop.f32.mrf.mxu0
      %v4835 = vadd.f32 %v4746, %v4834
      %v4836 = vpop.f32.mrf.mxu0
      %v4837 = vadd.f32 %v4748, %v4836
      %4838 = vmatmul.bf16.gmra.mxu0 %v3634
      %v4839 = vpop.f32.mrf.mxu0
      %v4840 = vadd.f32 %v4751, %v4839
      %v4841 = vpop.f32.mrf.mxu0
      %v4842 = vadd.f32 %v4753, %v4841
      %4843 = vmatmul.bf16.gmra.mxu0 %v3643
      %v4844 = vpop.f32.mrf.mxu0
      %v4845 = vadd.f32 %v4756, %v4844
      %v4846 = vpop.f32.mrf.mxu0
      %v4847 = vadd.f32 %v4758, %v4846
      %4848 = vmatmul.bf16.gmra.mxu0 %v3652
      %v4849 = vpop.f32.mrf.mxu0
      %v4850 = vadd.f32 %v4761, %v4849
      %v4851 = vpop.f32.mrf.mxu0
      %v4852 = vadd.f32 %v4763, %v4851
      %4853 = vdwg.mxu0
      %4854 = vmatpush.bf16.msra.mxu0 %v4150
      %4855 = vmatpush.bf16.msra.mxu0 %v4149
      %4856 = vmatpush.bf16.msra.mxu0 %v4148
      %4857 = vmatpush.bf16.msra.mxu0 %v4147
      %4858 = vmatpush.bf16.msra.mxu0 %v4146
      %4859 = vmatpush.bf16.msra.mxu0 %v4145
      %4860 = vmatpush.bf16.msra.mxu0 %v4144
      %4861 = vmatpush.bf16.msra.mxu0 %v4143
      %4862 = vmatmul.bf16.gmra.mxu0 %v3518
      %v4863 = vpop.f32.mrf.mxu0
      %v4864 = vadd.f32 %v4775, %v4863
      %v4865 = vpop.f32.mrf.mxu0
      %v4866 = vadd.f32 %v4777, %v4865
      %4867 = vmatmul.bf16.gmra.mxu0 %v3527
      %v4868 = vpop.f32.mrf.mxu0
      %v4869 = vadd.f32 %v4780, %v4868
      %v4870 = vpop.f32.mrf.mxu0
      %v4871 = vadd.f32 %v4782, %v4870
      %4872 = vmatmul.bf16.gmra.mxu0 %v3536
      %v4873 = vpop.f32.mrf.mxu0
      %v4874 = vadd.f32 %v4785, %v4873
      %v4875 = vpop.f32.mrf.mxu0
      %v4876 = vadd.f32 %v4787, %v4875
      %4877 = vmatmul.bf16.gmra.mxu0 %v3545
      %v4878 = vpop.f32.mrf.mxu0
      %v4879 = vadd.f32 %v4790, %v4878
      %v4880 = vpop.f32.mrf.mxu0
      %v4881 = vadd.f32 %v4792, %v4880
      %4882 = vmatmul.bf16.gmra.mxu0 %v3554
      %v4883 = vpop.f32.mrf.mxu0
      %v4884 = vadd.f32 %v4795, %v4883
      %v4885 = vpop.f32.mrf.mxu0
      %v4886 = vadd.f32 %v4797, %v4885
      %4887 = vmatmul.bf16.gmra.mxu0 %v3563
      %v4888 = vpop.f32.mrf.mxu0
      %v4889 = vadd.f32 %v4800, %v4888
      %v4890 = vpop.f32.mrf.mxu0
      %v4891 = vadd.f32 %v4802, %v4890
      %4892 = vmatmul.bf16.gmra.mxu0 %v3572
      %v4893 = vpop.f32.mrf.mxu0
      %v4894 = vadd.f32 %v4805, %v4893
      %v4895 = vpop.f32.mrf.mxu0
      %v4896 = vadd.f32 %v4807, %v4895
      %4897 = vmatmul.bf16.gmra.mxu0 %v3581
      %v4898 = vpop.f32.mrf.mxu0
      %v4899 = vadd.f32 %v4810, %v4898
      %v4900 = vpop.f32.mrf.mxu0
      %v4901 = vadd.f32 %v4812, %v4900
      %4902 = vmatmul.bf16.gmra.mxu0 %v3590
      %v4903 = vpop.f32.mrf.mxu0
      %v4904 = vadd.f32 %v4815, %v4903
      %v4905 = vpop.f32.mrf.mxu0
      %v4906 = vadd.f32 %v4817, %v4905
      %4907 = vmatmul.bf16.gmra.mxu0 %v3599
      %v4908 = vpop.f32.mrf.mxu0
      %v4909 = vadd.f32 %v4820, %v4908
      %v4910 = vpop.f32.mrf.mxu0
      %v4911 = vadd.f32 %v4822, %v4910
      %4912 = vmatmul.bf16.gmra.mxu0 %v3608
      %v4913 = vpop.f32.mrf.mxu0
      %v4914 = vadd.f32 %v4825, %v4913
      %v4915 = vpop.f32.mrf.mxu0
      %v4916 = vadd.f32 %v4827, %v4915
      %4917 = vmatmul.bf16.gmra.mxu0 %v3617
      %v4918 = vpop.f32.mrf.mxu0
      %v4919 = vadd.f32 %v4830, %v4918
      %v4920 = vpop.f32.mrf.mxu0
      %v4921 = vadd.f32 %v4832, %v4920
      %4922 = vmatmul.bf16.gmra.mxu0 %v3626
      %v4923 = vpop.f32.mrf.mxu0
      %v4924 = vadd.f32 %v4835, %v4923
      %v4925 = vpop.f32.mrf.mxu0
      %v4926 = vadd.f32 %v4837, %v4925
      %4927 = vmatmul.bf16.gmra.mxu0 %v3635
      %v4928 = vpop.f32.mrf.mxu0
      %v4929 = vadd.f32 %v4840, %v4928
      %v4930 = vpop.f32.mrf.mxu0
      %v4931 = vadd.f32 %v4842, %v4930
      %4932 = vmatmul.bf16.gmra.mxu0 %v3644
      %v4933 = vpop.f32.mrf.mxu0
      %v4934 = vadd.f32 %v4845, %v4933
      %v4935 = vpop.f32.mrf.mxu0
      %v4936 = vadd.f32 %v4847, %v4935
      %4937 = vmatmul.bf16.gmra.mxu0 %v3653
      %v4938 = vpop.f32.mrf.mxu0
      %v4939 = vadd.f32 %v4850, %v4938
      %v4940 = vpop.f32.mrf.mxu0
      %v4941 = vadd.f32 %v4852, %v4940
      %4942 = vdwg.mxu0
      %4943 = vmatpush.bf16.msra.mxu0 %v4158
      %4944 = vmatpush.bf16.msra.mxu0 %v4157
      %4945 = vmatpush.bf16.msra.mxu0 %v4156
      %4946 = vmatpush.bf16.msra.mxu0 %v4155
      %4947 = vmatpush.bf16.msra.mxu0 %v4154
      %4948 = vmatpush.bf16.msra.mxu0 %v4153
      %4949 = vmatpush.bf16.msra.mxu0 %v4152
      %4950 = vmatpush.bf16.msra.mxu0 %v4151
      %4951 = vmatmul.bf16.gmra.mxu0 %v3519
      %v4952 = vpop.f32.mrf.mxu0
      %v4953 = vadd.f32 %v4864, %v4952
      %v4954 = vpop.f32.mrf.mxu0
      %v4955 = vadd.f32 %v4866, %v4954
      %4956 = vmatmul.bf16.gmra.mxu0 %v3528
      %v4957 = vpop.f32.mrf.mxu0
      %v4958 = vadd.f32 %v4869, %v4957
      %v4959 = vpop.f32.mrf.mxu0
      %v4960 = vadd.f32 %v4871, %v4959
      %4961 = vmatmul.bf16.gmra.mxu0 %v3537
      %v4962 = vpop.f32.mrf.mxu0
      %v4963 = vadd.f32 %v4874, %v4962
      %v4964 = vpop.f32.mrf.mxu0
      %v4965 = vadd.f32 %v4876, %v4964
      %4966 = vmatmul.bf16.gmra.mxu0 %v3546
      %v4967 = vpop.f32.mrf.mxu0
      %v4968 = vadd.f32 %v4879, %v4967
      %v4969 = vpop.f32.mrf.mxu0
      %v4970 = vadd.f32 %v4881, %v4969
      %4971 = vmatmul.bf16.gmra.mxu0 %v3555
      %v4972 = vpop.f32.mrf.mxu0
      %v4973 = vadd.f32 %v4884, %v4972
      %v4974 = vpop.f32.mrf.mxu0
      %v4975 = vadd.f32 %v4886, %v4974
      %4976 = vmatmul.bf16.gmra.mxu0 %v3564
      %v4977 = vpop.f32.mrf.mxu0
      %v4978 = vadd.f32 %v4889, %v4977
      %v4979 = vpop.f32.mrf.mxu0
      %v4980 = vadd.f32 %v4891, %v4979
      %4981 = vmatmul.bf16.gmra.mxu0 %v3573
      %v4982 = vpop.f32.mrf.mxu0
      %v4983 = vadd.f32 %v4894, %v4982
      %v4984 = vpop.f32.mrf.mxu0
      %v4985 = vadd.f32 %v4896, %v4984
      %4986 = vmatmul.bf16.gmra.mxu0 %v3582
      %v4987 = vpop.f32.mrf.mxu0
      %v4988 = vadd.f32 %v4899, %v4987
      %v4989 = vpop.f32.mrf.mxu0
      %v4990 = vadd.f32 %v4901, %v4989
      %4991 = vmatmul.bf16.gmra.mxu0 %v3591
      %v4992 = vpop.f32.mrf.mxu0
      %v4993 = vadd.f32 %v4904, %v4992
      %v4994 = vpop.f32.mrf.mxu0
      %v4995 = vadd.f32 %v4906, %v4994
      %4996 = vmatmul.bf16.gmra.mxu0 %v3600
      %v4997 = vpop.f32.mrf.mxu0
      %v4998 = vadd.f32 %v4909, %v4997
      %v4999 = vpop.f32.mrf.mxu0
      %v5000 = vadd.f32 %v4911, %v4999
      %5001 = vmatmul.bf16.gmra.mxu0 %v3609
      %v5002 = vpop.f32.mrf.mxu0
      %v5003 = vadd.f32 %v4914, %v5002
      %v5004 = vpop.f32.mrf.mxu0
      %v5005 = vadd.f32 %v4916, %v5004
      %5006 = vmatmul.bf16.gmra.mxu0 %v3618
      %v5007 = vpop.f32.mrf.mxu0
      %v5008 = vadd.f32 %v4919, %v5007
      %v5009 = vpop.f32.mrf.mxu0
      %v5010 = vadd.f32 %v4921, %v5009
      %5011 = vmatmul.bf16.gmra.mxu0 %v3627
      %v5012 = vpop.f32.mrf.mxu0
      %v5013 = vadd.f32 %v4924, %v5012
      %v5014 = vpop.f32.mrf.mxu0
      %v5015 = vadd.f32 %v4926, %v5014
      %5016 = vmatmul.bf16.gmra.mxu0 %v3636
      %v5017 = vpop.f32.mrf.mxu0
      %v5018 = vadd.f32 %v4929, %v5017
      %v5019 = vpop.f32.mrf.mxu0
      %v5020 = vadd.f32 %v4931, %v5019
      %5021 = vmatmul.bf16.gmra.mxu0 %v3645
      %v5022 = vpop.f32.mrf.mxu0
      %v5023 = vadd.f32 %v4934, %v5022
      %v5024 = vpop.f32.mrf.mxu0
      %v5025 = vadd.f32 %v4936, %v5024
      %5026 = vmatmul.bf16.gmra.mxu0 %v3654
      %v5027 = vpop.f32.mrf.mxu0
      %v5028 = vadd.f32 %v4939, %v5027
      %v5029 = vpop.f32.mrf.mxu0
      %v5030 = vadd.f32 %v4941, %v5029
      %5031 = vdwg.mxu0
      %v5032 = vmul.f32 %v4953, 0.1
      %v5033 = vmul.f32 %v4955, 0.1
      %v5034 = vmul.f32 %v4958, 0.1
      %v5035 = vmul.f32 %v4960, 0.1
      %v5036 = vmul.f32 %v4963, 0.1
      %v5037 = vmul.f32 %v4965, 0.1
      %v5038 = vmul.f32 %v4968, 0.1
      %v5039 = vmul.f32 %v4970, 0.1
      %v5040 = vmul.f32 %v4973, 0.1
      %v5041 = vmul.f32 %v4975, 0.1
      %v5042 = vmul.f32 %v4978, 0.1
      %v5043 = vmul.f32 %v4980, 0.1
      %v5044 = vmul.f32 %v4983, 0.1
      %v5045 = vmul.f32 %v4985, 0.1
      %v5046 = vmul.f32 %v4988, 0.1
      %v5047 = vmul.f32 %v4990, 0.1
      %v5048 = vmul.f32 %v4993, 0.1
      %v5049 = vmul.f32 %v4995, 0.1
      %v5050 = vmul.f32 %v4998, 0.1
      %v5051 = vmul.f32 %v5000, 0.1
      %v5052 = vmul.f32 %v5003, 0.1
      %v5053 = vmul.f32 %v5005, 0.1
      %v5054 = vmul.f32 %v5008, 0.1
      %v5055 = vmul.f32 %v5010, 0.1
      %v5056 = vmul.f32 %v5013, 0.1
      %v5057 = vmul.f32 %v5015, 0.1
      %v5058 = vmul.f32 %v5018, 0.1
      %v5059 = vmul.f32 %v5020, 0.1
      %v5060 = vmul.f32 %v5023, 0.1
      %v5061 = vmul.f32 %v5025, 0.1
      %v5062 = vmul.f32 %v5028, 0.1
      %v5063 = vmul.f32 %v5030, 0.1
      %v5064 = vmax.f32 %v4953, %v5032
      %v5065 = vmax.f32 %v4955, %v5033
      %v5066 = vmax.f32 %v4958, %v5034
      %v5067 = vmax.f32 %v4960, %v5035
      %v5068 = vmax.f32 %v4963, %v5036
      %v5069 = vmax.f32 %v4965, %v5037
      %v5070 = vmax.f32 %v4968, %v5038
      %v5071 = vmax.f32 %v4970, %v5039
      %v5072 = vmax.f32 %v4973, %v5040
      %v5073 = vmax.f32 %v4975, %v5041
      %v5074 = vmax.f32 %v4978, %v5042
      %v5075 = vmax.f32 %v4980, %v5043
      %v5076 = vmax.f32 %v4983, %v5044
      %v5077 = vmax.f32 %v4985, %v5045
      %v5078 = vmax.f32 %v4988, %v5046
      %v5079 = vmax.f32 %v4990, %v5047
      %v5080 = vmax.f32 %v4993, %v5048
      %v5081 = vmax.f32 %v4995, %v5049
      %v5082 = vmax.f32 %v4998, %v5050
      %v5083 = vmax.f32 %v5000, %v5051
      %v5084 = vmax.f32 %v5003, %v5052
      %v5085 = vmax.f32 %v5005, %v5053
      %v5086 = vmax.f32 %v5008, %v5054
      %v5087 = vmax.f32 %v5010, %v5055
      %v5088 = vmax.f32 %v5013, %v5056
      %v5089 = vmax.f32 %v5015, %v5057
      %v5090 = vmax.f32 %v5018, %v5058
      %v5091 = vmax.f32 %v5020, %v5059
      %v5092 = vmax.f32 %v5023, %v5060
      %v5093 = vmax.f32 %v5025, %v5061
      %v5094 = vmax.f32 %v5028, %v5062
      %v5095 = vmax.f32 %v5030, %v5063
      %v5096 = vmax.f32 %v5064, %v5066
      %v5097 = vmax.f32 %v5065, %v5067
      %v5098 = vmax.f32 %v5068, %v5070
      %v5099 = vmax.f32 %v5069, %v5071
      %v5100 = vmax.f32 %v5072, %v5074
      %v5101 = vmax.f32 %v5073, %v5075
      %v5102 = vmax.f32 %v5076, %v5078
      %v5103 = vmax.f32 %v5077, %v5079
      %v5104 = vmax.f32 %v5080, %v5082
      %v5105 = vmax.f32 %v5081, %v5083
      %v5106 = vmax.f32 %v5084, %v5086
      %v5107 = vmax.f32 %v5085, %v5087
      %v5108 = vmax.f32 %v5088, %v5090
      %v5109 = vmax.f32 %v5089, %v5091
      %v5110 = vmax.f32 %v5092, %v5094
      %v5111 = vmax.f32 %v5093, %v5095
      %5112 = vst [vmem:[#allocation6] sm:$0xff] %v5096
      %5113 = vst [vmem:[#allocation6 + $0x8] sm:$0xff] %v5097
      %5114 = vst [vmem:[#allocation6 + $0x10] sm:$0xff] %v5098
      %5115 = vst [vmem:[#allocation6 + $0x18] sm:$0xff] %v5099
      %5116 = vst [vmem:[#allocation6 + $0x20] sm:$0xff] %v5100
      %5117 = vst [vmem:[#allocation6 + $0x28] sm:$0xff] %v5101
      %5118 = vst [vmem:[#allocation6 + $0x30] sm:$0xff] %v5102
      %5119 = vst [vmem:[#allocation6 + $0x38] sm:$0xff] %v5103
      %5120 = vst [vmem:[#allocation6 + $0x40] sm:$0xff] %v5104
      %5121 = vst [vmem:[#allocation6 + $0x48] sm:$0xff] %v5105
      %5122 = vst [vmem:[#allocation6 + $0x50] sm:$0xff] %v5106
      %5123 = vst [vmem:[#allocation6 + $0x58] sm:$0xff] %v5107
      %5124 = vst [vmem:[#allocation6 + $0x60] sm:$0xff] %v5108
      %5125 = vst [vmem:[#allocation6 + $0x68] sm:$0xff] %v5109
      %5126 = vst [vmem:[#allocation6 + $0x70] sm:$0xff] %v5110
      %5127 = vst [vmem:[#allocation6 + $0x78] sm:$0xff] %v5111
      %v5128 = vld [vmem:[#allocation6] ss:$2 sm:$0xff]
      %s5129 = scalar_lea.vmem [#allocation6], 16
      %v5130 = vld [vmem:[%s5129] ss:$2 sm:$0xff]
      %s5131 = scalar_lea.vmem [#allocation6], 32
      %v5132 = vld [vmem:[%s5131] ss:$2 sm:$0xff]
      %s5133 = scalar_lea.vmem [#allocation6], 48
      %v5134 = vld [vmem:[%s5133] ss:$2 sm:$0xff]
      %s5135 = scalar_lea.vmem [#allocation6], 64
      %v5136 = vld [vmem:[%s5135] ss:$2 sm:$0xff]
      %s5137 = scalar_lea.vmem [#allocation6], 80
      %v5138 = vld [vmem:[%s5137] ss:$2 sm:$0xff]
      %s5139 = scalar_lea.vmem [#allocation6], 96
      %v5140 = vld [vmem:[%s5139] ss:$2 sm:$0xff]
      %s5141 = scalar_lea.vmem [#allocation6], 112
      %v5142 = vld [vmem:[%s5141] ss:$2 sm:$0xff]
      %v5143 = vld [vmem:[%s1761] ss:$2 sm:$0xff]
      %v5144 = vld [vmem:[%s1763] ss:$2 sm:$0xff]
      %v5145 = vld [vmem:[%s1765] ss:$2 sm:$0xff]
      %v5146 = vld [vmem:[%s1767] ss:$2 sm:$0xff]
      %v5147 = vld [vmem:[%s1769] ss:$2 sm:$0xff]
      %v5148 = vld [vmem:[%s1771] ss:$2 sm:$0xff]
      %v5149 = vld [vmem:[%s1773] ss:$2 sm:$0xff]
      %v5150 = vld [vmem:[%s1775] ss:$2 sm:$0xff]
      %v5151 = vmax.f32 %v5128, %v5143
      %v5152 = vmax.f32 %v5130, %v5144
      %v5153 = vmax.f32 %v5132, %v5145
      %v5154 = vmax.f32 %v5134, %v5146
      %v5155 = vmax.f32 %v5136, %v5147
      %v5156 = vmax.f32 %v5138, %v5148
      %v5157 = vmax.f32 %v5140, %v5149
      %v5158 = vmax.f32 %v5142, %v5150
      %s5159 = scalar_lea.vmem [#allocation3], 24
      %5160 = vst [vmem:[%s5159 + $0x8] sm:$0xff] %v5151
      %5161 = vst [vmem:[%s5159 + $0x20] sm:$0xff] %v5152
      %5162 = vst [vmem:[%s5159 + $0x38] sm:$0xff] %v5153
      %5163 = vst [vmem:[%s5159 + $0x50] sm:$0xff] %v5154
      %5164 = vst [vmem:[%s5159 + $0x68] sm:$0xff] %v5155
      %5165 = vst [vmem:[%s5159 + $0x80] sm:$0xff] %v5156
      %5166 = vst [vmem:[%s5159 + $0x98] sm:$0xff] %v5157
      %5167 = vst [vmem:[%s5159 + $0xb0] sm:$0xff] %v5158
      %v5168 = vld [vmem:[#allocation3 + $0x7] sm:$0xff]
      %v5169 = vld [vmem:[#allocation3 + $0x1f] sm:$0xff]
      %v5170 = vld [vmem:[#allocation3 + $0x37] sm:$0xff]
      %v5171 = vld [vmem:[#allocation3 + $0x4f] sm:$0xff]
      %v5172 = vld [vmem:[#allocation3 + $0x67] sm:$0xff]
      %v5173 = vld [vmem:[#allocation3 + $0x7f] sm:$0xff]
      %v5174 = vld [vmem:[#allocation3 + $0x97] sm:$0xff]
      %v5175 = vld [vmem:[#allocation3 + $0xaf] sm:$0xff]
      %v5176 = vpack.c.bf16 %v5168, %v5168
      %v5177 = vpack.c.bf16 %v5169, %v5169
      %v5178 = vpack.c.bf16 %v5170, %v5170
      %v5179 = vpack.c.bf16 %v5171, %v5171
      %v5180 = vpack.c.bf16 %v5172, %v5172
      %v5181 = vpack.c.bf16 %v5173, %v5173
      %v5182 = vpack.c.bf16 %v5174, %v5174
      %v5183 = vpack.c.bf16 %v5175, %v5175
      %5184 = vst [vmem:[#allocation5] sm:$0xf] %v5176
      %5185 = vst [vmem:[#allocation5 + $0x24] sm:$0xf] %v5177
      %5186 = vst [vmem:[#allocation5 + $0x48] sm:$0xf] %v5178
      %5187 = vst [vmem:[#allocation5 + $0x6c] sm:$0xf] %v5179
      %5188 = vst [vmem:[#allocation5 + $0x90] sm:$0xf] %v5180
      %5189 = vst [vmem:[#allocation5 + $0xb4] sm:$0xf] %v5181
      %5190 = vst [vmem:[#allocation5 + $0xd8] sm:$0xf] %v5182
      %5191 = vst [vmem:[#allocation5 + $0xfc] sm:$0xf] %v5183
      %v5192 = vld [vmem:[#allocation3 + $0x8] sm:$0xff]
      %v5193 = vld [vmem:[#allocation3 + $0x20] sm:$0xff]
      %v5194 = vld [vmem:[#allocation3 + $0x38] sm:$0xff]
      %v5195 = vld [vmem:[#allocation3 + $0x50] sm:$0xff]
      %v5196 = vld [vmem:[#allocation3 + $0x68] sm:$0xff]
      %v5197 = vld [vmem:[#allocation3 + $0x80] sm:$0xff]
      %v5198 = vld [vmem:[#allocation3 + $0x98] sm:$0xff]
      %v5199 = vld [vmem:[#allocation3 + $0xb0] sm:$0xff]
      %v5200 = vpack.c.bf16 %v5192, %v5192
      %v5201 = vpack.c.bf16 %v5193, %v5193
      %v5202 = vpack.c.bf16 %v5194, %v5194
      %v5203 = vpack.c.bf16 %v5195, %v5195
      %v5204 = vpack.c.bf16 %v5196, %v5196
      %v5205 = vpack.c.bf16 %v5197, %v5197
      %v5206 = vpack.c.bf16 %v5198, %v5198
      %v5207 = vpack.c.bf16 %v5199, %v5199
      %5208 = vst [vmem:[#allocation5 + $0x4] sm:$0xf] %v5200
      %5209 = vst [vmem:[#allocation5 + $0x28] sm:$0xf] %v5201
      %5210 = vst [vmem:[#allocation5 + $0x4c] sm:$0xf] %v5202
      %5211 = vst [vmem:[#allocation5 + $0x70] sm:$0xf] %v5203
      %5212 = vst [vmem:[#allocation5 + $0x94] sm:$0xf] %v5204
      %5213 = vst [vmem:[#allocation5 + $0xb8] sm:$0xf] %v5205
      %5214 = vst [vmem:[#allocation5 + $0xdc] sm:$0xf] %v5206
      %5215 = vst [vmem:[#allocation5 + $0x100] sm:$0xf] %v5207
      %v5216 = vld [vmem:[#allocation3 + $0x9] sm:$0xff]
      %v5217 = vld [vmem:[#allocation3 + $0x21] sm:$0xff]
      %v5218 = vld [vmem:[#allocation3 + $0x39] sm:$0xff]
      %v5219 = vld [vmem:[#allocation3 + $0x51] sm:$0xff]
      %v5220 = vld [vmem:[#allocation3 + $0x69] sm:$0xff]
      %v5221 = vld [vmem:[#allocation3 + $0x81] sm:$0xff]
      %v5222 = vld [vmem:[#allocation3 + $0x99] sm:$0xff]
      %v5223 = vld [vmem:[#allocation3 + $0xb1] sm:$0xff]
      %v5224 = vpack.c.bf16 %v5216, %v5216
      %v5225 = vpack.c.bf16 %v5217, %v5217
      %v5226 = vpack.c.bf16 %v5218, %v5218
      %v5227 = vpack.c.bf16 %v5219, %v5219
      %v5228 = vpack.c.bf16 %v5220, %v5220
      %v5229 = vpack.c.bf16 %v5221, %v5221
      %v5230 = vpack.c.bf16 %v5222, %v5222
      %v5231 = vpack.c.bf16 %v5223, %v5223
      %5232 = vst [vmem:[#allocation5 + $0x8] sm:$0xf] %v5224
      %5233 = vst [vmem:[#allocation5 + $0x2c] sm:$0xf] %v5225
      %5234 = vst [vmem:[#allocation5 + $0x50] sm:$0xf] %v5226
      %5235 = vst [vmem:[#allocation5 + $0x74] sm:$0xf] %v5227
      %5236 = vst [vmem:[#allocation5 + $0x98] sm:$0xf] %v5228
      %5237 = vst [vmem:[#allocation5 + $0xbc] sm:$0xf] %v5229
      %5238 = vst [vmem:[#allocation5 + $0xe0] sm:$0xf] %v5230
      %5239 = vst [vmem:[#allocation5 + $0x104] sm:$0xf] %v5231
      %v5240 = vld [vmem:[%s5159 + $0x7] sm:$0xff]
      %v5241 = vld [vmem:[%s5159 + $0x1f] sm:$0xff]
      %v5242 = vld [vmem:[%s5159 + $0x37] sm:$0xff]
      %v5243 = vld [vmem:[%s5159 + $0x4f] sm:$0xff]
      %v5244 = vld [vmem:[%s5159 + $0x67] sm:$0xff]
      %v5245 = vld [vmem:[%s5159 + $0x7f] sm:$0xff]
      %v5246 = vld [vmem:[%s5159 + $0x97] sm:$0xff]
      %v5247 = vld [vmem:[%s5159 + $0xaf] sm:$0xff]
      %v5248 = vpack.c.bf16 %v5240, %v5240
      %v5249 = vpack.c.bf16 %v5241, %v5241
      %v5250 = vpack.c.bf16 %v5242, %v5242
      %v5251 = vpack.c.bf16 %v5243, %v5243
      %v5252 = vpack.c.bf16 %v5244, %v5244
      %v5253 = vpack.c.bf16 %v5245, %v5245
      %v5254 = vpack.c.bf16 %v5246, %v5246
      %v5255 = vpack.c.bf16 %v5247, %v5247
      %5256 = vst [vmem:[#allocation5 + $0xc] sm:$0xf] %v5248
      %5257 = vst [vmem:[#allocation5 + $0x30] sm:$0xf] %v5249
      %5258 = vst [vmem:[#allocation5 + $0x54] sm:$0xf] %v5250
      %5259 = vst [vmem:[#allocation5 + $0x78] sm:$0xf] %v5251
      %5260 = vst [vmem:[#allocation5 + $0x9c] sm:$0xf] %v5252
      %5261 = vst [vmem:[#allocation5 + $0xc0] sm:$0xf] %v5253
      %5262 = vst [vmem:[#allocation5 + $0xe4] sm:$0xf] %v5254
      %5263 = vst [vmem:[#allocation5 + $0x108] sm:$0xf] %v5255
      %v5264 = vld [vmem:[%s5159 + $0x8] sm:$0xff]
      %v5265 = vld [vmem:[%s5159 + $0x20] sm:$0xff]
      %v5266 = vld [vmem:[%s5159 + $0x38] sm:$0xff]
      %v5267 = vld [vmem:[%s5159 + $0x50] sm:$0xff]
      %v5268 = vld [vmem:[%s5159 + $0x68] sm:$0xff]
      %v5269 = vld [vmem:[%s5159 + $0x80] sm:$0xff]
      %v5270 = vld [vmem:[%s5159 + $0x98] sm:$0xff]
      %v5271 = vld [vmem:[%s5159 + $0xb0] sm:$0xff]
      %v5272 = vpack.c.bf16 %v5264, %v5264
      %v5273 = vpack.c.bf16 %v5265, %v5265
      %v5274 = vpack.c.bf16 %v5266, %v5266
      %v5275 = vpack.c.bf16 %v5267, %v5267
      %v5276 = vpack.c.bf16 %v5268, %v5268
      %v5277 = vpack.c.bf16 %v5269, %v5269
      %v5278 = vpack.c.bf16 %v5270, %v5270
      %v5279 = vpack.c.bf16 %v5271, %v5271
      %5280 = vst [vmem:[#allocation5 + $0x10] sm:$0xf] %v5272
      %5281 = vst [vmem:[#allocation5 + $0x34] sm:$0xf] %v5273
      %5282 = vst [vmem:[#allocation5 + $0x58] sm:$0xf] %v5274
      %5283 = vst [vmem:[#allocation5 + $0x7c] sm:$0xf] %v5275
      %5284 = vst [vmem:[#allocation5 + $0xa0] sm:$0xf] %v5276
      %5285 = vst [vmem:[#allocation5 + $0xc4] sm:$0xf] %v5277
      %5286 = vst [vmem:[#allocation5 + $0xe8] sm:$0xf] %v5278
      %5287 = vst [vmem:[#allocation5 + $0x10c] sm:$0xf] %v5279
      %v5288 = vld [vmem:[%s5159 + $0x9] sm:$0xff]
      %v5289 = vld [vmem:[%s5159 + $0x21] sm:$0xff]
      %v5290 = vld [vmem:[%s5159 + $0x39] sm:$0xff]
      %v5291 = vld [vmem:[%s5159 + $0x51] sm:$0xff]
      %v5292 = vld [vmem:[%s5159 + $0x69] sm:$0xff]
      %v5293 = vld [vmem:[%s5159 + $0x81] sm:$0xff]
      %v5294 = vld [vmem:[%s5159 + $0x99] sm:$0xff]
      %v5295 = vld [vmem:[%s5159 + $0xb1] sm:$0xff]
      %v5296 = vpack.c.bf16 %v5288, %v5288
      %v5297 = vpack.c.bf16 %v5289, %v5289
      %v5298 = vpack.c.bf16 %v5290, %v5290
      %v5299 = vpack.c.bf16 %v5291, %v5291
      %v5300 = vpack.c.bf16 %v5292, %v5292
      %v5301 = vpack.c.bf16 %v5293, %v5293
      %v5302 = vpack.c.bf16 %v5294, %v5294
      %v5303 = vpack.c.bf16 %v5295, %v5295
      %5304 = vst [vmem:[#allocation5 + $0x14] sm:$0xf] %v5296
      %5305 = vst [vmem:[#allocation5 + $0x38] sm:$0xf] %v5297
      %5306 = vst [vmem:[#allocation5 + $0x5c] sm:$0xf] %v5298
      %5307 = vst [vmem:[#allocation5 + $0x80] sm:$0xf] %v5299
      %5308 = vst [vmem:[#allocation5 + $0xa4] sm:$0xf] %v5300
      %5309 = vst [vmem:[#allocation5 + $0xc8] sm:$0xf] %v5301
      %5310 = vst [vmem:[#allocation5 + $0xec] sm:$0xf] %v5302
      %5311 = vst [vmem:[#allocation5 + $0x110] sm:$0xf] %v5303
      %s5312 = scalar_lea.vmem [#allocation3], 48
      %v5313 = vld [vmem:[%s5312 + $0x7] sm:$0xff]
      %v5314 = vld [vmem:[%s5312 + $0x1f] sm:$0xff]
      %v5315 = vld [vmem:[%s5312 + $0x37] sm:$0xff]
      %v5316 = vld [vmem:[%s5312 + $0x4f] sm:$0xff]
      %v5317 = vld [vmem:[%s5312 + $0x67] sm:$0xff]
      %v5318 = vld [vmem:[%s5312 + $0x7f] sm:$0xff]
      %v5319 = vld [vmem:[%s5312 + $0x97] sm:$0xff]
      %v5320 = vld [vmem:[%s5312 + $0xaf] sm:$0xff]
      %v5321 = vpack.c.bf16 %v5313, %v5313
      %v5322 = vpack.c.bf16 %v5314, %v5314
      %v5323 = vpack.c.bf16 %v5315, %v5315
      %v5324 = vpack.c.bf16 %v5316, %v5316
      %v5325 = vpack.c.bf16 %v5317, %v5317
      %v5326 = vpack.c.bf16 %v5318, %v5318
      %v5327 = vpack.c.bf16 %v5319, %v5319
      %v5328 = vpack.c.bf16 %v5320, %v5320
      %5329 = vst [vmem:[#allocation5 + $0x18] sm:$0xf] %v5321
      %5330 = vst [vmem:[#allocation5 + $0x3c] sm:$0xf] %v5322
      %5331 = vst [vmem:[#allocation5 + $0x60] sm:$0xf] %v5323
      %5332 = vst [vmem:[#allocation5 + $0x84] sm:$0xf] %v5324
      %5333 = vst [vmem:[#allocation5 + $0xa8] sm:$0xf] %v5325
      %5334 = vst [vmem:[#allocation5 + $0xcc] sm:$0xf] %v5326
      %5335 = vst [vmem:[#allocation5 + $0xf0] sm:$0xf] %v5327
      %5336 = vst [vmem:[#allocation5 + $0x114] sm:$0xf] %v5328
      %v5337 = vld [vmem:[%s5312 + $0x8] sm:$0xff]
      %v5338 = vld [vmem:[%s5312 + $0x20] sm:$0xff]
      %v5339 = vld [vmem:[%s5312 + $0x38] sm:$0xff]
      %v5340 = vld [vmem:[%s5312 + $0x50] sm:$0xff]
      %v5341 = vld [vmem:[%s5312 + $0x68] sm:$0xff]
      %v5342 = vld [vmem:[%s5312 + $0x80] sm:$0xff]
      %v5343 = vld [vmem:[%s5312 + $0x98] sm:$0xff]
      %v5344 = vld [vmem:[%s5312 + $0xb0] sm:$0xff]
      %v5345 = vpack.c.bf16 %v5337, %v5337
      %v5346 = vpack.c.bf16 %v5338, %v5338
      %v5347 = vpack.c.bf16 %v5339, %v5339
      %v5348 = vpack.c.bf16 %v5340, %v5340
      %v5349 = vpack.c.bf16 %v5341, %v5341
      %v5350 = vpack.c.bf16 %v5342, %v5342
      %v5351 = vpack.c.bf16 %v5343, %v5343
      %v5352 = vpack.c.bf16 %v5344, %v5344
      %5353 = vst [vmem:[#allocation5 + $0x1c] sm:$0xf] %v5345
      %5354 = vst [vmem:[#allocation5 + $0x40] sm:$0xf] %v5346
      %5355 = vst [vmem:[#allocation5 + $0x64] sm:$0xf] %v5347
      %5356 = vst [vmem:[#allocation5 + $0x88] sm:$0xf] %v5348
      %5357 = vst [vmem:[#allocation5 + $0xac] sm:$0xf] %v5349
      %5358 = vst [vmem:[#allocation5 + $0xd0] sm:$0xf] %v5350
      %5359 = vst [vmem:[#allocation5 + $0xf4] sm:$0xf] %v5351
      %5360 = vst [vmem:[#allocation5 + $0x118] sm:$0xf] %v5352
      %v5361 = vld [vmem:[%s5312 + $0x9] sm:$0xff]
      %v5362 = vld [vmem:[%s5312 + $0x21] sm:$0xff]
      %v5363 = vld [vmem:[%s5312 + $0x39] sm:$0xff]
      %v5364 = vld [vmem:[%s5312 + $0x51] sm:$0xff]
      %v5365 = vld [vmem:[%s5312 + $0x69] sm:$0xff]
      %v5366 = vld [vmem:[%s5312 + $0x81] sm:$0xff]
      %v5367 = vld [vmem:[%s5312 + $0x99] sm:$0xff]
      %v5368 = vld [vmem:[%s5312 + $0xb1] sm:$0xff]
      %v5369 = vpack.c.bf16 %v5361, %v5361
      %v5370 = vpack.c.bf16 %v5362, %v5362
      %v5371 = vpack.c.bf16 %v5363, %v5363
      %v5372 = vpack.c.bf16 %v5364, %v5364
      %v5373 = vpack.c.bf16 %v5365, %v5365
      %v5374 = vpack.c.bf16 %v5366, %v5366
      %v5375 = vpack.c.bf16 %v5367, %v5367
      %v5376 = vpack.c.bf16 %v5368, %v5368
      %5377 = vst [vmem:[#allocation5 + $0x20] sm:$0xf] %v5369
      %5378 = vst [vmem:[#allocation5 + $0x44] sm:$0xf] %v5370
      %5379 = vst [vmem:[#allocation5 + $0x68] sm:$0xf] %v5371
      %5380 = vst [vmem:[#allocation5 + $0x8c] sm:$0xf] %v5372
      %5381 = vst [vmem:[#allocation5 + $0xb0] sm:$0xf] %v5373
      %5382 = vst [vmem:[#allocation5 + $0xd4] sm:$0xf] %v5374
      %5383 = vst [vmem:[#allocation5 + $0xf8] sm:$0xf] %v5375
      %5384 = vst [vmem:[#allocation5 + $0x11c] sm:$0xf] %v5376
      %v5385 = vld [vmem:[#allocation5] sm:$0xff]
      %v5386 = vld [vmem:[#allocation5 + $0x8] sm:$0xff]
      %v5387 = vld [vmem:[#allocation5 + $0x10] sm:$0xff]
      %v5388 = vld [vmem:[#allocation5 + $0x18] sm:$0xff]
      %v5389 = vld [vmem:[#allocation5 + $0x20] sm:$0xf]
      %v5390 = vld [vmem:[#allocation5 + $0x24] sm:$0xff]
      %v5391 = vld [vmem:[#allocation5 + $0x2c] sm:$0xff]
      %v5392 = vld [vmem:[#allocation5 + $0x34] sm:$0xff]
      %v5393 = vld [vmem:[#allocation5 + $0x3c] sm:$0xff]
      %v5394 = vld [vmem:[#allocation5 + $0x44] sm:$0xf]
      %v5395 = vld [vmem:[#allocation5 + $0x48] sm:$0xff]
      %v5396 = vld [vmem:[#allocation5 + $0x50] sm:$0xff]
      %v5397 = vld [vmem:[#allocation5 + $0x58] sm:$0xff]
      %v5398 = vld [vmem:[#allocation5 + $0x60] sm:$0xff]
      %v5399 = vld [vmem:[#allocation5 + $0x68] sm:$0xf]
      %v5400 = vld [vmem:[#allocation5 + $0x6c] sm:$0xff]
      %v5401 = vld [vmem:[#allocation5 + $0x74] sm:$0xff]
      %v5402 = vld [vmem:[#allocation5 + $0x7c] sm:$0xff]
      %v5403 = vld [vmem:[#allocation5 + $0x84] sm:$0xff]
      %v5404 = vld [vmem:[#allocation5 + $0x8c] sm:$0xf]
      %v5405 = vld [vmem:[#allocation5 + $0x90] sm:$0xff]
      %v5406 = vld [vmem:[#allocation5 + $0x98] sm:$0xff]
      %v5407 = vld [vmem:[#allocation5 + $0xa0] sm:$0xff]
      %v5408 = vld [vmem:[#allocation5 + $0xa8] sm:$0xff]
      %v5409 = vld [vmem:[#allocation5 + $0xb0] sm:$0xf]
      %v5410 = vld [vmem:[#allocation5 + $0xb4] sm:$0xff]
      %v5411 = vld [vmem:[#allocation5 + $0xbc] sm:$0xff]
      %v5412 = vld [vmem:[#allocation5 + $0xc4] sm:$0xff]
      %v5413 = vld [vmem:[#allocation5 + $0xcc] sm:$0xff]
      %v5414 = vld [vmem:[#allocation5 + $0xd4] sm:$0xf]
      %v5415 = vld [vmem:[#allocation5 + $0xd8] sm:$0xff]
      %v5416 = vld [vmem:[#allocation5 + $0xe0] sm:$0xff]
      %v5417 = vld [vmem:[#allocation5 + $0xe8] sm:$0xff]
      %v5418 = vld [vmem:[#allocation5 + $0xf0] sm:$0xff]
      %v5419 = vld [vmem:[#allocation5 + $0xf8] sm:$0xf]
      %v5420 = vld [vmem:[#allocation5 + $0xfc] sm:$0xff]
      %v5421 = vld [vmem:[#allocation5 + $0x104] sm:$0xff]
      %v5422 = vld [vmem:[#allocation5 + $0x10c] sm:$0xff]
      %v5423 = vld [vmem:[#allocation5 + $0x114] sm:$0xff]
      %v5424 = vld [vmem:[#allocation5 + $0x11c] sm:$0xf]
      %v5425 = vld [vmem:[%s5] sm:$0xf]
      %v5426 = vld [vmem:[%s5 + $0x4] sm:$0xf]
      %v5427 = vld [vmem:[%s5 + $0x8] sm:$0xf]
      %v5428 = vld [vmem:[%s5 + $0xc] sm:$0xf]
      %v5429 = vld [vmem:[%s5 + $0x10] sm:$0xf]
      %v5430 = vld [vmem:[%s5 + $0x14] sm:$0xf]
      %v5431 = vld [vmem:[%s5 + $0x18] sm:$0xf]
      %v5432 = vld [vmem:[%s5 + $0x1c] sm:$0xf]
      %v5433 = vld [vmem:[%s5 + $0x20] sm:$0xf]
      %v5434 = vld [vmem:[%s5 + $0x24] sm:$0xf]
      %v5435 = vld [vmem:[%s5 + $0x28] sm:$0xf]
      %v5436 = vld [vmem:[%s5 + $0x2c] sm:$0xf]
      %v5437 = vld [vmem:[%s5 + $0x30] sm:$0xf]
      %v5438 = vld [vmem:[%s5 + $0x34] sm:$0xf]
      %v5439 = vld [vmem:[%s5 + $0x38] sm:$0xf]
      %v5440 = vld [vmem:[%s5 + $0x3c] sm:$0xf]
      %v5441 = vld [vmem:[%s5 + $0x40] sm:$0xf]
      %v5442 = vld [vmem:[%s5 + $0x44] sm:$0xf]
      %v5443 = vld [vmem:[%s5 + $0x48] sm:$0xf]
      %v5444 = vld [vmem:[%s5 + $0x4c] sm:$0xf]
      %v5445 = vld [vmem:[%s5 + $0x50] sm:$0xf]
      %v5446 = vld [vmem:[%s5 + $0x54] sm:$0xf]
      %v5447 = vld [vmem:[%s5 + $0x58] sm:$0xf]
      %v5448 = vld [vmem:[%s5 + $0x5c] sm:$0xf]
      %v5449 = vld [vmem:[%s5 + $0x60] sm:$0xf]
      %v5450 = vld [vmem:[%s5 + $0x64] sm:$0xf]
      %v5451 = vld [vmem:[%s5 + $0x68] sm:$0xf]
      %v5452 = vld [vmem:[%s5 + $0x6c] sm:$0xf]
      %v5453 = vld [vmem:[%s5 + $0x70] sm:$0xf]
      %v5454 = vld [vmem:[%s5 + $0x74] sm:$0xf]
      %v5455 = vld [vmem:[%s5 + $0x78] sm:$0xf]
      %v5456 = vld [vmem:[%s5 + $0x7c] sm:$0xf]
      %v5457 = vld [vmem:[%s5 + $0x80] sm:$0xf]
      %v5458 = vld [vmem:[%s5 + $0x84] sm:$0xf]
      %v5459 = vld [vmem:[%s5 + $0x88] sm:$0xf]
      %v5460 = vld [vmem:[%s5 + $0x8c] sm:$0xf]
      %v5461 = vld [vmem:[%s5 + $0x90] sm:$0xf]
      %v5462 = vld [vmem:[%s5 + $0x94] sm:$0xf]
      %v5463 = vld [vmem:[%s5 + $0x98] sm:$0xf]
      %v5464 = vld [vmem:[%s5 + $0x9c] sm:$0xf]
      %v5465 = vld [vmem:[%s5 + $0xa0] sm:$0xf]
      %v5466 = vld [vmem:[%s5 + $0xa4] sm:$0xf]
      %v5467 = vld [vmem:[%s5 + $0xa8] sm:$0xf]
      %v5468 = vld [vmem:[%s5 + $0xac] sm:$0xf]
      %v5469 = vld [vmem:[%s5 + $0xb0] sm:$0xf]
      %v5470 = vld [vmem:[%s5 + $0xb4] sm:$0xf]
      %v5471 = vld [vmem:[%s5 + $0xb8] sm:$0xf]
      %v5472 = vld [vmem:[%s5 + $0xbc] sm:$0xf]
      %v5473 = vld [vmem:[%s5 + $0xc0] sm:$0xf]
      %v5474 = vld [vmem:[%s5 + $0xc4] sm:$0xf]
      %v5475 = vld [vmem:[%s5 + $0xc8] sm:$0xf]
      %v5476 = vld [vmem:[%s5 + $0xcc] sm:$0xf]
      %v5477 = vld [vmem:[%s5 + $0xd0] sm:$0xf]
      %v5478 = vld [vmem:[%s5 + $0xd4] sm:$0xf]
      %v5479 = vld [vmem:[%s5 + $0xd8] sm:$0xf]
      %v5480 = vld [vmem:[%s5 + $0xdc] sm:$0xf]
      %v5481 = vld [vmem:[%s5 + $0xe0] sm:$0xf]
      %v5482 = vld [vmem:[%s5 + $0xe4] sm:$0xf]
      %v5483 = vld [vmem:[%s5 + $0xe8] sm:$0xf]
      %v5484 = vld [vmem:[%s5 + $0xec] sm:$0xf]
      %v5485 = vld [vmem:[%s5 + $0xf0] sm:$0xf]
      %v5486 = vld [vmem:[%s5 + $0xf4] sm:$0xf]
      %v5487 = vld [vmem:[%s5 + $0xf8] sm:$0xf]
      %v5488 = vld [vmem:[%s5 + $0xfc] sm:$0xf]
      %v5489 = vld [vmem:[%s5 + $0x100] sm:$0xf]
      %v5490 = vld [vmem:[%s5 + $0x104] sm:$0xf]
      %v5491 = vld [vmem:[%s5 + $0x108] sm:$0xf]
      %v5492 = vld [vmem:[%s5 + $0x10c] sm:$0xf]
      %v5493 = vld [vmem:[%s5 + $0x110] sm:$0xf]
      %v5494 = vld [vmem:[%s5 + $0x114] sm:$0xf]
      %v5495 = vld [vmem:[%s5 + $0x118] sm:$0xf]
      %v5496 = vld [vmem:[%s5 + $0x11c] sm:$0xf]
      %v5497 = vld [vmem:[%s5 + $0x120] sm:$0xf]
      %v5498 = vld [vmem:[%s5 + $0x124] sm:$0xf]
      %v5499 = vld [vmem:[%s5 + $0x128] sm:$0xf]
      %v5500 = vld [vmem:[%s5 + $0x12c] sm:$0xf]
      %v5501 = vld [vmem:[%s5 + $0x130] sm:$0xf]
      %v5502 = vld [vmem:[%s5 + $0x134] sm:$0xf]
      %v5503 = vld [vmem:[%s5 + $0x138] sm:$0xf]
      %v5504 = vld [vmem:[%s5 + $0x13c] sm:$0xf]
      %v5505 = vld [vmem:[%s5 + $0x140] sm:$0xf]
      %v5506 = vld [vmem:[%s5 + $0x144] sm:$0xf]
      %v5507 = vld [vmem:[%s5 + $0x148] sm:$0xf]
      %v5508 = vld [vmem:[%s5 + $0x14c] sm:$0xf]
      %v5509 = vld [vmem:[%s5 + $0x150] sm:$0xf]
      %v5510 = vld [vmem:[%s5 + $0x154] sm:$0xf]
      %v5511 = vld [vmem:[%s5 + $0x158] sm:$0xf]
      %v5512 = vld [vmem:[%s5 + $0x15c] sm:$0xf]
      %v5513 = vld [vmem:[%s5 + $0x160] sm:$0xf]
      %v5514 = vld [vmem:[%s5 + $0x164] sm:$0xf]
      %v5515 = vld [vmem:[%s5 + $0x168] sm:$0xf]
      %v5516 = vld [vmem:[%s5 + $0x16c] sm:$0xf]
      %v5517 = vld [vmem:[%s5 + $0x170] sm:$0xf]
      %v5518 = vld [vmem:[%s5 + $0x174] sm:$0xf]
      %v5519 = vld [vmem:[%s5 + $0x178] sm:$0xf]
      %v5520 = vld [vmem:[%s5 + $0x17c] sm:$0xf]
      %v5521 = vld [vmem:[%s5 + $0x180] sm:$0xf]
      %v5522 = vld [vmem:[%s5 + $0x184] sm:$0xf]
      %v5523 = vld [vmem:[%s5 + $0x188] sm:$0xf]
      %v5524 = vld [vmem:[%s5 + $0x18c] sm:$0xf]
      %v5525 = vld [vmem:[%s5 + $0x190] sm:$0xf]
      %v5526 = vld [vmem:[%s5 + $0x194] sm:$0xf]
      %v5527 = vld [vmem:[%s5 + $0x198] sm:$0xf]
      %v5528 = vld [vmem:[%s5 + $0x19c] sm:$0xf]
      %v5529 = vld [vmem:[%s5 + $0x1a0] sm:$0xf]
      %v5530 = vld [vmem:[%s5 + $0x1a4] sm:$0xf]
      %v5531 = vld [vmem:[%s5 + $0x1a8] sm:$0xf]
      %v5532 = vld [vmem:[%s5 + $0x1ac] sm:$0xf]
      %v5533 = vld [vmem:[%s5 + $0x1b0] sm:$0xf]
      %v5534 = vld [vmem:[%s5 + $0x1b4] sm:$0xf]
      %v5535 = vld [vmem:[%s5 + $0x1b8] sm:$0xf]
      %v5536 = vld [vmem:[%s5 + $0x1bc] sm:$0xf]
      %v5537 = vld [vmem:[%s5 + $0x1c0] sm:$0xf]
      %v5538 = vld [vmem:[%s5 + $0x1c4] sm:$0xf]
      %v5539 = vld [vmem:[%s5 + $0x1c8] sm:$0xf]
      %v5540 = vld [vmem:[%s5 + $0x1cc] sm:$0xf]
      %v5541 = vld [vmem:[%s5 + $0x1d0] sm:$0xf]
      %v5542 = vld [vmem:[%s5 + $0x1d4] sm:$0xf]
      %v5543 = vld [vmem:[%s5 + $0x1d8] sm:$0xf]
      %v5544 = vld [vmem:[%s5 + $0x1dc] sm:$0xf]
      %v5545 = vld [vmem:[%s5 + $0x1e0] sm:$0xf]
      %v5546 = vld [vmem:[%s5 + $0x1e4] sm:$0xf]
      %v5547 = vld [vmem:[%s5 + $0x1e8] sm:$0xf]
      %v5548 = vld [vmem:[%s5 + $0x1ec] sm:$0xf]
      %v5549 = vld [vmem:[%s5 + $0x1f0] sm:$0xf]
      %v5550 = vld [vmem:[%s5 + $0x1f4] sm:$0xf]
      %v5551 = vld [vmem:[%s5 + $0x1f8] sm:$0xf]
      %v5552 = vld [vmem:[%s5 + $0x1fc] sm:$0xf]
      %v5553 = vld [vmem:[%s5 + $0x200] sm:$0xf]
      %v5554 = vld [vmem:[%s5 + $0x204] sm:$0xf]
      %v5555 = vld [vmem:[%s5 + $0x208] sm:$0xf]
      %v5556 = vld [vmem:[%s5 + $0x20c] sm:$0xf]
      %v5557 = vld [vmem:[%s5 + $0x210] sm:$0xf]
      %v5558 = vld [vmem:[%s5 + $0x214] sm:$0xf]
      %v5559 = vld [vmem:[%s5 + $0x218] sm:$0xf]
      %v5560 = vld [vmem:[%s5 + $0x21c] sm:$0xf]
      %v5561 = vld [vmem:[%s5 + $0x220] sm:$0xf]
      %v5562 = vld [vmem:[%s5 + $0x224] sm:$0xf]
      %v5563 = vld [vmem:[%s5 + $0x228] sm:$0xf]
      %v5564 = vld [vmem:[%s5 + $0x22c] sm:$0xf]
      %v5565 = vld [vmem:[%s5 + $0x230] sm:$0xf]
      %v5566 = vld [vmem:[%s5 + $0x234] sm:$0xf]
      %v5567 = vld [vmem:[%s5 + $0x238] sm:$0xf]
      %v5568 = vld [vmem:[%s5 + $0x23c] sm:$0xf]
      %v5569 = vld [vmem:[%s6] sm:$0x1]
      %v5571 = vperm.slane %v5569, 0
      %v5613 = vunpack.c.l.b16 %v5385
      %v5614 = vunpack.c.h.b16 %v5385
      %v5615 = vunpack.c.l.b16 %v5386
      %v5616 = vunpack.c.h.b16 %v5386
      %v5617 = vunpack.c.l.b16 %v5387
      %v5618 = vunpack.c.h.b16 %v5387
      %v5619 = vunpack.c.l.b16 %v5388
      %v5620 = vunpack.c.h.b16 %v5388
      %v5621 = vunpack.c.l.b16 %v5389
      %v5622 = vunpack.c.l.b16 %v5390
      %v5623 = vunpack.c.h.b16 %v5390
      %v5624 = vunpack.c.l.b16 %v5391
      %v5625 = vunpack.c.h.b16 %v5391
      %v5626 = vunpack.c.l.b16 %v5392
      %v5627 = vunpack.c.h.b16 %v5392
      %v5628 = vunpack.c.l.b16 %v5393
      %v5629 = vunpack.c.h.b16 %v5393
      %v5630 = vunpack.c.l.b16 %v5394
      %v5631 = vunpack.c.l.b16 %v5395
      %v5632 = vunpack.c.h.b16 %v5395
      %v5633 = vunpack.c.l.b16 %v5396
      %v5634 = vunpack.c.h.b16 %v5396
      %v5635 = vunpack.c.l.b16 %v5397
      %v5636 = vunpack.c.h.b16 %v5397
      %v5637 = vunpack.c.l.b16 %v5398
      %v5638 = vunpack.c.h.b16 %v5398
      %v5639 = vunpack.c.l.b16 %v5399
      %v5640 = vunpack.c.l.b16 %v5400
      %v5641 = vunpack.c.h.b16 %v5400
      %v5642 = vunpack.c.l.b16 %v5401
      %v5643 = vunpack.c.h.b16 %v5401
      %v5644 = vunpack.c.l.b16 %v5402
      %v5645 = vunpack.c.h.b16 %v5402
      %v5646 = vunpack.c.l.b16 %v5403
      %v5647 = vunpack.c.h.b16 %v5403
      %v5648 = vunpack.c.l.b16 %v5404
      %v5649 = vunpack.c.l.b16 %v5405
      %v5650 = vunpack.c.h.b16 %v5405
      %v5651 = vunpack.c.l.b16 %v5406
      %v5652 = vunpack.c.h.b16 %v5406
      %v5653 = vunpack.c.l.b16 %v5407
      %v5654 = vunpack.c.h.b16 %v5407
      %v5655 = vunpack.c.l.b16 %v5408
      %v5656 = vunpack.c.h.b16 %v5408
      %v5657 = vunpack.c.l.b16 %v5409
      %v5658 = vunpack.c.l.b16 %v5410
      %v5659 = vunpack.c.h.b16 %v5410
      %v5660 = vunpack.c.l.b16 %v5411
      %v5661 = vunpack.c.h.b16 %v5411
      %v5662 = vunpack.c.l.b16 %v5412
      %v5663 = vunpack.c.h.b16 %v5412
      %v5664 = vunpack.c.l.b16 %v5413
      %v5665 = vunpack.c.h.b16 %v5413
      %v5666 = vunpack.c.l.b16 %v5414
      %v5667 = vunpack.c.l.b16 %v5415
      %v5668 = vunpack.c.h.b16 %v5415
      %v5669 = vunpack.c.l.b16 %v5416
      %v5670 = vunpack.c.h.b16 %v5416
      %v5671 = vunpack.c.l.b16 %v5417
      %v5672 = vunpack.c.h.b16 %v5417
      %v5673 = vunpack.c.l.b16 %v5418
      %v5674 = vunpack.c.h.b16 %v5418
      %v5675 = vunpack.c.l.b16 %v5419
      %v5676 = vunpack.c.l.b16 %v5420
      %v5677 = vunpack.c.h.b16 %v5420
      %v5678 = vunpack.c.l.b16 %v5421
      %v5679 = vunpack.c.h.b16 %v5421
      %v5680 = vunpack.c.l.b16 %v5422
      %v5681 = vunpack.c.h.b16 %v5422
      %v5682 = vunpack.c.l.b16 %v5423
      %v5683 = vunpack.c.h.b16 %v5423
      %v5684 = vunpack.c.l.b16 %v5424
      %v5685 = vpack.c.b16 %v5622, %v5613
      %v5686 = vpack.c.b16 %v5623, %v5614
      %v5687 = vpack.c.b16 %v5624, %v5615
      %v5688 = vpack.c.b16 %v5625, %v5616
      %v5689 = vpack.c.b16 %v5626, %v5617
      %v5690 = vpack.c.b16 %v5627, %v5618
      %v5691 = vpack.c.b16 %v5628, %v5619
      %v5692 = vpack.c.b16 %v5629, %v5620
      %v5693 = vpack.c.b16 %v5630, %v5621
      %v5694 = vpack.c.b16 %v5640, %v5631
      %v5695 = vpack.c.b16 %v5641, %v5632
      %v5696 = vpack.c.b16 %v5642, %v5633
      %v5697 = vpack.c.b16 %v5643, %v5634
      %v5698 = vpack.c.b16 %v5644, %v5635
      %v5699 = vpack.c.b16 %v5645, %v5636
      %v5700 = vpack.c.b16 %v5646, %v5637
      %v5701 = vpack.c.b16 %v5647, %v5638
      %v5702 = vpack.c.b16 %v5648, %v5639
      %v5703 = vpack.c.b16 %v5658, %v5649
      %v5704 = vpack.c.b16 %v5659, %v5650
      %v5705 = vpack.c.b16 %v5660, %v5651
      %v5706 = vpack.c.b16 %v5661, %v5652
      %v5707 = vpack.c.b16 %v5662, %v5653
      %v5708 = vpack.c.b16 %v5663, %v5654
      %v5709 = vpack.c.b16 %v5664, %v5655
      %v5710 = vpack.c.b16 %v5665, %v5656
      %v5711 = vpack.c.b16 %v5666, %v5657
      %v5712 = vpack.c.b16 %v5676, %v5667
      %v5713 = vpack.c.b16 %v5677, %v5668
      %v5714 = vpack.c.b16 %v5678, %v5669
      %v5715 = vpack.c.b16 %v5679, %v5670
      %v5716 = vpack.c.b16 %v5680, %v5671
      %v5717 = vpack.c.b16 %v5681, %v5672
      %v5718 = vpack.c.b16 %v5682, %v5673
      %v5719 = vpack.c.b16 %v5683, %v5674
      %v5720 = vpack.c.b16 %v5684, %v5675
      %v5901 = vunpack.c.l.b16 %v5425
      %v5902 = vunpack.c.l.b16 %v5426
      %v5903 = vunpack.c.l.b16 %v5427
      %v5904 = vunpack.c.l.b16 %v5428
      %v5905 = vunpack.c.l.b16 %v5429
      %v5906 = vunpack.c.l.b16 %v5430
      %v5907 = vunpack.c.l.b16 %v5431
      %v5908 = vunpack.c.l.b16 %v5432
      %v5909 = vunpack.c.l.b16 %v5433
      %v5910 = vunpack.c.l.b16 %v5434
      %v5911 = vunpack.c.l.b16 %v5435
      %v5912 = vunpack.c.l.b16 %v5436
      %v5913 = vunpack.c.l.b16 %v5437
      %v5914 = vunpack.c.l.b16 %v5438
      %v5915 = vunpack.c.l.b16 %v5439
      %v5916 = vunpack.c.l.b16 %v5440
      %v5917 = vunpack.c.l.b16 %v5441
      %v5918 = vunpack.c.l.b16 %v5442
      %v5919 = vunpack.c.l.b16 %v5443
      %v5920 = vunpack.c.l.b16 %v5444
      %v5921 = vunpack.c.l.b16 %v5445
      %v5922 = vunpack.c.l.b16 %v5446
      %v5923 = vunpack.c.l.b16 %v5447
      %v5924 = vunpack.c.l.b16 %v5448
      %v5925 = vunpack.c.l.b16 %v5449
      %v5926 = vunpack.c.l.b16 %v5450
      %v5927 = vunpack.c.l.b16 %v5451
      %v5928 = vunpack.c.l.b16 %v5452
      %v5929 = vunpack.c.l.b16 %v5453
      %v5930 = vunpack.c.l.b16 %v5454
      %v5931 = vunpack.c.l.b16 %v5455
      %v5932 = vunpack.c.l.b16 %v5456
      %v5933 = vunpack.c.l.b16 %v5457
      %v5934 = vunpack.c.l.b16 %v5458
      %v5935 = vunpack.c.l.b16 %v5459
      %v5936 = vunpack.c.l.b16 %v5460
      %v5937 = vunpack.c.l.b16 %v5461
      %v5938 = vunpack.c.l.b16 %v5462
      %v5939 = vunpack.c.l.b16 %v5463
      %v5940 = vunpack.c.l.b16 %v5464
      %v5941 = vunpack.c.l.b16 %v5465
      %v5942 = vunpack.c.l.b16 %v5466
      %v5943 = vunpack.c.l.b16 %v5467
      %v5944 = vunpack.c.l.b16 %v5468
      %v5945 = vunpack.c.l.b16 %v5469
      %v5946 = vunpack.c.l.b16 %v5470
      %v5947 = vunpack.c.l.b16 %v5471
      %v5948 = vunpack.c.l.b16 %v5472
      %v5949 = vunpack.c.l.b16 %v5473
      %v5950 = vunpack.c.l.b16 %v5474
      %v5951 = vunpack.c.l.b16 %v5475
      %v5952 = vunpack.c.l.b16 %v5476
      %v5953 = vunpack.c.l.b16 %v5477
      %v5954 = vunpack.c.l.b16 %v5478
      %v5955 = vunpack.c.l.b16 %v5479
      %v5956 = vunpack.c.l.b16 %v5480
      %v5957 = vunpack.c.l.b16 %v5481
      %v5958 = vunpack.c.l.b16 %v5482
      %v5959 = vunpack.c.l.b16 %v5483
      %v5960 = vunpack.c.l.b16 %v5484
      %v5961 = vunpack.c.l.b16 %v5485
      %v5962 = vunpack.c.l.b16 %v5486
      %v5963 = vunpack.c.l.b16 %v5487
      %v5964 = vunpack.c.l.b16 %v5488
      %v5965 = vunpack.c.l.b16 %v5489
      %v5966 = vunpack.c.l.b16 %v5490
      %v5967 = vunpack.c.l.b16 %v5491
      %v5968 = vunpack.c.l.b16 %v5492
      %v5969 = vunpack.c.l.b16 %v5493
      %v5970 = vunpack.c.l.b16 %v5494
      %v5971 = vunpack.c.l.b16 %v5495
      %v5972 = vunpack.c.l.b16 %v5496
      %v5973 = vunpack.c.l.b16 %v5497
      %v5974 = vunpack.c.l.b16 %v5498
      %v5975 = vunpack.c.l.b16 %v5499
      %v5976 = vunpack.c.l.b16 %v5500
      %v5977 = vunpack.c.l.b16 %v5501
      %v5978 = vunpack.c.l.b16 %v5502
      %v5979 = vunpack.c.l.b16 %v5503
      %v5980 = vunpack.c.l.b16 %v5504
      %v5981 = vunpack.c.l.b16 %v5505
      %v5982 = vunpack.c.l.b16 %v5506
      %v5983 = vunpack.c.l.b16 %v5507
      %v5984 = vunpack.c.l.b16 %v5508
      %v5985 = vunpack.c.l.b16 %v5509
      %v5986 = vunpack.c.l.b16 %v5510
      %v5987 = vunpack.c.l.b16 %v5511
      %v5988 = vunpack.c.l.b16 %v5512
      %v5989 = vunpack.c.l.b16 %v5513
      %v5990 = vunpack.c.l.b16 %v5514
      %v5991 = vunpack.c.l.b16 %v5515
      %v5992 = vunpack.c.l.b16 %v5516
      %v5993 = vunpack.c.l.b16 %v5517
      %v5994 = vunpack.c.l.b16 %v5518
      %v5995 = vunpack.c.l.b16 %v5519
      %v5996 = vunpack.c.l.b16 %v5520
      %v5997 = vunpack.c.l.b16 %v5521
      %v5998 = vunpack.c.l.b16 %v5522
      %v5999 = vunpack.c.l.b16 %v5523
      %v6000 = vunpack.c.l.b16 %v5524
      %v6001 = vunpack.c.l.b16 %v5525
      %v6002 = vunpack.c.l.b16 %v5526
      %v6003 = vunpack.c.l.b16 %v5527
      %v6004 = vunpack.c.l.b16 %v5528
      %v6005 = vunpack.c.l.b16 %v5529
      %v6006 = vunpack.c.l.b16 %v5530
      %v6007 = vunpack.c.l.b16 %v5531
      %v6008 = vunpack.c.l.b16 %v5532
      %v6009 = vunpack.c.l.b16 %v5533
      %v6010 = vunpack.c.l.b16 %v5534
      %v6011 = vunpack.c.l.b16 %v5535
      %v6012 = vunpack.c.l.b16 %v5536
      %v6013 = vunpack.c.l.b16 %v5537
      %v6014 = vunpack.c.l.b16 %v5538
      %v6015 = vunpack.c.l.b16 %v5539
      %v6016 = vunpack.c.l.b16 %v5540
      %v6017 = vunpack.c.l.b16 %v5541
      %v6018 = vunpack.c.l.b16 %v5542
      %v6019 = vunpack.c.l.b16 %v5543
      %v6020 = vunpack.c.l.b16 %v5544
      %v6021 = vunpack.c.l.b16 %v5545
      %v6022 = vunpack.c.l.b16 %v5546
      %v6023 = vunpack.c.l.b16 %v5547
      %v6024 = vunpack.c.l.b16 %v5548
      %v6025 = vunpack.c.l.b16 %v5549
      %v6026 = vunpack.c.l.b16 %v5550
      %v6027 = vunpack.c.l.b16 %v5551
      %v6028 = vunpack.c.l.b16 %v5552
      %v6029 = vunpack.c.l.b16 %v5553
      %v6030 = vunpack.c.l.b16 %v5554
      %v6031 = vunpack.c.l.b16 %v5555
      %v6032 = vunpack.c.l.b16 %v5556
      %v6033 = vunpack.c.l.b16 %v5557
      %v6034 = vunpack.c.l.b16 %v5558
      %v6035 = vunpack.c.l.b16 %v5559
      %v6036 = vunpack.c.l.b16 %v5560
      %v6037 = vunpack.c.l.b16 %v5561
      %v6038 = vunpack.c.l.b16 %v5562
      %v6039 = vunpack.c.l.b16 %v5563
      %v6040 = vunpack.c.l.b16 %v5564
      %v6041 = vunpack.c.l.b16 %v5565
      %v6042 = vunpack.c.l.b16 %v5566
      %v6043 = vunpack.c.l.b16 %v5567
      %v6044 = vunpack.c.l.b16 %v5568
      %v6045 = vpack.c.b16 %v5902, %v5901
      %v6046 = vpack.c.b16 %v5904, %v5903
      %v6047 = vpack.c.b16 %v5906, %v5905
      %v6048 = vpack.c.b16 %v5908, %v5907
      %v6049 = vpack.c.b16 %v5910, %v5909
      %v6050 = vpack.c.b16 %v5912, %v5911
      %v6051 = vpack.c.b16 %v5914, %v5913
      %v6052 = vpack.c.b16 %v5916, %v5915
      %v6053 = vpack.c.b16 %v5918, %v5917
      %v6054 = vpack.c.b16 %v5920, %v5919
      %v6055 = vpack.c.b16 %v5922, %v5921
      %v6056 = vpack.c.b16 %v5924, %v5923
      %v6057 = vpack.c.b16 %v5926, %v5925
      %v6058 = vpack.c.b16 %v5928, %v5927
      %v6059 = vpack.c.b16 %v5930, %v5929
      %v6060 = vpack.c.b16 %v5932, %v5931
      %v6061 = vpack.c.b16 %v5934, %v5933
      %v6062 = vpack.c.b16 %v5936, %v5935
      %v6063 = vpack.c.b16 %v5938, %v5937
      %v6064 = vpack.c.b16 %v5940, %v5939
      %v6065 = vpack.c.b16 %v5942, %v5941
      %v6066 = vpack.c.b16 %v5944, %v5943
      %v6067 = vpack.c.b16 %v5946, %v5945
      %v6068 = vpack.c.b16 %v5948, %v5947
      %v6069 = vpack.c.b16 %v5950, %v5949
      %v6070 = vpack.c.b16 %v5952, %v5951
      %v6071 = vpack.c.b16 %v5954, %v5953
      %v6072 = vpack.c.b16 %v5956, %v5955
      %v6073 = vpack.c.b16 %v5958, %v5957
      %v6074 = vpack.c.b16 %v5960, %v5959
      %v6075 = vpack.c.b16 %v5962, %v5961
      %v6076 = vpack.c.b16 %v5964, %v5963
      %v6077 = vpack.c.b16 %v5966, %v5965
      %v6078 = vpack.c.b16 %v5968, %v5967
      %v6079 = vpack.c.b16 %v5970, %v5969
      %v6080 = vpack.c.b16 %v5972, %v5971
      %v6081 = vpack.c.b16 %v5974, %v5973
      %v6082 = vpack.c.b16 %v5976, %v5975
      %v6083 = vpack.c.b16 %v5978, %v5977
      %v6084 = vpack.c.b16 %v5980, %v5979
      %v6085 = vpack.c.b16 %v5982, %v5981
      %v6086 = vpack.c.b16 %v5984, %v5983
      %v6087 = vpack.c.b16 %v5986, %v5985
      %v6088 = vpack.c.b16 %v5988, %v5987
      %v6089 = vpack.c.b16 %v5990, %v5989
      %v6090 = vpack.c.b16 %v5992, %v5991
      %v6091 = vpack.c.b16 %v5994, %v5993
      %v6092 = vpack.c.b16 %v5996, %v5995
      %v6093 = vpack.c.b16 %v5998, %v5997
      %v6094 = vpack.c.b16 %v6000, %v5999
      %v6095 = vpack.c.b16 %v6002, %v6001
      %v6096 = vpack.c.b16 %v6004, %v6003
      %v6097 = vpack.c.b16 %v6006, %v6005
      %v6098 = vpack.c.b16 %v6008, %v6007
      %v6099 = vpack.c.b16 %v6010, %v6009
      %v6100 = vpack.c.b16 %v6012, %v6011
      %v6101 = vpack.c.b16 %v6014, %v6013
      %v6102 = vpack.c.b16 %v6016, %v6015
      %v6103 = vpack.c.b16 %v6018, %v6017
      %v6104 = vpack.c.b16 %v6020, %v6019
      %v6105 = vpack.c.b16 %v6022, %v6021
      %v6106 = vpack.c.b16 %v6024, %v6023
      %v6107 = vpack.c.b16 %v6026, %v6025
      %v6108 = vpack.c.b16 %v6028, %v6027
      %v6109 = vpack.c.b16 %v6030, %v6029
      %v6110 = vpack.c.b16 %v6032, %v6031
      %v6111 = vpack.c.b16 %v6034, %v6033
      %v6112 = vpack.c.b16 %v6036, %v6035
      %v6113 = vpack.c.b16 %v6038, %v6037
      %v6114 = vpack.c.b16 %v6040, %v6039
      %v6115 = vpack.c.b16 %v6042, %v6041
      %v6116 = vpack.c.b16 %v6044, %v6043
      %6189 = vmatpush.bf16.msra.mxu0 %v6052
      %6190 = vmatpush.bf16.msra.mxu0 %v6051
      %6191 = vmatpush.bf16.msra.mxu0 %v6050
      %6192 = vmatpush.bf16.msra.mxu0 %v6049
      %6193 = vmatpush.bf16.msra.mxu0 %v6048
      %6194 = vmatpush.bf16.msra.mxu0 %v6047
      %6195 = vmatpush.bf16.msra.mxu0 %v6046
      %6196 = vmatpush.bf16.msra.mxu0 %v6045
      %6197 = vmatmul.bf16.gmra.mxu0 %v5685
      %v6198 = vpop.f32.mrf.mxu0
      %v6199 = vadd.f32 %v5571, %v6198
      %v6200 = vpop.f32.mrf.mxu0
      %v6201 = vadd.f32 %v5571, %v6200
      %6202 = vmatmul.bf16.gmra.mxu0 %v5694
      %v6203 = vpop.f32.mrf.mxu0
      %v6204 = vadd.f32 %v5571, %v6203
      %v6205 = vpop.f32.mrf.mxu0
      %v6206 = vadd.f32 %v5571, %v6205
      %6207 = vmatmul.bf16.gmra.mxu0 %v5703
      %v6208 = vpop.f32.mrf.mxu0
      %v6209 = vadd.f32 %v5571, %v6208
      %v6210 = vpop.f32.mrf.mxu0
      %v6211 = vadd.f32 %v5571, %v6210
      %6212 = vmatmul.bf16.gmra.mxu0 %v5712
      %v6213 = vpop.f32.mrf.mxu0
      %v6214 = vadd.f32 %v5571, %v6213
      %v6215 = vpop.f32.mrf.mxu0
      %v6216 = vadd.f32 %v5571, %v6215
      %6217 = vdwg.mxu0
      %6218 = vmatpush.bf16.msra.mxu0 %v6060
      %6219 = vmatpush.bf16.msra.mxu0 %v6059
      %6220 = vmatpush.bf16.msra.mxu0 %v6058
      %6221 = vmatpush.bf16.msra.mxu0 %v6057
      %6222 = vmatpush.bf16.msra.mxu0 %v6056
      %6223 = vmatpush.bf16.msra.mxu0 %v6055
      %6224 = vmatpush.bf16.msra.mxu0 %v6054
      %6225 = vmatpush.bf16.msra.mxu0 %v6053
      %6226 = vmatmul.bf16.gmra.mxu0 %v5686
      %v6227 = vpop.f32.mrf.mxu0
      %v6228 = vadd.f32 %v6199, %v6227
      %v6229 = vpop.f32.mrf.mxu0
      %v6230 = vadd.f32 %v6201, %v6229
      %6231 = vmatmul.bf16.gmra.mxu0 %v5695
      %v6232 = vpop.f32.mrf.mxu0
      %v6233 = vadd.f32 %v6204, %v6232
      %v6234 = vpop.f32.mrf.mxu0
      %v6235 = vadd.f32 %v6206, %v6234
      %6236 = vmatmul.bf16.gmra.mxu0 %v5704
      %v6237 = vpop.f32.mrf.mxu0
      %v6238 = vadd.f32 %v6209, %v6237
      %v6239 = vpop.f32.mrf.mxu0
      %v6240 = vadd.f32 %v6211, %v6239
      %6241 = vmatmul.bf16.gmra.mxu0 %v5713
      %v6242 = vpop.f32.mrf.mxu0
      %v6243 = vadd.f32 %v6214, %v6242
      %v6244 = vpop.f32.mrf.mxu0
      %v6245 = vadd.f32 %v6216, %v6244
      %6246 = vdwg.mxu0
      %6247 = vmatpush.bf16.msra.mxu0 %v6068
      %6248 = vmatpush.bf16.msra.mxu0 %v6067
      %6249 = vmatpush.bf16.msra.mxu0 %v6066
      %6250 = vmatpush.bf16.msra.mxu0 %v6065
      %6251 = vmatpush.bf16.msra.mxu0 %v6064
      %6252 = vmatpush.bf16.msra.mxu0 %v6063
      %6253 = vmatpush.bf16.msra.mxu0 %v6062
      %6254 = vmatpush.bf16.msra.mxu0 %v6061
      %6255 = vmatmul.bf16.gmra.mxu0 %v5687
      %v6256 = vpop.f32.mrf.mxu0
      %v6257 = vadd.f32 %v6228, %v6256
      %v6258 = vpop.f32.mrf.mxu0
      %v6259 = vadd.f32 %v6230, %v6258
      %6260 = vmatmul.bf16.gmra.mxu0 %v5696
      %v6261 = vpop.f32.mrf.mxu0
      %v6262 = vadd.f32 %v6233, %v6261
      %v6263 = vpop.f32.mrf.mxu0
      %v6264 = vadd.f32 %v6235, %v6263
      %6265 = vmatmul.bf16.gmra.mxu0 %v5705
      %v6266 = vpop.f32.mrf.mxu0
      %v6267 = vadd.f32 %v6238, %v6266
      %v6268 = vpop.f32.mrf.mxu0
      %v6269 = vadd.f32 %v6240, %v6268
      %6270 = vmatmul.bf16.gmra.mxu0 %v5714
      %v6271 = vpop.f32.mrf.mxu0
      %v6272 = vadd.f32 %v6243, %v6271
      %v6273 = vpop.f32.mrf.mxu0
      %v6274 = vadd.f32 %v6245, %v6273
      %6275 = vdwg.mxu0
      %6276 = vmatpush.bf16.msra.mxu0 %v6076
      %6277 = vmatpush.bf16.msra.mxu0 %v6075
      %6278 = vmatpush.bf16.msra.mxu0 %v6074
      %6279 = vmatpush.bf16.msra.mxu0 %v6073
      %6280 = vmatpush.bf16.msra.mxu0 %v6072
      %6281 = vmatpush.bf16.msra.mxu0 %v6071
      %6282 = vmatpush.bf16.msra.mxu0 %v6070
      %6283 = vmatpush.bf16.msra.mxu0 %v6069
      %6284 = vmatmul.bf16.gmra.mxu0 %v5688
      %v6285 = vpop.f32.mrf.mxu0
      %v6286 = vadd.f32 %v6257, %v6285
      %v6287 = vpop.f32.mrf.mxu0
      %v6288 = vadd.f32 %v6259, %v6287
      %6289 = vmatmul.bf16.gmra.mxu0 %v5697
      %v6290 = vpop.f32.mrf.mxu0
      %v6291 = vadd.f32 %v6262, %v6290
      %v6292 = vpop.f32.mrf.mxu0
      %v6293 = vadd.f32 %v6264, %v6292
      %6294 = vmatmul.bf16.gmra.mxu0 %v5706
      %v6295 = vpop.f32.mrf.mxu0
      %v6296 = vadd.f32 %v6267, %v6295
      %v6297 = vpop.f32.mrf.mxu0
      %v6298 = vadd.f32 %v6269, %v6297
      %6299 = vmatmul.bf16.gmra.mxu0 %v5715
      %v6300 = vpop.f32.mrf.mxu0
      %v6301 = vadd.f32 %v6272, %v6300
      %v6302 = vpop.f32.mrf.mxu0
      %v6303 = vadd.f32 %v6274, %v6302
      %6304 = vdwg.mxu0
      %6305 = vmatpush.bf16.msra.mxu0 %v6084
      %6306 = vmatpush.bf16.msra.mxu0 %v6083
      %6307 = vmatpush.bf16.msra.mxu0 %v6082
      %6308 = vmatpush.bf16.msra.mxu0 %v6081
      %6309 = vmatpush.bf16.msra.mxu0 %v6080
      %6310 = vmatpush.bf16.msra.mxu0 %v6079
      %6311 = vmatpush.bf16.msra.mxu0 %v6078
      %6312 = vmatpush.bf16.msra.mxu0 %v6077
      %6313 = vmatmul.bf16.gmra.mxu0 %v5689
      %v6314 = vpop.f32.mrf.mxu0
      %v6315 = vadd.f32 %v6286, %v6314
      %v6316 = vpop.f32.mrf.mxu0
      %v6317 = vadd.f32 %v6288, %v6316
      %6318 = vmatmul.bf16.gmra.mxu0 %v5698
      %v6319 = vpop.f32.mrf.mxu0
      %v6320 = vadd.f32 %v6291, %v6319
      %v6321 = vpop.f32.mrf.mxu0
      %v6322 = vadd.f32 %v6293, %v6321
      %6323 = vmatmul.bf16.gmra.mxu0 %v5707
      %v6324 = vpop.f32.mrf.mxu0
      %v6325 = vadd.f32 %v6296, %v6324
      %v6326 = vpop.f32.mrf.mxu0
      %v6327 = vadd.f32 %v6298, %v6326
      %6328 = vmatmul.bf16.gmra.mxu0 %v5716
      %v6329 = vpop.f32.mrf.mxu0
      %v6330 = vadd.f32 %v6301, %v6329
      %v6331 = vpop.f32.mrf.mxu0
      %v6332 = vadd.f32 %v6303, %v6331
      %6333 = vdwg.mxu0
      %6334 = vmatpush.bf16.msra.mxu0 %v6092
      %6335 = vmatpush.bf16.msra.mxu0 %v6091
      %6336 = vmatpush.bf16.msra.mxu0 %v6090
      %6337 = vmatpush.bf16.msra.mxu0 %v6089
      %6338 = vmatpush.bf16.msra.mxu0 %v6088
      %6339 = vmatpush.bf16.msra.mxu0 %v6087
      %6340 = vmatpush.bf16.msra.mxu0 %v6086
      %6341 = vmatpush.bf16.msra.mxu0 %v6085
      %6342 = vmatmul.bf16.gmra.mxu0 %v5690
      %v6343 = vpop.f32.mrf.mxu0
      %v6344 = vadd.f32 %v6315, %v6343
      %v6345 = vpop.f32.mrf.mxu0
      %v6346 = vadd.f32 %v6317, %v6345
      %6347 = vmatmul.bf16.gmra.mxu0 %v5699
      %v6348 = vpop.f32.mrf.mxu0
      %v6349 = vadd.f32 %v6320, %v6348
      %v6350 = vpop.f32.mrf.mxu0
      %v6351 = vadd.f32 %v6322, %v6350
      %6352 = vmatmul.bf16.gmra.mxu0 %v5708
      %v6353 = vpop.f32.mrf.mxu0
      %v6354 = vadd.f32 %v6325, %v6353
      %v6355 = vpop.f32.mrf.mxu0
      %v6356 = vadd.f32 %v6327, %v6355
      %6357 = vmatmul.bf16.gmra.mxu0 %v5717
      %v6358 = vpop.f32.mrf.mxu0
      %v6359 = vadd.f32 %v6330, %v6358
      %v6360 = vpop.f32.mrf.mxu0
      %v6361 = vadd.f32 %v6332, %v6360
      %6362 = vdwg.mxu0
      %6363 = vmatpush.bf16.msra.mxu0 %v6100
      %6364 = vmatpush.bf16.msra.mxu0 %v6099
      %6365 = vmatpush.bf16.msra.mxu0 %v6098
      %6366 = vmatpush.bf16.msra.mxu0 %v6097
      %6367 = vmatpush.bf16.msra.mxu0 %v6096
      %6368 = vmatpush.bf16.msra.mxu0 %v6095
      %6369 = vmatpush.bf16.msra.mxu0 %v6094
      %6370 = vmatpush.bf16.msra.mxu0 %v6093
      %6371 = vmatmul.bf16.gmra.mxu0 %v5691
      %v6372 = vpop.f32.mrf.mxu0
      %v6373 = vadd.f32 %v6344, %v6372
      %v6374 = vpop.f32.mrf.mxu0
      %v6375 = vadd.f32 %v6346, %v6374
      %6376 = vmatmul.bf16.gmra.mxu0 %v5700
      %v6377 = vpop.f32.mrf.mxu0
      %v6378 = vadd.f32 %v6349, %v6377
      %v6379 = vpop.f32.mrf.mxu0
      %v6380 = vadd.f32 %v6351, %v6379
      %6381 = vmatmul.bf16.gmra.mxu0 %v5709
      %v6382 = vpop.f32.mrf.mxu0
      %v6383 = vadd.f32 %v6354, %v6382
      %v6384 = vpop.f32.mrf.mxu0
      %v6385 = vadd.f32 %v6356, %v6384
      %6386 = vmatmul.bf16.gmra.mxu0 %v5718
      %v6387 = vpop.f32.mrf.mxu0
      %v6388 = vadd.f32 %v6359, %v6387
      %v6389 = vpop.f32.mrf.mxu0
      %v6390 = vadd.f32 %v6361, %v6389
      %6391 = vdwg.mxu0
      %6392 = vmatpush.bf16.msra.mxu0 %v6108
      %6393 = vmatpush.bf16.msra.mxu0 %v6107
      %6394 = vmatpush.bf16.msra.mxu0 %v6106
      %6395 = vmatpush.bf16.msra.mxu0 %v6105
      %6396 = vmatpush.bf16.msra.mxu0 %v6104
      %6397 = vmatpush.bf16.msra.mxu0 %v6103
      %6398 = vmatpush.bf16.msra.mxu0 %v6102
      %6399 = vmatpush.bf16.msra.mxu0 %v6101
      %6400 = vmatmul.bf16.gmra.mxu0 %v5692
      %v6401 = vpop.f32.mrf.mxu0
      %v6402 = vadd.f32 %v6373, %v6401
      %v6403 = vpop.f32.mrf.mxu0
      %v6404 = vadd.f32 %v6375, %v6403
      %6405 = vmatmul.bf16.gmra.mxu0 %v5701
      %v6406 = vpop.f32.mrf.mxu0
      %v6407 = vadd.f32 %v6378, %v6406
      %v6408 = vpop.f32.mrf.mxu0
      %v6409 = vadd.f32 %v6380, %v6408
      %6410 = vmatmul.bf16.gmra.mxu0 %v5710
      %v6411 = vpop.f32.mrf.mxu0
      %v6412 = vadd.f32 %v6383, %v6411
      %v6413 = vpop.f32.mrf.mxu0
      %v6414 = vadd.f32 %v6385, %v6413
      %6415 = vmatmul.bf16.gmra.mxu0 %v5719
      %v6416 = vpop.f32.mrf.mxu0
      %v6417 = vadd.f32 %v6388, %v6416
      %v6418 = vpop.f32.mrf.mxu0
      %v6419 = vadd.f32 %v6390, %v6418
      %6420 = vdwg.mxu0
      %6421 = vmatpush.bf16.msra.mxu0 %v6116
      %6422 = vmatpush.bf16.msra.mxu0 %v6115
      %6423 = vmatpush.bf16.msra.mxu0 %v6114
      %6424 = vmatpush.bf16.msra.mxu0 %v6113
      %6425 = vmatpush.bf16.msra.mxu0 %v6112
      %6426 = vmatpush.bf16.msra.mxu0 %v6111
      %6427 = vmatpush.bf16.msra.mxu0 %v6110
      %6428 = vmatpush.bf16.msra.mxu0 %v6109
      %6429 = vmatmul.bf16.gmra.mxu0 %v5693
      %v6430 = vpop.f32.mrf.mxu0
      %v6431 = vadd.f32 %v6402, %v6430
      %v6432 = vpop.f32.mrf.mxu0
      %v6433 = vadd.f32 %v6404, %v6432
      %6434 = vmatmul.bf16.gmra.mxu0 %v5702
      %v6435 = vpop.f32.mrf.mxu0
      %v6436 = vadd.f32 %v6407, %v6435
      %v6437 = vpop.f32.mrf.mxu0
      %v6438 = vadd.f32 %v6409, %v6437
      %6439 = vmatmul.bf16.gmra.mxu0 %v5711
      %v6440 = vpop.f32.mrf.mxu0
      %v6441 = vadd.f32 %v6412, %v6440
      %v6442 = vpop.f32.mrf.mxu0
      %v6443 = vadd.f32 %v6414, %v6442
      %6444 = vmatmul.bf16.gmra.mxu0 %v5720
      %v6445 = vpop.f32.mrf.mxu0
      %v6446 = vadd.f32 %v6417, %v6445
      %v6447 = vpop.f32.mrf.mxu0
      %v6448 = vadd.f32 %v6419, %v6447
      %6449 = vdwg.mxu0
      %v6450 = vmul.f32 %v6431, 0.1
      %v6451 = vmul.f32 %v6433, 0.1
      %v6452 = vmul.f32 %v6436, 0.1
      %v6453 = vmul.f32 %v6438, 0.1
      %v6454 = vmul.f32 %v6441, 0.1
      %v6455 = vmul.f32 %v6443, 0.1
      %v6456 = vmul.f32 %v6446, 0.1
      %v6457 = vmul.f32 %v6448, 0.1
      %v6458 = vmax.f32 %v6431, %v6450
      %v6459 = vmax.f32 %v6433, %v6451
      %v6460 = vmax.f32 %v6436, %v6452
      %v6461 = vmax.f32 %v6438, %v6453
      %v6462 = vmax.f32 %v6441, %v6454
      %v6463 = vmax.f32 %v6443, %v6455
      %v6464 = vmax.f32 %v6446, %v6456
      %v6465 = vmax.f32 %v6448, %v6457
      %v6466 = vmax.f32 %v6458, %v6459
      %v6467 = vmax.f32 %v6460, %v6461
      %v6468 = vmax.f32 %v6462, %v6463
      %v6469 = vmax.f32 %v6464, %v6465
      %6470 = vst [vmem:[#allocation6] sm:$0xff] %v6466
      %6471 = vst [vmem:[#allocation6 + $0x8] sm:$0xff] %v6467
      %6472 = vst [vmem:[#allocation6 + $0x10] sm:$0xff] %v6468
      %6473 = vst [vmem:[#allocation6 + $0x18] sm:$0xff] %v6469
      %v6474 = vld [vmem:[#allocation6] ss:$2 sm:$0xff]
      %v6475 = vld [vmem:[%s5129] ss:$2 sm:$0xff]
      %v6476 = vld [vmem:[%s1761] ss:$2 sm:$0xff]
      %v6477 = vld [vmem:[%s1763] ss:$2 sm:$0xff]
      %v6478 = vmax.f32 %v6474, %v6476
      %v6479 = vmax.f32 %v6475, %v6477
      %v6480 = vpack.c.bf16 %v6479, %v6478
      %v6481 = vld [vmem:[%s7] sm:$0xf]
      %v6482 = vld [vmem:[%s7 + $0x4] sm:$0xf]
      %v6483 = vld [vmem:[%s7 + $0x8] sm:$0xf]
      %v6484 = vld [vmem:[%s7 + $0xc] sm:$0xf]
      %v6485 = vld [vmem:[%s7 + $0x10] sm:$0xf]
      %v6486 = vld [vmem:[%s7 + $0x14] sm:$0xf]
      %v6487 = vld [vmem:[%s7 + $0x18] sm:$0xf]
      %v6488 = vld [vmem:[%s7 + $0x1c] sm:$0xf]
      %v6489 = vld [vmem:[%s7 + $0x20] sm:$0xf]
      %v6490 = vld [vmem:[%s7 + $0x24] sm:$0xf]
      %v6491 = vld [vmem:[%s7 + $0x28] sm:$0xf]
      %v6492 = vld [vmem:[%s7 + $0x2c] sm:$0xf]
      %v6493 = vld [vmem:[%s7 + $0x30] sm:$0xf]
      %v6494 = vld [vmem:[%s7 + $0x34] sm:$0xf]
      %v6495 = vld [vmem:[%s7 + $0x38] sm:$0xf]
      %v6496 = vld [vmem:[%s7 + $0x3c] sm:$0xf]
      %v6497 = vld [vmem:[%s8] sm:$0x1]
      %v6499 = vperm.slane %v6497, 0
      %v6517 = vunpack.c.l.b16 %v6481
      %v6518 = vunpack.c.l.b16 %v6482
      %v6519 = vunpack.c.l.b16 %v6483
      %v6520 = vunpack.c.l.b16 %v6484
      %v6521 = vunpack.c.l.b16 %v6485
      %v6522 = vunpack.c.l.b16 %v6486
      %v6523 = vunpack.c.l.b16 %v6487
      %v6524 = vunpack.c.l.b16 %v6488
      %v6525 = vunpack.c.l.b16 %v6489
      %v6526 = vunpack.c.l.b16 %v6490
      %v6527 = vunpack.c.l.b16 %v6491
      %v6528 = vunpack.c.l.b16 %v6492
      %v6529 = vunpack.c.l.b16 %v6493
      %v6530 = vunpack.c.l.b16 %v6494
      %v6531 = vunpack.c.l.b16 %v6495
      %v6532 = vunpack.c.l.b16 %v6496
      %v6533 = vpack.c.b16 %v6518, %v6517
      %v6534 = vpack.c.b16 %v6520, %v6519
      %v6535 = vpack.c.b16 %v6522, %v6521
      %v6536 = vpack.c.b16 %v6524, %v6523
      %v6537 = vpack.c.b16 %v6526, %v6525
      %v6538 = vpack.c.b16 %v6528, %v6527
      %v6539 = vpack.c.b16 %v6530, %v6529
      %v6540 = vpack.c.b16 %v6532, %v6531
      %6549 = vmatpush.bf16.msra.mxu0 %v6540
      %6550 = vmatpush.bf16.msra.mxu0 %v6539
      %6551 = vmatpush.bf16.msra.mxu0 %v6538
      %6552 = vmatpush.bf16.msra.mxu0 %v6537
      %6553 = vmatpush.bf16.msra.mxu0 %v6536
      %6554 = vmatpush.bf16.msra.mxu0 %v6535
      %6555 = vmatpush.bf16.msra.mxu0 %v6534
      %6556 = vmatpush.bf16.msra.mxu0 %v6533
      %6557 = vmatmul.bf16.gmra.mxu0 %v6480
      %v6558 = vpop.f32.mrf.mxu0
      %v6559 = vadd.f32 %v6499, %v6558
      %v6560 = vpop.f32.mrf.mxu0
      %v6561 = vadd.f32 %v6499, %v6560
      %6562 = vdwg.mxu0
      %v6563 = vxor.u32 %v6559, 2147483648
      %v6564 = vxor.u32 %v6561, 2147483648
      %v6565 = vmul.f32 %v6563, 1.442695
      %v6566 = vpow.pop %v6565
      %v6567 = vmul.f32 %v6564, 1.442695
      %v6568 = vpow.pop %v6567
      %v6569 = vadd.f32 %v6566, 1.0
      %v6570 = vadd.f32 %v6568, 1.0
      %v6571 = vrcp.pop %v6569
      %v6572 = vmul.f32 %v6569, %v6571
      %v6573 = vsub.f32 1.0, %v6572
      %v6574 = vmul.f32 %v6571, %v6573
      %v6575 = vadd.f32 %v6571, %v6574
      %vm6576 = vweird.f32 %v6569
      %vm6577 = vweird.f32 %v6571
      %vm6578 = vmor %vm6576, %vm6577
      %v6579 = vsel %vm6578, %v6571, %v6575
      %v6580 = vand.u32 2147483647, %v6569
      %vm6581 = vcmp.eq.f32.partialorder %v6580, 8.507059e+37
      %v6582 = vand.u32 %v6569, 2147483648
      %v6583 = vor.u32 1.1754944e-38, %v6582
      %v6584 = vsel %vm6581, %v6583, %v6579
      %v6585 = vmul.f32 1.0, %v6584
      %v6586 = vrcp.pop %v6570
      %v6587 = vmul.f32 %v6570, %v6586
      %v6588 = vsub.f32 1.0, %v6587
      %v6589 = vmul.f32 %v6586, %v6588
      %v6590 = vadd.f32 %v6586, %v6589
      %vm6591 = vweird.f32 %v6570
      %vm6592 = vweird.f32 %v6586
      %vm6593 = vmor %vm6591, %vm6592
      %v6594 = vsel %vm6593, %v6586, %v6590
      %v6595 = vand.u32 2147483647, %v6570
      %vm6596 = vcmp.eq.f32.partialorder %v6595, 8.507059e+37
      %v6597 = vand.u32 %v6570, 2147483648
      %v6598 = vor.u32 1.1754944e-38, %v6597
      %v6599 = vsel %vm6596, %v6598, %v6594
      %v6600 = vmul.f32 1.0, %v6599
      %6601 = vst [vmem:[%s332] sm:$0xff] %v6585
      %6602 = vst [vmem:[%s332 + $0x8] sm:$0xff] %v6600
      %p6603 = scmp.lt.s32.totalorder %s20, 1
      %s6604 = scalar_select %p6603, %s20, 1
      %s6605 = smul.addr %s6604, 2
      %s6606 = smul.addr %s6605, 8
      %s6607 = scalar_lea.vmem %s9, %s6606
      // Predicated region
      $region57: #{yolo_lite_trainer_forward.1} parent=55 // pred_check
        %p6608 = pneg %p232
      $region58: #{yolo_lite_trainer_forward.1} parent=55 // pred_check_branch
        %6610 = sbr.rel (%p6608) target = $region60
      $region59: #{yolo_lite_trainer_forward.1} parent=55 // pred_region
        _
      $region60: #{yolo_lite_trainer_forward.1} parent=55 // pred_fallthru
        _
    $region56: #{yolo_lite_trainer_forward.1} parent=5 // pred_fallthru
      _
    %p6611 = scmp.le.s32.totalorder 2, %s15
    // Predicated region
    $region61: #{yolo_lite_trainer_forward.1} parent=5 // pred_check
      %p6612 = pneg %p6611
    $region62: #{yolo_lite_trainer_forward.1} parent=5 // pred_check_branch
      %6614 = sbr.rel (%p6612) target = $region64
    $region63: #{yolo_lite_trainer_forward.1} parent=5 // pred_region
      %s6615 = ssub.s32 %s15, 2
      // Predicated region
      $region65: #{yolo_lite_trainer_forward.1} parent=63 // pred_check
        %p6616 = pneg %p238
      $region66: #{yolo_lite_trainer_forward.1} parent=63 // pred_check_branch
        %6618 = sbr.rel (%p6616) target = $region68
      $region67: #{yolo_lite_trainer_forward.1} parent=63 // pred_region
        %p6619 = scmp.lt.s32.totalorder %s21, 1
        %s6620 = scalar_select %p6619, %s21, 1
        %s6621 = smul.addr %s6620, 2
        %s6622 = smul.addr %s6621, 8
        %s6623 = scalar_lea.vmem %s9, %s6622
      $region68: #{yolo_lite_trainer_forward.1} parent=63 // pred_fallthru
        _
    $region64: #{yolo_lite_trainer_forward.1} parent=5 // pred_fallthru
      _
  $region6: #{yolo_lite_trainer_forward.1} parent=0 // loop_footer
    %s19 = sadd.s32 1, %s15
  $region7: #{yolo_lite_trainer_forward.1} parent=0 // loop_footer_branch
    %14 = sbr.rel target = $region3
  $region8: #{yolo_lite_trainer_forward.1} parent=0 // loop_exit
    _

</llo_original>
